<compile_context>
chip_gen: v7x
topology: tpu7x:2x2x1
jax: 0.10.0
libtpu: 0.0.40
codegen_flags: <defaults>
</compile_context>

<pallas_src>
import math
import numpy as np
import jax
import jax.numpy as jnp
from jax import lax
from jax.experimental import pallas as pl
from jax.experimental.pallas import tpu as pltpu

# ----------------------------- model hyper-params -----------------------------
D_MODEL = 32
N_HEADS = 4
D_K = D_MODEL // N_HEADS
D_FF = 64
N_LAYERS = 2
LN_EPS = 1e-6
NEG_INF = -1e9
LANE = 128
ATTN_SCALE = 1.0 / math.sqrt(D_K)


# --------------------- static layout of the two packed slabs -------------------
def _build_layout():
    """Row/col offsets (static Python ints) of every parameter in the slabs."""
    state = {"m": 0, "v": 0}

    def mat(nr, nc):
        r = state["m"]
        state["m"] += ((nr + 7) // 8) * 8          # 8-row aligned blocks
        return (r, nr, nc)

    def vec(nc):
        r = state["v"]
        state["v"] += 1                            # one vector per slab row
        return (r, nc)

    def mha():
        return {"wqkv": mat(D_MODEL, 3 * D_MODEL), "wo": mat(D_MODEL, D_MODEL),
                "bqkv": vec(3 * D_MODEL), "bo": vec(D_MODEL)}

    def ffn():
        return {"w1": mat(D_MODEL, D_FF), "b1": vec(D_FF),
                "w2": mat(D_FF, D_MODEL), "b2": vec(D_MODEL)}

    def ln():
        return {"g": vec(D_MODEL), "b": vec(D_MODEL)}

    enc_layers = [{"self_attn": mha(), "ln1": ln(), "ffn": ffn(), "ln2": ln()}
                  for _ in range(N_LAYERS)]
    dec_layers = [{"self_attn": mha(), "ln1": ln(), "cross_attn": mha(),
                   "ln2": ln(), "ffn": ffn(), "ln3": ln()}
                  for _ in range(N_LAYERS)]
    return {
        "encoder": {"layers": enc_layers, "norm": ln()},
        "decoder": {"layers": dec_layers, "norm": ln()},
        "wrows": ((state["m"] + 7) // 8) * 8,
        "vrows": ((state["v"] + 7) // 8) * 8,
    }


LAYOUT = _build_layout()


# --------------------------- fused forward (1 kernel) --------------------------
def encoder_decoder_forward(wslab, vslab, source, target, source_mask, target_mask):
    """Reproduces EncoderDecoder.forward:
         memory = encoder(source, source_mask)
         x      = decoder(memory, target, source_mask, target_mask)
    """
    B, S, D = source.shape
    T = target.shape[1]
    assert D == D_MODEL
    L = LAYOUT

    def kernel(src_ref, tgt_ref, smask_ref, tmask_ref, w_ref, v_ref, out_ref):
        # ----------------- slab accessors (all offsets static) -----------------
        def mat(sl):
            r, nr, nc = sl
            return w_ref[r:r + nr, :nc]

        def vec(sl):
            r, nc = sl
            return v_ref[r:r + 1, :nc]

        def layer_norm(x, lnl):
            mu = jnp.mean(x, axis=-1, keepdims=True)
            var = jnp.mean((x - mu) ** 2, axis=-1, keepdims=True)
            return (x - mu) * lax.rsqrt(var + LN_EPS) * vec(lnl["g"]) + vec(lnl["b"])

        def ffn(x, fl):
            h = jnp.dot(x, mat(fl["w1"]), preferred_element_type=jnp.float32) + vec(fl["b1"])
            h = jnp.maximum(h, 0.0)                                     # ReLU
            return jnp.dot(h, mat(fl["w2"]), preferred_element_type=jnp.float32) + vec(fl["b2"])

        def to_heads(x, rows):
            # [B*rows, H*dk] -> head-major [H*B, rows, dk]  (h outer, b inner)
            xb = x.reshape(B, rows, D_MODEL)
            return jnp.concatenate(
                [xb[:, :, h * D_K:(h + 1) * D_K] for h in range(N_HEADS)], axis=0)

        def from_heads(o3, rows):
            # [H*B, rows, dk] -> [B*rows, H*dk]
            parts = [o3[h * B:(h + 1) * B] for h in range(N_HEADS)]     # each [B, rows, dk]
            return jnp.concatenate(parts, axis=-1).reshape(B * rows, D_MODEL)

        def mha(al, xq, xkv, bias, Sq, Skv, self_attn):
            rq, nrq, _ = al["wqkv"]
            rb, _ = al["bqkv"]
            if self_attn:
                qkv = (jnp.dot(xq, w_ref[rq:rq + nrq, :3 * D_MODEL],
                               preferred_element_type=jnp.float32)
                       + v_ref[rb:rb + 1, :3 * D_MODEL])
                q = qkv[:, :D_MODEL]
                k = qkv[:, D_MODEL:2 * D_MODEL]
                v = qkv[:, 2 * D_MODEL:3 * D_MODEL]
            else:
                q = (jnp.dot(xq, w_ref[rq:rq + nrq, :D_MODEL],
                             preferred_element_type=jnp.float32)
                     + v_ref[rb:rb + 1, :D_MODEL])
                kv = (jnp.dot(xkv, w_ref[rq:rq + nrq, D_MODEL:3 * D_MODEL],
                              preferred_element_type=jnp.float32)
                      + v_ref[rb:rb + 1, D_MODEL:3 * D_MODEL])
                k = kv[:, :D_MODEL]
                v = kv[:, D_MODEL:2 * D_MODEL]
            # NOTE: the 1/sqrt(d_k) scale is already folded into the packed
            # q-projection columns at init time.

            q3 = to_heads(q, Sq)          # [H*B, Sq,  dk]
            k3 = to_heads(k, Skv)         # [H*B, Skv, dk]
            v3 = to_heads(v, Skv)

            # (B,H)-batched scores + softmax + P@V
            s = jnp.einsum("bqd,bkd->bqk", q3, k3,
                           preferred_element_type=jnp.float32) + bias   # [H*B, Sq, Skv]
            s = s - jnp.max(s, axis=-1, keepdims=True)
            p = jnp.exp(s)
            p = p * pl.reciprocal(jnp.sum(p, axis=-1, keepdims=True), approx=True)
            o3 = jnp.einsum("bqk,bkd->bqd", p, v3,
                            preferred_element_type=jnp.float32)         # [H*B, Sq, dk]

            o = from_heads(o3, Sq)                                      # [B*Sq, D]
            return jnp.dot(o, mat(al["wo"]),
                           preferred_element_type=jnp.float32) + vec(al["bo"])

        # ------- masks -> additive bias, built ONCE, broadcast over heads -------
        src_bias = jnp.where(smask_ref[...] > 0.0, 0.0, NEG_INF).reshape(B, 1, S)
        src_bias = jnp.concatenate([src_bias] * N_HEADS, axis=0)        # [H*B, 1, S]
        tgt_bias = jnp.where(tmask_ref[...] > 0.0, 0.0, NEG_INF).reshape(B, T, T)
        tgt_bias = jnp.concatenate([tgt_bias] * N_HEADS, axis=0)        # [H*B, T, T]

        # -------- encoder: N pre-norm layers of [self-attn, FFN] + final LN -------
        # (static unroll; at N_LAYERS=2 a fori_loop over stacked weights is neutral)
        x = src_ref[...]                                                # [B*S, D]
        for lp in L["encoder"]["layers"]:
            y = layer_norm(x, lp["ln1"])
            x = x + mha(lp["self_attn"], y, y, src_bias, S, S, True)
            y = layer_norm(x, lp["ln2"])
            x = x + ffn(y, lp["ffn"])
        memory = layer_norm(x, L["encoder"]["norm"])

        # -- decoder: N pre-norm layers of [self-attn, cross-attn, FFN] + final LN --
        x = tgt_ref[...]                                                # [B*T, D]
        for lp in L["decoder"]["layers"]:
            y = layer_norm(x, lp["ln1"])
            x = x + mha(lp["self_attn"], y, y, tgt_bias, T, T, True)
            y = layer_norm(x, lp["ln2"])
            x = x + mha(lp["cross_attn"], y, memory, src_bias, T, S, False)
            y = layer_norm(x, lp["ln3"])
            x = x + ffn(y, lp["ffn"])
        x = layer_norm(x, L["decoder"]["norm"])

        out_ref[...] = x

    out2d = pl.pallas_call(
        kernel,
        out_shape=jax.ShapeDtypeStruct((B * T, D_MODEL), jnp.float32),
        in_specs=[pl.BlockSpec(memory_space=pltpu.MemorySpace.VMEM)] * 6,
        out_specs=pl.BlockSpec(memory_space=pltpu.MemorySpace.VMEM),
        # gridless / single-TensorCore: fully VMEM-resident (~400 KiB) on all
        # generations; megacore sharding only pays off at much larger row counts.
    )(
        source.reshape(B * S, D_MODEL),
        target.reshape(B * T, D_MODEL),
        source_mask.reshape(B, S).astype(jnp.float32),
        target_mask.reshape(B * T, T).astype(jnp.float32),
        wslab, vslab,
    )
    return out2d.reshape(B, T, D_MODEL)


# ------------------------------- parameter init --------------------------------
def init_params(key):
    """Generates the transformer weights and packs them into two lane-dense
    slabs (matrices: [wrows,128]; bias/LN vectors: [vrows,128])."""
    L = LAYOUT
    keys = iter(jax.random.split(key, 64))

    wslab = np.zeros((L["wrows"], LANE), np.float32)
    vslab = np.zeros((L["vrows"], LANE), np.float32)

    def rnd(din, dout):
        return np.asarray(jax.random.normal(next(keys), (din, dout), jnp.float32)) * 0.05

    def put_mat(sl, a):
        r, nr, nc = sl
        wslab[r:r + nr, :nc] = a

    def put_vec(sl, a):
        r, nc = sl
        vslab[r, :nc] = a

    def fill_mha(al):
        wq, wk, wv = rnd(D_MODEL, D_MODEL), rnd(D_MODEL, D_MODEL), rnd(D_MODEL, D_MODEL)
        # fold the softmax 1/sqrt(d_k) scale into the q-projection at pack time
        put_mat(al["wqkv"], np.concatenate([wq * ATTN_SCALE, wk, wv], axis=1))
        put_vec(al["bqkv"], np.zeros(3 * D_MODEL, np.float32))
        put_mat(al["wo"], rnd(D_MODEL, D_MODEL))
        put_vec(al["bo"], np.zeros(D_MODEL, np.float32))

    def fill_ffn(fl):
        put_mat(fl["w1"], rnd(D_MODEL, D_FF))
        put_vec(fl["b1"], np.zeros(D_FF, np.float32))
        put_mat(fl["w2"], rnd(D_FF, D_MODEL))
        put_vec(fl["b2"], np.zeros(D_MODEL, np.float32))

    def fill_ln(lnl):
        put_vec(lnl["g"], np.ones(D_MODEL, np.float32))
        put_vec(lnl["b"], np.zeros(D_MODEL, np.float32))

    for lp in L["encoder"]["layers"]:
        fill_mha(lp["self_attn"]); fill_ln(lp["ln1"])
        fill_ffn(lp["ffn"]);       fill_ln(lp["ln2"])
    fill_ln(L["encoder"]["norm"])
    for lp in L["decoder"]["layers"]:
        fill_mha(lp["self_attn"]);  fill_ln(lp["ln1"])
        fill_mha(lp["cross_attn"]); fill_ln(lp["ln2"])
        fill_ffn(lp["ffn"]);        fill_ln(lp["ln3"])
    fill_ln(L["decoder"]["norm"])

    return jnp.asarray(wslab), jnp.asarray(vslab)
    # TODO(synk): source_embed / target_embed / generator are defined in __init__
    # but never used by forward(); intentionally not instantiated.


# -------------------------------------- main ------------------------------------
if __name__ == "__main__":
    B, S, T = 2, 8, 8
    key = jax.random.PRNGKey(0)
    k_par, k_src, k_tgt = jax.random.split(key, 3)

    wslab, vslab = init_params(k_par)

    # forward() feeds `source`/`target` straight to encoder/decoder (no embedding),
    # so they are already-embedded float tensors of shape [B, S, D_MODEL].
    source = jax.random.normal(k_src, (B, S, D_MODEL), jnp.float32)
    target = jax.random.normal(k_tgt, (B, T, D_MODEL), jnp.float32)
    source_mask = jnp.ones((B, 1, S), jnp.float32)                                   # all valid
    target_mask = jnp.tril(jnp.ones((T, T), jnp.float32))[None].repeat(B, axis=0)    # causal

    fwd = jax.jit(encoder_decoder_forward)
    out = fwd(wslab, vslab, source, target, source_mask, target_mask)
    out = jax.block_until_ready(out)

    assert out.shape == (B, T, D_MODEL), out.shape
    assert bool(jnp.all(jnp.isfinite(out)))
    print("KERNEL_OK")
</pallas_src>

<mosaic_0001>
module attributes {stable_mosaic.version = 11 : i64} {
  func.func @kernel(%arg0: memref<16x32xf32, #tpu.memory_space<vmem>>, %arg1: memref<16x32xf32, #tpu.memory_space<vmem>>, %arg2: memref<2x8xf32, #tpu.memory_space<vmem>>, %arg3: memref<16x8xf32, #tpu.memory_space<vmem>>, %arg4: memref<768x128xf32, #tpu.memory_space<vmem>>, %arg5: memref<48x128xf32, #tpu.memory_space<vmem>>, %arg6: memref<16x32xf32, #tpu.memory_space<vmem>>) attributes {dimension_semantics = [], scalar_prefetch = 0 : i64, scratch_operands = 0 : i64, tpu.core_type = #tpu.core_type<tc>} {
    %c0 = arith.constant 0 : index
    %c0_0 = arith.constant 0 : index
    %0 = vector.load %arg2[%c0, %c0_0] : memref<2x8xf32, #tpu.memory_space<vmem>>, vector<2x8xf32>
    %cst = arith.constant 0.000000e+00 : f32
    %1 = vector.broadcast %cst : f32 to vector<2x8xf32>
    %2 = arith.cmpf ogt, %0, %1 : vector<2x8xf32>
    %cst_1 = arith.constant 0.000000e+00 : f32
    %cst_2 = arith.constant -1.000000e+09 : f32
    %3 = vector.broadcast %cst_1 : f32 to vector<2x8xf32>
    %4 = vector.broadcast %cst_2 : f32 to vector<2x8xf32>
    %5 = arith.select %2, %3, %4 : vector<2x8xi1>, vector<2x8xf32>
    %6 = vector.shape_cast %5 : vector<2x8xf32> to vector<2x1x8xf32>
    %7 = tpu.concatenate %6, %6, %6, %6 in 0 : vector<2x1x8xf32>, vector<2x1x8xf32>, vector<2x1x8xf32>, vector<2x1x8xf32> -> vector<8x1x8xf32>
    %c0_3 = arith.constant 0 : index
    %c0_4 = arith.constant 0 : index
    %8 = vector.load %arg3[%c0_3, %c0_4] : memref<16x8xf32, #tpu.memory_space<vmem>>, vector<16x8xf32>
    %cst_5 = arith.constant 0.000000e+00 : f32
    %9 = vector.broadcast %cst_5 : f32 to vector<16x8xf32>
    %10 = arith.cmpf ogt, %8, %9 : vector<16x8xf32>
    %cst_6 = arith.constant 0.000000e+00 : f32
    %cst_7 = arith.constant -1.000000e+09 : f32
    %11 = vector.broadcast %cst_6 : f32 to vector<16x8xf32>
    %12 = vector.broadcast %cst_7 : f32 to vector<16x8xf32>
    %13 = arith.select %10, %11, %12 : vector<16x8xi1>, vector<16x8xf32>
    %14 = vector.shape_cast %13 : vector<16x8xf32> to vector<2x8x8xf32>
    %15 = tpu.concatenate %14, %14, %14, %14 in 0 : vector<2x8x8xf32>, vector<2x8x8xf32>, vector<2x8x8xf32>, vector<2x8x8xf32> -> vector<8x8x8xf32>
    %c0_8 = arith.constant 0 : index
    %c0_9 = arith.constant 0 : index
    %16 = vector.load %arg0[%c0_8, %c0_9] : memref<16x32xf32, #tpu.memory_space<vmem>>, vector<16x32xf32>
    %cst_10 = arith.constant dense<0.000000e+00> : vector<16xf32>
    %17 = vector.multi_reduction <add>, %16, %cst_10 [1] : vector<16x32xf32> to vector<16xf32>
    %18 = vector.shape_cast %17 : vector<16xf32> to vector<16x1xf32>
    %cst_11 = arith.constant 3.200000e+01 : f32
    %19 = vector.broadcast %cst_11 : f32 to vector<16x1xf32>
    %20 = arith.divf %18, %19 : vector<16x1xf32>
    %21 = vector.broadcast %20 : vector<16x1xf32> to vector<16x32xf32>
    %22 = arith.subf %16, %21 : vector<16x32xf32>
    %23 = arith.mulf %22, %22 : vector<16x32xf32>
    %cst_12 = arith.constant dense<0.000000e+00> : vector<16xf32>
    %24 = vector.multi_reduction <add>, %23, %cst_12 [1] : vector<16x32xf32> to vector<16xf32>
    %25 = vector.shape_cast %24 : vector<16xf32> to vector<16x1xf32>
    %cst_13 = arith.constant 3.200000e+01 : f32
    %26 = vector.broadcast %cst_13 : f32 to vector<16x1xf32>
    %27 = arith.divf %25, %26 : vector<16x1xf32>
    %28 = vector.broadcast %20 : vector<16x1xf32> to vector<16x32xf32>
    %29 = arith.subf %16, %28 : vector<16x32xf32>
    %cst_14 = arith.constant 9.99999997E-7 : f32
    %30 = vector.broadcast %cst_14 : f32 to vector<16x1xf32>
    %31 = arith.addf %27, %30 : vector<16x1xf32>
    %32 = math.rsqrt %31 : vector<16x1xf32>
    %33 = vector.broadcast %32 : vector<16x1xf32> to vector<16x32xf32>
    %34 = arith.mulf %29, %33 : vector<16x32xf32>
    %c2 = arith.constant 2 : index
    %c0_15 = arith.constant 0 : index
    %35 = vector.load %arg5[%c2, %c0_15] : memref<48x128xf32, #tpu.memory_space<vmem>>, vector<1x32xf32>
    %36 = vector.broadcast %35 : vector<1x32xf32> to vector<16x32xf32>
    %37 = arith.mulf %34, %36 : vector<16x32xf32>
    %c3 = arith.constant 3 : index
    %c0_16 = arith.constant 0 : index
    %38 = vector.load %arg5[%c3, %c0_16] : memref<48x128xf32, #tpu.memory_space<vmem>>, vector<1x32xf32>
    %39 = vector.broadcast %38 : vector<1x32xf32> to vector<16x32xf32>
    %40 = arith.addf %37, %39 : vector<16x32xf32>
    %c0_17 = arith.constant 0 : index
    %c0_18 = arith.constant 0 : index
    %41 = vector.load %arg4[%c0_17, %c0_18] : memref<768x128xf32, #tpu.memory_space<vmem>>, vector<32x96xf32>
    %cst_19 = arith.constant dense<0.000000e+00> : vector<16x96xf32>
    %42 = tpu.matmul %40, %41, %cst_19 {dimension_numbers = #tpu.dot_dimension_numbers<[1], [0], [0], [1], [0, 0, 1, 1], [], []>} : vector<16x32xf32>, vector<32x96xf32>, vector<16x96xf32> -> vector<16x96xf32>
    %c0_20 = arith.constant 0 : index
    %c0_21 = arith.constant 0 : index
    %43 = vector.load %arg5[%c0_20, %c0_21] : memref<48x128xf32, #tpu.memory_space<vmem>>, vector<1x96xf32>
    %44 = vector.broadcast %43 : vector<1x96xf32> to vector<16x96xf32>
    %45 = arith.addf %42, %44 : vector<16x96xf32>
    %46 = vector.extract_strided_slice %45 {offsets = [0, 0], sizes = [16, 32], strides = [1, 1]} : vector<16x96xf32> to vector<16x32xf32>
    %47 = vector.extract_strided_slice %45 {offsets = [0, 32], sizes = [16, 32], strides = [1, 1]} : vector<16x96xf32> to vector<16x32xf32>
    %48 = vector.extract_strided_slice %45 {offsets = [0, 64], sizes = [16, 32], strides = [1, 1]} : vector<16x96xf32> to vector<16x32xf32>
    %49 = vector.shape_cast %46 : vector<16x32xf32> to vector<2x8x32xf32>
    %50 = vector.extract_strided_slice %49 {offsets = [0, 0, 0], sizes = [2, 8, 8], strides = [1, 1, 1]} : vector<2x8x32xf32> to vector<2x8x8xf32>
    %51 = vector.extract_strided_slice %49 {offsets = [0, 0, 8], sizes = [2, 8, 8], strides = [1, 1, 1]} : vector<2x8x32xf32> to vector<2x8x8xf32>
    %52 = vector.extract_strided_slice %49 {offsets = [0, 0, 16], sizes = [2, 8, 8], strides = [1, 1, 1]} : vector<2x8x32xf32> to vector<2x8x8xf32>
    %53 = vector.extract_strided_slice %49 {offsets = [0, 0, 24], sizes = [2, 8, 8], strides = [1, 1, 1]} : vector<2x8x32xf32> to vector<2x8x8xf32>
    %54 = tpu.concatenate %50, %51, %52, %53 in 0 : vector<2x8x8xf32>, vector<2x8x8xf32>, vector<2x8x8xf32>, vector<2x8x8xf32> -> vector<8x8x8xf32>
    %55 = vector.shape_cast %47 : vector<16x32xf32> to vector<2x8x32xf32>
    %56 = vector.extract_strided_slice %55 {offsets = [0, 0, 0], sizes = [2, 8, 8], strides = [1, 1, 1]} : vector<2x8x32xf32> to vector<2x8x8xf32>
    %57 = vector.extract_strided_slice %55 {offsets = [0, 0, 8], sizes = [2, 8, 8], strides = [1, 1, 1]} : vector<2x8x32xf32> to vector<2x8x8xf32>
    %58 = vector.extract_strided_slice %55 {offsets = [0, 0, 16], sizes = [2, 8, 8], strides = [1, 1, 1]} : vector<2x8x32xf32> to vector<2x8x8xf32>
    %59 = vector.extract_strided_slice %55 {offsets = [0, 0, 24], sizes = [2, 8, 8], strides = [1, 1, 1]} : vector<2x8x32xf32> to vector<2x8x8xf32>
    %60 = tpu.concatenate %56, %57, %58, %59 in 0 : vector<2x8x8xf32>, vector<2x8x8xf32>, vector<2x8x8xf32>, vector<2x8x8xf32> -> vector<8x8x8xf32>
    %61 = vector.shape_cast %48 : vector<16x32xf32> to vector<2x8x32xf32>
    %62 = vector.extract_strided_slice %61 {offsets = [0, 0, 0], sizes = [2, 8, 8], strides = [1, 1, 1]} : vector<2x8x32xf32> to vector<2x8x8xf32>
    %63 = vector.extract_strided_slice %61 {offsets = [0, 0, 8], sizes = [2, 8, 8], strides = [1, 1, 1]} : vector<2x8x32xf32> to vector<2x8x8xf32>
    %64 = vector.extract_strided_slice %61 {offsets = [0, 0, 16], sizes = [2, 8, 8], strides = [1, 1, 1]} : vector<2x8x32xf32> to vector<2x8x8xf32>
    %65 = vector.extract_strided_slice %61 {offsets = [0, 0, 24], sizes = [2, 8, 8], strides = [1, 1, 1]} : vector<2x8x32xf32> to vector<2x8x8xf32>
    %66 = tpu.concatenate %62, %63, %64, %65 in 0 : vector<2x8x8xf32>, vector<2x8x8xf32>, vector<2x8x8xf32>, vector<2x8x8xf32> -> vector<8x8x8xf32>
    "tpu.trace_start"() <{level = 10 : i32, message = "bqd,bkd->bqk"}> : () -> ()
    %cst_22 = arith.constant dense<0.000000e+00> : vector<8x8x8xf32>
    %67 = tpu.matmul %54, %60, %cst_22 {dimension_numbers = #tpu.dot_dimension_numbers<[2], [2], [1], [1], [0, 0, 0, 1, 1, 1], [0], [0]>} : vector<8x8x8xf32>, vector<8x8x8xf32>, vector<8x8x8xf32> -> vector<8x8x8xf32>
    "tpu.trace_stop"() : () -> ()
    %68 = vector.broadcast %7 : vector<8x1x8xf32> to vector<8x8x8xf32>
    %69 = arith.addf %67, %68 : vector<8x8x8xf32>
    %cst_23 = arith.constant dense<0xFF800000> : vector<8x8xf32>
    %70 = vector.multi_reduction <maximumf>, %69, %cst_23 [2] : vector<8x8x8xf32> to vector<8x8xf32>
    %71 = vector.shape_cast %70 : vector<8x8xf32> to vector<8x8x1xf32>
    %72 = vector.broadcast %71 : vector<8x8x1xf32> to vector<8x8x8xf32>
    %73 = arith.subf %69, %72 : vector<8x8x8xf32>
    %74 = math.exp %73 : vector<8x8x8xf32>
    %cst_24 = arith.constant dense<0.000000e+00> : vector<8x8xf32>
    %75 = vector.multi_reduction <add>, %74, %cst_24 [2] : vector<8x8x8xf32> to vector<8x8xf32>
    %76 = vector.shape_cast %75 : vector<8x8xf32> to vector<8x8x1xf32>
    %77 = tpu.reciprocal %76 {approx = true} : vector<8x8x1xf32> -> vector<8x8x1xf32>
    %78 = vector.broadcast %77 : vector<8x8x1xf32> to vector<8x8x8xf32>
    %79 = arith.mulf %74, %78 : vector<8x8x8xf32>
    "tpu.trace_start"() <{level = 10 : i32, message = "bqk,bkd->bqd"}> : () -> ()
    %cst_25 = arith.constant dense<0.000000e+00> : vector<8x8x8xf32>
    %80 = tpu.matmul %79, %66, %cst_25 {dimension_numbers = #tpu.dot_dimension_numbers<[2], [1], [1], [2], [0, 0, 0, 1, 1, 2], [0], [0]>} : vector<8x8x8xf32>, vector<8x8x8xf32>, vector<8x8x8xf32> -> vector<8x8x8xf32>
    "tpu.trace_stop"() : () -> ()
    %81 = vector.extract_strided_slice %80 {offsets = [0, 0, 0], sizes = [2, 8, 8], strides = [1, 1, 1]} : vector<8x8x8xf32> to vector<2x8x8xf32>
    %82 = vector.extract_strided_slice %80 {offsets = [2, 0, 0], sizes = [2, 8, 8], strides = [1, 1, 1]} : vector<8x8x8xf32> to vector<2x8x8xf32>
    %83 = vector.extract_strided_slice %80 {offsets = [4, 0, 0], sizes = [2, 8, 8], strides = [1, 1, 1]} : vector<8x8x8xf32> to vector<2x8x8xf32>
    %84 = vector.extract_strided_slice %80 {offsets = [6, 0, 0], sizes = [2, 8, 8], strides = [1, 1, 1]} : vector<8x8x8xf32> to vector<2x8x8xf32>
    %85 = tpu.concatenate %81, %82, %83, %84 in 2 : vector<2x8x8xf32>, vector<2x8x8xf32>, vector<2x8x8xf32>, vector<2x8x8xf32> -> vector<2x8x32xf32>
    %86 = vector.shape_cast %85 : vector<2x8x32xf32> to vector<16x32xf32>
    %c32 = arith.constant 32 : index
    %c0_26 = arith.constant 0 : index
    %87 = vector.load %arg4[%c32, %c0_26] : memref<768x128xf32, #tpu.memory_space<vmem>>, vector<32x32xf32>
    %cst_27 = arith.constant dense<0.000000e+00> : vector<16x32xf32>
    %88 = tpu.matmul %86, %87, %cst_27 {dimension_numbers = #tpu.dot_dimension_numbers<[1], [0], [0], [1], [0, 0, 1, 1], [], []>} : vector<16x32xf32>, vector<32x32xf32>, vector<16x32xf32> -> vector<16x32xf32>
    %c1 = arith.constant 1 : index
    %c0_28 = arith.constant 0 : index
    %89 = vector.load %arg5[%c1, %c0_28] : memref<48x128xf32, #tpu.memory_space<vmem>>, vector<1x32xf32>
    %90 = vector.broadcast %89 : vector<1x32xf32> to vector<16x32xf32>
    %91 = arith.addf %88, %90 : vector<16x32xf32>
    %92 = arith.addf %16, %91 : vector<16x32xf32>
    %cst_29 = arith.constant dense<0.000000e+00> : vector<16xf32>
    %93 = vector.multi_reduction <add>, %92, %cst_29 [1] : vector<16x32xf32> to vector<16xf32>
    %94 = vector.shape_cast %93 : vector<16xf32> to vector<16x1xf32>
    %cst_30 = arith.constant 3.200000e+01 : f32
    %95 = vector.broadcast %cst_30 : f32 to vector<16x1xf32>
    %96 = arith.divf %94, %95 : vector<16x1xf32>
    %97 = vector.broadcast %96 : vector<16x1xf32> to vector<16x32xf32>
    %98 = arith.subf %92, %97 : vector<16x32xf32>
    %99 = arith.mulf %98, %98 : vector<16x32xf32>
    %cst_31 = arith.constant dense<0.000000e+00> : vector<16xf32>
    %100 = vector.multi_reduction <add>, %99, %cst_31 [1] : vector<16x32xf32> to vector<16xf32>
    %101 = vector.shape_cast %100 : vector<16xf32> to vector<16x1xf32>
    %cst_32 = arith.constant 3.200000e+01 : f32
    %102 = vector.broadcast %cst_32 : f32 to vector<16x1xf32>
    %103 = arith.divf %101, %102 : vector<16x1xf32>
    %104 = vector.broadcast %96 : vector<16x1xf32> to vector<16x32xf32>
    %105 = arith.subf %92, %104 : vector<16x32xf32>
    %cst_33 = arith.constant 9.99999997E-7 : f32
    %106 = vector.broadcast %cst_33 : f32 to vector<16x1xf32>
    %107 = arith.addf %103, %106 : vector<16x1xf32>
    %108 = math.rsqrt %107 : vector<16x1xf32>
    %109 = vector.broadcast %108 : vector<16x1xf32> to vector<16x32xf32>
    %110 = arith.mulf %105, %109 : vector<16x32xf32>
    %c6 = arith.constant 6 : index
    %c0_34 = arith.constant 0 : index
    %111 = vector.load %arg5[%c6, %c0_34] : memref<48x128xf32, #tpu.memory_space<vmem>>, vector<1x32xf32>
    %112 = vector.broadcast %111 : vector<1x32xf32> to vector<16x32xf32>
    %113 = arith.mulf %110, %112 : vector<16x32xf32>
    %c7 = arith.constant 7 : index
    %c0_35 = arith.constant 0 : index
    %114 = vector.load %arg5[%c7, %c0_35] : memref<48x128xf32, #tpu.memory_space<vmem>>, vector<1x32xf32>
    %115 = vector.broadcast %114 : vector<1x32xf32> to vector<16x32xf32>
    %116 = arith.addf %113, %115 : vector<16x32xf32>
    %c64 = arith.constant 64 : index
    %c0_36 = arith.constant 0 : index
    %117 = vector.load %arg4[%c64, %c0_36] : memref<768x128xf32, #tpu.memory_space<vmem>>, vector<32x64xf32>
    %cst_37 = arith.constant dense<0.000000e+00> : vector<16x64xf32>
    %118 = tpu.matmul %116, %117, %cst_37 {dimension_numbers = #tpu.dot_dimension_numbers<[1], [0], [0], [1], [0, 0, 1, 1], [], []>} : vector<16x32xf32>, vector<32x64xf32>, vector<16x64xf32> -> vector<16x64xf32>
    %c4 = arith.constant 4 : index
    %c0_38 = arith.constant 0 : index
    %119 = vector.load %arg5[%c4, %c0_38] : memref<48x128xf32, #tpu.memory_space<vmem>>, vector<1x64xf32>
    %120 = vector.broadcast %119 : vector<1x64xf32> to vector<16x64xf32>
    %121 = arith.addf %118, %120 : vector<16x64xf32>
    %cst_39 = arith.constant 0.000000e+00 : f32
    %122 = vector.broadcast %cst_39 : f32 to vector<16x64xf32>
    %123 = arith.maximumf %121, %122 : vector<16x64xf32>
    %c96 = arith.constant 96 : index
    %c0_40 = arith.constant 0 : index
    %124 = vector.load %arg4[%c96, %c0_40] : memref<768x128xf32, #tpu.memory_space<vmem>>, vector<64x32xf32>
    %cst_41 = arith.constant dense<0.000000e+00> : vector<16x32xf32>
    %125 = tpu.matmul %123, %124, %cst_41 {dimension_numbers = #tpu.dot_dimension_numbers<[1], [0], [0], [1], [0, 0, 1, 1], [], []>} : vector<16x64xf32>, vector<64x32xf32>, vector<16x32xf32> -> vector<16x32xf32>
    %c5 = arith.constant 5 : index
    %c0_42 = arith.constant 0 : index
    %126 = vector.load %arg5[%c5, %c0_42] : memref<48x128xf32, #tpu.memory_space<vmem>>, vector<1x32xf32>
    %127 = vector.broadcast %126 : vector<1x32xf32> to vector<16x32xf32>
    %128 = arith.addf %125, %127 : vector<16x32xf32>
    %129 = arith.addf %92, %128 : vector<16x32xf32>
    %cst_43 = arith.constant dense<0.000000e+00> : vector<16xf32>
    %130 = vector.multi_reduction <add>, %129, %cst_43 [1] : vector<16x32xf32> to vector<16xf32>
    %131 = vector.shape_cast %130 : vector<16xf32> to vector<16x1xf32>
    %cst_44 = arith.constant 3.200000e+01 : f32
    %132 = vector.broadcast %cst_44 : f32 to vector<16x1xf32>
    %133 = arith.divf %131, %132 : vector<16x1xf32>
    %134 = vector.broadcast %133 : vector<16x1xf32> to vector<16x32xf32>
    %135 = arith.subf %129, %134 : vector<16x32xf32>
    %136 = arith.mulf %135, %135 : vector<16x32xf32>
    %cst_45 = arith.constant dense<0.000000e+00> : vector<16xf32>
    %137 = vector.multi_reduction <add>, %136, %cst_45 [1] : vector<16x32xf32> to vector<16xf32>
    %138 = vector.shape_cast %137 : vector<16xf32> to vector<16x1xf32>
    %cst_46 = arith.constant 3.200000e+01 : f32
    %139 = vector.broadcast %cst_46 : f32 to vector<16x1xf32>
    %140 = arith.divf %138, %139 : vector<16x1xf32>
    %141 = vector.broadcast %133 : vector<16x1xf32> to vector<16x32xf32>
    %142 = arith.subf %129, %141 : vector<16x32xf32>
    %cst_47 = arith.constant 9.99999997E-7 : f32
    %143 = vector.broadcast %cst_47 : f32 to vector<16x1xf32>
    %144 = arith.addf %140, %143 : vector<16x1xf32>
    %145 = math.rsqrt %144 : vector<16x1xf32>
    %146 = vector.broadcast %145 : vector<16x1xf32> to vector<16x32xf32>
    %147 = arith.mulf %142, %146 : vector<16x32xf32>
    %c10 = arith.constant 10 : index
    %c0_48 = arith.constant 0 : index
    %148 = vector.load %arg5[%c10, %c0_48] : memref<48x128xf32, #tpu.memory_space<vmem>>, vector<1x32xf32>
    %149 = vector.broadcast %148 : vector<1x32xf32> to vector<16x32xf32>
    %150 = arith.mulf %147, %149 : vector<16x32xf32>
    %c11 = arith.constant 11 : index
    %c0_49 = arith.constant 0 : index
    %151 = vector.load %arg5[%c11, %c0_49] : memref<48x128xf32, #tpu.memory_space<vmem>>, vector<1x32xf32>
    %152 = vector.broadcast %151 : vector<1x32xf32> to vector<16x32xf32>
    %153 = arith.addf %150, %152 : vector<16x32xf32>
    %c160 = arith.constant 160 : index
    %c0_50 = arith.constant 0 : index
    %154 = vector.load %arg4[%c160, %c0_50] : memref<768x128xf32, #tpu.memory_space<vmem>>, vector<32x96xf32>
    %cst_51 = arith.constant dense<0.000000e+00> : vector<16x96xf32>
    %155 = tpu.matmul %153, %154, %cst_51 {dimension_numbers = #tpu.dot_dimension_numbers<[1], [0], [0], [1], [0, 0, 1, 1], [], []>} : vector<16x32xf32>, vector<32x96xf32>, vector<16x96xf32> -> vector<16x96xf32>
    %c8 = arith.constant 8 : index
    %c0_52 = arith.constant 0 : index
    %156 = vector.load %arg5[%c8, %c0_52] : memref<48x128xf32, #tpu.memory_space<vmem>>, vector<1x96xf32>
    %157 = vector.broadcast %156 : vector<1x96xf32> to vector<16x96xf32>
    %158 = arith.addf %155, %157 : vector<16x96xf32>
    %159 = vector.extract_strided_slice %158 {offsets = [0, 0], sizes = [16, 32], strides = [1, 1]} : vector<16x96xf32> to vector<16x32xf32>
    %160 = vector.extract_strided_slice %158 {offsets = [0, 32], sizes = [16, 32], strides = [1, 1]} : vector<16x96xf32> to vector<16x32xf32>
    %161 = vector.extract_strided_slice %158 {offsets = [0, 64], sizes = [16, 32], strides = [1, 1]} : vector<16x96xf32> to vector<16x32xf32>
    %162 = vector.shape_cast %159 : vector<16x32xf32> to vector<2x8x32xf32>
    %163 = vector.extract_strided_slice %162 {offsets = [0, 0, 0], sizes = [2, 8, 8], strides = [1, 1, 1]} : vector<2x8x32xf32> to vector<2x8x8xf32>
    %164 = vector.extract_strided_slice %162 {offsets = [0, 0, 8], sizes = [2, 8, 8], strides = [1, 1, 1]} : vector<2x8x32xf32> to vector<2x8x8xf32>
    %165 = vector.extract_strided_slice %162 {offsets = [0, 0, 16], sizes = [2, 8, 8], strides = [1, 1, 1]} : vector<2x8x32xf32> to vector<2x8x8xf32>
    %166 = vector.extract_strided_slice %162 {offsets = [0, 0, 24], sizes = [2, 8, 8], strides = [1, 1, 1]} : vector<2x8x32xf32> to vector<2x8x8xf32>
    %167 = tpu.concatenate %163, %164, %165, %166 in 0 : vector<2x8x8xf32>, vector<2x8x8xf32>, vector<2x8x8xf32>, vector<2x8x8xf32> -> vector<8x8x8xf32>
    %168 = vector.shape_cast %160 : vector<16x32xf32> to vector<2x8x32xf32>
    %169 = vector.extract_strided_slice %168 {offsets = [0, 0, 0], sizes = [2, 8, 8], strides = [1, 1, 1]} : vector<2x8x32xf32> to vector<2x8x8xf32>
    %170 = vector.extract_strided_slice %168 {offsets = [0, 0, 8], sizes = [2, 8, 8], strides = [1, 1, 1]} : vector<2x8x32xf32> to vector<2x8x8xf32>
    %171 = vector.extract_strided_slice %168 {offsets = [0, 0, 16], sizes = [2, 8, 8], strides = [1, 1, 1]} : vector<2x8x32xf32> to vector<2x8x8xf32>
    %172 = vector.extract_strided_slice %168 {offsets = [0, 0, 24], sizes = [2, 8, 8], strides = [1, 1, 1]} : vector<2x8x32xf32> to vector<2x8x8xf32>
    %173 = tpu.concatenate %169, %170, %171, %172 in 0 : vector<2x8x8xf32>, vector<2x8x8xf32>, vector<2x8x8xf32>, vector<2x8x8xf32> -> vector<8x8x8xf32>
    %174 = vector.shape_cast %161 : vector<16x32xf32> to vector<2x8x32xf32>
    %175 = vector.extract_strided_slice %174 {offsets = [0, 0, 0], sizes = [2, 8, 8], strides = [1, 1, 1]} : vector<2x8x32xf32> to vector<2x8x8xf32>
    %176 = vector.extract_strided_slice %174 {offsets = [0, 0, 8], sizes = [2, 8, 8], strides = [1, 1, 1]} : vector<2x8x32xf32> to vector<2x8x8xf32>
    %177 = vector.extract_strided_slice %174 {offsets = [0, 0, 16], sizes = [2, 8, 8], strides = [1, 1, 1]} : vector<2x8x32xf32> to vector<2x8x8xf32>
    %178 = vector.extract_strided_slice %174 {offsets = [0, 0, 24], sizes = [2, 8, 8], strides = [1, 1, 1]} : vector<2x8x32xf32> to vector<2x8x8xf32>
    %179 = tpu.concatenate %175, %176, %177, %178 in 0 : vector<2x8x8xf32>, vector<2x8x8xf32>, vector<2x8x8xf32>, vector<2x8x8xf32> -> vector<8x8x8xf32>
    "tpu.trace_start"() <{level = 10 : i32, message = "bqd,bkd->bqk"}> : () -> ()
    %cst_53 = arith.constant dense<0.000000e+00> : vector<8x8x8xf32>
    %180 = tpu.matmul %167, %173, %cst_53 {dimension_numbers = #tpu.dot_dimension_numbers<[2], [2], [1], [1], [0, 0, 0, 1, 1, 1], [0], [0]>} : vector<8x8x8xf32>, vector<8x8x8xf32>, vector<8x8x8xf32> -> vector<8x8x8xf32>
    "tpu.trace_stop"() : () -> ()
    %181 = vector.broadcast %7 : vector<8x1x8xf32> to vector<8x8x8xf32>
    %182 = arith.addf %180, %181 : vector<8x8x8xf32>
    %cst_54 = arith.constant dense<0xFF800000> : vector<8x8xf32>
    %183 = vector.multi_reduction <maximumf>, %182, %cst_54 [2] : vector<8x8x8xf32> to vector<8x8xf32>
    %184 = vector.shape_cast %183 : vector<8x8xf32> to vector<8x8x1xf32>
    %185 = vector.broadcast %184 : vector<8x8x1xf32> to vector<8x8x8xf32>
    %186 = arith.subf %182, %185 : vector<8x8x8xf32>
    %187 = math.exp %186 : vector<8x8x8xf32>
    %cst_55 = arith.constant dense<0.000000e+00> : vector<8x8xf32>
    %188 = vector.multi_reduction <add>, %187, %cst_55 [2] : vector<8x8x8xf32> to vector<8x8xf32>
    %189 = vector.shape_cast %188 : vector<8x8xf32> to vector<8x8x1xf32>
    %190 = tpu.reciprocal %189 {approx = true} : vector<8x8x1xf32> -> vector<8x8x1xf32>
    %191 = vector.broadcast %190 : vector<8x8x1xf32> to vector<8x8x8xf32>
    %192 = arith.mulf %187, %191 : vector<8x8x8xf32>
    "tpu.trace_start"() <{level = 10 : i32, message = "bqk,bkd->bqd"}> : () -> ()
    %cst_56 = arith.constant dense<0.000000e+00> : vector<8x8x8xf32>
    %193 = tpu.matmul %192, %179, %cst_56 {dimension_numbers = #tpu.dot_dimension_numbers<[2], [1], [1], [2], [0, 0, 0, 1, 1, 2], [0], [0]>} : vector<8x8x8xf32>, vector<8x8x8xf32>, vector<8x8x8xf32> -> vector<8x8x8xf32>
    "tpu.trace_stop"() : () -> ()
    %194 = vector.extract_strided_slice %193 {offsets = [0, 0, 0], sizes = [2, 8, 8], strides = [1, 1, 1]} : vector<8x8x8xf32> to vector<2x8x8xf32>
    %195 = vector.extract_strided_slice %193 {offsets = [2, 0, 0], sizes = [2, 8, 8], strides = [1, 1, 1]} : vector<8x8x8xf32> to vector<2x8x8xf32>
    %196 = vector.extract_strided_slice %193 {offsets = [4, 0, 0], sizes = [2, 8, 8], strides = [1, 1, 1]} : vector<8x8x8xf32> to vector<2x8x8xf32>
    %197 = vector.extract_strided_slice %193 {offsets = [6, 0, 0], sizes = [2, 8, 8], strides = [1, 1, 1]} : vector<8x8x8xf32> to vector<2x8x8xf32>
    %198 = tpu.concatenate %194, %195, %196, %197 in 2 : vector<2x8x8xf32>, vector<2x8x8xf32>, vector<2x8x8xf32>, vector<2x8x8xf32> -> vector<2x8x32xf32>
    %199 = vector.shape_cast %198 : vector<2x8x32xf32> to vector<16x32xf32>
    %c192 = arith.constant 192 : index
    %c0_57 = arith.constant 0 : index
    %200 = vector.load %arg4[%c192, %c0_57] : memref<768x128xf32, #tpu.memory_space<vmem>>, vector<32x32xf32>
    %cst_58 = arith.constant dense<0.000000e+00> : vector<16x32xf32>
    %201 = tpu.matmul %199, %200, %cst_58 {dimension_numbers = #tpu.dot_dimension_numbers<[1], [0], [0], [1], [0, 0, 1, 1], [], []>} : vector<16x32xf32>, vector<32x32xf32>, vector<16x32xf32> -> vector<16x32xf32>
    %c9 = arith.constant 9 : index
    %c0_59 = arith.constant 0 : index
    %202 = vector.load %arg5[%c9, %c0_59] : memref<48x128xf32, #tpu.memory_space<vmem>>, vector<1x32xf32>
    %203 = vector.broadcast %202 : vector<1x32xf32> to vector<16x32xf32>
    %204 = arith.addf %201, %203 : vector<16x32xf32>
    %205 = arith.addf %129, %204 : vector<16x32xf32>
    %cst_60 = arith.constant dense<0.000000e+00> : vector<16xf32>
    %206 = vector.multi_reduction <add>, %205, %cst_60 [1] : vector<16x32xf32> to vector<16xf32>
    %207 = vector.shape_cast %206 : vector<16xf32> to vector<16x1xf32>
    %cst_61 = arith.constant 3.200000e+01 : f32
    %208 = vector.broadcast %cst_61 : f32 to vector<16x1xf32>
    %209 = arith.divf %207, %208 : vector<16x1xf32>
    %210 = vector.broadcast %209 : vector<16x1xf32> to vector<16x32xf32>
    %211 = arith.subf %205, %210 : vector<16x32xf32>
    %212 = arith.mulf %211, %211 : vector<16x32xf32>
    %cst_62 = arith.constant dense<0.000000e+00> : vector<16xf32>
    %213 = vector.multi_reduction <add>, %212, %cst_62 [1] : vector<16x32xf32> to vector<16xf32>
    %214 = vector.shape_cast %213 : vector<16xf32> to vector<16x1xf32>
    %cst_63 = arith.constant 3.200000e+01 : f32
    %215 = vector.broadcast %cst_63 : f32 to vector<16x1xf32>
    %216 = arith.divf %214, %215 : vector<16x1xf32>
    %217 = vector.broadcast %209 : vector<16x1xf32> to vector<16x32xf32>
    %218 = arith.subf %205, %217 : vector<16x32xf32>
    %cst_64 = arith.constant 9.99999997E-7 : f32
    %219 = vector.broadcast %cst_64 : f32 to vector<16x1xf32>
    %220 = arith.addf %216, %219 : vector<16x1xf32>
    %221 = math.rsqrt %220 : vector<16x1xf32>
    %222 = vector.broadcast %221 : vector<16x1xf32> to vector<16x32xf32>
    %223 = arith.mulf %218, %222 : vector<16x32xf32>
    %c14 = arith.constant 14 : index
    %c0_65 = arith.constant 0 : index
    %224 = vector.load %arg5[%c14, %c0_65] : memref<48x128xf32, #tpu.memory_space<vmem>>, vector<1x32xf32>
    %225 = vector.broadcast %224 : vector<1x32xf32> to vector<16x32xf32>
    %226 = arith.mulf %223, %225 : vector<16x32xf32>
    %c15 = arith.constant 15 : index
    %c0_66 = arith.constant 0 : index
    %227 = vector.load %arg5[%c15, %c0_66] : memref<48x128xf32, #tpu.memory_space<vmem>>, vector<1x32xf32>
    %228 = vector.broadcast %227 : vector<1x32xf32> to vector<16x32xf32>
    %229 = arith.addf %226, %228 : vector<16x32xf32>
    %c224 = arith.constant 224 : index
    %c0_67 = arith.constant 0 : index
    %230 = vector.load %arg4[%c224, %c0_67] : memref<768x128xf32, #tpu.memory_space<vmem>>, vector<32x64xf32>
    %cst_68 = arith.constant dense<0.000000e+00> : vector<16x64xf32>
    %231 = tpu.matmul %229, %230, %cst_68 {dimension_numbers = #tpu.dot_dimension_numbers<[1], [0], [0], [1], [0, 0, 1, 1], [], []>} : vector<16x32xf32>, vector<32x64xf32>, vector<16x64xf32> -> vector<16x64xf32>
    %c12 = arith.constant 12 : index
    %c0_69 = arith.constant 0 : index
    %232 = vector.load %arg5[%c12, %c0_69] : memref<48x128xf32, #tpu.memory_space<vmem>>, vector<1x64xf32>
    %233 = vector.broadcast %232 : vector<1x64xf32> to vector<16x64xf32>
    %234 = arith.addf %231, %233 : vector<16x64xf32>
    %cst_70 = arith.constant 0.000000e+00 : f32
    %235 = vector.broadcast %cst_70 : f32 to vector<16x64xf32>
    %236 = arith.maximumf %234, %235 : vector<16x64xf32>
    %c256 = arith.constant 256 : index
    %c0_71 = arith.constant 0 : index
    %237 = vector.load %arg4[%c256, %c0_71] : memref<768x128xf32, #tpu.memory_space<vmem>>, vector<64x32xf32>
    %cst_72 = arith.constant dense<0.000000e+00> : vector<16x32xf32>
    %238 = tpu.matmul %236, %237, %cst_72 {dimension_numbers = #tpu.dot_dimension_numbers<[1], [0], [0], [1], [0, 0, 1, 1], [], []>} : vector<16x64xf32>, vector<64x32xf32>, vector<16x32xf32> -> vector<16x32xf32>
    %c13 = arith.constant 13 : index
    %c0_73 = arith.constant 0 : index
    %239 = vector.load %arg5[%c13, %c0_73] : memref<48x128xf32, #tpu.memory_space<vmem>>, vector<1x32xf32>
    %240 = vector.broadcast %239 : vector<1x32xf32> to vector<16x32xf32>
    %241 = arith.addf %238, %240 : vector<16x32xf32>
    %242 = arith.addf %205, %241 : vector<16x32xf32>
    %cst_74 = arith.constant dense<0.000000e+00> : vector<16xf32>
    %243 = vector.multi_reduction <add>, %242, %cst_74 [1] : vector<16x32xf32> to vector<16xf32>
    %244 = vector.shape_cast %243 : vector<16xf32> to vector<16x1xf32>
    %cst_75 = arith.constant 3.200000e+01 : f32
    %245 = vector.broadcast %cst_75 : f32 to vector<16x1xf32>
    %246 = arith.divf %244, %245 : vector<16x1xf32>
    %247 = vector.broadcast %246 : vector<16x1xf32> to vector<16x32xf32>
    %248 = arith.subf %242, %247 : vector<16x32xf32>
    %249 = arith.mulf %248, %248 : vector<16x32xf32>
    %cst_76 = arith.constant dense<0.000000e+00> : vector<16xf32>
    %250 = vector.multi_reduction <add>, %249, %cst_76 [1] : vector<16x32xf32> to vector<16xf32>
    %251 = vector.shape_cast %250 : vector<16xf32> to vector<16x1xf32>
    %cst_77 = arith.constant 3.200000e+01 : f32
    %252 = vector.broadcast %cst_77 : f32 to vector<16x1xf32>
    %253 = arith.divf %251, %252 : vector<16x1xf32>
    %254 = vector.broadcast %246 : vector<16x1xf32> to vector<16x32xf32>
    %255 = arith.subf %242, %254 : vector<16x32xf32>
    %cst_78 = arith.constant 9.99999997E-7 : f32
    %256 = vector.broadcast %cst_78 : f32 to vector<16x1xf32>
    %257 = arith.addf %253, %256 : vector<16x1xf32>
    %258 = math.rsqrt %257 : vector<16x1xf32>
    %259 = vector.broadcast %258 : vector<16x1xf32> to vector<16x32xf32>
    %260 = arith.mulf %255, %259 : vector<16x32xf32>
    %c40 = arith.constant 40 : index
    %c0_79 = arith.constant 0 : index
    %261 = vector.load %arg5[%c40, %c0_79] : memref<48x128xf32, #tpu.memory_space<vmem>>, vector<1x32xf32>
    %262 = vector.broadcast %261 : vector<1x32xf32> to vector<16x32xf32>
    %263 = arith.mulf %260, %262 : vector<16x32xf32>
    %c41 = arith.constant 41 : index
    %c0_80 = arith.constant 0 : index
    %264 = vector.load %arg5[%c41, %c0_80] : memref<48x128xf32, #tpu.memory_space<vmem>>, vector<1x32xf32>
    %265 = vector.broadcast %264 : vector<1x32xf32> to vector<16x32xf32>
    %266 = arith.addf %263, %265 : vector<16x32xf32>
    %c0_81 = arith.constant 0 : index
    %c0_82 = arith.constant 0 : index
    %267 = vector.load %arg1[%c0_81, %c0_82] : memref<16x32xf32, #tpu.memory_space<vmem>>, vector<16x32xf32>
    %cst_83 = arith.constant dense<0.000000e+00> : vector<16xf32>
    %268 = vector.multi_reduction <add>, %267, %cst_83 [1] : vector<16x32xf32> to vector<16xf32>
    %269 = vector.shape_cast %268 : vector<16xf32> to vector<16x1xf32>
    %cst_84 = arith.constant 3.200000e+01 : f32
    %270 = vector.broadcast %cst_84 : f32 to vector<16x1xf32>
    %271 = arith.divf %269, %270 : vector<16x1xf32>
    %272 = vector.broadcast %271 : vector<16x1xf32> to vector<16x32xf32>
    %273 = arith.subf %267, %272 : vector<16x32xf32>
    %274 = arith.mulf %273, %273 : vector<16x32xf32>
    %cst_85 = arith.constant dense<0.000000e+00> : vector<16xf32>
    %275 = vector.multi_reduction <add>, %274, %cst_85 [1] : vector<16x32xf32> to vector<16xf32>
    %276 = vector.shape_cast %275 : vector<16xf32> to vector<16x1xf32>
    %cst_86 = arith.constant 3.200000e+01 : f32
    %277 = vector.broadcast %cst_86 : f32 to vector<16x1xf32>
    %278 = arith.divf %276, %277 : vector<16x1xf32>
    %279 = vector.broadcast %271 : vector<16x1xf32> to vector<16x32xf32>
    %280 = arith.subf %267, %279 : vector<16x32xf32>
    %cst_87 = arith.constant 9.99999997E-7 : f32
    %281 = vector.broadcast %cst_87 : f32 to vector<16x1xf32>
    %282 = arith.addf %278, %281 : vector<16x1xf32>
    %283 = math.rsqrt %282 : vector<16x1xf32>
    %284 = vector.broadcast %283 : vector<16x1xf32> to vector<16x32xf32>
    %285 = arith.mulf %280, %284 : vector<16x32xf32>
    %c18 = arith.constant 18 : index
    %c0_88 = arith.constant 0 : index
    %286 = vector.load %arg5[%c18, %c0_88] : memref<48x128xf32, #tpu.memory_space<vmem>>, vector<1x32xf32>
    %287 = vector.broadcast %286 : vector<1x32xf32> to vector<16x32xf32>
    %288 = arith.mulf %285, %287 : vector<16x32xf32>
    %c19 = arith.constant 19 : index
    %c0_89 = arith.constant 0 : index
    %289 = vector.load %arg5[%c19, %c0_89] : memref<48x128xf32, #tpu.memory_space<vmem>>, vector<1x32xf32>
    %290 = vector.broadcast %289 : vector<1x32xf32> to vector<16x32xf32>
    %291 = arith.addf %288, %290 : vector<16x32xf32>
    %c320 = arith.constant 320 : index
    %c0_90 = arith.constant 0 : index
    %292 = vector.load %arg4[%c320, %c0_90] : memref<768x128xf32, #tpu.memory_space<vmem>>, vector<32x96xf32>
    %cst_91 = arith.constant dense<0.000000e+00> : vector<16x96xf32>
    %293 = tpu.matmul %291, %292, %cst_91 {dimension_numbers = #tpu.dot_dimension_numbers<[1], [0], [0], [1], [0, 0, 1, 1], [], []>} : vector<16x32xf32>, vector<32x96xf32>, vector<16x96xf32> -> vector<16x96xf32>
    %c16 = arith.constant 16 : index
    %c0_92 = arith.constant 0 : index
    %294 = vector.load %arg5[%c16, %c0_92] : memref<48x128xf32, #tpu.memory_space<vmem>>, vector<1x96xf32>
    %295 = vector.broadcast %294 : vector<1x96xf32> to vector<16x96xf32>
    %296 = arith.addf %293, %295 : vector<16x96xf32>
    %297 = vector.extract_strided_slice %296 {offsets = [0, 0], sizes = [16, 32], strides = [1, 1]} : vector<16x96xf32> to vector<16x32xf32>
    %298 = vector.extract_strided_slice %296 {offsets = [0, 32], sizes = [16, 32], strides = [1, 1]} : vector<16x96xf32> to vector<16x32xf32>
    %299 = vector.extract_strided_slice %296 {offsets = [0, 64], sizes = [16, 32], strides = [1, 1]} : vector<16x96xf32> to vector<16x32xf32>
    %300 = vector.shape_cast %297 : vector<16x32xf32> to vector<2x8x32xf32>
    %301 = vector.extract_strided_slice %300 {offsets = [0, 0, 0], sizes = [2, 8, 8], strides = [1, 1, 1]} : vector<2x8x32xf32> to vector<2x8x8xf32>
    %302 = vector.extract_strided_slice %300 {offsets = [0, 0, 8], sizes = [2, 8, 8], strides = [1, 1, 1]} : vector<2x8x32xf32> to vector<2x8x8xf32>
    %303 = vector.extract_strided_slice %300 {offsets = [0, 0, 16], sizes = [2, 8, 8], strides = [1, 1, 1]} : vector<2x8x32xf32> to vector<2x8x8xf32>
    %304 = vector.extract_strided_slice %300 {offsets = [0, 0, 24], sizes = [2, 8, 8], strides = [1, 1, 1]} : vector<2x8x32xf32> to vector<2x8x8xf32>
    %305 = tpu.concatenate %301, %302, %303, %304 in 0 : vector<2x8x8xf32>, vector<2x8x8xf32>, vector<2x8x8xf32>, vector<2x8x8xf32> -> vector<8x8x8xf32>
    %306 = vector.shape_cast %298 : vector<16x32xf32> to vector<2x8x32xf32>
    %307 = vector.extract_strided_slice %306 {offsets = [0, 0, 0], sizes = [2, 8, 8], strides = [1, 1, 1]} : vector<2x8x32xf32> to vector<2x8x8xf32>
    %308 = vector.extract_strided_slice %306 {offsets = [0, 0, 8], sizes = [2, 8, 8], strides = [1, 1, 1]} : vector<2x8x32xf32> to vector<2x8x8xf32>
    %309 = vector.extract_strided_slice %306 {offsets = [0, 0, 16], sizes = [2, 8, 8], strides = [1, 1, 1]} : vector<2x8x32xf32> to vector<2x8x8xf32>
    %310 = vector.extract_strided_slice %306 {offsets = [0, 0, 24], sizes = [2, 8, 8], strides = [1, 1, 1]} : vector<2x8x32xf32> to vector<2x8x8xf32>
    %311 = tpu.concatenate %307, %308, %309, %310 in 0 : vector<2x8x8xf32>, vector<2x8x8xf32>, vector<2x8x8xf32>, vector<2x8x8xf32> -> vector<8x8x8xf32>
    %312 = vector.shape_cast %299 : vector<16x32xf32> to vector<2x8x32xf32>
    %313 = vector.extract_strided_slice %312 {offsets = [0, 0, 0], sizes = [2, 8, 8], strides = [1, 1, 1]} : vector<2x8x32xf32> to vector<2x8x8xf32>
    %314 = vector.extract_strided_slice %312 {offsets = [0, 0, 8], sizes = [2, 8, 8], strides = [1, 1, 1]} : vector<2x8x32xf32> to vector<2x8x8xf32>
    %315 = vector.extract_strided_slice %312 {offsets = [0, 0, 16], sizes = [2, 8, 8], strides = [1, 1, 1]} : vector<2x8x32xf32> to vector<2x8x8xf32>
    %316 = vector.extract_strided_slice %312 {offsets = [0, 0, 24], sizes = [2, 8, 8], strides = [1, 1, 1]} : vector<2x8x32xf32> to vector<2x8x8xf32>
    %317 = tpu.concatenate %313, %314, %315, %316 in 0 : vector<2x8x8xf32>, vector<2x8x8xf32>, vector<2x8x8xf32>, vector<2x8x8xf32> -> vector<8x8x8xf32>
    "tpu.trace_start"() <{level = 10 : i32, message = "bqd,bkd->bqk"}> : () -> ()
    %cst_93 = arith.constant dense<0.000000e+00> : vector<8x8x8xf32>
    %318 = tpu.matmul %305, %311, %cst_93 {dimension_numbers = #tpu.dot_dimension_numbers<[2], [2], [1], [1], [0, 0, 0, 1, 1, 1], [0], [0]>} : vector<8x8x8xf32>, vector<8x8x8xf32>, vector<8x8x8xf32> -> vector<8x8x8xf32>
    "tpu.trace_stop"() : () -> ()
    %319 = arith.addf %318, %15 : vector<8x8x8xf32>
    %cst_94 = arith.constant dense<0xFF800000> : vector<8x8xf32>
    %320 = vector.multi_reduction <maximumf>, %319, %cst_94 [2] : vector<8x8x8xf32> to vector<8x8xf32>
    %321 = vector.shape_cast %320 : vector<8x8xf32> to vector<8x8x1xf32>
    %322 = vector.broadcast %321 : vector<8x8x1xf32> to vector<8x8x8xf32>
    %323 = arith.subf %319, %322 : vector<8x8x8xf32>
    %324 = math.exp %323 : vector<8x8x8xf32>
    %cst_95 = arith.constant dense<0.000000e+00> : vector<8x8xf32>
    %325 = vector.multi_reduction <add>, %324, %cst_95 [2] : vector<8x8x8xf32> to vector<8x8xf32>
    %326 = vector.shape_cast %325 : vector<8x8xf32> to vector<8x8x1xf32>
    %327 = tpu.reciprocal %326 {approx = true} : vector<8x8x1xf32> -> vector<8x8x1xf32>
    %328 = vector.broadcast %327 : vector<8x8x1xf32> to vector<8x8x8xf32>
    %329 = arith.mulf %324, %328 : vector<8x8x8xf32>
    "tpu.trace_start"() <{level = 10 : i32, message = "bqk,bkd->bqd"}> : () -> ()
    %cst_96 = arith.constant dense<0.000000e+00> : vector<8x8x8xf32>
    %330 = tpu.matmul %329, %317, %cst_96 {dimension_numbers = #tpu.dot_dimension_numbers<[2], [1], [1], [2], [0, 0, 0, 1, 1, 2], [0], [0]>} : vector<8x8x8xf32>, vector<8x8x8xf32>, vector<8x8x8xf32> -> vector<8x8x8xf32>
    "tpu.trace_stop"() : () -> ()
    %331 = vector.extract_strided_slice %330 {offsets = [0, 0, 0], sizes = [2, 8, 8], strides = [1, 1, 1]} : vector<8x8x8xf32> to vector<2x8x8xf32>
    %332 = vector.extract_strided_slice %330 {offsets = [2, 0, 0], sizes = [2, 8, 8], strides = [1, 1, 1]} : vector<8x8x8xf32> to vector<2x8x8xf32>
    %333 = vector.extract_strided_slice %330 {offsets = [4, 0, 0], sizes = [2, 8, 8], strides = [1, 1, 1]} : vector<8x8x8xf32> to vector<2x8x8xf32>
    %334 = vector.extract_strided_slice %330 {offsets = [6, 0, 0], sizes = [2, 8, 8], strides = [1, 1, 1]} : vector<8x8x8xf32> to vector<2x8x8xf32>
    %335 = tpu.concatenate %331, %332, %333, %334 in 2 : vector<2x8x8xf32>, vector<2x8x8xf32>, vector<2x8x8xf32>, vector<2x8x8xf32> -> vector<2x8x32xf32>
    %336 = vector.shape_cast %335 : vector<2x8x32xf32> to vector<16x32xf32>
    %c352 = arith.constant 352 : index
    %c0_97 = arith.constant 0 : index
    %337 = vector.load %arg4[%c352, %c0_97] : memref<768x128xf32, #tpu.memory_space<vmem>>, vector<32x32xf32>
    %cst_98 = arith.constant dense<0.000000e+00> : vector<16x32xf32>
    %338 = tpu.matmul %336, %337, %cst_98 {dimension_numbers = #tpu.dot_dimension_numbers<[1], [0], [0], [1], [0, 0, 1, 1], [], []>} : vector<16x32xf32>, vector<32x32xf32>, vector<16x32xf32> -> vector<16x32xf32>
    %c17 = arith.constant 17 : index
    %c0_99 = arith.constant 0 : index
    %339 = vector.load %arg5[%c17, %c0_99] : memref<48x128xf32, #tpu.memory_space<vmem>>, vector<1x32xf32>
    %340 = vector.broadcast %339 : vector<1x32xf32> to vector<16x32xf32>
    %341 = arith.addf %338, %340 : vector<16x32xf32>
    %342 = arith.addf %267, %341 : vector<16x32xf32>
    %cst_100 = arith.constant dense<0.000000e+00> : vector<16xf32>
    %343 = vector.multi_reduction <add>, %342, %cst_100 [1] : vector<16x32xf32> to vector<16xf32>
    %344 = vector.shape_cast %343 : vector<16xf32> to vector<16x1xf32>
    %cst_101 = arith.constant 3.200000e+01 : f32
    %345 = vector.broadcast %cst_101 : f32 to vector<16x1xf32>
    %346 = arith.divf %344, %345 : vector<16x1xf32>
    %347 = vector.broadcast %346 : vector<16x1xf32> to vector<16x32xf32>
    %348 = arith.subf %342, %347 : vector<16x32xf32>
    %349 = arith.mulf %348, %348 : vector<16x32xf32>
    %cst_102 = arith.constant dense<0.000000e+00> : vector<16xf32>
    %350 = vector.multi_reduction <add>, %349, %cst_102 [1] : vector<16x32xf32> to vector<16xf32>
    %351 = vector.shape_cast %350 : vector<16xf32> to vector<16x1xf32>
    %cst_103 = arith.constant 3.200000e+01 : f32
    %352 = vector.broadcast %cst_103 : f32 to vector<16x1xf32>
    %353 = arith.divf %351, %352 : vector<16x1xf32>
    %354 = vector.broadcast %346 : vector<16x1xf32> to vector<16x32xf32>
    %355 = arith.subf %342, %354 : vector<16x32xf32>
    %cst_104 = arith.constant 9.99999997E-7 : f32
    %356 = vector.broadcast %cst_104 : f32 to vector<16x1xf32>
    %357 = arith.addf %353, %356 : vector<16x1xf32>
    %358 = math.rsqrt %357 : vector<16x1xf32>
    %359 = vector.broadcast %358 : vector<16x1xf32> to vector<16x32xf32>
    %360 = arith.mulf %355, %359 : vector<16x32xf32>
    %c22 = arith.constant 22 : index
    %c0_105 = arith.constant 0 : index
    %361 = vector.load %arg5[%c22, %c0_105] : memref<48x128xf32, #tpu.memory_space<vmem>>, vector<1x32xf32>
    %362 = vector.broadcast %361 : vector<1x32xf32> to vector<16x32xf32>
    %363 = arith.mulf %360, %362 : vector<16x32xf32>
    %c23 = arith.constant 23 : index
    %c0_106 = arith.constant 0 : index
    %364 = vector.load %arg5[%c23, %c0_106] : memref<48x128xf32, #tpu.memory_space<vmem>>, vector<1x32xf32>
    %365 = vector.broadcast %364 : vector<1x32xf32> to vector<16x32xf32>
    %366 = arith.addf %363, %365 : vector<16x32xf32>
    %c384 = arith.constant 384 : index
    %c0_107 = arith.constant 0 : index
    %367 = vector.load %arg4[%c384, %c0_107] : memref<768x128xf32, #tpu.memory_space<vmem>>, vector<32x32xf32>
    %cst_108 = arith.constant dense<0.000000e+00> : vector<16x32xf32>
    %368 = tpu.matmul %366, %367, %cst_108 {dimension_numbers = #tpu.dot_dimension_numbers<[1], [0], [0], [1], [0, 0, 1, 1], [], []>} : vector<16x32xf32>, vector<32x32xf32>, vector<16x32xf32> -> vector<16x32xf32>
    %c20 = arith.constant 20 : index
    %c0_109 = arith.constant 0 : index
    %369 = vector.load %arg5[%c20, %c0_109] : memref<48x128xf32, #tpu.memory_space<vmem>>, vector<1x32xf32>
    %370 = vector.broadcast %369 : vector<1x32xf32> to vector<16x32xf32>
    %371 = arith.addf %368, %370 : vector<16x32xf32>
    %c384_110 = arith.constant 384 : index
    %c32_111 = arith.constant 32 : index
    %372 = vector.load %arg4[%c384_110, %c32_111] : memref<768x128xf32, #tpu.memory_space<vmem>>, vector<32x64xf32>
    %cst_112 = arith.constant dense<0.000000e+00> : vector<16x64xf32>
    %373 = tpu.matmul %266, %372, %cst_112 {dimension_numbers = #tpu.dot_dimension_numbers<[1], [0], [0], [1], [0, 0, 1, 1], [], []>} : vector<16x32xf32>, vector<32x64xf32>, vector<16x64xf32> -> vector<16x64xf32>
    %c20_113 = arith.constant 20 : index
    %c32_114 = arith.constant 32 : index
    %374 = vector.load %arg5[%c20_113, %c32_114] : memref<48x128xf32, #tpu.memory_space<vmem>>, vector<1x64xf32>
    %375 = vector.broadcast %374 : vector<1x64xf32> to vector<16x64xf32>
    %376 = arith.addf %373, %375 : vector<16x64xf32>
    %377 = vector.extract_strided_slice %376 {offsets = [0, 0], sizes = [16, 32], strides = [1, 1]} : vector<16x64xf32> to vector<16x32xf32>
    %378 = vector.extract_strided_slice %376 {offsets = [0, 32], sizes = [16, 32], strides = [1, 1]} : vector<16x64xf32> to vector<16x32xf32>
    %379 = vector.shape_cast %371 : vector<16x32xf32> to vector<2x8x32xf32>
    %380 = vector.extract_strided_slice %379 {offsets = [0, 0, 0], sizes = [2, 8, 8], strides = [1, 1, 1]} : vector<2x8x32xf32> to vector<2x8x8xf32>
    %381 = vector.extract_strided_slice %379 {offsets = [0, 0, 8], sizes = [2, 8, 8], strides = [1, 1, 1]} : vector<2x8x32xf32> to vector<2x8x8xf32>
    %382 = vector.extract_strided_slice %379 {offsets = [0, 0, 16], sizes = [2, 8, 8], strides = [1, 1, 1]} : vector<2x8x32xf32> to vector<2x8x8xf32>
    %383 = vector.extract_strided_slice %379 {offsets = [0, 0, 24], sizes = [2, 8, 8], strides = [1, 1, 1]} : vector<2x8x32xf32> to vector<2x8x8xf32>
    %384 = tpu.concatenate %380, %381, %382, %383 in 0 : vector<2x8x8xf32>, vector<2x8x8xf32>, vector<2x8x8xf32>, vector<2x8x8xf32> -> vector<8x8x8xf32>
    %385 = vector.shape_cast %377 : vector<16x32xf32> to vector<2x8x32xf32>
    %386 = vector.extract_strided_slice %385 {offsets = [0, 0, 0], sizes = [2, 8, 8], strides = [1, 1, 1]} : vector<2x8x32xf32> to vector<2x8x8xf32>
    %387 = vector.extract_strided_slice %385 {offsets = [0, 0, 8], sizes = [2, 8, 8], strides = [1, 1, 1]} : vector<2x8x32xf32> to vector<2x8x8xf32>
    %388 = vector.extract_strided_slice %385 {offsets = [0, 0, 16], sizes = [2, 8, 8], strides = [1, 1, 1]} : vector<2x8x32xf32> to vector<2x8x8xf32>
    %389 = vector.extract_strided_slice %385 {offsets = [0, 0, 24], sizes = [2, 8, 8], strides = [1, 1, 1]} : vector<2x8x32xf32> to vector<2x8x8xf32>
    %390 = tpu.concatenate %386, %387, %388, %389 in 0 : vector<2x8x8xf32>, vector<2x8x8xf32>, vector<2x8x8xf32>, vector<2x8x8xf32> -> vector<8x8x8xf32>
    %391 = vector.shape_cast %378 : vector<16x32xf32> to vector<2x8x32xf32>
    %392 = vector.extract_strided_slice %391 {offsets = [0, 0, 0], sizes = [2, 8, 8], strides = [1, 1, 1]} : vector<2x8x32xf32> to vector<2x8x8xf32>
    %393 = vector.extract_strided_slice %391 {offsets = [0, 0, 8], sizes = [2, 8, 8], strides = [1, 1, 1]} : vector<2x8x32xf32> to vector<2x8x8xf32>
    %394 = vector.extract_strided_slice %391 {offsets = [0, 0, 16], sizes = [2, 8, 8], strides = [1, 1, 1]} : vector<2x8x32xf32> to vector<2x8x8xf32>
    %395 = vector.extract_strided_slice %391 {offsets = [0, 0, 24], sizes = [2, 8, 8], strides = [1, 1, 1]} : vector<2x8x32xf32> to vector<2x8x8xf32>
    %396 = tpu.concatenate %392, %393, %394, %395 in 0 : vector<2x8x8xf32>, vector<2x8x8xf32>, vector<2x8x8xf32>, vector<2x8x8xf32> -> vector<8x8x8xf32>
    "tpu.trace_start"() <{level = 10 : i32, message = "bqd,bkd->bqk"}> : () -> ()
    %cst_115 = arith.constant dense<0.000000e+00> : vector<8x8x8xf32>
    %397 = tpu.matmul %384, %390, %cst_115 {dimension_numbers = #tpu.dot_dimension_numbers<[2], [2], [1], [1], [0, 0, 0, 1, 1, 1], [0], [0]>} : vector<8x8x8xf32>, vector<8x8x8xf32>, vector<8x8x8xf32> -> vector<8x8x8xf32>
    "tpu.trace_stop"() : () -> ()
    %398 = vector.broadcast %7 : vector<8x1x8xf32> to vector<8x8x8xf32>
    %399 = arith.addf %397, %398 : vector<8x8x8xf32>
    %cst_116 = arith.constant dense<0xFF800000> : vector<8x8xf32>
    %400 = vector.multi_reduction <maximumf>, %399, %cst_116 [2] : vector<8x8x8xf32> to vector<8x8xf32>
    %401 = vector.shape_cast %400 : vector<8x8xf32> to vector<8x8x1xf32>
    %402 = vector.broadcast %401 : vector<8x8x1xf32> to vector<8x8x8xf32>
    %403 = arith.subf %399, %402 : vector<8x8x8xf32>
    %404 = math.exp %403 : vector<8x8x8xf32>
    %cst_117 = arith.constant dense<0.000000e+00> : vector<8x8xf32>
    %405 = vector.multi_reduction <add>, %404, %cst_117 [2] : vector<8x8x8xf32> to vector<8x8xf32>
    %406 = vector.shape_cast %405 : vector<8x8xf32> to vector<8x8x1xf32>
    %407 = tpu.reciprocal %406 {approx = true} : vector<8x8x1xf32> -> vector<8x8x1xf32>
    %408 = vector.broadcast %407 : vector<8x8x1xf32> to vector<8x8x8xf32>
    %409 = arith.mulf %404, %408 : vector<8x8x8xf32>
    "tpu.trace_start"() <{level = 10 : i32, message = "bqk,bkd->bqd"}> : () -> ()
    %cst_118 = arith.constant dense<0.000000e+00> : vector<8x8x8xf32>
    %410 = tpu.matmul %409, %396, %cst_118 {dimension_numbers = #tpu.dot_dimension_numbers<[2], [1], [1], [2], [0, 0, 0, 1, 1, 2], [0], [0]>} : vector<8x8x8xf32>, vector<8x8x8xf32>, vector<8x8x8xf32> -> vector<8x8x8xf32>
    "tpu.trace_stop"() : () -> ()
    %411 = vector.extract_strided_slice %410 {offsets = [0, 0, 0], sizes = [2, 8, 8], strides = [1, 1, 1]} : vector<8x8x8xf32> to vector<2x8x8xf32>
    %412 = vector.extract_strided_slice %410 {offsets = [2, 0, 0], sizes = [2, 8, 8], strides = [1, 1, 1]} : vector<8x8x8xf32> to vector<2x8x8xf32>
    %413 = vector.extract_strided_slice %410 {offsets = [4, 0, 0], sizes = [2, 8, 8], strides = [1, 1, 1]} : vector<8x8x8xf32> to vector<2x8x8xf32>
    %414 = vector.extract_strided_slice %410 {offsets = [6, 0, 0], sizes = [2, 8, 8], strides = [1, 1, 1]} : vector<8x8x8xf32> to vector<2x8x8xf32>
    %415 = tpu.concatenate %411, %412, %413, %414 in 2 : vector<2x8x8xf32>, vector<2x8x8xf32>, vector<2x8x8xf32>, vector<2x8x8xf32> -> vector<2x8x32xf32>
    %416 = vector.shape_cast %415 : vector<2x8x32xf32> to vector<16x32xf32>
    %c416 = arith.constant 416 : index
    %c0_119 = arith.constant 0 : index
    %417 = vector.load %arg4[%c416, %c0_119] : memref<768x128xf32, #tpu.memory_space<vmem>>, vector<32x32xf32>
    %cst_120 = arith.constant dense<0.000000e+00> : vector<16x32xf32>
    %418 = tpu.matmul %416, %417, %cst_120 {dimension_numbers = #tpu.dot_dimension_numbers<[1], [0], [0], [1], [0, 0, 1, 1], [], []>} : vector<16x32xf32>, vector<32x32xf32>, vector<16x32xf32> -> vector<16x32xf32>
    %c21 = arith.constant 21 : index
    %c0_121 = arith.constant 0 : index
    %419 = vector.load %arg5[%c21, %c0_121] : memref<48x128xf32, #tpu.memory_space<vmem>>, vector<1x32xf32>
    %420 = vector.broadcast %419 : vector<1x32xf32> to vector<16x32xf32>
    %421 = arith.addf %418, %420 : vector<16x32xf32>
    %422 = arith.addf %342, %421 : vector<16x32xf32>
    %cst_122 = arith.constant dense<0.000000e+00> : vector<16xf32>
    %423 = vector.multi_reduction <add>, %422, %cst_122 [1] : vector<16x32xf32> to vector<16xf32>
    %424 = vector.shape_cast %423 : vector<16xf32> to vector<16x1xf32>
    %cst_123 = arith.constant 3.200000e+01 : f32
    %425 = vector.broadcast %cst_123 : f32 to vector<16x1xf32>
    %426 = arith.divf %424, %425 : vector<16x1xf32>
    %427 = vector.broadcast %426 : vector<16x1xf32> to vector<16x32xf32>
    %428 = arith.subf %422, %427 : vector<16x32xf32>
    %429 = arith.mulf %428, %428 : vector<16x32xf32>
    %cst_124 = arith.constant dense<0.000000e+00> : vector<16xf32>
    %430 = vector.multi_reduction <add>, %429, %cst_124 [1] : vector<16x32xf32> to vector<16xf32>
    %431 = vector.shape_cast %430 : vector<16xf32> to vector<16x1xf32>
    %cst_125 = arith.constant 3.200000e+01 : f32
    %432 = vector.broadcast %cst_125 : f32 to vector<16x1xf32>
    %433 = arith.divf %431, %432 : vector<16x1xf32>
    %434 = vector.broadcast %426 : vector<16x1xf32> to vector<16x32xf32>
    %435 = arith.subf %422, %434 : vector<16x32xf32>
    %cst_126 = arith.constant 9.99999997E-7 : f32
    %436 = vector.broadcast %cst_126 : f32 to vector<16x1xf32>
    %437 = arith.addf %433, %436 : vector<16x1xf32>
    %438 = math.rsqrt %437 : vector<16x1xf32>
    %439 = vector.broadcast %438 : vector<16x1xf32> to vector<16x32xf32>
    %440 = arith.mulf %435, %439 : vector<16x32xf32>
    %c26 = arith.constant 26 : index
    %c0_127 = arith.constant 0 : index
    %441 = vector.load %arg5[%c26, %c0_127] : memref<48x128xf32, #tpu.memory_space<vmem>>, vector<1x32xf32>
    %442 = vector.broadcast %441 : vector<1x32xf32> to vector<16x32xf32>
    %443 = arith.mulf %440, %442 : vector<16x32xf32>
    %c27 = arith.constant 27 : index
    %c0_128 = arith.constant 0 : index
    %444 = vector.load %arg5[%c27, %c0_128] : memref<48x128xf32, #tpu.memory_space<vmem>>, vector<1x32xf32>
    %445 = vector.broadcast %444 : vector<1x32xf32> to vector<16x32xf32>
    %446 = arith.addf %443, %445 : vector<16x32xf32>
    %c448 = arith.constant 448 : index
    %c0_129 = arith.constant 0 : index
    %447 = vector.load %arg4[%c448, %c0_129] : memref<768x128xf32, #tpu.memory_space<vmem>>, vector<32x64xf32>
    %cst_130 = arith.constant dense<0.000000e+00> : vector<16x64xf32>
    %448 = tpu.matmul %446, %447, %cst_130 {dimension_numbers = #tpu.dot_dimension_numbers<[1], [0], [0], [1], [0, 0, 1, 1], [], []>} : vector<16x32xf32>, vector<32x64xf32>, vector<16x64xf32> -> vector<16x64xf32>
    %c24 = arith.constant 24 : index
    %c0_131 = arith.constant 0 : index
    %449 = vector.load %arg5[%c24, %c0_131] : memref<48x128xf32, #tpu.memory_space<vmem>>, vector<1x64xf32>
    %450 = vector.broadcast %449 : vector<1x64xf32> to vector<16x64xf32>
    %451 = arith.addf %448, %450 : vector<16x64xf32>
    %cst_132 = arith.constant 0.000000e+00 : f32
    %452 = vector.broadcast %cst_132 : f32 to vector<16x64xf32>
    %453 = arith.maximumf %451, %452 : vector<16x64xf32>
    %c480 = arith.constant 480 : index
    %c0_133 = arith.constant 0 : index
    %454 = vector.load %arg4[%c480, %c0_133] : memref<768x128xf32, #tpu.memory_space<vmem>>, vector<64x32xf32>
    %cst_134 = arith.constant dense<0.000000e+00> : vector<16x32xf32>
    %455 = tpu.matmul %453, %454, %cst_134 {dimension_numbers = #tpu.dot_dimension_numbers<[1], [0], [0], [1], [0, 0, 1, 1], [], []>} : vector<16x64xf32>, vector<64x32xf32>, vector<16x32xf32> -> vector<16x32xf32>
    %c25 = arith.constant 25 : index
    %c0_135 = arith.constant 0 : index
    %456 = vector.load %arg5[%c25, %c0_135] : memref<48x128xf32, #tpu.memory_space<vmem>>, vector<1x32xf32>
    %457 = vector.broadcast %456 : vector<1x32xf32> to vector<16x32xf32>
    %458 = arith.addf %455, %457 : vector<16x32xf32>
    %459 = arith.addf %422, %458 : vector<16x32xf32>
    %cst_136 = arith.constant dense<0.000000e+00> : vector<16xf32>
    %460 = vector.multi_reduction <add>, %459, %cst_136 [1] : vector<16x32xf32> to vector<16xf32>
    %461 = vector.shape_cast %460 : vector<16xf32> to vector<16x1xf32>
    %cst_137 = arith.constant 3.200000e+01 : f32
    %462 = vector.broadcast %cst_137 : f32 to vector<16x1xf32>
    %463 = arith.divf %461, %462 : vector<16x1xf32>
    %464 = vector.broadcast %463 : vector<16x1xf32> to vector<16x32xf32>
    %465 = arith.subf %459, %464 : vector<16x32xf32>
    %466 = arith.mulf %465, %465 : vector<16x32xf32>
    %cst_138 = arith.constant dense<0.000000e+00> : vector<16xf32>
    %467 = vector.multi_reduction <add>, %466, %cst_138 [1] : vector<16x32xf32> to vector<16xf32>
    %468 = vector.shape_cast %467 : vector<16xf32> to vector<16x1xf32>
    %cst_139 = arith.constant 3.200000e+01 : f32
    %469 = vector.broadcast %cst_139 : f32 to vector<16x1xf32>
    %470 = arith.divf %468, %469 : vector<16x1xf32>
    %471 = vector.broadcast %463 : vector<16x1xf32> to vector<16x32xf32>
    %472 = arith.subf %459, %471 : vector<16x32xf32>
    %cst_140 = arith.constant 9.99999997E-7 : f32
    %473 = vector.broadcast %cst_140 : f32 to vector<16x1xf32>
    %474 = arith.addf %470, %473 : vector<16x1xf32>
    %475 = math.rsqrt %474 : vector<16x1xf32>
    %476 = vector.broadcast %475 : vector<16x1xf32> to vector<16x32xf32>
    %477 = arith.mulf %472, %476 : vector<16x32xf32>
    %c30 = arith.constant 30 : index
    %c0_141 = arith.constant 0 : index
    %478 = vector.load %arg5[%c30, %c0_141] : memref<48x128xf32, #tpu.memory_space<vmem>>, vector<1x32xf32>
    %479 = vector.broadcast %478 : vector<1x32xf32> to vector<16x32xf32>
    %480 = arith.mulf %477, %479 : vector<16x32xf32>
    %c31 = arith.constant 31 : index
    %c0_142 = arith.constant 0 : index
    %481 = vector.load %arg5[%c31, %c0_142] : memref<48x128xf32, #tpu.memory_space<vmem>>, vector<1x32xf32>
    %482 = vector.broadcast %481 : vector<1x32xf32> to vector<16x32xf32>
    %483 = arith.addf %480, %482 : vector<16x32xf32>
    %c544 = arith.constant 544 : index
    %c0_143 = arith.constant 0 : index
    %484 = vector.load %arg4[%c544, %c0_143] : memref<768x128xf32, #tpu.memory_space<vmem>>, vector<32x96xf32>
    %cst_144 = arith.constant dense<0.000000e+00> : vector<16x96xf32>
    %485 = tpu.matmul %483, %484, %cst_144 {dimension_numbers = #tpu.dot_dimension_numbers<[1], [0], [0], [1], [0, 0, 1, 1], [], []>} : vector<16x32xf32>, vector<32x96xf32>, vector<16x96xf32> -> vector<16x96xf32>
    %c28 = arith.constant 28 : index
    %c0_145 = arith.constant 0 : index
    %486 = vector.load %arg5[%c28, %c0_145] : memref<48x128xf32, #tpu.memory_space<vmem>>, vector<1x96xf32>
    %487 = vector.broadcast %486 : vector<1x96xf32> to vector<16x96xf32>
    %488 = arith.addf %485, %487 : vector<16x96xf32>
    %489 = vector.extract_strided_slice %488 {offsets = [0, 0], sizes = [16, 32], strides = [1, 1]} : vector<16x96xf32> to vector<16x32xf32>
    %490 = vector.extract_strided_slice %488 {offsets = [0, 32], sizes = [16, 32], strides = [1, 1]} : vector<16x96xf32> to vector<16x32xf32>
    %491 = vector.extract_strided_slice %488 {offsets = [0, 64], sizes = [16, 32], strides = [1, 1]} : vector<16x96xf32> to vector<16x32xf32>
    %492 = vector.shape_cast %489 : vector<16x32xf32> to vector<2x8x32xf32>
    %493 = vector.extract_strided_slice %492 {offsets = [0, 0, 0], sizes = [2, 8, 8], strides = [1, 1, 1]} : vector<2x8x32xf32> to vector<2x8x8xf32>
    %494 = vector.extract_strided_slice %492 {offsets = [0, 0, 8], sizes = [2, 8, 8], strides = [1, 1, 1]} : vector<2x8x32xf32> to vector<2x8x8xf32>
    %495 = vector.extract_strided_slice %492 {offsets = [0, 0, 16], sizes = [2, 8, 8], strides = [1, 1, 1]} : vector<2x8x32xf32> to vector<2x8x8xf32>
    %496 = vector.extract_strided_slice %492 {offsets = [0, 0, 24], sizes = [2, 8, 8], strides = [1, 1, 1]} : vector<2x8x32xf32> to vector<2x8x8xf32>
    %497 = tpu.concatenate %493, %494, %495, %496 in 0 : vector<2x8x8xf32>, vector<2x8x8xf32>, vector<2x8x8xf32>, vector<2x8x8xf32> -> vector<8x8x8xf32>
    %498 = vector.shape_cast %490 : vector<16x32xf32> to vector<2x8x32xf32>
    %499 = vector.extract_strided_slice %498 {offsets = [0, 0, 0], sizes = [2, 8, 8], strides = [1, 1, 1]} : vector<2x8x32xf32> to vector<2x8x8xf32>
    %500 = vector.extract_strided_slice %498 {offsets = [0, 0, 8], sizes = [2, 8, 8], strides = [1, 1, 1]} : vector<2x8x32xf32> to vector<2x8x8xf32>
    %501 = vector.extract_strided_slice %498 {offsets = [0, 0, 16], sizes = [2, 8, 8], strides = [1, 1, 1]} : vector<2x8x32xf32> to vector<2x8x8xf32>
    %502 = vector.extract_strided_slice %498 {offsets = [0, 0, 24], sizes = [2, 8, 8], strides = [1, 1, 1]} : vector<2x8x32xf32> to vector<2x8x8xf32>
    %503 = tpu.concatenate %499, %500, %501, %502 in 0 : vector<2x8x8xf32>, vector<2x8x8xf32>, vector<2x8x8xf32>, vector<2x8x8xf32> -> vector<8x8x8xf32>
    %504 = vector.shape_cast %491 : vector<16x32xf32> to vector<2x8x32xf32>
    %505 = vector.extract_strided_slice %504 {offsets = [0, 0, 0], sizes = [2, 8, 8], strides = [1, 1, 1]} : vector<2x8x32xf32> to vector<2x8x8xf32>
    %506 = vector.extract_strided_slice %504 {offsets = [0, 0, 8], sizes = [2, 8, 8], strides = [1, 1, 1]} : vector<2x8x32xf32> to vector<2x8x8xf32>
    %507 = vector.extract_strided_slice %504 {offsets = [0, 0, 16], sizes = [2, 8, 8], strides = [1, 1, 1]} : vector<2x8x32xf32> to vector<2x8x8xf32>
    %508 = vector.extract_strided_slice %504 {offsets = [0, 0, 24], sizes = [2, 8, 8], strides = [1, 1, 1]} : vector<2x8x32xf32> to vector<2x8x8xf32>
    %509 = tpu.concatenate %505, %506, %507, %508 in 0 : vector<2x8x8xf32>, vector<2x8x8xf32>, vector<2x8x8xf32>, vector<2x8x8xf32> -> vector<8x8x8xf32>
    "tpu.trace_start"() <{level = 10 : i32, message = "bqd,bkd->bqk"}> : () -> ()
    %cst_146 = arith.constant dense<0.000000e+00> : vector<8x8x8xf32>
    %510 = tpu.matmul %497, %503, %cst_146 {dimension_numbers = #tpu.dot_dimension_numbers<[2], [2], [1], [1], [0, 0, 0, 1, 1, 1], [0], [0]>} : vector<8x8x8xf32>, vector<8x8x8xf32>, vector<8x8x8xf32> -> vector<8x8x8xf32>
    "tpu.trace_stop"() : () -> ()
    %511 = arith.addf %510, %15 : vector<8x8x8xf32>
    %cst_147 = arith.constant dense<0xFF800000> : vector<8x8xf32>
    %512 = vector.multi_reduction <maximumf>, %511, %cst_147 [2] : vector<8x8x8xf32> to vector<8x8xf32>
    %513 = vector.shape_cast %512 : vector<8x8xf32> to vector<8x8x1xf32>
    %514 = vector.broadcast %513 : vector<8x8x1xf32> to vector<8x8x8xf32>
    %515 = arith.subf %511, %514 : vector<8x8x8xf32>
    %516 = math.exp %515 : vector<8x8x8xf32>
    %cst_148 = arith.constant dense<0.000000e+00> : vector<8x8xf32>
    %517 = vector.multi_reduction <add>, %516, %cst_148 [2] : vector<8x8x8xf32> to vector<8x8xf32>
    %518 = vector.shape_cast %517 : vector<8x8xf32> to vector<8x8x1xf32>
    %519 = tpu.reciprocal %518 {approx = true} : vector<8x8x1xf32> -> vector<8x8x1xf32>
    %520 = vector.broadcast %519 : vector<8x8x1xf32> to vector<8x8x8xf32>
    %521 = arith.mulf %516, %520 : vector<8x8x8xf32>
    "tpu.trace_start"() <{level = 10 : i32, message = "bqk,bkd->bqd"}> : () -> ()
    %cst_149 = arith.constant dense<0.000000e+00> : vector<8x8x8xf32>
    %522 = tpu.matmul %521, %509, %cst_149 {dimension_numbers = #tpu.dot_dimension_numbers<[2], [1], [1], [2], [0, 0, 0, 1, 1, 2], [0], [0]>} : vector<8x8x8xf32>, vector<8x8x8xf32>, vector<8x8x8xf32> -> vector<8x8x8xf32>
    "tpu.trace_stop"() : () -> ()
    %523 = vector.extract_strided_slice %522 {offsets = [0, 0, 0], sizes = [2, 8, 8], strides = [1, 1, 1]} : vector<8x8x8xf32> to vector<2x8x8xf32>
    %524 = vector.extract_strided_slice %522 {offsets = [2, 0, 0], sizes = [2, 8, 8], strides = [1, 1, 1]} : vector<8x8x8xf32> to vector<2x8x8xf32>
    %525 = vector.extract_strided_slice %522 {offsets = [4, 0, 0], sizes = [2, 8, 8], strides = [1, 1, 1]} : vector<8x8x8xf32> to vector<2x8x8xf32>
    %526 = vector.extract_strided_slice %522 {offsets = [6, 0, 0], sizes = [2, 8, 8], strides = [1, 1, 1]} : vector<8x8x8xf32> to vector<2x8x8xf32>
    %527 = tpu.concatenate %523, %524, %525, %526 in 2 : vector<2x8x8xf32>, vector<2x8x8xf32>, vector<2x8x8xf32>, vector<2x8x8xf32> -> vector<2x8x32xf32>
    %528 = vector.shape_cast %527 : vector<2x8x32xf32> to vector<16x32xf32>
    %c576 = arith.constant 576 : index
    %c0_150 = arith.constant 0 : index
    %529 = vector.load %arg4[%c576, %c0_150] : memref<768x128xf32, #tpu.memory_space<vmem>>, vector<32x32xf32>
    %cst_151 = arith.constant dense<0.000000e+00> : vector<16x32xf32>
    %530 = tpu.matmul %528, %529, %cst_151 {dimension_numbers = #tpu.dot_dimension_numbers<[1], [0], [0], [1], [0, 0, 1, 1], [], []>} : vector<16x32xf32>, vector<32x32xf32>, vector<16x32xf32> -> vector<16x32xf32>
    %c29 = arith.constant 29 : index
    %c0_152 = arith.constant 0 : index
    %531 = vector.load %arg5[%c29, %c0_152] : memref<48x128xf32, #tpu.memory_space<vmem>>, vector<1x32xf32>
    %532 = vector.broadcast %531 : vector<1x32xf32> to vector<16x32xf32>
    %533 = arith.addf %530, %532 : vector<16x32xf32>
    %534 = arith.addf %459, %533 : vector<16x32xf32>
    %cst_153 = arith.constant dense<0.000000e+00> : vector<16xf32>
    %535 = vector.multi_reduction <add>, %534, %cst_153 [1] : vector<16x32xf32> to vector<16xf32>
    %536 = vector.shape_cast %535 : vector<16xf32> to vector<16x1xf32>
    %cst_154 = arith.constant 3.200000e+01 : f32
    %537 = vector.broadcast %cst_154 : f32 to vector<16x1xf32>
    %538 = arith.divf %536, %537 : vector<16x1xf32>
    %539 = vector.broadcast %538 : vector<16x1xf32> to vector<16x32xf32>
    %540 = arith.subf %534, %539 : vector<16x32xf32>
    %541 = arith.mulf %540, %540 : vector<16x32xf32>
    %cst_155 = arith.constant dense<0.000000e+00> : vector<16xf32>
    %542 = vector.multi_reduction <add>, %541, %cst_155 [1] : vector<16x32xf32> to vector<16xf32>
    %543 = vector.shape_cast %542 : vector<16xf32> to vector<16x1xf32>
    %cst_156 = arith.constant 3.200000e+01 : f32
    %544 = vector.broadcast %cst_156 : f32 to vector<16x1xf32>
    %545 = arith.divf %543, %544 : vector<16x1xf32>
    %546 = vector.broadcast %538 : vector<16x1xf32> to vector<16x32xf32>
    %547 = arith.subf %534, %546 : vector<16x32xf32>
    %cst_157 = arith.constant 9.99999997E-7 : f32
    %548 = vector.broadcast %cst_157 : f32 to vector<16x1xf32>
    %549 = arith.addf %545, %548 : vector<16x1xf32>
    %550 = math.rsqrt %549 : vector<16x1xf32>
    %551 = vector.broadcast %550 : vector<16x1xf32> to vector<16x32xf32>
    %552 = arith.mulf %547, %551 : vector<16x32xf32>
    %c34 = arith.constant 34 : index
    %c0_158 = arith.constant 0 : index
    %553 = vector.load %arg5[%c34, %c0_158] : memref<48x128xf32, #tpu.memory_space<vmem>>, vector<1x32xf32>
    %554 = vector.broadcast %553 : vector<1x32xf32> to vector<16x32xf32>
    %555 = arith.mulf %552, %554 : vector<16x32xf32>
    %c35 = arith.constant 35 : index
    %c0_159 = arith.constant 0 : index
    %556 = vector.load %arg5[%c35, %c0_159] : memref<48x128xf32, #tpu.memory_space<vmem>>, vector<1x32xf32>
    %557 = vector.broadcast %556 : vector<1x32xf32> to vector<16x32xf32>
    %558 = arith.addf %555, %557 : vector<16x32xf32>
    %c608 = arith.constant 608 : index
    %c0_160 = arith.constant 0 : index
    %559 = vector.load %arg4[%c608, %c0_160] : memref<768x128xf32, #tpu.memory_space<vmem>>, vector<32x32xf32>
    %cst_161 = arith.constant dense<0.000000e+00> : vector<16x32xf32>
    %560 = tpu.matmul %558, %559, %cst_161 {dimension_numbers = #tpu.dot_dimension_numbers<[1], [0], [0], [1], [0, 0, 1, 1], [], []>} : vector<16x32xf32>, vector<32x32xf32>, vector<16x32xf32> -> vector<16x32xf32>
    %c32_162 = arith.constant 32 : index
    %c0_163 = arith.constant 0 : index
    %561 = vector.load %arg5[%c32_162, %c0_163] : memref<48x128xf32, #tpu.memory_space<vmem>>, vector<1x32xf32>
    %562 = vector.broadcast %561 : vector<1x32xf32> to vector<16x32xf32>
    %563 = arith.addf %560, %562 : vector<16x32xf32>
    %c608_164 = arith.constant 608 : index
    %c32_165 = arith.constant 32 : index
    %564 = vector.load %arg4[%c608_164, %c32_165] : memref<768x128xf32, #tpu.memory_space<vmem>>, vector<32x64xf32>
    %cst_166 = arith.constant dense<0.000000e+00> : vector<16x64xf32>
    %565 = tpu.matmul %266, %564, %cst_166 {dimension_numbers = #tpu.dot_dimension_numbers<[1], [0], [0], [1], [0, 0, 1, 1], [], []>} : vector<16x32xf32>, vector<32x64xf32>, vector<16x64xf32> -> vector<16x64xf32>
    %c32_167 = arith.constant 32 : index
    %c32_168 = arith.constant 32 : index
    %566 = vector.load %arg5[%c32_167, %c32_168] : memref<48x128xf32, #tpu.memory_space<vmem>>, vector<1x64xf32>
    %567 = vector.broadcast %566 : vector<1x64xf32> to vector<16x64xf32>
    %568 = arith.addf %565, %567 : vector<16x64xf32>
    %569 = vector.extract_strided_slice %568 {offsets = [0, 0], sizes = [16, 32], strides = [1, 1]} : vector<16x64xf32> to vector<16x32xf32>
    %570 = vector.extract_strided_slice %568 {offsets = [0, 32], sizes = [16, 32], strides = [1, 1]} : vector<16x64xf32> to vector<16x32xf32>
    %571 = vector.shape_cast %563 : vector<16x32xf32> to vector<2x8x32xf32>
    %572 = vector.extract_strided_slice %571 {offsets = [0, 0, 0], sizes = [2, 8, 8], strides = [1, 1, 1]} : vector<2x8x32xf32> to vector<2x8x8xf32>
    %573 = vector.extract_strided_slice %571 {offsets = [0, 0, 8], sizes = [2, 8, 8], strides = [1, 1, 1]} : vector<2x8x32xf32> to vector<2x8x8xf32>
    %574 = vector.extract_strided_slice %571 {offsets = [0, 0, 16], sizes = [2, 8, 8], strides = [1, 1, 1]} : vector<2x8x32xf32> to vector<2x8x8xf32>
    %575 = vector.extract_strided_slice %571 {offsets = [0, 0, 24], sizes = [2, 8, 8], strides = [1, 1, 1]} : vector<2x8x32xf32> to vector<2x8x8xf32>
    %576 = tpu.concatenate %572, %573, %574, %575 in 0 : vector<2x8x8xf32>, vector<2x8x8xf32>, vector<2x8x8xf32>, vector<2x8x8xf32> -> vector<8x8x8xf32>
    %577 = vector.shape_cast %569 : vector<16x32xf32> to vector<2x8x32xf32>
    %578 = vector.extract_strided_slice %577 {offsets = [0, 0, 0], sizes = [2, 8, 8], strides = [1, 1, 1]} : vector<2x8x32xf32> to vector<2x8x8xf32>
    %579 = vector.extract_strided_slice %577 {offsets = [0, 0, 8], sizes = [2, 8, 8], strides = [1, 1, 1]} : vector<2x8x32xf32> to vector<2x8x8xf32>
    %580 = vector.extract_strided_slice %577 {offsets = [0, 0, 16], sizes = [2, 8, 8], strides = [1, 1, 1]} : vector<2x8x32xf32> to vector<2x8x8xf32>
    %581 = vector.extract_strided_slice %577 {offsets = [0, 0, 24], sizes = [2, 8, 8], strides = [1, 1, 1]} : vector<2x8x32xf32> to vector<2x8x8xf32>
    %582 = tpu.concatenate %578, %579, %580, %581 in 0 : vector<2x8x8xf32>, vector<2x8x8xf32>, vector<2x8x8xf32>, vector<2x8x8xf32> -> vector<8x8x8xf32>
    %583 = vector.shape_cast %570 : vector<16x32xf32> to vector<2x8x32xf32>
    %584 = vector.extract_strided_slice %583 {offsets = [0, 0, 0], sizes = [2, 8, 8], strides = [1, 1, 1]} : vector<2x8x32xf32> to vector<2x8x8xf32>
    %585 = vector.extract_strided_slice %583 {offsets = [0, 0, 8], sizes = [2, 8, 8], strides = [1, 1, 1]} : vector<2x8x32xf32> to vector<2x8x8xf32>
    %586 = vector.extract_strided_slice %583 {offsets = [0, 0, 16], sizes = [2, 8, 8], strides = [1, 1, 1]} : vector<2x8x32xf32> to vector<2x8x8xf32>
    %587 = vector.extract_strided_slice %583 {offsets = [0, 0, 24], sizes = [2, 8, 8], strides = [1, 1, 1]} : vector<2x8x32xf32> to vector<2x8x8xf32>
    %588 = tpu.concatenate %584, %585, %586, %587 in 0 : vector<2x8x8xf32>, vector<2x8x8xf32>, vector<2x8x8xf32>, vector<2x8x8xf32> -> vector<8x8x8xf32>
    "tpu.trace_start"() <{level = 10 : i32, message = "bqd,bkd->bqk"}> : () -> ()
    %cst_169 = arith.constant dense<0.000000e+00> : vector<8x8x8xf32>
    %589 = tpu.matmul %576, %582, %cst_169 {dimension_numbers = #tpu.dot_dimension_numbers<[2], [2], [1], [1], [0, 0, 0, 1, 1, 1], [0], [0]>} : vector<8x8x8xf32>, vector<8x8x8xf32>, vector<8x8x8xf32> -> vector<8x8x8xf32>
    "tpu.trace_stop"() : () -> ()
    %590 = vector.broadcast %7 : vector<8x1x8xf32> to vector<8x8x8xf32>
    %591 = arith.addf %589, %590 : vector<8x8x8xf32>
    %cst_170 = arith.constant dense<0xFF800000> : vector<8x8xf32>
    %592 = vector.multi_reduction <maximumf>, %591, %cst_170 [2] : vector<8x8x8xf32> to vector<8x8xf32>
    %593 = vector.shape_cast %592 : vector<8x8xf32> to vector<8x8x1xf32>
    %594 = vector.broadcast %593 : vector<8x8x1xf32> to vector<8x8x8xf32>
    %595 = arith.subf %591, %594 : vector<8x8x8xf32>
    %596 = math.exp %595 : vector<8x8x8xf32>
    %cst_171 = arith.constant dense<0.000000e+00> : vector<8x8xf32>
    %597 = vector.multi_reduction <add>, %596, %cst_171 [2] : vector<8x8x8xf32> to vector<8x8xf32>
    %598 = vector.shape_cast %597 : vector<8x8xf32> to vector<8x8x1xf32>
    %599 = tpu.reciprocal %598 {approx = true} : vector<8x8x1xf32> -> vector<8x8x1xf32>
    %600 = vector.broadcast %599 : vector<8x8x1xf32> to vector<8x8x8xf32>
    %601 = arith.mulf %596, %600 : vector<8x8x8xf32>
    "tpu.trace_start"() <{level = 10 : i32, message = "bqk,bkd->bqd"}> : () -> ()
    %cst_172 = arith.constant dense<0.000000e+00> : vector<8x8x8xf32>
    %602 = tpu.matmul %601, %588, %cst_172 {dimension_numbers = #tpu.dot_dimension_numbers<[2], [1], [1], [2], [0, 0, 0, 1, 1, 2], [0], [0]>} : vector<8x8x8xf32>, vector<8x8x8xf32>, vector<8x8x8xf32> -> vector<8x8x8xf32>
    "tpu.trace_stop"() : () -> ()
    %603 = vector.extract_strided_slice %602 {offsets = [0, 0, 0], sizes = [2, 8, 8], strides = [1, 1, 1]} : vector<8x8x8xf32> to vector<2x8x8xf32>
    %604 = vector.extract_strided_slice %602 {offsets = [2, 0, 0], sizes = [2, 8, 8], strides = [1, 1, 1]} : vector<8x8x8xf32> to vector<2x8x8xf32>
    %605 = vector.extract_strided_slice %602 {offsets = [4, 0, 0], sizes = [2, 8, 8], strides = [1, 1, 1]} : vector<8x8x8xf32> to vector<2x8x8xf32>
    %606 = vector.extract_strided_slice %602 {offsets = [6, 0, 0], sizes = [2, 8, 8], strides = [1, 1, 1]} : vector<8x8x8xf32> to vector<2x8x8xf32>
    %607 = tpu.concatenate %603, %604, %605, %606 in 2 : vector<2x8x8xf32>, vector<2x8x8xf32>, vector<2x8x8xf32>, vector<2x8x8xf32> -> vector<2x8x32xf32>
    %608 = vector.shape_cast %607 : vector<2x8x32xf32> to vector<16x32xf32>
    %c640 = arith.constant 640 : index
    %c0_173 = arith.constant 0 : index
    %609 = vector.load %arg4[%c640, %c0_173] : memref<768x128xf32, #tpu.memory_space<vmem>>, vector<32x32xf32>
    %cst_174 = arith.constant dense<0.000000e+00> : vector<16x32xf32>
    %610 = tpu.matmul %608, %609, %cst_174 {dimension_numbers = #tpu.dot_dimension_numbers<[1], [0], [0], [1], [0, 0, 1, 1], [], []>} : vector<16x32xf32>, vector<32x32xf32>, vector<16x32xf32> -> vector<16x32xf32>
    %c33 = arith.constant 33 : index
    %c0_175 = arith.constant 0 : index
    %611 = vector.load %arg5[%c33, %c0_175] : memref<48x128xf32, #tpu.memory_space<vmem>>, vector<1x32xf32>
    %612 = vector.broadcast %611 : vector<1x32xf32> to vector<16x32xf32>
    %613 = arith.addf %610, %612 : vector<16x32xf32>
    %614 = arith.addf %534, %613 : vector<16x32xf32>
    %cst_176 = arith.constant dense<0.000000e+00> : vector<16xf32>
    %615 = vector.multi_reduction <add>, %614, %cst_176 [1] : vector<16x32xf32> to vector<16xf32>
    %616 = vector.shape_cast %615 : vector<16xf32> to vector<16x1xf32>
    %cst_177 = arith.constant 3.200000e+01 : f32
    %617 = vector.broadcast %cst_177 : f32 to vector<16x1xf32>
    %618 = arith.divf %616, %617 : vector<16x1xf32>
    %619 = vector.broadcast %618 : vector<16x1xf32> to vector<16x32xf32>
    %620 = arith.subf %614, %619 : vector<16x32xf32>
    %621 = arith.mulf %620, %620 : vector<16x32xf32>
    %cst_178 = arith.constant dense<0.000000e+00> : vector<16xf32>
    %622 = vector.multi_reduction <add>, %621, %cst_178 [1] : vector<16x32xf32> to vector<16xf32>
    %623 = vector.shape_cast %622 : vector<16xf32> to vector<16x1xf32>
    %cst_179 = arith.constant 3.200000e+01 : f32
    %624 = vector.broadcast %cst_179 : f32 to vector<16x1xf32>
    %625 = arith.divf %623, %624 : vector<16x1xf32>
    %626 = vector.broadcast %618 : vector<16x1xf32> to vector<16x32xf32>
    %627 = arith.subf %614, %626 : vector<16x32xf32>
    %cst_180 = arith.constant 9.99999997E-7 : f32
    %628 = vector.broadcast %cst_180 : f32 to vector<16x1xf32>
    %629 = arith.addf %625, %628 : vector<16x1xf32>
    %630 = math.rsqrt %629 : vector<16x1xf32>
    %631 = vector.broadcast %630 : vector<16x1xf32> to vector<16x32xf32>
    %632 = arith.mulf %627, %631 : vector<16x32xf32>
    %c38 = arith.constant 38 : index
    %c0_181 = arith.constant 0 : index
    %633 = vector.load %arg5[%c38, %c0_181] : memref<48x128xf32, #tpu.memory_space<vmem>>, vector<1x32xf32>
    %634 = vector.broadcast %633 : vector<1x32xf32> to vector<16x32xf32>
    %635 = arith.mulf %632, %634 : vector<16x32xf32>
    %c39 = arith.constant 39 : index
    %c0_182 = arith.constant 0 : index
    %636 = vector.load %arg5[%c39, %c0_182] : memref<48x128xf32, #tpu.memory_space<vmem>>, vector<1x32xf32>
    %637 = vector.broadcast %636 : vector<1x32xf32> to vector<16x32xf32>
    %638 = arith.addf %635, %637 : vector<16x32xf32>
    %c672 = arith.constant 672 : index
    %c0_183 = arith.constant 0 : index
    %639 = vector.load %arg4[%c672, %c0_183] : memref<768x128xf32, #tpu.memory_space<vmem>>, vector<32x64xf32>
    %cst_184 = arith.constant dense<0.000000e+00> : vector<16x64xf32>
    %640 = tpu.matmul %638, %639, %cst_184 {dimension_numbers = #tpu.dot_dimension_numbers<[1], [0], [0], [1], [0, 0, 1, 1], [], []>} : vector<16x32xf32>, vector<32x64xf32>, vector<16x64xf32> -> vector<16x64xf32>
    %c36 = arith.constant 36 : index
    %c0_185 = arith.constant 0 : index
    %641 = vector.load %arg5[%c36, %c0_185] : memref<48x128xf32, #tpu.memory_space<vmem>>, vector<1x64xf32>
    %642 = vector.broadcast %641 : vector<1x64xf32> to vector<16x64xf32>
    %643 = arith.addf %640, %642 : vector<16x64xf32>
    %cst_186 = arith.constant 0.000000e+00 : f32
    %644 = vector.broadcast %cst_186 : f32 to vector<16x64xf32>
    %645 = arith.maximumf %643, %644 : vector<16x64xf32>
    %c704 = arith.constant 704 : index
    %c0_187 = arith.constant 0 : index
    %646 = vector.load %arg4[%c704, %c0_187] : memref<768x128xf32, #tpu.memory_space<vmem>>, vector<64x32xf32>
    %cst_188 = arith.constant dense<0.000000e+00> : vector<16x32xf32>
    %647 = tpu.matmul %645, %646, %cst_188 {dimension_numbers = #tpu.dot_dimension_numbers<[1], [0], [0], [1], [0, 0, 1, 1], [], []>} : vector<16x64xf32>, vector<64x32xf32>, vector<16x32xf32> -> vector<16x32xf32>
    %c37 = arith.constant 37 : index
    %c0_189 = arith.constant 0 : index
    %648 = vector.load %arg5[%c37, %c0_189] : memref<48x128xf32, #tpu.memory_space<vmem>>, vector<1x32xf32>
    %649 = vector.broadcast %648 : vector<1x32xf32> to vector<16x32xf32>
    %650 = arith.addf %647, %649 : vector<16x32xf32>
    %651 = arith.addf %614, %650 : vector<16x32xf32>
    %cst_190 = arith.constant dense<0.000000e+00> : vector<16xf32>
    %652 = vector.multi_reduction <add>, %651, %cst_190 [1] : vector<16x32xf32> to vector<16xf32>
    %653 = vector.shape_cast %652 : vector<16xf32> to vector<16x1xf32>
    %cst_191 = arith.constant 3.200000e+01 : f32
    %654 = vector.broadcast %cst_191 : f32 to vector<16x1xf32>
    %655 = arith.divf %653, %654 : vector<16x1xf32>
    %656 = vector.broadcast %655 : vector<16x1xf32> to vector<16x32xf32>
    %657 = arith.subf %651, %656 : vector<16x32xf32>
    %658 = arith.mulf %657, %657 : vector<16x32xf32>
    %cst_192 = arith.constant dense<0.000000e+00> : vector<16xf32>
    %659 = vector.multi_reduction <add>, %658, %cst_192 [1] : vector<16x32xf32> to vector<16xf32>
    %660 = vector.shape_cast %659 : vector<16xf32> to vector<16x1xf32>
    %cst_193 = arith.constant 3.200000e+01 : f32
    %661 = vector.broadcast %cst_193 : f32 to vector<16x1xf32>
    %662 = arith.divf %660, %661 : vector<16x1xf32>
    %663 = vector.broadcast %655 : vector<16x1xf32> to vector<16x32xf32>
    %664 = arith.subf %651, %663 : vector<16x32xf32>
    %cst_194 = arith.constant 9.99999997E-7 : f32
    %665 = vector.broadcast %cst_194 : f32 to vector<16x1xf32>
    %666 = arith.addf %662, %665 : vector<16x1xf32>
    %667 = math.rsqrt %666 : vector<16x1xf32>
    %668 = vector.broadcast %667 : vector<16x1xf32> to vector<16x32xf32>
    %669 = arith.mulf %664, %668 : vector<16x32xf32>
    %c42 = arith.constant 42 : index
    %c0_195 = arith.constant 0 : index
    %670 = vector.load %arg5[%c42, %c0_195] : memref<48x128xf32, #tpu.memory_space<vmem>>, vector<1x32xf32>
    %671 = vector.broadcast %670 : vector<1x32xf32> to vector<16x32xf32>
    %672 = arith.mulf %669, %671 : vector<16x32xf32>
    %c43 = arith.constant 43 : index
    %c0_196 = arith.constant 0 : index
    %673 = vector.load %arg5[%c43, %c0_196] : memref<48x128xf32, #tpu.memory_space<vmem>>, vector<1x32xf32>
    %674 = vector.broadcast %673 : vector<1x32xf32> to vector<16x32xf32>
    %675 = arith.addf %672, %674 : vector<16x32xf32>
    %c0_197 = arith.constant 0 : index
    %c0_198 = arith.constant 0 : index
    %676 = vector.load %arg6[%c0_197, %c0_198] : memref<16x32xf32, #tpu.memory_space<vmem>>, vector<16x32xf32>
    tpu.vector_store %arg6[%c0_197, %c0_198], %675 {strides = array<i32>} : memref<16x32xf32, #tpu.memory_space<vmem>>, vector<16x32xf32>,
    return
  }
}

</mosaic_0001>

<llo_original>
// kernel: encoder_decoder_forward.1
$region0: #{encoder_decoder_forward.1}
  #allocation0 [shape = 'u32[]', space=smem, size = 0x4, offset = 0x4, fixed_abs, tag = 'smem constant byte address 0x4 - core index']
  #allocation1 [shape = 'u32[144,128]{1,0:T(1,128)}', space=vmem, size = 0x12000, scoped, tag = 'internal scratch']
  %s0 = inlined_call_operand.vmem [shape: f32[16,32], index: 0, kind: input, shape index: {}]
  %s1 = inlined_call_operand.hbm [shape: f32[16,32], index: 1, kind: input, shape index: {}]
  %s2 = inlined_call_operand.vmem [shape: f32[2,8], index: 2, kind: input, shape index: {}]
  %s3 = inlined_call_operand.vmem [shape: f32[16,8], index: 3, kind: input, shape index: {}]
  %s4 = inlined_call_operand.hbm [shape: f32[768,128], index: 4, kind: input, shape index: {}]
  %s5 = inlined_call_operand.hbm [shape: f32[48,128], index: 5, kind: input, shape index: {}]
  %s6 = inlined_call_operand.hbm [shape: f32[16,32], index: 6, kind: output, shape index: {}]
  %s7 = sld [smem:[#allocation0]]
  $region46: #{encoder_decoder_forward.1} parent=0
    _
  %s9 = ssub.s32 1, %s7
  %s10 = scalar_select 0, %s9, %s7
  $region1: #{encoder_decoder_forward.1} parent=0
    #allocation2 [shape = 'u8[8192]{0}', space=vmem, size = 0x2000, scoped, tag = 'input window, operand 1, single buffered']
    #allocation3 [shape = 's32[1]{0}', space=sflag, size = 0x4, scoped, tag = 'scoped memory for encoder_decoder_forward.1']
    #allocation4 [shape = 's32[1]{0}', space=sflag, size = 0x4, scoped, tag = 'scoped memory for encoder_decoder_forward.1']
    #allocation5 [shape = 'u8[393216]{0}', space=vmem, size = 0x60000, scoped, tag = 'input window, operand 4, single buffered']
    #allocation6 [shape = 's32[1]{0}', space=sflag, size = 0x4, scoped, tag = 'scoped memory for encoder_decoder_forward.1']
    #allocation7 [shape = 'u8[24576]{0}', space=vmem, size = 0x6000, scoped, tag = 'input window, operand 5, single buffered']
    #allocation8 [shape = 'u8[8192]{0}', space=vmem, size = 0x2000, scoped, tag = 'output window, operand 0, single buffered']
    %11 = vsyncpa [#allocation3], 0
    %12 = vsyncpa [#allocation6], 0
    %13 = vsyncpa [#allocation4], 0
    // Predicated region
    $region2: #{encoder_decoder_forward.1} parent=1 // pred_check
      _
    $region3: #{encoder_decoder_forward.1} parent=1 // pred_check_branch
      %15 = sbr.rel (0) target = $region5
    $region4: #{encoder_decoder_forward.1} parent=1 // pred_region
      _
    $region5: #{encoder_decoder_forward.1} parent=1 // pred_fallthru
      _
    // Predicated region
    $region6: #{encoder_decoder_forward.1} parent=1 // pred_check
      _
    $region7: #{encoder_decoder_forward.1} parent=1 // pred_check_branch
      %17 = sbr.rel (0) target = $region9
    $region8: #{encoder_decoder_forward.1} parent=1 // pred_region
      %s19 = ssub.s32 256, 256
      %20 = vsyncadd [#allocation3], %s19
      %s21 = sshll.u32 [#allocation2], 4
      %s22 = int_to_ptr.vmem [resolvable:$true] %s21
      %27 = dma.hbm_to_vmem [thread:$0]  %s1, 256, %s22, [#allocation3], 128, 128, 8
    $region9: #{encoder_decoder_forward.1} parent=1 // pred_fallthru
      _
    // Predicated region
    $region10: #{encoder_decoder_forward.1} parent=1 // pred_check
      _
    $region11: #{encoder_decoder_forward.1} parent=1 // pred_check_branch
      %29 = sbr.rel (0) target = $region13
    $region12: #{encoder_decoder_forward.1} parent=1 // pred_region
      _
    $region13: #{encoder_decoder_forward.1} parent=1 // pred_fallthru
      _
    // Predicated region
    $region14: #{encoder_decoder_forward.1} parent=1 // pred_check
      _
    $region15: #{encoder_decoder_forward.1} parent=1 // pred_check_branch
      %31 = sbr.rel (0) target = $region17
    $region16: #{encoder_decoder_forward.1} parent=1 // pred_region
      _
    $region17: #{encoder_decoder_forward.1} parent=1 // pred_fallthru
      _
    // Predicated region
    $region18: #{encoder_decoder_forward.1} parent=1 // pred_check
      _
    $region19: #{encoder_decoder_forward.1} parent=1 // pred_check_branch
      %33 = sbr.rel (0) target = $region21
    $region20: #{encoder_decoder_forward.1} parent=1 // pred_region
      %s35 = ssub.s32 12288, 12288
      %36 = vsyncadd [#allocation6], %s35
      %s37 = sshll.u32 [#allocation5], 4
      %s38 = int_to_ptr.vmem [resolvable:$true] %s37
      %43 = dma.hbm_to_vmem [thread:$0]  %s4, 12288, %s38, [#allocation6], 128, 128, 8
    $region21: #{encoder_decoder_forward.1} parent=1 // pred_fallthru
      _
    // Predicated region
    $region22: #{encoder_decoder_forward.1} parent=1 // pred_check
      _
    $region23: #{encoder_decoder_forward.1} parent=1 // pred_check_branch
      %45 = sbr.rel (0) target = $region25
    $region24: #{encoder_decoder_forward.1} parent=1 // pred_region
      %s47 = ssub.s32 768, 768
      %48 = vsyncadd [#allocation6], %s47
      %s49 = sshll.u32 [#allocation7], 4
      %s50 = int_to_ptr.vmem [resolvable:$true] %s49
      %55 = dma.hbm_to_vmem [thread:$0]  %s5, 768, %s50, [#allocation6], 128, 128, 8
    $region25: #{encoder_decoder_forward.1} parent=1 // pred_fallthru
      _
    // Predicated region
    $region26: #{encoder_decoder_forward.1} parent=1 // pred_check
      _
    $region27: #{encoder_decoder_forward.1} parent=1 // pred_check_branch
      %57 = sbr.rel (0) target = $region29
    $region28: #{encoder_decoder_forward.1} parent=1 // pred_region
      %58 = dma.done [#allocation3], 256
    $region29: #{encoder_decoder_forward.1} parent=1 // pred_fallthru
      _
    // Predicated region
    $region30: #{encoder_decoder_forward.1} parent=1 // pred_check
      _
    $region31: #{encoder_decoder_forward.1} parent=1 // pred_check_branch
      %60 = sbr.rel (0) target = $region33
    $region32: #{encoder_decoder_forward.1} parent=1 // pred_region
      %61 = dma.done [#allocation6], 12288
    $region33: #{encoder_decoder_forward.1} parent=1 // pred_fallthru
      _
    // Predicated region
    $region34: #{encoder_decoder_forward.1} parent=1 // pred_check
      _
    $region35: #{encoder_decoder_forward.1} parent=1 // pred_check_branch
      %63 = sbr.rel (0) target = $region37
    $region36: #{encoder_decoder_forward.1} parent=1 // pred_region
      %64 = dma.done [#allocation6], 768
    $region37: #{encoder_decoder_forward.1} parent=1 // pred_fallthru
      _
    %v65 = vld [vmem:[%s2] sm:$0x3]
    %vm66 = vcmp.gt.f32.partialorder %v65, 0.0
    %v67 = vsel %vm66, 0.0, -1e+09
    %v70 = vunpack.c.l.s4 1966171168
    %v71 = vunpack.c.0.s8 %v70
    %v72 = vlaneseq
    %v73 = vshrl.u32 %v72, 7
    %v74 = vsub.s32 %v71, %v73
    %v75 = vrot.slane %v67, %v74
    %v76 = vcombine.high %v75, %v75
    %v78 = vunpack.c.l.s4 1966171168
    %v79 = vunpack.c.0.s8 %v78
    %v80 = vlaneseq
    %v81 = vshrl.u32 %v80, 7
    %v82 = vsub.s32 %v79, %v81
    %v83 = vrot.slane %v75, %v82
    %v85 = vunpack.c.l.s4 1966171168
    %v86 = vunpack.c.0.s8 %v85
    %v87 = vlaneseq
    %v88 = vshrl.u32 %v87, 7
    %v89 = vsub.s32 %v86, %v88
    %v90 = vrot.slane %v76, %v89
    %v91 = vld [vmem:[%s3] sm:$0xff]
    %v92 = vld [vmem:[%s3 + $0x8] sm:$0xff]
    %vm93 = vcmp.gt.f32.partialorder %v91, 0.0
    %vm94 = vcmp.gt.f32.partialorder %v92, 0.0
    %v95 = vsel %vm93, 0.0, -1e+09
    %v96 = vsel %vm94, 0.0, -1e+09
    %v97 = vld [vmem:[%s0] sm:$0xff]
    %v98 = vld [vmem:[%s0 + $0x8] sm:$0xff]
    %vm99 = vcmask 261120
    %v100 = vsel %vm99, %v97, 0.0
    %101 = vadd.xlane.f32.xlu0 %v100
    %v102 = vpop.xlane.xlu0 %101
    %v103 = vsel %vm99, %v98, 0.0
    %104 = vadd.xlane.f32.xlu0 %v103
    %v105 = vpop.xlane.xlu0 %104
    %v106 = vrcp.pop 32.0
    %v107 = vmul.f32 %v102, %v106
    %v108 = vmul.f32 %v105, %v106
    %v109 = vsub.f32 %v97, %v107
    %v110 = vsub.f32 %v98, %v108
    %v111 = vmul.f32 %v109, %v109
    %v112 = vmul.f32 %v110, %v110
    %v113 = vsel %vm99, %v111, 0.0
    %114 = vadd.xlane.f32.xlu0 %v113
    %v115 = vpop.xlane.xlu0 %114
    %v116 = vsel %vm99, %v112, 0.0
    %117 = vadd.xlane.f32.xlu0 %v116
    %v118 = vpop.xlane.xlu0 %117
    %v119 = vmul.f32 %v115, %v106
    %v120 = vmul.f32 %v118, %v106
    %v121 = vadd.f32 %v119, 1e-06
    %v122 = vadd.f32 %v120, 1e-06
    %v123 = vrsqrt.pop %v121
    %v124 = vrsqrt.pop %v122
    %v125 = vmul.f32 %v109, %v123
    %v126 = vmul.f32 %v110, %v124
    %v127 = vld [vmem:[#allocation7 + $0x2] sm:$0x1]
    %v128 = vlaneseq
    %v129 = vshrl.u32 %v128, 7
    %v130 = vsub.s32 0, %v129
    %v131 = vrot.slane %v127, %v130
    %v132 = vmul.f32 %v125, %v131
    %v133 = vmul.f32 %v126, %v131
    %v134 = vld [vmem:[#allocation7 + $0x3] sm:$0x1]
    %v135 = vlaneseq
    %v136 = vshrl.u32 %v135, 7
    %v137 = vsub.s32 0, %v136
    %v138 = vrot.slane %v134, %v137
    %v139 = vadd.f32 %v132, %v138
    %v140 = vadd.f32 %v133, %v138
    %v141 = vld [vmem:[#allocation5] sm:$0xff]
    %v142 = vld [vmem:[#allocation5 + $0x8] sm:$0xff]
    %v143 = vld [vmem:[#allocation5 + $0x10] sm:$0xff]
    %v144 = vld [vmem:[#allocation5 + $0x18] sm:$0xff]
    %v145 = vld [vmem:[#allocation7] sm:$0x1]
    %v146 = vlaneseq
    %v147 = vshrl.u32 %v146, 7
    %v148 = vsub.s32 0, %v147
    %v149 = vrot.slane %v145, %v148
    %v151 = vsel %vm99, %v139, 0
    %v154 = vsel %vm99, %v140, 0
    %156 = vmatprep.subr.mxu0 0.0
    %157 = vmatpush1.msra.mxu0 %v141
    %158 = vmatprep.subr.mxu0 0.0
    %159 = vmatpush1.msra.mxu0 %v142
    %160 = vmatprep.subr.mxu0 0.0
    %161 = vmatpush1.msra.mxu0 %v143
    %162 = vmatprep.subr.mxu0 0.0
    %163 = vmatpush1.msra.mxu0 %v144
    %164 = vmatprep.subr.mxu0 0.0
    %165 = vmatpush1.msra.mxu0 0.0
    %166 = vmatprep.subr.mxu0 0.0
    %167 = vmatpush1.msra.mxu0 0.0
    %168 = vmatprep.subr.mxu0 0.0
    %169 = vmatpush1.msra.mxu0 0.0
    %170 = vmatprep.subr.mxu0 0.0
    %171 = vmatpush1.msra.mxu0 0.0
    %172 = vmatprep.subr.mxu0 0.0
    %173 = vmatpush1.msra.mxu0 0.0
    %174 = vmatprep.subr.mxu0 0.0
    %175 = vmatpush1.msra.mxu0 0.0
    %176 = vmatprep.subr.mxu0 0.0
    %177 = vmatpush1.msra.mxu0 0.0
    %178 = vmatprep.subr.mxu0 0.0
    %179 = vmatpush1.msra.mxu0 0.0
    %180 = vmatprep.subr.mxu0 0.0
    %181 = vmatpush1.msra.mxu0 0.0
    %182 = vmatprep.subr.mxu0 0.0
    %183 = vmatpush1.msra.mxu0 0.0
    %184 = vmatprep.subr.mxu0 0.0
    %185 = vmatpush1.msra.mxu0 0.0
    %186 = vmatprep.subr.mxu0 0.0
    %187 = vmatpush1.msra.mxu0 0.0
    %188 = vmatprep.subr.mxu0 0.0
    %189 = vmatpush1.msra.mxu0 0.0
    %190 = vmatprep.subr.mxu0 0.0
    %191 = vmatpush1.msra.mxu0 0.0
    %192 = vmatprep.subr.mxu0 0.0
    %193 = vmatpush1.msra.mxu0 0.0
    %194 = vmatprep.subr.mxu0 0.0
    %195 = vmatpush1.msra.mxu0 0.0
    %196 = vmatprep.subr.mxu0 0.0
    %197 = vmatpush1.msra.mxu0 0.0
    %198 = vmatprep.subr.mxu0 0.0
    %199 = vmatpush1.msra.mxu0 0.0
    %200 = vmatprep.subr.mxu0 0.0
    %201 = vmatpush1.msra.mxu0 0.0
    %202 = vmatprep.subr.mxu0 0.0
    %203 = vmatpush1.msra.mxu0 0.0
    %204 = vmatprep.subr.mxu0 0.0
    %205 = vmatpush1.msra.mxu0 0.0
    %206 = vmatprep.subr.mxu0 0.0
    %207 = vmatpush1.msra.mxu0 0.0
    %208 = vmatprep.subr.mxu0 0.0
    %209 = vmatpush1.msra.mxu0 0.0
    %210 = vmatprep.subr.mxu0 0.0
    %211 = vmatpush1.msra.mxu0 0.0
    %212 = vmatprep.subr.mxu0 0.0
    %213 = vmatpush1.msra.mxu0 0.0
    %214 = vmatprep.subr.mxu0 0.0
    %215 = vmatpush1.msra.mxu0 0.0
    %216 = vmatprep.subr.mxu0 0.0
    %217 = vmatpush1.msra.mxu0 0.0
    %218 = vmatprep.subr.mxu0 0.0
    %219 = vmatpush1.msra.mxu0 0.0
    %220 = vmatprep.mubr.f32.mxu0 0.0
    %221 = vmatmul.mubr.f32.gmra.mrb[0].mxu0 %v151
    %v222 = vpop.f32.mrb[0].mxu0
    %v223 = vadd.f32 %v149, %v222
    %v224 = vpop.f32.mrb[0].mxu0
    %225 = vmatprep.mubr.f32.mxu0 0.0
    %226 = vmatmul.mubr.f32.gmra.mrb[0].mxu0 %v154
    %v227 = vpop.f32.mrb[0].mxu0
    %v228 = vadd.f32 %v149, %v227
    %v229 = vpop.f32.mrb[0].mxu0
    %230 = vdwg.mxu0
    %233 = vrot.lane.b32.xlu0 %v223, 120
    %v234 = vpop.permute.xlu0 %233
    %235 = vrot.lane.b32.xlu0 %v228, 120
    %v236 = vpop.permute.xlu0 %235
    %237 = vrot.lane.b32.xlu0 %v223, 112
    %v238 = vpop.permute.xlu0 %237
    %239 = vrot.lane.b32.xlu0 %v228, 112
    %v240 = vpop.permute.xlu0 %239
    %241 = vrot.lane.b32.xlu0 %v223, 104
    %v242 = vpop.permute.xlu0 %241
    %243 = vrot.lane.b32.xlu0 %v228, 104
    %v244 = vpop.permute.xlu0 %243
    %v245 = vlaneseq
    %v246 = vshrl.u32 %v245, 7
    %v247 = vsub.s32 0, %v246
    %v248 = vrot.slane %v83, %v247
    %v249 = vlaneseq
    %v250 = vshrl.u32 %v249, 7
    %v251 = vsub.s32 0, %v250
    %v252 = vrot.slane %v90, %v251
    %255 = vrot.lane.b32.xlu0 %v223, 96
    %v256 = vpop.permute.xlu0 %255
    %vm257 = vcmask 64512
    %v258 = vsel %vm257, %v223, 0
    %v260 = vsel %vm257, %v256, 0
    %262 = vmatprep.subr.mxu0 0.0
    %263 = vmatpush1.xpose.msra.mxu0 %v260
    %264 = vmatprep.subr.mxu0 0.0
    %265 = vmatpush1.xpose.msra.mxu0 0.0
    %266 = vmatprep.subr.mxu0 0.0
    %267 = vmatpush1.xpose.msra.mxu0 0.0
    %268 = vmatprep.subr.mxu0 0.0
    %269 = vmatpush1.xpose.msra.mxu0 0.0
    %270 = vmatprep.subr.mxu0 0.0
    %271 = vmatpush1.xpose.msra.mxu0 0.0
    %272 = vmatprep.subr.mxu0 0.0
    %273 = vmatpush1.xpose.msra.mxu0 0.0
    %274 = vmatprep.subr.mxu0 0.0
    %275 = vmatpush1.xpose.msra.mxu0 0.0
    %276 = vmatprep.subr.mxu0 0.0
    %277 = vmatpush1.xpose.msra.mxu0 0.0
    %278 = vmatprep.subr.mxu0 0.0
    %279 = vmatpush1.xpose.msra.mxu0 0.0
    %280 = vmatprep.subr.mxu0 0.0
    %281 = vmatpush1.xpose.msra.mxu0 0.0
    %282 = vmatprep.subr.mxu0 0.0
    %283 = vmatpush1.xpose.msra.mxu0 0.0
    %284 = vmatprep.subr.mxu0 0.0
    %285 = vmatpush1.xpose.msra.mxu0 0.0
    %286 = vmatprep.subr.mxu0 0.0
    %287 = vmatpush1.xpose.msra.mxu0 0.0
    %288 = vmatprep.subr.mxu0 0.0
    %289 = vmatpush1.xpose.msra.mxu0 0.0
    %290 = vmatprep.subr.mxu0 0.0
    %291 = vmatpush1.xpose.msra.mxu0 0.0
    %292 = vmatprep.subr.mxu0 0.0
    %293 = vmatpush1.xpose.msra.mxu0 0.0
    %294 = vmatprep.subr.mxu0 0.0
    %295 = vmatpush1.xpose.msra.mxu0 0.0
    %296 = vmatprep.subr.mxu0 0.0
    %297 = vmatpush1.xpose.msra.mxu0 0.0
    %298 = vmatprep.subr.mxu0 0.0
    %299 = vmatpush1.xpose.msra.mxu0 0.0
    %300 = vmatprep.subr.mxu0 0.0
    %301 = vmatpush1.xpose.msra.mxu0 0.0
    %302 = vmatprep.subr.mxu0 0.0
    %303 = vmatpush1.xpose.msra.mxu0 0.0
    %304 = vmatprep.subr.mxu0 0.0
    %305 = vmatpush1.xpose.msra.mxu0 0.0
    %306 = vmatprep.subr.mxu0 0.0
    %307 = vmatpush1.xpose.msra.mxu0 0.0
    %308 = vmatprep.subr.mxu0 0.0
    %309 = vmatpush1.xpose.msra.mxu0 0.0
    %310 = vmatprep.subr.mxu0 0.0
    %311 = vmatpush1.xpose.msra.mxu0 0.0
    %312 = vmatprep.subr.mxu0 0.0
    %313 = vmatpush1.xpose.msra.mxu0 0.0
    %314 = vmatprep.subr.mxu0 0.0
    %315 = vmatpush1.xpose.msra.mxu0 0.0
    %316 = vmatprep.subr.mxu0 0.0
    %317 = vmatpush1.xpose.msra.mxu0 0.0
    %318 = vmatprep.subr.mxu0 0.0
    %319 = vmatpush1.xpose.msra.mxu0 0.0
    %320 = vmatprep.subr.mxu0 0.0
    %321 = vmatpush1.xpose.msra.mxu0 0.0
    %322 = vmatprep.subr.mxu0 0.0
    %323 = vmatpush1.xpose.msra.mxu0 0.0
    %324 = vmatprep.subr.mxu0 0.0
    %325 = vmatpush1.xpose.msra.mxu0 0.0
    %326 = vmatprep.mubr.f32.mxu0 0.0
    %327 = vmatmul.mubr.f32.gmra.mrb[0].mxu0 %v258
    %v328 = vpop.f32.mrb[0].mxu0
    %v329 = vadd.f32 %v248, %v328
    %v330 = vpop.f32.mrb[0].mxu0
    %331 = vdwg.mxu0
    %332 = vrot.lane.b32.xlu0 %v228, 96
    %v333 = vpop.permute.xlu0 %332
    %v334 = vsel %vm257, %v228, 0
    %v336 = vsel %vm257, %v333, 0
    %338 = vmatprep.subr.mxu0 0.0
    %339 = vmatpush1.xpose.msra.mxu0 %v336
    %340 = vmatprep.subr.mxu0 0.0
    %341 = vmatpush1.xpose.msra.mxu0 0.0
    %342 = vmatprep.subr.mxu0 0.0
    %343 = vmatpush1.xpose.msra.mxu0 0.0
    %344 = vmatprep.subr.mxu0 0.0
    %345 = vmatpush1.xpose.msra.mxu0 0.0
    %346 = vmatprep.subr.mxu0 0.0
    %347 = vmatpush1.xpose.msra.mxu0 0.0
    %348 = vmatprep.subr.mxu0 0.0
    %349 = vmatpush1.xpose.msra.mxu0 0.0
    %350 = vmatprep.subr.mxu0 0.0
    %351 = vmatpush1.xpose.msra.mxu0 0.0
    %352 = vmatprep.subr.mxu0 0.0
    %353 = vmatpush1.xpose.msra.mxu0 0.0
    %354 = vmatprep.subr.mxu0 0.0
    %355 = vmatpush1.xpose.msra.mxu0 0.0
    %356 = vmatprep.subr.mxu0 0.0
    %357 = vmatpush1.xpose.msra.mxu0 0.0
    %358 = vmatprep.subr.mxu0 0.0
    %359 = vmatpush1.xpose.msra.mxu0 0.0
    %360 = vmatprep.subr.mxu0 0.0
    %361 = vmatpush1.xpose.msra.mxu0 0.0
    %362 = vmatprep.subr.mxu0 0.0
    %363 = vmatpush1.xpose.msra.mxu0 0.0
    %364 = vmatprep.subr.mxu0 0.0
    %365 = vmatpush1.xpose.msra.mxu0 0.0
    %366 = vmatprep.subr.mxu0 0.0
    %367 = vmatpush1.xpose.msra.mxu0 0.0
    %368 = vmatprep.subr.mxu0 0.0
    %369 = vmatpush1.xpose.msra.mxu0 0.0
    %370 = vmatprep.subr.mxu0 0.0
    %371 = vmatpush1.xpose.msra.mxu0 0.0
    %372 = vmatprep.subr.mxu0 0.0
    %373 = vmatpush1.xpose.msra.mxu0 0.0
    %374 = vmatprep.subr.mxu0 0.0
    %375 = vmatpush1.xpose.msra.mxu0 0.0
    %376 = vmatprep.subr.mxu0 0.0
    %377 = vmatpush1.xpose.msra.mxu0 0.0
    %378 = vmatprep.subr.mxu0 0.0
    %379 = vmatpush1.xpose.msra.mxu0 0.0
    %380 = vmatprep.subr.mxu0 0.0
    %381 = vmatpush1.xpose.msra.mxu0 0.0
    %382 = vmatprep.subr.mxu0 0.0
    %383 = vmatpush1.xpose.msra.mxu0 0.0
    %384 = vmatprep.subr.mxu0 0.0
    %385 = vmatpush1.xpose.msra.mxu0 0.0
    %386 = vmatprep.subr.mxu0 0.0
    %387 = vmatpush1.xpose.msra.mxu0 0.0
    %388 = vmatprep.subr.mxu0 0.0
    %389 = vmatpush1.xpose.msra.mxu0 0.0
    %390 = vmatprep.subr.mxu0 0.0
    %391 = vmatpush1.xpose.msra.mxu0 0.0
    %392 = vmatprep.subr.mxu0 0.0
    %393 = vmatpush1.xpose.msra.mxu0 0.0
    %394 = vmatprep.subr.mxu0 0.0
    %395 = vmatpush1.xpose.msra.mxu0 0.0
    %396 = vmatprep.subr.mxu0 0.0
    %397 = vmatpush1.xpose.msra.mxu0 0.0
    %398 = vmatprep.subr.mxu0 0.0
    %399 = vmatpush1.xpose.msra.mxu0 0.0
    %400 = vmatprep.subr.mxu0 0.0
    %401 = vmatpush1.xpose.msra.mxu0 0.0
    %402 = vmatprep.mubr.f32.mxu0 0.0
    %403 = vmatmul.mubr.f32.gmra.mrb[0].mxu0 %v334
    %v404 = vpop.f32.mrb[0].mxu0
    %v405 = vadd.f32 %v252, %v404
    %v406 = vpop.f32.mrb[0].mxu0
    %407 = vdwg.mxu0
    %408 = vrot.lane.b32.xlu0 %v234, 96
    %v409 = vpop.permute.xlu0 %408
    %v410 = vsel %vm257, %v234, 0
    %v412 = vsel %vm257, %v409, 0
    %414 = vmatprep.subr.mxu0 0.0
    %415 = vmatpush1.xpose.msra.mxu0 %v412
    %416 = vmatprep.subr.mxu0 0.0
    %417 = vmatpush1.xpose.msra.mxu0 0.0
    %418 = vmatprep.subr.mxu0 0.0
    %419 = vmatpush1.xpose.msra.mxu0 0.0
    %420 = vmatprep.subr.mxu0 0.0
    %421 = vmatpush1.xpose.msra.mxu0 0.0
    %422 = vmatprep.subr.mxu0 0.0
    %423 = vmatpush1.xpose.msra.mxu0 0.0
    %424 = vmatprep.subr.mxu0 0.0
    %425 = vmatpush1.xpose.msra.mxu0 0.0
    %426 = vmatprep.subr.mxu0 0.0
    %427 = vmatpush1.xpose.msra.mxu0 0.0
    %428 = vmatprep.subr.mxu0 0.0
    %429 = vmatpush1.xpose.msra.mxu0 0.0
    %430 = vmatprep.subr.mxu0 0.0
    %431 = vmatpush1.xpose.msra.mxu0 0.0
    %432 = vmatprep.subr.mxu0 0.0
    %433 = vmatpush1.xpose.msra.mxu0 0.0
    %434 = vmatprep.subr.mxu0 0.0
    %435 = vmatpush1.xpose.msra.mxu0 0.0
    %436 = vmatprep.subr.mxu0 0.0
    %437 = vmatpush1.xpose.msra.mxu0 0.0
    %438 = vmatprep.subr.mxu0 0.0
    %439 = vmatpush1.xpose.msra.mxu0 0.0
    %440 = vmatprep.subr.mxu0 0.0
    %441 = vmatpush1.xpose.msra.mxu0 0.0
    %442 = vmatprep.subr.mxu0 0.0
    %443 = vmatpush1.xpose.msra.mxu0 0.0
    %444 = vmatprep.subr.mxu0 0.0
    %445 = vmatpush1.xpose.msra.mxu0 0.0
    %446 = vmatprep.subr.mxu0 0.0
    %447 = vmatpush1.xpose.msra.mxu0 0.0
    %448 = vmatprep.subr.mxu0 0.0
    %449 = vmatpush1.xpose.msra.mxu0 0.0
    %450 = vmatprep.subr.mxu0 0.0
    %451 = vmatpush1.xpose.msra.mxu0 0.0
    %452 = vmatprep.subr.mxu0 0.0
    %453 = vmatpush1.xpose.msra.mxu0 0.0
    %454 = vmatprep.subr.mxu0 0.0
    %455 = vmatpush1.xpose.msra.mxu0 0.0
    %456 = vmatprep.subr.mxu0 0.0
    %457 = vmatpush1.xpose.msra.mxu0 0.0
    %458 = vmatprep.subr.mxu0 0.0
    %459 = vmatpush1.xpose.msra.mxu0 0.0
    %460 = vmatprep.subr.mxu0 0.0
    %461 = vmatpush1.xpose.msra.mxu0 0.0
    %462 = vmatprep.subr.mxu0 0.0
    %463 = vmatpush1.xpose.msra.mxu0 0.0
    %464 = vmatprep.subr.mxu0 0.0
    %465 = vmatpush1.xpose.msra.mxu0 0.0
    %466 = vmatprep.subr.mxu0 0.0
    %467 = vmatpush1.xpose.msra.mxu0 0.0
    %468 = vmatprep.subr.mxu0 0.0
    %469 = vmatpush1.xpose.msra.mxu0 0.0
    %470 = vmatprep.subr.mxu0 0.0
    %471 = vmatpush1.xpose.msra.mxu0 0.0
    %472 = vmatprep.subr.mxu0 0.0
    %473 = vmatpush1.xpose.msra.mxu0 0.0
    %474 = vmatprep.subr.mxu0 0.0
    %475 = vmatpush1.xpose.msra.mxu0 0.0
    %476 = vmatprep.subr.mxu0 0.0
    %477 = vmatpush1.xpose.msra.mxu0 0.0
    %478 = vmatprep.mubr.f32.mxu0 0.0
    %479 = vmatmul.mubr.f32.gmra.mrb[0].mxu0 %v410
    %v480 = vpop.f32.mrb[0].mxu0
    %v481 = vadd.f32 %v248, %v480
    %v482 = vpop.f32.mrb[0].mxu0
    %483 = vdwg.mxu0
    %484 = vrot.lane.b32.xlu0 %v236, 96
    %v485 = vpop.permute.xlu0 %484
    %v486 = vsel %vm257, %v236, 0
    %v488 = vsel %vm257, %v485, 0
    %490 = vmatprep.subr.mxu0 0.0
    %491 = vmatpush1.xpose.msra.mxu0 %v488
    %492 = vmatprep.subr.mxu0 0.0
    %493 = vmatpush1.xpose.msra.mxu0 0.0
    %494 = vmatprep.subr.mxu0 0.0
    %495 = vmatpush1.xpose.msra.mxu0 0.0
    %496 = vmatprep.subr.mxu0 0.0
    %497 = vmatpush1.xpose.msra.mxu0 0.0
    %498 = vmatprep.subr.mxu0 0.0
    %499 = vmatpush1.xpose.msra.mxu0 0.0
    %500 = vmatprep.subr.mxu0 0.0
    %501 = vmatpush1.xpose.msra.mxu0 0.0
    %502 = vmatprep.subr.mxu0 0.0
    %503 = vmatpush1.xpose.msra.mxu0 0.0
    %504 = vmatprep.subr.mxu0 0.0
    %505 = vmatpush1.xpose.msra.mxu0 0.0
    %506 = vmatprep.subr.mxu0 0.0
    %507 = vmatpush1.xpose.msra.mxu0 0.0
    %508 = vmatprep.subr.mxu0 0.0
    %509 = vmatpush1.xpose.msra.mxu0 0.0
    %510 = vmatprep.subr.mxu0 0.0
    %511 = vmatpush1.xpose.msra.mxu0 0.0
    %512 = vmatprep.subr.mxu0 0.0
    %513 = vmatpush1.xpose.msra.mxu0 0.0
    %514 = vmatprep.subr.mxu0 0.0
    %515 = vmatpush1.xpose.msra.mxu0 0.0
    %516 = vmatprep.subr.mxu0 0.0
    %517 = vmatpush1.xpose.msra.mxu0 0.0
    %518 = vmatprep.subr.mxu0 0.0
    %519 = vmatpush1.xpose.msra.mxu0 0.0
    %520 = vmatprep.subr.mxu0 0.0
    %521 = vmatpush1.xpose.msra.mxu0 0.0
    %522 = vmatprep.subr.mxu0 0.0
    %523 = vmatpush1.xpose.msra.mxu0 0.0
    %524 = vmatprep.subr.mxu0 0.0
    %525 = vmatpush1.xpose.msra.mxu0 0.0
    %526 = vmatprep.subr.mxu0 0.0
    %527 = vmatpush1.xpose.msra.mxu0 0.0
    %528 = vmatprep.subr.mxu0 0.0
    %529 = vmatpush1.xpose.msra.mxu0 0.0
    %530 = vmatprep.subr.mxu0 0.0
    %531 = vmatpush1.xpose.msra.mxu0 0.0
    %532 = vmatprep.subr.mxu0 0.0
    %533 = vmatpush1.xpose.msra.mxu0 0.0
    %534 = vmatprep.subr.mxu0 0.0
    %535 = vmatpush1.xpose.msra.mxu0 0.0
    %536 = vmatprep.subr.mxu0 0.0
    %537 = vmatpush1.xpose.msra.mxu0 0.0
    %538 = vmatprep.subr.mxu0 0.0
    %539 = vmatpush1.xpose.msra.mxu0 0.0
    %540 = vmatprep.subr.mxu0 0.0
    %541 = vmatpush1.xpose.msra.mxu0 0.0
    %542 = vmatprep.subr.mxu0 0.0
    %543 = vmatpush1.xpose.msra.mxu0 0.0
    %544 = vmatprep.subr.mxu0 0.0
    %545 = vmatpush1.xpose.msra.mxu0 0.0
    %546 = vmatprep.subr.mxu0 0.0
    %547 = vmatpush1.xpose.msra.mxu0 0.0
    %548 = vmatprep.subr.mxu0 0.0
    %549 = vmatpush1.xpose.msra.mxu0 0.0
    %550 = vmatprep.subr.mxu0 0.0
    %551 = vmatpush1.xpose.msra.mxu0 0.0
    %552 = vmatprep.subr.mxu0 0.0
    %553 = vmatpush1.xpose.msra.mxu0 0.0
    %554 = vmatprep.mubr.f32.mxu0 0.0
    %555 = vmatmul.mubr.f32.gmra.mrb[0].mxu0 %v486
    %v556 = vpop.f32.mrb[0].mxu0
    %v557 = vadd.f32 %v252, %v556
    %v558 = vpop.f32.mrb[0].mxu0
    %559 = vdwg.mxu0
    %560 = vrot.lane.b32.xlu0 %v238, 96
    %v561 = vpop.permute.xlu0 %560
    %v562 = vsel %vm257, %v238, 0
    %v564 = vsel %vm257, %v561, 0
    %566 = vmatprep.subr.mxu0 0.0
    %567 = vmatpush1.xpose.msra.mxu0 %v564
    %568 = vmatprep.subr.mxu0 0.0
    %569 = vmatpush1.xpose.msra.mxu0 0.0
    %570 = vmatprep.subr.mxu0 0.0
    %571 = vmatpush1.xpose.msra.mxu0 0.0
    %572 = vmatprep.subr.mxu0 0.0
    %573 = vmatpush1.xpose.msra.mxu0 0.0
    %574 = vmatprep.subr.mxu0 0.0
    %575 = vmatpush1.xpose.msra.mxu0 0.0
    %576 = vmatprep.subr.mxu0 0.0
    %577 = vmatpush1.xpose.msra.mxu0 0.0
    %578 = vmatprep.subr.mxu0 0.0
    %579 = vmatpush1.xpose.msra.mxu0 0.0
    %580 = vmatprep.subr.mxu0 0.0
    %581 = vmatpush1.xpose.msra.mxu0 0.0
    %582 = vmatprep.subr.mxu0 0.0
    %583 = vmatpush1.xpose.msra.mxu0 0.0
    %584 = vmatprep.subr.mxu0 0.0
    %585 = vmatpush1.xpose.msra.mxu0 0.0
    %586 = vmatprep.subr.mxu0 0.0
    %587 = vmatpush1.xpose.msra.mxu0 0.0
    %588 = vmatprep.subr.mxu0 0.0
    %589 = vmatpush1.xpose.msra.mxu0 0.0
    %590 = vmatprep.subr.mxu0 0.0
    %591 = vmatpush1.xpose.msra.mxu0 0.0
    %592 = vmatprep.subr.mxu0 0.0
    %593 = vmatpush1.xpose.msra.mxu0 0.0
    %594 = vmatprep.subr.mxu0 0.0
    %595 = vmatpush1.xpose.msra.mxu0 0.0
    %596 = vmatprep.subr.mxu0 0.0
    %597 = vmatpush1.xpose.msra.mxu0 0.0
    %598 = vmatprep.subr.mxu0 0.0
    %599 = vmatpush1.xpose.msra.mxu0 0.0
    %600 = vmatprep.subr.mxu0 0.0
    %601 = vmatpush1.xpose.msra.mxu0 0.0
    %602 = vmatprep.subr.mxu0 0.0
    %603 = vmatpush1.xpose.msra.mxu0 0.0
    %604 = vmatprep.subr.mxu0 0.0
    %605 = vmatpush1.xpose.msra.mxu0 0.0
    %606 = vmatprep.subr.mxu0 0.0
    %607 = vmatpush1.xpose.msra.mxu0 0.0
    %608 = vmatprep.subr.mxu0 0.0
    %609 = vmatpush1.xpose.msra.mxu0 0.0
    %610 = vmatprep.subr.mxu0 0.0
    %611 = vmatpush1.xpose.msra.mxu0 0.0
    %612 = vmatprep.subr.mxu0 0.0
    %613 = vmatpush1.xpose.msra.mxu0 0.0
    %614 = vmatprep.subr.mxu0 0.0
    %615 = vmatpush1.xpose.msra.mxu0 0.0
    %616 = vmatprep.subr.mxu0 0.0
    %617 = vmatpush1.xpose.msra.mxu0 0.0
    %618 = vmatprep.subr.mxu0 0.0
    %619 = vmatpush1.xpose.msra.mxu0 0.0
    %620 = vmatprep.subr.mxu0 0.0
    %621 = vmatpush1.xpose.msra.mxu0 0.0
    %622 = vmatprep.subr.mxu0 0.0
    %623 = vmatpush1.xpose.msra.mxu0 0.0
    %624 = vmatprep.subr.mxu0 0.0
    %625 = vmatpush1.xpose.msra.mxu0 0.0
    %626 = vmatprep.subr.mxu0 0.0
    %627 = vmatpush1.xpose.msra.mxu0 0.0
    %628 = vmatprep.subr.mxu0 0.0
    %629 = vmatpush1.xpose.msra.mxu0 0.0
    %630 = vmatprep.mubr.f32.mxu0 0.0
    %631 = vmatmul.mubr.f32.gmra.mrb[0].mxu0 %v562
    %v632 = vpop.f32.mrb[0].mxu0
    %v633 = vadd.f32 %v248, %v632
    %v634 = vpop.f32.mrb[0].mxu0
    %635 = vdwg.mxu0
    %636 = vrot.lane.b32.xlu0 %v240, 96
    %v637 = vpop.permute.xlu0 %636
    %v638 = vsel %vm257, %v240, 0
    %v640 = vsel %vm257, %v637, 0
    %642 = vmatprep.subr.mxu0 0.0
    %643 = vmatpush1.xpose.msra.mxu0 %v640
    %644 = vmatprep.subr.mxu0 0.0
    %645 = vmatpush1.xpose.msra.mxu0 0.0
    %646 = vmatprep.subr.mxu0 0.0
    %647 = vmatpush1.xpose.msra.mxu0 0.0
    %648 = vmatprep.subr.mxu0 0.0
    %649 = vmatpush1.xpose.msra.mxu0 0.0
    %650 = vmatprep.subr.mxu0 0.0
    %651 = vmatpush1.xpose.msra.mxu0 0.0
    %652 = vmatprep.subr.mxu0 0.0
    %653 = vmatpush1.xpose.msra.mxu0 0.0
    %654 = vmatprep.subr.mxu0 0.0
    %655 = vmatpush1.xpose.msra.mxu0 0.0
    %656 = vmatprep.subr.mxu0 0.0
    %657 = vmatpush1.xpose.msra.mxu0 0.0
    %658 = vmatprep.subr.mxu0 0.0
    %659 = vmatpush1.xpose.msra.mxu0 0.0
    %660 = vmatprep.subr.mxu0 0.0
    %661 = vmatpush1.xpose.msra.mxu0 0.0
    %662 = vmatprep.subr.mxu0 0.0
    %663 = vmatpush1.xpose.msra.mxu0 0.0
    %664 = vmatprep.subr.mxu0 0.0
    %665 = vmatpush1.xpose.msra.mxu0 0.0
    %666 = vmatprep.subr.mxu0 0.0
    %667 = vmatpush1.xpose.msra.mxu0 0.0
    %668 = vmatprep.subr.mxu0 0.0
    %669 = vmatpush1.xpose.msra.mxu0 0.0
    %670 = vmatprep.subr.mxu0 0.0
    %671 = vmatpush1.xpose.msra.mxu0 0.0
    %672 = vmatprep.subr.mxu0 0.0
    %673 = vmatpush1.xpose.msra.mxu0 0.0
    %674 = vmatprep.subr.mxu0 0.0
    %675 = vmatpush1.xpose.msra.mxu0 0.0
    %676 = vmatprep.subr.mxu0 0.0
    %677 = vmatpush1.xpose.msra.mxu0 0.0
    %678 = vmatprep.subr.mxu0 0.0
    %679 = vmatpush1.xpose.msra.mxu0 0.0
    %680 = vmatprep.subr.mxu0 0.0
    %681 = vmatpush1.xpose.msra.mxu0 0.0
    %682 = vmatprep.subr.mxu0 0.0
    %683 = vmatpush1.xpose.msra.mxu0 0.0
    %684 = vmatprep.subr.mxu0 0.0
    %685 = vmatpush1.xpose.msra.mxu0 0.0
    %686 = vmatprep.subr.mxu0 0.0
    %687 = vmatpush1.xpose.msra.mxu0 0.0
    %688 = vmatprep.subr.mxu0 0.0
    %689 = vmatpush1.xpose.msra.mxu0 0.0
    %690 = vmatprep.subr.mxu0 0.0
    %691 = vmatpush1.xpose.msra.mxu0 0.0
    %692 = vmatprep.subr.mxu0 0.0
    %693 = vmatpush1.xpose.msra.mxu0 0.0
    %694 = vmatprep.subr.mxu0 0.0
    %695 = vmatpush1.xpose.msra.mxu0 0.0
    %696 = vmatprep.subr.mxu0 0.0
    %697 = vmatpush1.xpose.msra.mxu0 0.0
    %698 = vmatprep.subr.mxu0 0.0
    %699 = vmatpush1.xpose.msra.mxu0 0.0
    %700 = vmatprep.subr.mxu0 0.0
    %701 = vmatpush1.xpose.msra.mxu0 0.0
    %702 = vmatprep.subr.mxu0 0.0
    %703 = vmatpush1.xpose.msra.mxu0 0.0
    %704 = vmatprep.subr.mxu0 0.0
    %705 = vmatpush1.xpose.msra.mxu0 0.0
    %706 = vmatprep.mubr.f32.mxu0 0.0
    %707 = vmatmul.mubr.f32.gmra.mrb[0].mxu0 %v638
    %v708 = vpop.f32.mrb[0].mxu0
    %v709 = vadd.f32 %v252, %v708
    %v710 = vpop.f32.mrb[0].mxu0
    %711 = vdwg.mxu0
    %712 = vrot.lane.b32.xlu0 %v242, 96
    %v713 = vpop.permute.xlu0 %712
    %v714 = vsel %vm257, %v242, 0
    %v716 = vsel %vm257, %v713, 0
    %718 = vmatprep.subr.mxu0 0.0
    %719 = vmatpush1.xpose.msra.mxu0 %v716
    %720 = vmatprep.subr.mxu0 0.0
    %721 = vmatpush1.xpose.msra.mxu0 0.0
    %722 = vmatprep.subr.mxu0 0.0
    %723 = vmatpush1.xpose.msra.mxu0 0.0
    %724 = vmatprep.subr.mxu0 0.0
    %725 = vmatpush1.xpose.msra.mxu0 0.0
    %726 = vmatprep.subr.mxu0 0.0
    %727 = vmatpush1.xpose.msra.mxu0 0.0
    %728 = vmatprep.subr.mxu0 0.0
    %729 = vmatpush1.xpose.msra.mxu0 0.0
    %730 = vmatprep.subr.mxu0 0.0
    %731 = vmatpush1.xpose.msra.mxu0 0.0
    %732 = vmatprep.subr.mxu0 0.0
    %733 = vmatpush1.xpose.msra.mxu0 0.0
    %734 = vmatprep.subr.mxu0 0.0
    %735 = vmatpush1.xpose.msra.mxu0 0.0
    %736 = vmatprep.subr.mxu0 0.0
    %737 = vmatpush1.xpose.msra.mxu0 0.0
    %738 = vmatprep.subr.mxu0 0.0
    %739 = vmatpush1.xpose.msra.mxu0 0.0
    %740 = vmatprep.subr.mxu0 0.0
    %741 = vmatpush1.xpose.msra.mxu0 0.0
    %742 = vmatprep.subr.mxu0 0.0
    %743 = vmatpush1.xpose.msra.mxu0 0.0
    %744 = vmatprep.subr.mxu0 0.0
    %745 = vmatpush1.xpose.msra.mxu0 0.0
    %746 = vmatprep.subr.mxu0 0.0
    %747 = vmatpush1.xpose.msra.mxu0 0.0
    %748 = vmatprep.subr.mxu0 0.0
    %749 = vmatpush1.xpose.msra.mxu0 0.0
    %750 = vmatprep.subr.mxu0 0.0
    %751 = vmatpush1.xpose.msra.mxu0 0.0
    %752 = vmatprep.subr.mxu0 0.0
    %753 = vmatpush1.xpose.msra.mxu0 0.0
    %754 = vmatprep.subr.mxu0 0.0
    %755 = vmatpush1.xpose.msra.mxu0 0.0
    %756 = vmatprep.subr.mxu0 0.0
    %757 = vmatpush1.xpose.msra.mxu0 0.0
    %758 = vmatprep.subr.mxu0 0.0
    %759 = vmatpush1.xpose.msra.mxu0 0.0
    %760 = vmatprep.subr.mxu0 0.0
    %761 = vmatpush1.xpose.msra.mxu0 0.0
    %762 = vmatprep.subr.mxu0 0.0
    %763 = vmatpush1.xpose.msra.mxu0 0.0
    %764 = vmatprep.subr.mxu0 0.0
    %765 = vmatpush1.xpose.msra.mxu0 0.0
    %766 = vmatprep.subr.mxu0 0.0
    %767 = vmatpush1.xpose.msra.mxu0 0.0
    %768 = vmatprep.subr.mxu0 0.0
    %769 = vmatpush1.xpose.msra.mxu0 0.0
    %770 = vmatprep.subr.mxu0 0.0
    %771 = vmatpush1.xpose.msra.mxu0 0.0
    %772 = vmatprep.subr.mxu0 0.0
    %773 = vmatpush1.xpose.msra.mxu0 0.0
    %774 = vmatprep.subr.mxu0 0.0
    %775 = vmatpush1.xpose.msra.mxu0 0.0
    %776 = vmatprep.subr.mxu0 0.0
    %777 = vmatpush1.xpose.msra.mxu0 0.0
    %778 = vmatprep.subr.mxu0 0.0
    %779 = vmatpush1.xpose.msra.mxu0 0.0
    %780 = vmatprep.subr.mxu0 0.0
    %781 = vmatpush1.xpose.msra.mxu0 0.0
    %782 = vmatprep.mubr.f32.mxu0 0.0
    %783 = vmatmul.mubr.f32.gmra.mrb[0].mxu0 %v714
    %v784 = vpop.f32.mrb[0].mxu0
    %v785 = vadd.f32 %v248, %v784
    %v786 = vpop.f32.mrb[0].mxu0
    %787 = vdwg.mxu0
    %788 = vrot.lane.b32.xlu0 %v244, 96
    %v789 = vpop.permute.xlu0 %788
    %v790 = vsel %vm257, %v244, 0
    %v792 = vsel %vm257, %v789, 0
    %794 = vmatprep.subr.mxu0 0.0
    %795 = vmatpush1.xpose.msra.mxu0 %v792
    %796 = vmatprep.subr.mxu0 0.0
    %797 = vmatpush1.xpose.msra.mxu0 0.0
    %798 = vmatprep.subr.mxu0 0.0
    %799 = vmatpush1.xpose.msra.mxu0 0.0
    %800 = vmatprep.subr.mxu0 0.0
    %801 = vmatpush1.xpose.msra.mxu0 0.0
    %802 = vmatprep.subr.mxu0 0.0
    %803 = vmatpush1.xpose.msra.mxu0 0.0
    %804 = vmatprep.subr.mxu0 0.0
    %805 = vmatpush1.xpose.msra.mxu0 0.0
    %806 = vmatprep.subr.mxu0 0.0
    %807 = vmatpush1.xpose.msra.mxu0 0.0
    %808 = vmatprep.subr.mxu0 0.0
    %809 = vmatpush1.xpose.msra.mxu0 0.0
    %810 = vmatprep.subr.mxu0 0.0
    %811 = vmatpush1.xpose.msra.mxu0 0.0
    %812 = vmatprep.subr.mxu0 0.0
    %813 = vmatpush1.xpose.msra.mxu0 0.0
    %814 = vmatprep.subr.mxu0 0.0
    %815 = vmatpush1.xpose.msra.mxu0 0.0
    %816 = vmatprep.subr.mxu0 0.0
    %817 = vmatpush1.xpose.msra.mxu0 0.0
    %818 = vmatprep.subr.mxu0 0.0
    %819 = vmatpush1.xpose.msra.mxu0 0.0
    %820 = vmatprep.subr.mxu0 0.0
    %821 = vmatpush1.xpose.msra.mxu0 0.0
    %822 = vmatprep.subr.mxu0 0.0
    %823 = vmatpush1.xpose.msra.mxu0 0.0
    %824 = vmatprep.subr.mxu0 0.0
    %825 = vmatpush1.xpose.msra.mxu0 0.0
    %826 = vmatprep.subr.mxu0 0.0
    %827 = vmatpush1.xpose.msra.mxu0 0.0
    %828 = vmatprep.subr.mxu0 0.0
    %829 = vmatpush1.xpose.msra.mxu0 0.0
    %830 = vmatprep.subr.mxu0 0.0
    %831 = vmatpush1.xpose.msra.mxu0 0.0
    %832 = vmatprep.subr.mxu0 0.0
    %833 = vmatpush1.xpose.msra.mxu0 0.0
    %834 = vmatprep.subr.mxu0 0.0
    %835 = vmatpush1.xpose.msra.mxu0 0.0
    %836 = vmatprep.subr.mxu0 0.0
    %837 = vmatpush1.xpose.msra.mxu0 0.0
    %838 = vmatprep.subr.mxu0 0.0
    %839 = vmatpush1.xpose.msra.mxu0 0.0
    %840 = vmatprep.subr.mxu0 0.0
    %841 = vmatpush1.xpose.msra.mxu0 0.0
    %842 = vmatprep.subr.mxu0 0.0
    %843 = vmatpush1.xpose.msra.mxu0 0.0
    %844 = vmatprep.subr.mxu0 0.0
    %845 = vmatpush1.xpose.msra.mxu0 0.0
    %846 = vmatprep.subr.mxu0 0.0
    %847 = vmatpush1.xpose.msra.mxu0 0.0
    %848 = vmatprep.subr.mxu0 0.0
    %849 = vmatpush1.xpose.msra.mxu0 0.0
    %850 = vmatprep.subr.mxu0 0.0
    %851 = vmatpush1.xpose.msra.mxu0 0.0
    %852 = vmatprep.subr.mxu0 0.0
    %853 = vmatpush1.xpose.msra.mxu0 0.0
    %854 = vmatprep.subr.mxu0 0.0
    %855 = vmatpush1.xpose.msra.mxu0 0.0
    %856 = vmatprep.subr.mxu0 0.0
    %857 = vmatpush1.xpose.msra.mxu0 0.0
    %858 = vmatprep.mubr.f32.mxu0 0.0
    %859 = vmatmul.mubr.f32.gmra.mrb[0].mxu0 %v790
    %v860 = vpop.f32.mrb[0].mxu0
    %v861 = vadd.f32 %v252, %v860
    %v862 = vpop.f32.mrb[0].mxu0
    %863 = vdwg.mxu0
    %v864 = vsel %vm257, %v329, -inf
    %865 = vmax.xlane.f32.xlu0 %v864
    %v866 = vpop.xlane.xlu0 %865
    %v867 = vsel %vm257, %v405, -inf
    %868 = vmax.xlane.f32.xlu0 %v867
    %v869 = vpop.xlane.xlu0 %868
    %v870 = vsel %vm257, %v481, -inf
    %871 = vmax.xlane.f32.xlu0 %v870
    %v872 = vpop.xlane.xlu0 %871
    %v873 = vsel %vm257, %v557, -inf
    %874 = vmax.xlane.f32.xlu0 %v873
    %v875 = vpop.xlane.xlu0 %874
    %v876 = vsel %vm257, %v633, -inf
    %877 = vmax.xlane.f32.xlu0 %v876
    %v878 = vpop.xlane.xlu0 %877
    %v879 = vsel %vm257, %v709, -inf
    %880 = vmax.xlane.f32.xlu0 %v879
    %v881 = vpop.xlane.xlu0 %880
    %v882 = vsel %vm257, %v785, -inf
    %883 = vmax.xlane.f32.xlu0 %v882
    %v884 = vpop.xlane.xlu0 %883
    %v885 = vsel %vm257, %v861, -inf
    %886 = vmax.xlane.f32.xlu0 %v885
    %v887 = vpop.xlane.xlu0 %886
    %v888 = vsub.f32 %v329, %v866
    %v889 = vsub.f32 %v405, %v869
    %v890 = vsub.f32 %v481, %v872
    %v891 = vsub.f32 %v557, %v875
    %v892 = vsub.f32 %v633, %v878
    %v893 = vsub.f32 %v709, %v881
    %v894 = vsub.f32 %v785, %v884
    %v895 = vsub.f32 %v861, %v887
    %v896 = vmul.f32 %v888, 1.442695
    %v897 = vpow.pop %v896
    %v898 = vmul.f32 %v889, 1.442695
    %v899 = vpow.pop %v898
    %v900 = vmul.f32 %v890, 1.442695
    %v901 = vpow.pop %v900
    %v902 = vmul.f32 %v891, 1.442695
    %v903 = vpow.pop %v902
    %v904 = vmul.f32 %v892, 1.442695
    %v905 = vpow.pop %v904
    %v906 = vmul.f32 %v893, 1.442695
    %v907 = vpow.pop %v906
    %v908 = vmul.f32 %v894, 1.442695
    %v909 = vpow.pop %v908
    %v910 = vmul.f32 %v895, 1.442695
    %v911 = vpow.pop %v910
    %v912 = vsel %vm257, %v897, 0.0
    %913 = vadd.xlane.f32.xlu0 %v912
    %v914 = vpop.xlane.xlu0 %913
    %v915 = vsel %vm257, %v899, 0.0
    %916 = vadd.xlane.f32.xlu0 %v915
    %v917 = vpop.xlane.xlu0 %916
    %v918 = vsel %vm257, %v901, 0.0
    %919 = vadd.xlane.f32.xlu0 %v918
    %v920 = vpop.xlane.xlu0 %919
    %v921 = vsel %vm257, %v903, 0.0
    %922 = vadd.xlane.f32.xlu0 %v921
    %v923 = vpop.xlane.xlu0 %922
    %v924 = vsel %vm257, %v905, 0.0
    %925 = vadd.xlane.f32.xlu0 %v924
    %v926 = vpop.xlane.xlu0 %925
    %v927 = vsel %vm257, %v907, 0.0
    %928 = vadd.xlane.f32.xlu0 %v927
    %v929 = vpop.xlane.xlu0 %928
    %v930 = vsel %vm257, %v909, 0.0
    %931 = vadd.xlane.f32.xlu0 %v930
    %v932 = vpop.xlane.xlu0 %931
    %v933 = vsel %vm257, %v911, 0.0
    %934 = vadd.xlane.f32.xlu0 %v933
    %v935 = vpop.xlane.xlu0 %934
    %v936 = vrcp.pop %v914
    %v937 = vrcp.pop %v917
    %v938 = vrcp.pop %v920
    %v939 = vrcp.pop %v923
    %v940 = vrcp.pop %v926
    %v941 = vrcp.pop %v929
    %v942 = vrcp.pop %v932
    %v943 = vrcp.pop %v935
    %v944 = vmul.f32 %v897, %v936
    %v945 = vmul.f32 %v899, %v937
    %v946 = vmul.f32 %v901, %v938
    %v947 = vmul.f32 %v903, %v939
    %v948 = vmul.f32 %v905, %v940
    %v949 = vmul.f32 %v907, %v941
    %v950 = vmul.f32 %v909, %v942
    %v951 = vmul.f32 %v911, %v943
    %952 = vrot.lane.b32.xlu0 %v223, 64
    %v953 = vpop.permute.xlu0 %952
    %v956 = vsel %vm257, %v944, 0
    %958 = vmatprep.subr.mxu0 0.0
    %959 = vmatpush1.msra.mxu0 %v953
    %960 = vmatprep.subr.mxu0 0.0
    %961 = vmatpush1.msra.mxu0 0.0
    %962 = vmatprep.subr.mxu0 0.0
    %963 = vmatpush1.msra.mxu0 0.0
    %964 = vmatprep.subr.mxu0 0.0
    %965 = vmatpush1.msra.mxu0 0.0
    %966 = vmatprep.subr.mxu0 0.0
    %967 = vmatpush1.msra.mxu0 0.0
    %968 = vmatprep.subr.mxu0 0.0
    %969 = vmatpush1.msra.mxu0 0.0
    %970 = vmatprep.subr.mxu0 0.0
    %971 = vmatpush1.msra.mxu0 0.0
    %972 = vmatprep.subr.mxu0 0.0
    %973 = vmatpush1.msra.mxu0 0.0
    %974 = vmatprep.subr.mxu0 0.0
    %975 = vmatpush1.msra.mxu0 0.0
    %976 = vmatprep.subr.mxu0 0.0
    %977 = vmatpush1.msra.mxu0 0.0
    %978 = vmatprep.subr.mxu0 0.0
    %979 = vmatpush1.msra.mxu0 0.0
    %980 = vmatprep.subr.mxu0 0.0
    %981 = vmatpush1.msra.mxu0 0.0
    %982 = vmatprep.subr.mxu0 0.0
    %983 = vmatpush1.msra.mxu0 0.0
    %984 = vmatprep.subr.mxu0 0.0
    %985 = vmatpush1.msra.mxu0 0.0
    %986 = vmatprep.subr.mxu0 0.0
    %987 = vmatpush1.msra.mxu0 0.0
    %988 = vmatprep.subr.mxu0 0.0
    %989 = vmatpush1.msra.mxu0 0.0
    %990 = vmatprep.subr.mxu0 0.0
    %991 = vmatpush1.msra.mxu0 0.0
    %992 = vmatprep.subr.mxu0 0.0
    %993 = vmatpush1.msra.mxu0 0.0
    %994 = vmatprep.subr.mxu0 0.0
    %995 = vmatpush1.msra.mxu0 0.0
    %996 = vmatprep.subr.mxu0 0.0
    %997 = vmatpush1.msra.mxu0 0.0
    %998 = vmatprep.subr.mxu0 0.0
    %999 = vmatpush1.msra.mxu0 0.0
    %1000 = vmatprep.subr.mxu0 0.0
    %1001 = vmatpush1.msra.mxu0 0.0
    %1002 = vmatprep.subr.mxu0 0.0
    %1003 = vmatpush1.msra.mxu0 0.0
    %1004 = vmatprep.subr.mxu0 0.0
    %1005 = vmatpush1.msra.mxu0 0.0
    %1006 = vmatprep.subr.mxu0 0.0
    %1007 = vmatpush1.msra.mxu0 0.0
    %1008 = vmatprep.subr.mxu0 0.0
    %1009 = vmatpush1.msra.mxu0 0.0
    %1010 = vmatprep.subr.mxu0 0.0
    %1011 = vmatpush1.msra.mxu0 0.0
    %1012 = vmatprep.subr.mxu0 0.0
    %1013 = vmatpush1.msra.mxu0 0.0
    %1014 = vmatprep.subr.mxu0 0.0
    %1015 = vmatpush1.msra.mxu0 0.0
    %1016 = vmatprep.subr.mxu0 0.0
    %1017 = vmatpush1.msra.mxu0 0.0
    %1018 = vmatprep.subr.mxu0 0.0
    %1019 = vmatpush1.msra.mxu0 0.0
    %1020 = vmatprep.subr.mxu0 0.0
    %1021 = vmatpush1.msra.mxu0 0.0
    %1022 = vmatprep.mubr.f32.mxu0 0.0
    %1023 = vmatmul.mubr.f32.gmra.mrb[0].mxu0 %v956
    %v1024 = vpop.f32.mrb[0].mxu0
    %v1025 = vadd.f32 0.0, %v1024
    %v1026 = vpop.f32.mrb[0].mxu0
    %1027 = vdwg.mxu0
    %1028 = vrot.lane.b32.xlu0 %v228, 64
    %v1029 = vpop.permute.xlu0 %1028
    %v1032 = vsel %vm257, %v945, 0
    %1034 = vmatprep.subr.mxu0 0.0
    %1035 = vmatpush1.msra.mxu0 %v1029
    %1036 = vmatprep.subr.mxu0 0.0
    %1037 = vmatpush1.msra.mxu0 0.0
    %1038 = vmatprep.subr.mxu0 0.0
    %1039 = vmatpush1.msra.mxu0 0.0
    %1040 = vmatprep.subr.mxu0 0.0
    %1041 = vmatpush1.msra.mxu0 0.0
    %1042 = vmatprep.subr.mxu0 0.0
    %1043 = vmatpush1.msra.mxu0 0.0
    %1044 = vmatprep.subr.mxu0 0.0
    %1045 = vmatpush1.msra.mxu0 0.0
    %1046 = vmatprep.subr.mxu0 0.0
    %1047 = vmatpush1.msra.mxu0 0.0
    %1048 = vmatprep.subr.mxu0 0.0
    %1049 = vmatpush1.msra.mxu0 0.0
    %1050 = vmatprep.subr.mxu0 0.0
    %1051 = vmatpush1.msra.mxu0 0.0
    %1052 = vmatprep.subr.mxu0 0.0
    %1053 = vmatpush1.msra.mxu0 0.0
    %1054 = vmatprep.subr.mxu0 0.0
    %1055 = vmatpush1.msra.mxu0 0.0
    %1056 = vmatprep.subr.mxu0 0.0
    %1057 = vmatpush1.msra.mxu0 0.0
    %1058 = vmatprep.subr.mxu0 0.0
    %1059 = vmatpush1.msra.mxu0 0.0
    %1060 = vmatprep.subr.mxu0 0.0
    %1061 = vmatpush1.msra.mxu0 0.0
    %1062 = vmatprep.subr.mxu0 0.0
    %1063 = vmatpush1.msra.mxu0 0.0
    %1064 = vmatprep.subr.mxu0 0.0
    %1065 = vmatpush1.msra.mxu0 0.0
    %1066 = vmatprep.subr.mxu0 0.0
    %1067 = vmatpush1.msra.mxu0 0.0
    %1068 = vmatprep.subr.mxu0 0.0
    %1069 = vmatpush1.msra.mxu0 0.0
    %1070 = vmatprep.subr.mxu0 0.0
    %1071 = vmatpush1.msra.mxu0 0.0
    %1072 = vmatprep.subr.mxu0 0.0
    %1073 = vmatpush1.msra.mxu0 0.0
    %1074 = vmatprep.subr.mxu0 0.0
    %1075 = vmatpush1.msra.mxu0 0.0
    %1076 = vmatprep.subr.mxu0 0.0
    %1077 = vmatpush1.msra.mxu0 0.0
    %1078 = vmatprep.subr.mxu0 0.0
    %1079 = vmatpush1.msra.mxu0 0.0
    %1080 = vmatprep.subr.mxu0 0.0
    %1081 = vmatpush1.msra.mxu0 0.0
    %1082 = vmatprep.subr.mxu0 0.0
    %1083 = vmatpush1.msra.mxu0 0.0
    %1084 = vmatprep.subr.mxu0 0.0
    %1085 = vmatpush1.msra.mxu0 0.0
    %1086 = vmatprep.subr.mxu0 0.0
    %1087 = vmatpush1.msra.mxu0 0.0
    %1088 = vmatprep.subr.mxu0 0.0
    %1089 = vmatpush1.msra.mxu0 0.0
    %1090 = vmatprep.subr.mxu0 0.0
    %1091 = vmatpush1.msra.mxu0 0.0
    %1092 = vmatprep.subr.mxu0 0.0
    %1093 = vmatpush1.msra.mxu0 0.0
    %1094 = vmatprep.subr.mxu0 0.0
    %1095 = vmatpush1.msra.mxu0 0.0
    %1096 = vmatprep.subr.mxu0 0.0
    %1097 = vmatpush1.msra.mxu0 0.0
    %1098 = vmatprep.mubr.f32.mxu0 0.0
    %1099 = vmatmul.mubr.f32.gmra.mrb[0].mxu0 %v1032
    %v1100 = vpop.f32.mrb[0].mxu0
    %v1101 = vadd.f32 0.0, %v1100
    %v1102 = vpop.f32.mrb[0].mxu0
    %1103 = vdwg.mxu0
    %1104 = vrot.lane.b32.xlu0 %v234, 64
    %v1105 = vpop.permute.xlu0 %1104
    %v1108 = vsel %vm257, %v946, 0
    %1110 = vmatprep.subr.mxu0 0.0
    %1111 = vmatpush1.msra.mxu0 %v1105
    %1112 = vmatprep.subr.mxu0 0.0
    %1113 = vmatpush1.msra.mxu0 0.0
    %1114 = vmatprep.subr.mxu0 0.0
    %1115 = vmatpush1.msra.mxu0 0.0
    %1116 = vmatprep.subr.mxu0 0.0
    %1117 = vmatpush1.msra.mxu0 0.0
    %1118 = vmatprep.subr.mxu0 0.0
    %1119 = vmatpush1.msra.mxu0 0.0
    %1120 = vmatprep.subr.mxu0 0.0
    %1121 = vmatpush1.msra.mxu0 0.0
    %1122 = vmatprep.subr.mxu0 0.0
    %1123 = vmatpush1.msra.mxu0 0.0
    %1124 = vmatprep.subr.mxu0 0.0
    %1125 = vmatpush1.msra.mxu0 0.0
    %1126 = vmatprep.subr.mxu0 0.0
    %1127 = vmatpush1.msra.mxu0 0.0
    %1128 = vmatprep.subr.mxu0 0.0
    %1129 = vmatpush1.msra.mxu0 0.0
    %1130 = vmatprep.subr.mxu0 0.0
    %1131 = vmatpush1.msra.mxu0 0.0
    %1132 = vmatprep.subr.mxu0 0.0
    %1133 = vmatpush1.msra.mxu0 0.0
    %1134 = vmatprep.subr.mxu0 0.0
    %1135 = vmatpush1.msra.mxu0 0.0
    %1136 = vmatprep.subr.mxu0 0.0
    %1137 = vmatpush1.msra.mxu0 0.0
    %1138 = vmatprep.subr.mxu0 0.0
    %1139 = vmatpush1.msra.mxu0 0.0
    %1140 = vmatprep.subr.mxu0 0.0
    %1141 = vmatpush1.msra.mxu0 0.0
    %1142 = vmatprep.subr.mxu0 0.0
    %1143 = vmatpush1.msra.mxu0 0.0
    %1144 = vmatprep.subr.mxu0 0.0
    %1145 = vmatpush1.msra.mxu0 0.0
    %1146 = vmatprep.subr.mxu0 0.0
    %1147 = vmatpush1.msra.mxu0 0.0
    %1148 = vmatprep.subr.mxu0 0.0
    %1149 = vmatpush1.msra.mxu0 0.0
    %1150 = vmatprep.subr.mxu0 0.0
    %1151 = vmatpush1.msra.mxu0 0.0
    %1152 = vmatprep.subr.mxu0 0.0
    %1153 = vmatpush1.msra.mxu0 0.0
    %1154 = vmatprep.subr.mxu0 0.0
    %1155 = vmatpush1.msra.mxu0 0.0
    %1156 = vmatprep.subr.mxu0 0.0
    %1157 = vmatpush1.msra.mxu0 0.0
    %1158 = vmatprep.subr.mxu0 0.0
    %1159 = vmatpush1.msra.mxu0 0.0
    %1160 = vmatprep.subr.mxu0 0.0
    %1161 = vmatpush1.msra.mxu0 0.0
    %1162 = vmatprep.subr.mxu0 0.0
    %1163 = vmatpush1.msra.mxu0 0.0
    %1164 = vmatprep.subr.mxu0 0.0
    %1165 = vmatpush1.msra.mxu0 0.0
    %1166 = vmatprep.subr.mxu0 0.0
    %1167 = vmatpush1.msra.mxu0 0.0
    %1168 = vmatprep.subr.mxu0 0.0
    %1169 = vmatpush1.msra.mxu0 0.0
    %1170 = vmatprep.subr.mxu0 0.0
    %1171 = vmatpush1.msra.mxu0 0.0
    %1172 = vmatprep.subr.mxu0 0.0
    %1173 = vmatpush1.msra.mxu0 0.0
    %1174 = vmatprep.mubr.f32.mxu0 0.0
    %1175 = vmatmul.mubr.f32.gmra.mrb[0].mxu0 %v1108
    %v1176 = vpop.f32.mrb[0].mxu0
    %v1177 = vadd.f32 0.0, %v1176
    %v1178 = vpop.f32.mrb[0].mxu0
    %1179 = vdwg.mxu0
    %1180 = vrot.lane.b32.xlu0 %v236, 64
    %v1181 = vpop.permute.xlu0 %1180
    %v1184 = vsel %vm257, %v947, 0
    %1186 = vmatprep.subr.mxu0 0.0
    %1187 = vmatpush1.msra.mxu0 %v1181
    %1188 = vmatprep.subr.mxu0 0.0
    %1189 = vmatpush1.msra.mxu0 0.0
    %1190 = vmatprep.subr.mxu0 0.0
    %1191 = vmatpush1.msra.mxu0 0.0
    %1192 = vmatprep.subr.mxu0 0.0
    %1193 = vmatpush1.msra.mxu0 0.0
    %1194 = vmatprep.subr.mxu0 0.0
    %1195 = vmatpush1.msra.mxu0 0.0
    %1196 = vmatprep.subr.mxu0 0.0
    %1197 = vmatpush1.msra.mxu0 0.0
    %1198 = vmatprep.subr.mxu0 0.0
    %1199 = vmatpush1.msra.mxu0 0.0
    %1200 = vmatprep.subr.mxu0 0.0
    %1201 = vmatpush1.msra.mxu0 0.0
    %1202 = vmatprep.subr.mxu0 0.0
    %1203 = vmatpush1.msra.mxu0 0.0
    %1204 = vmatprep.subr.mxu0 0.0
    %1205 = vmatpush1.msra.mxu0 0.0
    %1206 = vmatprep.subr.mxu0 0.0
    %1207 = vmatpush1.msra.mxu0 0.0
    %1208 = vmatprep.subr.mxu0 0.0
    %1209 = vmatpush1.msra.mxu0 0.0
    %1210 = vmatprep.subr.mxu0 0.0
    %1211 = vmatpush1.msra.mxu0 0.0
    %1212 = vmatprep.subr.mxu0 0.0
    %1213 = vmatpush1.msra.mxu0 0.0
    %1214 = vmatprep.subr.mxu0 0.0
    %1215 = vmatpush1.msra.mxu0 0.0
    %1216 = vmatprep.subr.mxu0 0.0
    %1217 = vmatpush1.msra.mxu0 0.0
    %1218 = vmatprep.subr.mxu0 0.0
    %1219 = vmatpush1.msra.mxu0 0.0
    %1220 = vmatprep.subr.mxu0 0.0
    %1221 = vmatpush1.msra.mxu0 0.0
    %1222 = vmatprep.subr.mxu0 0.0
    %1223 = vmatpush1.msra.mxu0 0.0
    %1224 = vmatprep.subr.mxu0 0.0
    %1225 = vmatpush1.msra.mxu0 0.0
    %1226 = vmatprep.subr.mxu0 0.0
    %1227 = vmatpush1.msra.mxu0 0.0
    %1228 = vmatprep.subr.mxu0 0.0
    %1229 = vmatpush1.msra.mxu0 0.0
    %1230 = vmatprep.subr.mxu0 0.0
    %1231 = vmatpush1.msra.mxu0 0.0
    %1232 = vmatprep.subr.mxu0 0.0
    %1233 = vmatpush1.msra.mxu0 0.0
    %1234 = vmatprep.subr.mxu0 0.0
    %1235 = vmatpush1.msra.mxu0 0.0
    %1236 = vmatprep.subr.mxu0 0.0
    %1237 = vmatpush1.msra.mxu0 0.0
    %1238 = vmatprep.subr.mxu0 0.0
    %1239 = vmatpush1.msra.mxu0 0.0
    %1240 = vmatprep.subr.mxu0 0.0
    %1241 = vmatpush1.msra.mxu0 0.0
    %1242 = vmatprep.subr.mxu0 0.0
    %1243 = vmatpush1.msra.mxu0 0.0
    %1244 = vmatprep.subr.mxu0 0.0
    %1245 = vmatpush1.msra.mxu0 0.0
    %1246 = vmatprep.subr.mxu0 0.0
    %1247 = vmatpush1.msra.mxu0 0.0
    %1248 = vmatprep.subr.mxu0 0.0
    %1249 = vmatpush1.msra.mxu0 0.0
    %1250 = vmatprep.mubr.f32.mxu0 0.0
    %1251 = vmatmul.mubr.f32.gmra.mrb[0].mxu0 %v1184
    %v1252 = vpop.f32.mrb[0].mxu0
    %v1253 = vadd.f32 0.0, %v1252
    %v1254 = vpop.f32.mrb[0].mxu0
    %1255 = vdwg.mxu0
    %1256 = vrot.lane.b32.xlu0 %v238, 64
    %v1257 = vpop.permute.xlu0 %1256
    %v1260 = vsel %vm257, %v948, 0
    %1262 = vmatprep.subr.mxu0 0.0
    %1263 = vmatpush1.msra.mxu0 %v1257
    %1264 = vmatprep.subr.mxu0 0.0
    %1265 = vmatpush1.msra.mxu0 0.0
    %1266 = vmatprep.subr.mxu0 0.0
    %1267 = vmatpush1.msra.mxu0 0.0
    %1268 = vmatprep.subr.mxu0 0.0
    %1269 = vmatpush1.msra.mxu0 0.0
    %1270 = vmatprep.subr.mxu0 0.0
    %1271 = vmatpush1.msra.mxu0 0.0
    %1272 = vmatprep.subr.mxu0 0.0
    %1273 = vmatpush1.msra.mxu0 0.0
    %1274 = vmatprep.subr.mxu0 0.0
    %1275 = vmatpush1.msra.mxu0 0.0
    %1276 = vmatprep.subr.mxu0 0.0
    %1277 = vmatpush1.msra.mxu0 0.0
    %1278 = vmatprep.subr.mxu0 0.0
    %1279 = vmatpush1.msra.mxu0 0.0
    %1280 = vmatprep.subr.mxu0 0.0
    %1281 = vmatpush1.msra.mxu0 0.0
    %1282 = vmatprep.subr.mxu0 0.0
    %1283 = vmatpush1.msra.mxu0 0.0
    %1284 = vmatprep.subr.mxu0 0.0
    %1285 = vmatpush1.msra.mxu0 0.0
    %1286 = vmatprep.subr.mxu0 0.0
    %1287 = vmatpush1.msra.mxu0 0.0
    %1288 = vmatprep.subr.mxu0 0.0
    %1289 = vmatpush1.msra.mxu0 0.0
    %1290 = vmatprep.subr.mxu0 0.0
    %1291 = vmatpush1.msra.mxu0 0.0
    %1292 = vmatprep.subr.mxu0 0.0
    %1293 = vmatpush1.msra.mxu0 0.0
    %1294 = vmatprep.subr.mxu0 0.0
    %1295 = vmatpush1.msra.mxu0 0.0
    %1296 = vmatprep.subr.mxu0 0.0
    %1297 = vmatpush1.msra.mxu0 0.0
    %1298 = vmatprep.subr.mxu0 0.0
    %1299 = vmatpush1.msra.mxu0 0.0
    %1300 = vmatprep.subr.mxu0 0.0
    %1301 = vmatpush1.msra.mxu0 0.0
    %1302 = vmatprep.subr.mxu0 0.0
    %1303 = vmatpush1.msra.mxu0 0.0
    %1304 = vmatprep.subr.mxu0 0.0
    %1305 = vmatpush1.msra.mxu0 0.0
    %1306 = vmatprep.subr.mxu0 0.0
    %1307 = vmatpush1.msra.mxu0 0.0
    %1308 = vmatprep.subr.mxu0 0.0
    %1309 = vmatpush1.msra.mxu0 0.0
    %1310 = vmatprep.subr.mxu0 0.0
    %1311 = vmatpush1.msra.mxu0 0.0
    %1312 = vmatprep.subr.mxu0 0.0
    %1313 = vmatpush1.msra.mxu0 0.0
    %1314 = vmatprep.subr.mxu0 0.0
    %1315 = vmatpush1.msra.mxu0 0.0
    %1316 = vmatprep.subr.mxu0 0.0
    %1317 = vmatpush1.msra.mxu0 0.0
    %1318 = vmatprep.subr.mxu0 0.0
    %1319 = vmatpush1.msra.mxu0 0.0
    %1320 = vmatprep.subr.mxu0 0.0
    %1321 = vmatpush1.msra.mxu0 0.0
    %1322 = vmatprep.subr.mxu0 0.0
    %1323 = vmatpush1.msra.mxu0 0.0
    %1324 = vmatprep.subr.mxu0 0.0
    %1325 = vmatpush1.msra.mxu0 0.0
    %1326 = vmatprep.mubr.f32.mxu0 0.0
    %1327 = vmatmul.mubr.f32.gmra.mrb[0].mxu0 %v1260
    %v1328 = vpop.f32.mrb[0].mxu0
    %v1329 = vadd.f32 0.0, %v1328
    %v1330 = vpop.f32.mrb[0].mxu0
    %1331 = vdwg.mxu0
    %1332 = vrot.lane.b32.xlu0 %v240, 64
    %v1333 = vpop.permute.xlu0 %1332
    %v1336 = vsel %vm257, %v949, 0
    %1338 = vmatprep.subr.mxu0 0.0
    %1339 = vmatpush1.msra.mxu0 %v1333
    %1340 = vmatprep.subr.mxu0 0.0
    %1341 = vmatpush1.msra.mxu0 0.0
    %1342 = vmatprep.subr.mxu0 0.0
    %1343 = vmatpush1.msra.mxu0 0.0
    %1344 = vmatprep.subr.mxu0 0.0
    %1345 = vmatpush1.msra.mxu0 0.0
    %1346 = vmatprep.subr.mxu0 0.0
    %1347 = vmatpush1.msra.mxu0 0.0
    %1348 = vmatprep.subr.mxu0 0.0
    %1349 = vmatpush1.msra.mxu0 0.0
    %1350 = vmatprep.subr.mxu0 0.0
    %1351 = vmatpush1.msra.mxu0 0.0
    %1352 = vmatprep.subr.mxu0 0.0
    %1353 = vmatpush1.msra.mxu0 0.0
    %1354 = vmatprep.subr.mxu0 0.0
    %1355 = vmatpush1.msra.mxu0 0.0
    %1356 = vmatprep.subr.mxu0 0.0
    %1357 = vmatpush1.msra.mxu0 0.0
    %1358 = vmatprep.subr.mxu0 0.0
    %1359 = vmatpush1.msra.mxu0 0.0
    %1360 = vmatprep.subr.mxu0 0.0
    %1361 = vmatpush1.msra.mxu0 0.0
    %1362 = vmatprep.subr.mxu0 0.0
    %1363 = vmatpush1.msra.mxu0 0.0
    %1364 = vmatprep.subr.mxu0 0.0
    %1365 = vmatpush1.msra.mxu0 0.0
    %1366 = vmatprep.subr.mxu0 0.0
    %1367 = vmatpush1.msra.mxu0 0.0
    %1368 = vmatprep.subr.mxu0 0.0
    %1369 = vmatpush1.msra.mxu0 0.0
    %1370 = vmatprep.subr.mxu0 0.0
    %1371 = vmatpush1.msra.mxu0 0.0
    %1372 = vmatprep.subr.mxu0 0.0
    %1373 = vmatpush1.msra.mxu0 0.0
    %1374 = vmatprep.subr.mxu0 0.0
    %1375 = vmatpush1.msra.mxu0 0.0
    %1376 = vmatprep.subr.mxu0 0.0
    %1377 = vmatpush1.msra.mxu0 0.0
    %1378 = vmatprep.subr.mxu0 0.0
    %1379 = vmatpush1.msra.mxu0 0.0
    %1380 = vmatprep.subr.mxu0 0.0
    %1381 = vmatpush1.msra.mxu0 0.0
    %1382 = vmatprep.subr.mxu0 0.0
    %1383 = vmatpush1.msra.mxu0 0.0
    %1384 = vmatprep.subr.mxu0 0.0
    %1385 = vmatpush1.msra.mxu0 0.0
    %1386 = vmatprep.subr.mxu0 0.0
    %1387 = vmatpush1.msra.mxu0 0.0
    %1388 = vmatprep.subr.mxu0 0.0
    %1389 = vmatpush1.msra.mxu0 0.0
    %1390 = vmatprep.subr.mxu0 0.0
    %1391 = vmatpush1.msra.mxu0 0.0
    %1392 = vmatprep.subr.mxu0 0.0
    %1393 = vmatpush1.msra.mxu0 0.0
    %1394 = vmatprep.subr.mxu0 0.0
    %1395 = vmatpush1.msra.mxu0 0.0
    %1396 = vmatprep.subr.mxu0 0.0
    %1397 = vmatpush1.msra.mxu0 0.0
    %1398 = vmatprep.subr.mxu0 0.0
    %1399 = vmatpush1.msra.mxu0 0.0
    %1400 = vmatprep.subr.mxu0 0.0
    %1401 = vmatpush1.msra.mxu0 0.0
    %1402 = vmatprep.mubr.f32.mxu0 0.0
    %1403 = vmatmul.mubr.f32.gmra.mrb[0].mxu0 %v1336
    %v1404 = vpop.f32.mrb[0].mxu0
    %v1405 = vadd.f32 0.0, %v1404
    %v1406 = vpop.f32.mrb[0].mxu0
    %1407 = vdwg.mxu0
    %1408 = vrot.lane.b32.xlu0 %v242, 64
    %v1409 = vpop.permute.xlu0 %1408
    %v1412 = vsel %vm257, %v950, 0
    %1414 = vmatprep.subr.mxu0 0.0
    %1415 = vmatpush1.msra.mxu0 %v1409
    %1416 = vmatprep.subr.mxu0 0.0
    %1417 = vmatpush1.msra.mxu0 0.0
    %1418 = vmatprep.subr.mxu0 0.0
    %1419 = vmatpush1.msra.mxu0 0.0
    %1420 = vmatprep.subr.mxu0 0.0
    %1421 = vmatpush1.msra.mxu0 0.0
    %1422 = vmatprep.subr.mxu0 0.0
    %1423 = vmatpush1.msra.mxu0 0.0
    %1424 = vmatprep.subr.mxu0 0.0
    %1425 = vmatpush1.msra.mxu0 0.0
    %1426 = vmatprep.subr.mxu0 0.0
    %1427 = vmatpush1.msra.mxu0 0.0
    %1428 = vmatprep.subr.mxu0 0.0
    %1429 = vmatpush1.msra.mxu0 0.0
    %1430 = vmatprep.subr.mxu0 0.0
    %1431 = vmatpush1.msra.mxu0 0.0
    %1432 = vmatprep.subr.mxu0 0.0
    %1433 = vmatpush1.msra.mxu0 0.0
    %1434 = vmatprep.subr.mxu0 0.0
    %1435 = vmatpush1.msra.mxu0 0.0
    %1436 = vmatprep.subr.mxu0 0.0
    %1437 = vmatpush1.msra.mxu0 0.0
    %1438 = vmatprep.subr.mxu0 0.0
    %1439 = vmatpush1.msra.mxu0 0.0
    %1440 = vmatprep.subr.mxu0 0.0
    %1441 = vmatpush1.msra.mxu0 0.0
    %1442 = vmatprep.subr.mxu0 0.0
    %1443 = vmatpush1.msra.mxu0 0.0
    %1444 = vmatprep.subr.mxu0 0.0
    %1445 = vmatpush1.msra.mxu0 0.0
    %1446 = vmatprep.subr.mxu0 0.0
    %1447 = vmatpush1.msra.mxu0 0.0
    %1448 = vmatprep.subr.mxu0 0.0
    %1449 = vmatpush1.msra.mxu0 0.0
    %1450 = vmatprep.subr.mxu0 0.0
    %1451 = vmatpush1.msra.mxu0 0.0
    %1452 = vmatprep.subr.mxu0 0.0
    %1453 = vmatpush1.msra.mxu0 0.0
    %1454 = vmatprep.subr.mxu0 0.0
    %1455 = vmatpush1.msra.mxu0 0.0
    %1456 = vmatprep.subr.mxu0 0.0
    %1457 = vmatpush1.msra.mxu0 0.0
    %1458 = vmatprep.subr.mxu0 0.0
    %1459 = vmatpush1.msra.mxu0 0.0
    %1460 = vmatprep.subr.mxu0 0.0
    %1461 = vmatpush1.msra.mxu0 0.0
    %1462 = vmatprep.subr.mxu0 0.0
    %1463 = vmatpush1.msra.mxu0 0.0
    %1464 = vmatprep.subr.mxu0 0.0
    %1465 = vmatpush1.msra.mxu0 0.0
    %1466 = vmatprep.subr.mxu0 0.0
    %1467 = vmatpush1.msra.mxu0 0.0
    %1468 = vmatprep.subr.mxu0 0.0
    %1469 = vmatpush1.msra.mxu0 0.0
    %1470 = vmatprep.subr.mxu0 0.0
    %1471 = vmatpush1.msra.mxu0 0.0
    %1472 = vmatprep.subr.mxu0 0.0
    %1473 = vmatpush1.msra.mxu0 0.0
    %1474 = vmatprep.subr.mxu0 0.0
    %1475 = vmatpush1.msra.mxu0 0.0
    %1476 = vmatprep.subr.mxu0 0.0
    %1477 = vmatpush1.msra.mxu0 0.0
    %1478 = vmatprep.mubr.f32.mxu0 0.0
    %1479 = vmatmul.mubr.f32.gmra.mrb[0].mxu0 %v1412
    %v1480 = vpop.f32.mrb[0].mxu0
    %v1481 = vadd.f32 0.0, %v1480
    %v1482 = vpop.f32.mrb[0].mxu0
    %1483 = vdwg.mxu0
    %1484 = vrot.lane.b32.xlu0 %v244, 64
    %v1485 = vpop.permute.xlu0 %1484
    %v1488 = vsel %vm257, %v951, 0
    %1490 = vmatprep.subr.mxu0 0.0
    %1491 = vmatpush1.msra.mxu0 %v1485
    %1492 = vmatprep.subr.mxu0 0.0
    %1493 = vmatpush1.msra.mxu0 0.0
    %1494 = vmatprep.subr.mxu0 0.0
    %1495 = vmatpush1.msra.mxu0 0.0
    %1496 = vmatprep.subr.mxu0 0.0
    %1497 = vmatpush1.msra.mxu0 0.0
    %1498 = vmatprep.subr.mxu0 0.0
    %1499 = vmatpush1.msra.mxu0 0.0
    %1500 = vmatprep.subr.mxu0 0.0
    %1501 = vmatpush1.msra.mxu0 0.0
    %1502 = vmatprep.subr.mxu0 0.0
    %1503 = vmatpush1.msra.mxu0 0.0
    %1504 = vmatprep.subr.mxu0 0.0
    %1505 = vmatpush1.msra.mxu0 0.0
    %1506 = vmatprep.subr.mxu0 0.0
    %1507 = vmatpush1.msra.mxu0 0.0
    %1508 = vmatprep.subr.mxu0 0.0
    %1509 = vmatpush1.msra.mxu0 0.0
    %1510 = vmatprep.subr.mxu0 0.0
    %1511 = vmatpush1.msra.mxu0 0.0
    %1512 = vmatprep.subr.mxu0 0.0
    %1513 = vmatpush1.msra.mxu0 0.0
    %1514 = vmatprep.subr.mxu0 0.0
    %1515 = vmatpush1.msra.mxu0 0.0
    %1516 = vmatprep.subr.mxu0 0.0
    %1517 = vmatpush1.msra.mxu0 0.0
    %1518 = vmatprep.subr.mxu0 0.0
    %1519 = vmatpush1.msra.mxu0 0.0
    %1520 = vmatprep.subr.mxu0 0.0
    %1521 = vmatpush1.msra.mxu0 0.0
    %1522 = vmatprep.subr.mxu0 0.0
    %1523 = vmatpush1.msra.mxu0 0.0
    %1524 = vmatprep.subr.mxu0 0.0
    %1525 = vmatpush1.msra.mxu0 0.0
    %1526 = vmatprep.subr.mxu0 0.0
    %1527 = vmatpush1.msra.mxu0 0.0
    %1528 = vmatprep.subr.mxu0 0.0
    %1529 = vmatpush1.msra.mxu0 0.0
    %1530 = vmatprep.subr.mxu0 0.0
    %1531 = vmatpush1.msra.mxu0 0.0
    %1532 = vmatprep.subr.mxu0 0.0
    %1533 = vmatpush1.msra.mxu0 0.0
    %1534 = vmatprep.subr.mxu0 0.0
    %1535 = vmatpush1.msra.mxu0 0.0
    %1536 = vmatprep.subr.mxu0 0.0
    %1537 = vmatpush1.msra.mxu0 0.0
    %1538 = vmatprep.subr.mxu0 0.0
    %1539 = vmatpush1.msra.mxu0 0.0
    %1540 = vmatprep.subr.mxu0 0.0
    %1541 = vmatpush1.msra.mxu0 0.0
    %1542 = vmatprep.subr.mxu0 0.0
    %1543 = vmatpush1.msra.mxu0 0.0
    %1544 = vmatprep.subr.mxu0 0.0
    %1545 = vmatpush1.msra.mxu0 0.0
    %1546 = vmatprep.subr.mxu0 0.0
    %1547 = vmatpush1.msra.mxu0 0.0
    %1548 = vmatprep.subr.mxu0 0.0
    %1549 = vmatpush1.msra.mxu0 0.0
    %1550 = vmatprep.subr.mxu0 0.0
    %1551 = vmatpush1.msra.mxu0 0.0
    %1552 = vmatprep.subr.mxu0 0.0
    %1553 = vmatpush1.msra.mxu0 0.0
    %1554 = vmatprep.mubr.f32.mxu0 0.0
    %1555 = vmatmul.mubr.f32.gmra.mrb[0].mxu0 %v1488
    %v1556 = vpop.f32.mrb[0].mxu0
    %v1557 = vadd.f32 0.0, %v1556
    %v1558 = vpop.f32.mrb[0].mxu0
    %1559 = vdwg.mxu0
    %1562 = vrot.lane.b32.xlu0 %v1177, 8
    %v1563 = vpop.permute.xlu0 %1562
    %1564 = vrot.lane.b32.xlu0 %v1253, 8
    %v1565 = vpop.permute.xlu0 %1564
    %1570 = vrot.lane.b32.xlu0 %v1329, 16
    %v1571 = vpop.permute.xlu0 %1570
    %1572 = vrot.lane.b32.xlu0 %v1405, 16
    %v1573 = vpop.permute.xlu0 %1572
    %1578 = vrot.lane.b32.xlu0 %v1481, 24
    %v1579 = vpop.permute.xlu0 %1578
    %1580 = vrot.lane.b32.xlu0 %v1557, 24
    %v1581 = vpop.permute.xlu0 %1580
    %v1584 = vsel %vm257, %v1025, %v1563
    %v1585 = vsel %vm257, %v1101, %v1565
    %vm1586 = vcmask 130048
    %v1587 = vsel %vm1586, %v1584, %v1571
    %v1588 = vsel %vm1586, %v1585, %v1573
    %vm1589 = vcmask 195584
    %v1590 = vsel %vm1589, %v1587, %v1579
    %v1591 = vsel %vm1589, %v1588, %v1581
    %v1592 = vld [vmem:[#allocation5 + $0x20] sm:$0xff]
    %v1593 = vld [vmem:[#allocation5 + $0x28] sm:$0xff]
    %v1594 = vld [vmem:[#allocation5 + $0x30] sm:$0xff]
    %v1595 = vld [vmem:[#allocation5 + $0x38] sm:$0xff]
    %v1596 = vld [vmem:[#allocation7 + $0x1] sm:$0x1]
    %v1597 = vlaneseq
    %v1598 = vshrl.u32 %v1597, 7
    %v1599 = vsub.s32 0, %v1598
    %v1600 = vrot.slane %v1596, %v1599
    %v1602 = vsel %vm99, %v1590, 0
    %v1605 = vsel %vm99, %v1591, 0
    %1607 = vmatprep.subr.mxu0 0.0
    %1608 = vmatpush1.msra.mxu0 %v1592
    %1609 = vmatprep.subr.mxu0 0.0
    %1610 = vmatpush1.msra.mxu0 %v1593
    %1611 = vmatprep.subr.mxu0 0.0
    %1612 = vmatpush1.msra.mxu0 %v1594
    %1613 = vmatprep.subr.mxu0 0.0
    %1614 = vmatpush1.msra.mxu0 %v1595
    %1615 = vmatprep.subr.mxu0 0.0
    %1616 = vmatpush1.msra.mxu0 0.0
    %1617 = vmatprep.subr.mxu0 0.0
    %1618 = vmatpush1.msra.mxu0 0.0
    %1619 = vmatprep.subr.mxu0 0.0
    %1620 = vmatpush1.msra.mxu0 0.0
    %1621 = vmatprep.subr.mxu0 0.0
    %1622 = vmatpush1.msra.mxu0 0.0
    %1623 = vmatprep.subr.mxu0 0.0
    %1624 = vmatpush1.msra.mxu0 0.0
    %1625 = vmatprep.subr.mxu0 0.0
    %1626 = vmatpush1.msra.mxu0 0.0
    %1627 = vmatprep.subr.mxu0 0.0
    %1628 = vmatpush1.msra.mxu0 0.0
    %1629 = vmatprep.subr.mxu0 0.0
    %1630 = vmatpush1.msra.mxu0 0.0
    %1631 = vmatprep.subr.mxu0 0.0
    %1632 = vmatpush1.msra.mxu0 0.0
    %1633 = vmatprep.subr.mxu0 0.0
    %1634 = vmatpush1.msra.mxu0 0.0
    %1635 = vmatprep.subr.mxu0 0.0
    %1636 = vmatpush1.msra.mxu0 0.0
    %1637 = vmatprep.subr.mxu0 0.0
    %1638 = vmatpush1.msra.mxu0 0.0
    %1639 = vmatprep.subr.mxu0 0.0
    %1640 = vmatpush1.msra.mxu0 0.0
    %1641 = vmatprep.subr.mxu0 0.0
    %1642 = vmatpush1.msra.mxu0 0.0
    %1643 = vmatprep.subr.mxu0 0.0
    %1644 = vmatpush1.msra.mxu0 0.0
    %1645 = vmatprep.subr.mxu0 0.0
    %1646 = vmatpush1.msra.mxu0 0.0
    %1647 = vmatprep.subr.mxu0 0.0
    %1648 = vmatpush1.msra.mxu0 0.0
    %1649 = vmatprep.subr.mxu0 0.0
    %1650 = vmatpush1.msra.mxu0 0.0
    %1651 = vmatprep.subr.mxu0 0.0
    %1652 = vmatpush1.msra.mxu0 0.0
    %1653 = vmatprep.subr.mxu0 0.0
    %1654 = vmatpush1.msra.mxu0 0.0
    %1655 = vmatprep.subr.mxu0 0.0
    %1656 = vmatpush1.msra.mxu0 0.0
    %1657 = vmatprep.subr.mxu0 0.0
    %1658 = vmatpush1.msra.mxu0 0.0
    %1659 = vmatprep.subr.mxu0 0.0
    %1660 = vmatpush1.msra.mxu0 0.0
    %1661 = vmatprep.subr.mxu0 0.0
    %1662 = vmatpush1.msra.mxu0 0.0
    %1663 = vmatprep.subr.mxu0 0.0
    %1664 = vmatpush1.msra.mxu0 0.0
    %1665 = vmatprep.subr.mxu0 0.0
    %1666 = vmatpush1.msra.mxu0 0.0
    %1667 = vmatprep.subr.mxu0 0.0
    %1668 = vmatpush1.msra.mxu0 0.0
    %1669 = vmatprep.subr.mxu0 0.0
    %1670 = vmatpush1.msra.mxu0 0.0
    %1671 = vmatprep.mubr.f32.mxu0 0.0
    %1672 = vmatmul.mubr.f32.gmra.mrb[0].mxu0 %v1602
    %v1673 = vpop.f32.mrb[0].mxu0
    %v1674 = vadd.f32 %v1600, %v1673
    %v1675 = vpop.f32.mrb[0].mxu0
    %1676 = vmatprep.mubr.f32.mxu0 0.0
    %1677 = vmatmul.mubr.f32.gmra.mrb[0].mxu0 %v1605
    %v1678 = vpop.f32.mrb[0].mxu0
    %v1679 = vadd.f32 %v1600, %v1678
    %v1680 = vpop.f32.mrb[0].mxu0
    %1681 = vdwg.mxu0
    %v1682 = vadd.f32 %v97, %v1674
    %v1683 = vadd.f32 %v98, %v1679
    %v1684 = vsel %vm99, %v1682, 0.0
    %1685 = vadd.xlane.f32.xlu0 %v1684
    %v1686 = vpop.xlane.xlu0 %1685
    %v1687 = vsel %vm99, %v1683, 0.0
    %1688 = vadd.xlane.f32.xlu0 %v1687
    %v1689 = vpop.xlane.xlu0 %1688
    %v1690 = vmul.f32 %v1686, %v106
    %v1691 = vmul.f32 %v1689, %v106
    %v1692 = vsub.f32 %v1682, %v1690
    %v1693 = vsub.f32 %v1683, %v1691
    %v1694 = vmul.f32 %v1692, %v1692
    %v1695 = vmul.f32 %v1693, %v1693
    %v1696 = vsel %vm99, %v1694, 0.0
    %1697 = vadd.xlane.f32.xlu0 %v1696
    %v1698 = vpop.xlane.xlu0 %1697
    %v1699 = vsel %vm99, %v1695, 0.0
    %1700 = vadd.xlane.f32.xlu0 %v1699
    %v1701 = vpop.xlane.xlu0 %1700
    %v1702 = vmul.f32 %v1698, %v106
    %v1703 = vmul.f32 %v1701, %v106
    %v1704 = vadd.f32 %v1702, 1e-06
    %v1705 = vadd.f32 %v1703, 1e-06
    %v1706 = vrsqrt.pop %v1704
    %v1707 = vrsqrt.pop %v1705
    %v1708 = vmul.f32 %v1692, %v1706
    %v1709 = vmul.f32 %v1693, %v1707
    %v1710 = vld [vmem:[#allocation7 + $0x6] sm:$0x1]
    %v1711 = vlaneseq
    %v1712 = vshrl.u32 %v1711, 7
    %v1713 = vsub.s32 0, %v1712
    %v1714 = vrot.slane %v1710, %v1713
    %v1715 = vmul.f32 %v1708, %v1714
    %v1716 = vmul.f32 %v1709, %v1714
    %v1717 = vld [vmem:[#allocation7 + $0x7] sm:$0x1]
    %v1718 = vlaneseq
    %v1719 = vshrl.u32 %v1718, 7
    %v1720 = vsub.s32 0, %v1719
    %v1721 = vrot.slane %v1717, %v1720
    %v1722 = vadd.f32 %v1715, %v1721
    %v1723 = vadd.f32 %v1716, %v1721
    %v1724 = vld [vmem:[#allocation5 + $0x40] sm:$0xff]
    %v1725 = vld [vmem:[#allocation5 + $0x48] sm:$0xff]
    %v1726 = vld [vmem:[#allocation5 + $0x50] sm:$0xff]
    %v1727 = vld [vmem:[#allocation5 + $0x58] sm:$0xff]
    %v1728 = vld [vmem:[#allocation7 + $0x4] sm:$0x1]
    %v1729 = vlaneseq
    %v1730 = vshrl.u32 %v1729, 7
    %v1731 = vsub.s32 0, %v1730
    %v1732 = vrot.slane %v1728, %v1731
    %v1734 = vsel %vm99, %v1722, 0
    %v1737 = vsel %vm99, %v1723, 0
    %1739 = vmatprep.subr.mxu0 0.0
    %1740 = vmatpush1.msra.mxu0 %v1724
    %1741 = vmatprep.subr.mxu0 0.0
    %1742 = vmatpush1.msra.mxu0 %v1725
    %1743 = vmatprep.subr.mxu0 0.0
    %1744 = vmatpush1.msra.mxu0 %v1726
    %1745 = vmatprep.subr.mxu0 0.0
    %1746 = vmatpush1.msra.mxu0 %v1727
    %1747 = vmatprep.subr.mxu0 0.0
    %1748 = vmatpush1.msra.mxu0 0.0
    %1749 = vmatprep.subr.mxu0 0.0
    %1750 = vmatpush1.msra.mxu0 0.0
    %1751 = vmatprep.subr.mxu0 0.0
    %1752 = vmatpush1.msra.mxu0 0.0
    %1753 = vmatprep.subr.mxu0 0.0
    %1754 = vmatpush1.msra.mxu0 0.0
    %1755 = vmatprep.subr.mxu0 0.0
    %1756 = vmatpush1.msra.mxu0 0.0
    %1757 = vmatprep.subr.mxu0 0.0
    %1758 = vmatpush1.msra.mxu0 0.0
    %1759 = vmatprep.subr.mxu0 0.0
    %1760 = vmatpush1.msra.mxu0 0.0
    %1761 = vmatprep.subr.mxu0 0.0
    %1762 = vmatpush1.msra.mxu0 0.0
    %1763 = vmatprep.subr.mxu0 0.0
    %1764 = vmatpush1.msra.mxu0 0.0
    %1765 = vmatprep.subr.mxu0 0.0
    %1766 = vmatpush1.msra.mxu0 0.0
    %1767 = vmatprep.subr.mxu0 0.0
    %1768 = vmatpush1.msra.mxu0 0.0
    %1769 = vmatprep.subr.mxu0 0.0
    %1770 = vmatpush1.msra.mxu0 0.0
    %1771 = vmatprep.subr.mxu0 0.0
    %1772 = vmatpush1.msra.mxu0 0.0
    %1773 = vmatprep.subr.mxu0 0.0
    %1774 = vmatpush1.msra.mxu0 0.0
    %1775 = vmatprep.subr.mxu0 0.0
    %1776 = vmatpush1.msra.mxu0 0.0
    %1777 = vmatprep.subr.mxu0 0.0
    %1778 = vmatpush1.msra.mxu0 0.0
    %1779 = vmatprep.subr.mxu0 0.0
    %1780 = vmatpush1.msra.mxu0 0.0
    %1781 = vmatprep.subr.mxu0 0.0
    %1782 = vmatpush1.msra.mxu0 0.0
    %1783 = vmatprep.subr.mxu0 0.0
    %1784 = vmatpush1.msra.mxu0 0.0
    %1785 = vmatprep.subr.mxu0 0.0
    %1786 = vmatpush1.msra.mxu0 0.0
    %1787 = vmatprep.subr.mxu0 0.0
    %1788 = vmatpush1.msra.mxu0 0.0
    %1789 = vmatprep.subr.mxu0 0.0
    %1790 = vmatpush1.msra.mxu0 0.0
    %1791 = vmatprep.subr.mxu0 0.0
    %1792 = vmatpush1.msra.mxu0 0.0
    %1793 = vmatprep.subr.mxu0 0.0
    %1794 = vmatpush1.msra.mxu0 0.0
    %1795 = vmatprep.subr.mxu0 0.0
    %1796 = vmatpush1.msra.mxu0 0.0
    %1797 = vmatprep.subr.mxu0 0.0
    %1798 = vmatpush1.msra.mxu0 0.0
    %1799 = vmatprep.subr.mxu0 0.0
    %1800 = vmatpush1.msra.mxu0 0.0
    %1801 = vmatprep.subr.mxu0 0.0
    %1802 = vmatpush1.msra.mxu0 0.0
    %1803 = vmatprep.mubr.f32.mxu0 0.0
    %1804 = vmatmul.mubr.f32.gmra.mrb[0].mxu0 %v1734
    %v1805 = vpop.f32.mrb[0].mxu0
    %v1806 = vadd.f32 %v1732, %v1805
    %v1807 = vpop.f32.mrb[0].mxu0
    %1808 = vmatprep.mubr.f32.mxu0 0.0
    %1809 = vmatmul.mubr.f32.gmra.mrb[0].mxu0 %v1737
    %v1810 = vpop.f32.mrb[0].mxu0
    %v1811 = vadd.f32 %v1732, %v1810
    %v1812 = vpop.f32.mrb[0].mxu0
    %1813 = vdwg.mxu0
    %v1814 = vmax.f32 %v1806, 0.0
    %v1815 = vmax.f32 %v1811, 0.0
    %v1816 = vld [vmem:[#allocation5 + $0x60] sm:$0xff]
    %v1817 = vld [vmem:[#allocation5 + $0x68] sm:$0xff]
    %v1818 = vld [vmem:[#allocation5 + $0x70] sm:$0xff]
    %v1819 = vld [vmem:[#allocation5 + $0x78] sm:$0xff]
    %v1820 = vld [vmem:[#allocation5 + $0x80] sm:$0xff]
    %v1821 = vld [vmem:[#allocation5 + $0x88] sm:$0xff]
    %v1822 = vld [vmem:[#allocation5 + $0x90] sm:$0xff]
    %v1823 = vld [vmem:[#allocation5 + $0x98] sm:$0xff]
    %v1824 = vld [vmem:[#allocation7 + $0x5] sm:$0x1]
    %v1825 = vlaneseq
    %v1826 = vshrl.u32 %v1825, 7
    %v1827 = vsub.s32 0, %v1826
    %v1828 = vrot.slane %v1824, %v1827
    %vm1829 = vcmask 523264
    %v1831 = vsel %vm1829, %v1814, 0
    %v1834 = vsel %vm1829, %v1815, 0
    %1836 = vmatprep.subr.mxu0 0.0
    %1837 = vmatpush1.msra.mxu0 %v1816
    %1838 = vmatprep.subr.mxu0 0.0
    %1839 = vmatpush1.msra.mxu0 %v1817
    %1840 = vmatprep.subr.mxu0 0.0
    %1841 = vmatpush1.msra.mxu0 %v1818
    %1842 = vmatprep.subr.mxu0 0.0
    %1843 = vmatpush1.msra.mxu0 %v1819
    %1844 = vmatprep.subr.mxu0 0.0
    %1845 = vmatpush1.msra.mxu0 %v1820
    %1846 = vmatprep.subr.mxu0 0.0
    %1847 = vmatpush1.msra.mxu0 %v1821
    %1848 = vmatprep.subr.mxu0 0.0
    %1849 = vmatpush1.msra.mxu0 %v1822
    %1850 = vmatprep.subr.mxu0 0.0
    %1851 = vmatpush1.msra.mxu0 %v1823
    %1852 = vmatprep.subr.mxu0 0.0
    %1853 = vmatpush1.msra.mxu0 0.0
    %1854 = vmatprep.subr.mxu0 0.0
    %1855 = vmatpush1.msra.mxu0 0.0
    %1856 = vmatprep.subr.mxu0 0.0
    %1857 = vmatpush1.msra.mxu0 0.0
    %1858 = vmatprep.subr.mxu0 0.0
    %1859 = vmatpush1.msra.mxu0 0.0
    %1860 = vmatprep.subr.mxu0 0.0
    %1861 = vmatpush1.msra.mxu0 0.0
    %1862 = vmatprep.subr.mxu0 0.0
    %1863 = vmatpush1.msra.mxu0 0.0
    %1864 = vmatprep.subr.mxu0 0.0
    %1865 = vmatpush1.msra.mxu0 0.0
    %1866 = vmatprep.subr.mxu0 0.0
    %1867 = vmatpush1.msra.mxu0 0.0
    %1868 = vmatprep.subr.mxu0 0.0
    %1869 = vmatpush1.msra.mxu0 0.0
    %1870 = vmatprep.subr.mxu0 0.0
    %1871 = vmatpush1.msra.mxu0 0.0
    %1872 = vmatprep.subr.mxu0 0.0
    %1873 = vmatpush1.msra.mxu0 0.0
    %1874 = vmatprep.subr.mxu0 0.0
    %1875 = vmatpush1.msra.mxu0 0.0
    %1876 = vmatprep.subr.mxu0 0.0
    %1877 = vmatpush1.msra.mxu0 0.0
    %1878 = vmatprep.subr.mxu0 0.0
    %1879 = vmatpush1.msra.mxu0 0.0
    %1880 = vmatprep.subr.mxu0 0.0
    %1881 = vmatpush1.msra.mxu0 0.0
    %1882 = vmatprep.subr.mxu0 0.0
    %1883 = vmatpush1.msra.mxu0 0.0
    %1884 = vmatprep.subr.mxu0 0.0
    %1885 = vmatpush1.msra.mxu0 0.0
    %1886 = vmatprep.subr.mxu0 0.0
    %1887 = vmatpush1.msra.mxu0 0.0
    %1888 = vmatprep.subr.mxu0 0.0
    %1889 = vmatpush1.msra.mxu0 0.0
    %1890 = vmatprep.subr.mxu0 0.0
    %1891 = vmatpush1.msra.mxu0 0.0
    %1892 = vmatprep.subr.mxu0 0.0
    %1893 = vmatpush1.msra.mxu0 0.0
    %1894 = vmatprep.subr.mxu0 0.0
    %1895 = vmatpush1.msra.mxu0 0.0
    %1896 = vmatprep.subr.mxu0 0.0
    %1897 = vmatpush1.msra.mxu0 0.0
    %1898 = vmatprep.subr.mxu0 0.0
    %1899 = vmatpush1.msra.mxu0 0.0
    %1900 = vmatprep.mubr.f32.mxu0 0.0
    %1901 = vmatmul.mubr.f32.gmra.mrb[0].mxu0 %v1831
    %v1902 = vpop.f32.mrb[0].mxu0
    %v1903 = vadd.f32 %v1828, %v1902
    %v1904 = vpop.f32.mrb[0].mxu0
    %1905 = vmatprep.mubr.f32.mxu0 0.0
    %1906 = vmatmul.mubr.f32.gmra.mrb[0].mxu0 %v1834
    %v1907 = vpop.f32.mrb[0].mxu0
    %v1908 = vadd.f32 %v1828, %v1907
    %v1909 = vpop.f32.mrb[0].mxu0
    %1910 = vdwg.mxu0
    %v1911 = vadd.f32 %v1682, %v1903
    %v1912 = vadd.f32 %v1683, %v1908
    %v1913 = vsel %vm99, %v1911, 0.0
    %1914 = vadd.xlane.f32.xlu0 %v1913
    %v1915 = vpop.xlane.xlu0 %1914
    %v1916 = vsel %vm99, %v1912, 0.0
    %1917 = vadd.xlane.f32.xlu0 %v1916
    %v1918 = vpop.xlane.xlu0 %1917
    %v1919 = vmul.f32 %v1915, %v106
    %v1920 = vmul.f32 %v1918, %v106
    %v1921 = vsub.f32 %v1911, %v1919
    %v1922 = vsub.f32 %v1912, %v1920
    %v1923 = vmul.f32 %v1921, %v1921
    %v1924 = vmul.f32 %v1922, %v1922
    %v1925 = vsel %vm99, %v1923, 0.0
    %1926 = vadd.xlane.f32.xlu0 %v1925
    %v1927 = vpop.xlane.xlu0 %1926
    %v1928 = vsel %vm99, %v1924, 0.0
    %1929 = vadd.xlane.f32.xlu0 %v1928
    %v1930 = vpop.xlane.xlu0 %1929
    %v1931 = vmul.f32 %v1927, %v106
    %v1932 = vmul.f32 %v1930, %v106
    %v1933 = vadd.f32 %v1931, 1e-06
    %v1934 = vadd.f32 %v1932, 1e-06
    %v1935 = vrsqrt.pop %v1933
    %v1936 = vrsqrt.pop %v1934
    %v1937 = vmul.f32 %v1921, %v1935
    %v1938 = vmul.f32 %v1922, %v1936
    %v1939 = vld [vmem:[#allocation7 + $0xa] sm:$0x1]
    %v1940 = vlaneseq
    %v1941 = vshrl.u32 %v1940, 7
    %v1942 = vsub.s32 0, %v1941
    %v1943 = vrot.slane %v1939, %v1942
    %v1944 = vmul.f32 %v1937, %v1943
    %v1945 = vmul.f32 %v1938, %v1943
    %v1946 = vld [vmem:[#allocation7 + $0xb] sm:$0x1]
    %v1947 = vlaneseq
    %v1948 = vshrl.u32 %v1947, 7
    %v1949 = vsub.s32 0, %v1948
    %v1950 = vrot.slane %v1946, %v1949
    %v1951 = vadd.f32 %v1944, %v1950
    %v1952 = vadd.f32 %v1945, %v1950
    %v1953 = vld [vmem:[#allocation5 + $0xa0] sm:$0xff]
    %v1954 = vld [vmem:[#allocation5 + $0xa8] sm:$0xff]
    %v1955 = vld [vmem:[#allocation5 + $0xb0] sm:$0xff]
    %v1956 = vld [vmem:[#allocation5 + $0xb8] sm:$0xff]
    %v1957 = vld [vmem:[#allocation7 + $0x8] sm:$0x1]
    %v1958 = vlaneseq
    %v1959 = vshrl.u32 %v1958, 7
    %v1960 = vsub.s32 0, %v1959
    %v1961 = vrot.slane %v1957, %v1960
    %v1963 = vsel %vm99, %v1951, 0
    %v1966 = vsel %vm99, %v1952, 0
    %1968 = vmatprep.subr.mxu0 0.0
    %1969 = vmatpush1.msra.mxu0 %v1953
    %1970 = vmatprep.subr.mxu0 0.0
    %1971 = vmatpush1.msra.mxu0 %v1954
    %1972 = vmatprep.subr.mxu0 0.0
    %1973 = vmatpush1.msra.mxu0 %v1955
    %1974 = vmatprep.subr.mxu0 0.0
    %1975 = vmatpush1.msra.mxu0 %v1956
    %1976 = vmatprep.subr.mxu0 0.0
    %1977 = vmatpush1.msra.mxu0 0.0
    %1978 = vmatprep.subr.mxu0 0.0
    %1979 = vmatpush1.msra.mxu0 0.0
    %1980 = vmatprep.subr.mxu0 0.0
    %1981 = vmatpush1.msra.mxu0 0.0
    %1982 = vmatprep.subr.mxu0 0.0
    %1983 = vmatpush1.msra.mxu0 0.0
    %1984 = vmatprep.subr.mxu0 0.0
    %1985 = vmatpush1.msra.mxu0 0.0
    %1986 = vmatprep.subr.mxu0 0.0
    %1987 = vmatpush1.msra.mxu0 0.0
    %1988 = vmatprep.subr.mxu0 0.0
    %1989 = vmatpush1.msra.mxu0 0.0
    %1990 = vmatprep.subr.mxu0 0.0
    %1991 = vmatpush1.msra.mxu0 0.0
    %1992 = vmatprep.subr.mxu0 0.0
    %1993 = vmatpush1.msra.mxu0 0.0
    %1994 = vmatprep.subr.mxu0 0.0
    %1995 = vmatpush1.msra.mxu0 0.0
    %1996 = vmatprep.subr.mxu0 0.0
    %1997 = vmatpush1.msra.mxu0 0.0
    %1998 = vmatprep.subr.mxu0 0.0
    %1999 = vmatpush1.msra.mxu0 0.0
    %2000 = vmatprep.subr.mxu0 0.0
    %2001 = vmatpush1.msra.mxu0 0.0
    %2002 = vmatprep.subr.mxu0 0.0
    %2003 = vmatpush1.msra.mxu0 0.0
    %2004 = vmatprep.subr.mxu0 0.0
    %2005 = vmatpush1.msra.mxu0 0.0
    %2006 = vmatprep.subr.mxu0 0.0
    %2007 = vmatpush1.msra.mxu0 0.0
    %2008 = vmatprep.subr.mxu0 0.0
    %2009 = vmatpush1.msra.mxu0 0.0
    %2010 = vmatprep.subr.mxu0 0.0
    %2011 = vmatpush1.msra.mxu0 0.0
    %2012 = vmatprep.subr.mxu0 0.0
    %2013 = vmatpush1.msra.mxu0 0.0
    %2014 = vmatprep.subr.mxu0 0.0
    %2015 = vmatpush1.msra.mxu0 0.0
    %2016 = vmatprep.subr.mxu0 0.0
    %2017 = vmatpush1.msra.mxu0 0.0
    %2018 = vmatprep.subr.mxu0 0.0
    %2019 = vmatpush1.msra.mxu0 0.0
    %2020 = vmatprep.subr.mxu0 0.0
    %2021 = vmatpush1.msra.mxu0 0.0
    %2022 = vmatprep.subr.mxu0 0.0
    %2023 = vmatpush1.msra.mxu0 0.0
    %2024 = vmatprep.subr.mxu0 0.0
    %2025 = vmatpush1.msra.mxu0 0.0
    %2026 = vmatprep.subr.mxu0 0.0
    %2027 = vmatpush1.msra.mxu0 0.0
    %2028 = vmatprep.subr.mxu0 0.0
    %2029 = vmatpush1.msra.mxu0 0.0
    %2030 = vmatprep.subr.mxu0 0.0
    %2031 = vmatpush1.msra.mxu0 0.0
    %2032 = vmatprep.mubr.f32.mxu0 0.0
    %2033 = vmatmul.mubr.f32.gmra.mrb[0].mxu0 %v1963
    %v2034 = vpop.f32.mrb[0].mxu0
    %v2035 = vadd.f32 %v1961, %v2034
    %v2036 = vpop.f32.mrb[0].mxu0
    %2037 = vmatprep.mubr.f32.mxu0 0.0
    %2038 = vmatmul.mubr.f32.gmra.mrb[0].mxu0 %v1966
    %v2039 = vpop.f32.mrb[0].mxu0
    %v2040 = vadd.f32 %v1961, %v2039
    %v2041 = vpop.f32.mrb[0].mxu0
    %2042 = vdwg.mxu0
    %2045 = vrot.lane.b32.xlu0 %v2035, 120
    %v2046 = vpop.permute.xlu0 %2045
    %2047 = vrot.lane.b32.xlu0 %v2040, 120
    %v2048 = vpop.permute.xlu0 %2047
    %2049 = vrot.lane.b32.xlu0 %v2035, 112
    %v2050 = vpop.permute.xlu0 %2049
    %2051 = vrot.lane.b32.xlu0 %v2040, 112
    %v2052 = vpop.permute.xlu0 %2051
    %2053 = vrot.lane.b32.xlu0 %v2035, 104
    %v2054 = vpop.permute.xlu0 %2053
    %2055 = vrot.lane.b32.xlu0 %v2040, 104
    %v2056 = vpop.permute.xlu0 %2055
    %2057 = vrot.lane.b32.xlu0 %v2035, 96
    %v2058 = vpop.permute.xlu0 %2057
    %v2059 = vsel %vm257, %v2035, 0
    %v2061 = vsel %vm257, %v2058, 0
    %2063 = vmatprep.subr.mxu0 0.0
    %2064 = vmatpush1.xpose.msra.mxu0 %v2061
    %2065 = vmatprep.subr.mxu0 0.0
    %2066 = vmatpush1.xpose.msra.mxu0 0.0
    %2067 = vmatprep.subr.mxu0 0.0
    %2068 = vmatpush1.xpose.msra.mxu0 0.0
    %2069 = vmatprep.subr.mxu0 0.0
    %2070 = vmatpush1.xpose.msra.mxu0 0.0
    %2071 = vmatprep.subr.mxu0 0.0
    %2072 = vmatpush1.xpose.msra.mxu0 0.0
    %2073 = vmatprep.subr.mxu0 0.0
    %2074 = vmatpush1.xpose.msra.mxu0 0.0
    %2075 = vmatprep.subr.mxu0 0.0
    %2076 = vmatpush1.xpose.msra.mxu0 0.0
    %2077 = vmatprep.subr.mxu0 0.0
    %2078 = vmatpush1.xpose.msra.mxu0 0.0
    %2079 = vmatprep.subr.mxu0 0.0
    %2080 = vmatpush1.xpose.msra.mxu0 0.0
    %2081 = vmatprep.subr.mxu0 0.0
    %2082 = vmatpush1.xpose.msra.mxu0 0.0
    %2083 = vmatprep.subr.mxu0 0.0
    %2084 = vmatpush1.xpose.msra.mxu0 0.0
    %2085 = vmatprep.subr.mxu0 0.0
    %2086 = vmatpush1.xpose.msra.mxu0 0.0
    %2087 = vmatprep.subr.mxu0 0.0
    %2088 = vmatpush1.xpose.msra.mxu0 0.0
    %2089 = vmatprep.subr.mxu0 0.0
    %2090 = vmatpush1.xpose.msra.mxu0 0.0
    %2091 = vmatprep.subr.mxu0 0.0
    %2092 = vmatpush1.xpose.msra.mxu0 0.0
    %2093 = vmatprep.subr.mxu0 0.0
    %2094 = vmatpush1.xpose.msra.mxu0 0.0
    %2095 = vmatprep.subr.mxu0 0.0
    %2096 = vmatpush1.xpose.msra.mxu0 0.0
    %2097 = vmatprep.subr.mxu0 0.0
    %2098 = vmatpush1.xpose.msra.mxu0 0.0
    %2099 = vmatprep.subr.mxu0 0.0
    %2100 = vmatpush1.xpose.msra.mxu0 0.0
    %2101 = vmatprep.subr.mxu0 0.0
    %2102 = vmatpush1.xpose.msra.mxu0 0.0
    %2103 = vmatprep.subr.mxu0 0.0
    %2104 = vmatpush1.xpose.msra.mxu0 0.0
    %2105 = vmatprep.subr.mxu0 0.0
    %2106 = vmatpush1.xpose.msra.mxu0 0.0
    %2107 = vmatprep.subr.mxu0 0.0
    %2108 = vmatpush1.xpose.msra.mxu0 0.0
    %2109 = vmatprep.subr.mxu0 0.0
    %2110 = vmatpush1.xpose.msra.mxu0 0.0
    %2111 = vmatprep.subr.mxu0 0.0
    %2112 = vmatpush1.xpose.msra.mxu0 0.0
    %2113 = vmatprep.subr.mxu0 0.0
    %2114 = vmatpush1.xpose.msra.mxu0 0.0
    %2115 = vmatprep.subr.mxu0 0.0
    %2116 = vmatpush1.xpose.msra.mxu0 0.0
    %2117 = vmatprep.subr.mxu0 0.0
    %2118 = vmatpush1.xpose.msra.mxu0 0.0
    %2119 = vmatprep.subr.mxu0 0.0
    %2120 = vmatpush1.xpose.msra.mxu0 0.0
    %2121 = vmatprep.subr.mxu0 0.0
    %2122 = vmatpush1.xpose.msra.mxu0 0.0
    %2123 = vmatprep.subr.mxu0 0.0
    %2124 = vmatpush1.xpose.msra.mxu0 0.0
    %2125 = vmatprep.subr.mxu0 0.0
    %2126 = vmatpush1.xpose.msra.mxu0 0.0
    %2127 = vmatprep.mubr.f32.mxu0 0.0
    %2128 = vmatmul.mubr.f32.gmra.mrb[0].mxu0 %v2059
    %v2129 = vpop.f32.mrb[0].mxu0
    %v2130 = vadd.f32 %v248, %v2129
    %v2131 = vpop.f32.mrb[0].mxu0
    %2132 = vdwg.mxu0
    %2133 = vrot.lane.b32.xlu0 %v2040, 96
    %v2134 = vpop.permute.xlu0 %2133
    %v2135 = vsel %vm257, %v2040, 0
    %v2137 = vsel %vm257, %v2134, 0
    %2139 = vmatprep.subr.mxu0 0.0
    %2140 = vmatpush1.xpose.msra.mxu0 %v2137
    %2141 = vmatprep.subr.mxu0 0.0
    %2142 = vmatpush1.xpose.msra.mxu0 0.0
    %2143 = vmatprep.subr.mxu0 0.0
    %2144 = vmatpush1.xpose.msra.mxu0 0.0
    %2145 = vmatprep.subr.mxu0 0.0
    %2146 = vmatpush1.xpose.msra.mxu0 0.0
    %2147 = vmatprep.subr.mxu0 0.0
    %2148 = vmatpush1.xpose.msra.mxu0 0.0
    %2149 = vmatprep.subr.mxu0 0.0
    %2150 = vmatpush1.xpose.msra.mxu0 0.0
    %2151 = vmatprep.subr.mxu0 0.0
    %2152 = vmatpush1.xpose.msra.mxu0 0.0
    %2153 = vmatprep.subr.mxu0 0.0
    %2154 = vmatpush1.xpose.msra.mxu0 0.0
    %2155 = vmatprep.subr.mxu0 0.0
    %2156 = vmatpush1.xpose.msra.mxu0 0.0
    %2157 = vmatprep.subr.mxu0 0.0
    %2158 = vmatpush1.xpose.msra.mxu0 0.0
    %2159 = vmatprep.subr.mxu0 0.0
    %2160 = vmatpush1.xpose.msra.mxu0 0.0
    %2161 = vmatprep.subr.mxu0 0.0
    %2162 = vmatpush1.xpose.msra.mxu0 0.0
    %2163 = vmatprep.subr.mxu0 0.0
    %2164 = vmatpush1.xpose.msra.mxu0 0.0
    %2165 = vmatprep.subr.mxu0 0.0
    %2166 = vmatpush1.xpose.msra.mxu0 0.0
    %2167 = vmatprep.subr.mxu0 0.0
    %2168 = vmatpush1.xpose.msra.mxu0 0.0
    %2169 = vmatprep.subr.mxu0 0.0
    %2170 = vmatpush1.xpose.msra.mxu0 0.0
    %2171 = vmatprep.subr.mxu0 0.0
    %2172 = vmatpush1.xpose.msra.mxu0 0.0
    %2173 = vmatprep.subr.mxu0 0.0
    %2174 = vmatpush1.xpose.msra.mxu0 0.0
    %2175 = vmatprep.subr.mxu0 0.0
    %2176 = vmatpush1.xpose.msra.mxu0 0.0
    %2177 = vmatprep.subr.mxu0 0.0
    %2178 = vmatpush1.xpose.msra.mxu0 0.0
    %2179 = vmatprep.subr.mxu0 0.0
    %2180 = vmatpush1.xpose.msra.mxu0 0.0
    %2181 = vmatprep.subr.mxu0 0.0
    %2182 = vmatpush1.xpose.msra.mxu0 0.0
    %2183 = vmatprep.subr.mxu0 0.0
    %2184 = vmatpush1.xpose.msra.mxu0 0.0
    %2185 = vmatprep.subr.mxu0 0.0
    %2186 = vmatpush1.xpose.msra.mxu0 0.0
    %2187 = vmatprep.subr.mxu0 0.0
    %2188 = vmatpush1.xpose.msra.mxu0 0.0
    %2189 = vmatprep.subr.mxu0 0.0
    %2190 = vmatpush1.xpose.msra.mxu0 0.0
    %2191 = vmatprep.subr.mxu0 0.0
    %2192 = vmatpush1.xpose.msra.mxu0 0.0
    %2193 = vmatprep.subr.mxu0 0.0
    %2194 = vmatpush1.xpose.msra.mxu0 0.0
    %2195 = vmatprep.subr.mxu0 0.0
    %2196 = vmatpush1.xpose.msra.mxu0 0.0
    %2197 = vmatprep.subr.mxu0 0.0
    %2198 = vmatpush1.xpose.msra.mxu0 0.0
    %2199 = vmatprep.subr.mxu0 0.0
    %2200 = vmatpush1.xpose.msra.mxu0 0.0
    %2201 = vmatprep.subr.mxu0 0.0
    %2202 = vmatpush1.xpose.msra.mxu0 0.0
    %2203 = vmatprep.mubr.f32.mxu0 0.0
    %2204 = vmatmul.mubr.f32.gmra.mrb[0].mxu0 %v2135
    %v2205 = vpop.f32.mrb[0].mxu0
    %v2206 = vadd.f32 %v252, %v2205
    %v2207 = vpop.f32.mrb[0].mxu0
    %2208 = vdwg.mxu0
    %2209 = vrot.lane.b32.xlu0 %v2046, 96
    %v2210 = vpop.permute.xlu0 %2209
    %v2211 = vsel %vm257, %v2046, 0
    %v2213 = vsel %vm257, %v2210, 0
    %2215 = vmatprep.subr.mxu0 0.0
    %2216 = vmatpush1.xpose.msra.mxu0 %v2213
    %2217 = vmatprep.subr.mxu0 0.0
    %2218 = vmatpush1.xpose.msra.mxu0 0.0
    %2219 = vmatprep.subr.mxu0 0.0
    %2220 = vmatpush1.xpose.msra.mxu0 0.0
    %2221 = vmatprep.subr.mxu0 0.0
    %2222 = vmatpush1.xpose.msra.mxu0 0.0
    %2223 = vmatprep.subr.mxu0 0.0
    %2224 = vmatpush1.xpose.msra.mxu0 0.0
    %2225 = vmatprep.subr.mxu0 0.0
    %2226 = vmatpush1.xpose.msra.mxu0 0.0
    %2227 = vmatprep.subr.mxu0 0.0
    %2228 = vmatpush1.xpose.msra.mxu0 0.0
    %2229 = vmatprep.subr.mxu0 0.0
    %2230 = vmatpush1.xpose.msra.mxu0 0.0
    %2231 = vmatprep.subr.mxu0 0.0
    %2232 = vmatpush1.xpose.msra.mxu0 0.0
    %2233 = vmatprep.subr.mxu0 0.0
    %2234 = vmatpush1.xpose.msra.mxu0 0.0
    %2235 = vmatprep.subr.mxu0 0.0
    %2236 = vmatpush1.xpose.msra.mxu0 0.0
    %2237 = vmatprep.subr.mxu0 0.0
    %2238 = vmatpush1.xpose.msra.mxu0 0.0
    %2239 = vmatprep.subr.mxu0 0.0
    %2240 = vmatpush1.xpose.msra.mxu0 0.0
    %2241 = vmatprep.subr.mxu0 0.0
    %2242 = vmatpush1.xpose.msra.mxu0 0.0
    %2243 = vmatprep.subr.mxu0 0.0
    %2244 = vmatpush1.xpose.msra.mxu0 0.0
    %2245 = vmatprep.subr.mxu0 0.0
    %2246 = vmatpush1.xpose.msra.mxu0 0.0
    %2247 = vmatprep.subr.mxu0 0.0
    %2248 = vmatpush1.xpose.msra.mxu0 0.0
    %2249 = vmatprep.subr.mxu0 0.0
    %2250 = vmatpush1.xpose.msra.mxu0 0.0
    %2251 = vmatprep.subr.mxu0 0.0
    %2252 = vmatpush1.xpose.msra.mxu0 0.0
    %2253 = vmatprep.subr.mxu0 0.0
    %2254 = vmatpush1.xpose.msra.mxu0 0.0
    %2255 = vmatprep.subr.mxu0 0.0
    %2256 = vmatpush1.xpose.msra.mxu0 0.0
    %2257 = vmatprep.subr.mxu0 0.0
    %2258 = vmatpush1.xpose.msra.mxu0 0.0
    %2259 = vmatprep.subr.mxu0 0.0
    %2260 = vmatpush1.xpose.msra.mxu0 0.0
    %2261 = vmatprep.subr.mxu0 0.0
    %2262 = vmatpush1.xpose.msra.mxu0 0.0
    %2263 = vmatprep.subr.mxu0 0.0
    %2264 = vmatpush1.xpose.msra.mxu0 0.0
    %2265 = vmatprep.subr.mxu0 0.0
    %2266 = vmatpush1.xpose.msra.mxu0 0.0
    %2267 = vmatprep.subr.mxu0 0.0
    %2268 = vmatpush1.xpose.msra.mxu0 0.0
    %2269 = vmatprep.subr.mxu0 0.0
    %2270 = vmatpush1.xpose.msra.mxu0 0.0
    %2271 = vmatprep.subr.mxu0 0.0
    %2272 = vmatpush1.xpose.msra.mxu0 0.0
    %2273 = vmatprep.subr.mxu0 0.0
    %2274 = vmatpush1.xpose.msra.mxu0 0.0
    %2275 = vmatprep.subr.mxu0 0.0
    %2276 = vmatpush1.xpose.msra.mxu0 0.0
    %2277 = vmatprep.subr.mxu0 0.0
    %2278 = vmatpush1.xpose.msra.mxu0 0.0
    %2279 = vmatprep.mubr.f32.mxu0 0.0
    %2280 = vmatmul.mubr.f32.gmra.mrb[0].mxu0 %v2211
    %v2281 = vpop.f32.mrb[0].mxu0
    %v2282 = vadd.f32 %v248, %v2281
    %v2283 = vpop.f32.mrb[0].mxu0
    %2284 = vdwg.mxu0
    %2285 = vrot.lane.b32.xlu0 %v2048, 96
    %v2286 = vpop.permute.xlu0 %2285
    %v2287 = vsel %vm257, %v2048, 0
    %v2289 = vsel %vm257, %v2286, 0
    %2291 = vmatprep.subr.mxu0 0.0
    %2292 = vmatpush1.xpose.msra.mxu0 %v2289
    %2293 = vmatprep.subr.mxu0 0.0
    %2294 = vmatpush1.xpose.msra.mxu0 0.0
    %2295 = vmatprep.subr.mxu0 0.0
    %2296 = vmatpush1.xpose.msra.mxu0 0.0
    %2297 = vmatprep.subr.mxu0 0.0
    %2298 = vmatpush1.xpose.msra.mxu0 0.0
    %2299 = vmatprep.subr.mxu0 0.0
    %2300 = vmatpush1.xpose.msra.mxu0 0.0
    %2301 = vmatprep.subr.mxu0 0.0
    %2302 = vmatpush1.xpose.msra.mxu0 0.0
    %2303 = vmatprep.subr.mxu0 0.0
    %2304 = vmatpush1.xpose.msra.mxu0 0.0
    %2305 = vmatprep.subr.mxu0 0.0
    %2306 = vmatpush1.xpose.msra.mxu0 0.0
    %2307 = vmatprep.subr.mxu0 0.0
    %2308 = vmatpush1.xpose.msra.mxu0 0.0
    %2309 = vmatprep.subr.mxu0 0.0
    %2310 = vmatpush1.xpose.msra.mxu0 0.0
    %2311 = vmatprep.subr.mxu0 0.0
    %2312 = vmatpush1.xpose.msra.mxu0 0.0
    %2313 = vmatprep.subr.mxu0 0.0
    %2314 = vmatpush1.xpose.msra.mxu0 0.0
    %2315 = vmatprep.subr.mxu0 0.0
    %2316 = vmatpush1.xpose.msra.mxu0 0.0
    %2317 = vmatprep.subr.mxu0 0.0
    %2318 = vmatpush1.xpose.msra.mxu0 0.0
    %2319 = vmatprep.subr.mxu0 0.0
    %2320 = vmatpush1.xpose.msra.mxu0 0.0
    %2321 = vmatprep.subr.mxu0 0.0
    %2322 = vmatpush1.xpose.msra.mxu0 0.0
    %2323 = vmatprep.subr.mxu0 0.0
    %2324 = vmatpush1.xpose.msra.mxu0 0.0
    %2325 = vmatprep.subr.mxu0 0.0
    %2326 = vmatpush1.xpose.msra.mxu0 0.0
    %2327 = vmatprep.subr.mxu0 0.0
    %2328 = vmatpush1.xpose.msra.mxu0 0.0
    %2329 = vmatprep.subr.mxu0 0.0
    %2330 = vmatpush1.xpose.msra.mxu0 0.0
    %2331 = vmatprep.subr.mxu0 0.0
    %2332 = vmatpush1.xpose.msra.mxu0 0.0
    %2333 = vmatprep.subr.mxu0 0.0
    %2334 = vmatpush1.xpose.msra.mxu0 0.0
    %2335 = vmatprep.subr.mxu0 0.0
    %2336 = vmatpush1.xpose.msra.mxu0 0.0
    %2337 = vmatprep.subr.mxu0 0.0
    %2338 = vmatpush1.xpose.msra.mxu0 0.0
    %2339 = vmatprep.subr.mxu0 0.0
    %2340 = vmatpush1.xpose.msra.mxu0 0.0
    %2341 = vmatprep.subr.mxu0 0.0
    %2342 = vmatpush1.xpose.msra.mxu0 0.0
    %2343 = vmatprep.subr.mxu0 0.0
    %2344 = vmatpush1.xpose.msra.mxu0 0.0
    %2345 = vmatprep.subr.mxu0 0.0
    %2346 = vmatpush1.xpose.msra.mxu0 0.0
    %2347 = vmatprep.subr.mxu0 0.0
    %2348 = vmatpush1.xpose.msra.mxu0 0.0
    %2349 = vmatprep.subr.mxu0 0.0
    %2350 = vmatpush1.xpose.msra.mxu0 0.0
    %2351 = vmatprep.subr.mxu0 0.0
    %2352 = vmatpush1.xpose.msra.mxu0 0.0
    %2353 = vmatprep.subr.mxu0 0.0
    %2354 = vmatpush1.xpose.msra.mxu0 0.0
    %2355 = vmatprep.mubr.f32.mxu0 0.0
    %2356 = vmatmul.mubr.f32.gmra.mrb[0].mxu0 %v2287
    %v2357 = vpop.f32.mrb[0].mxu0
    %v2358 = vadd.f32 %v252, %v2357
    %v2359 = vpop.f32.mrb[0].mxu0
    %2360 = vdwg.mxu0
    %2361 = vrot.lane.b32.xlu0 %v2050, 96
    %v2362 = vpop.permute.xlu0 %2361
    %v2363 = vsel %vm257, %v2050, 0
    %v2365 = vsel %vm257, %v2362, 0
    %2367 = vmatprep.subr.mxu0 0.0
    %2368 = vmatpush1.xpose.msra.mxu0 %v2365
    %2369 = vmatprep.subr.mxu0 0.0
    %2370 = vmatpush1.xpose.msra.mxu0 0.0
    %2371 = vmatprep.subr.mxu0 0.0
    %2372 = vmatpush1.xpose.msra.mxu0 0.0
    %2373 = vmatprep.subr.mxu0 0.0
    %2374 = vmatpush1.xpose.msra.mxu0 0.0
    %2375 = vmatprep.subr.mxu0 0.0
    %2376 = vmatpush1.xpose.msra.mxu0 0.0
    %2377 = vmatprep.subr.mxu0 0.0
    %2378 = vmatpush1.xpose.msra.mxu0 0.0
    %2379 = vmatprep.subr.mxu0 0.0
    %2380 = vmatpush1.xpose.msra.mxu0 0.0
    %2381 = vmatprep.subr.mxu0 0.0
    %2382 = vmatpush1.xpose.msra.mxu0 0.0
    %2383 = vmatprep.subr.mxu0 0.0
    %2384 = vmatpush1.xpose.msra.mxu0 0.0
    %2385 = vmatprep.subr.mxu0 0.0
    %2386 = vmatpush1.xpose.msra.mxu0 0.0
    %2387 = vmatprep.subr.mxu0 0.0
    %2388 = vmatpush1.xpose.msra.mxu0 0.0
    %2389 = vmatprep.subr.mxu0 0.0
    %2390 = vmatpush1.xpose.msra.mxu0 0.0
    %2391 = vmatprep.subr.mxu0 0.0
    %2392 = vmatpush1.xpose.msra.mxu0 0.0
    %2393 = vmatprep.subr.mxu0 0.0
    %2394 = vmatpush1.xpose.msra.mxu0 0.0
    %2395 = vmatprep.subr.mxu0 0.0
    %2396 = vmatpush1.xpose.msra.mxu0 0.0
    %2397 = vmatprep.subr.mxu0 0.0
    %2398 = vmatpush1.xpose.msra.mxu0 0.0
    %2399 = vmatprep.subr.mxu0 0.0
    %2400 = vmatpush1.xpose.msra.mxu0 0.0
    %2401 = vmatprep.subr.mxu0 0.0
    %2402 = vmatpush1.xpose.msra.mxu0 0.0
    %2403 = vmatprep.subr.mxu0 0.0
    %2404 = vmatpush1.xpose.msra.mxu0 0.0
    %2405 = vmatprep.subr.mxu0 0.0
    %2406 = vmatpush1.xpose.msra.mxu0 0.0
    %2407 = vmatprep.subr.mxu0 0.0
    %2408 = vmatpush1.xpose.msra.mxu0 0.0
    %2409 = vmatprep.subr.mxu0 0.0
    %2410 = vmatpush1.xpose.msra.mxu0 0.0
    %2411 = vmatprep.subr.mxu0 0.0
    %2412 = vmatpush1.xpose.msra.mxu0 0.0
    %2413 = vmatprep.subr.mxu0 0.0
    %2414 = vmatpush1.xpose.msra.mxu0 0.0
    %2415 = vmatprep.subr.mxu0 0.0
    %2416 = vmatpush1.xpose.msra.mxu0 0.0
    %2417 = vmatprep.subr.mxu0 0.0
    %2418 = vmatpush1.xpose.msra.mxu0 0.0
    %2419 = vmatprep.subr.mxu0 0.0
    %2420 = vmatpush1.xpose.msra.mxu0 0.0
    %2421 = vmatprep.subr.mxu0 0.0
    %2422 = vmatpush1.xpose.msra.mxu0 0.0
    %2423 = vmatprep.subr.mxu0 0.0
    %2424 = vmatpush1.xpose.msra.mxu0 0.0
    %2425 = vmatprep.subr.mxu0 0.0
    %2426 = vmatpush1.xpose.msra.mxu0 0.0
    %2427 = vmatprep.subr.mxu0 0.0
    %2428 = vmatpush1.xpose.msra.mxu0 0.0
    %2429 = vmatprep.subr.mxu0 0.0
    %2430 = vmatpush1.xpose.msra.mxu0 0.0
    %2431 = vmatprep.mubr.f32.mxu0 0.0
    %2432 = vmatmul.mubr.f32.gmra.mrb[0].mxu0 %v2363
    %v2433 = vpop.f32.mrb[0].mxu0
    %v2434 = vadd.f32 %v248, %v2433
    %v2435 = vpop.f32.mrb[0].mxu0
    %2436 = vdwg.mxu0
    %2437 = vrot.lane.b32.xlu0 %v2052, 96
    %v2438 = vpop.permute.xlu0 %2437
    %v2439 = vsel %vm257, %v2052, 0
    %v2441 = vsel %vm257, %v2438, 0
    %2443 = vmatprep.subr.mxu0 0.0
    %2444 = vmatpush1.xpose.msra.mxu0 %v2441
    %2445 = vmatprep.subr.mxu0 0.0
    %2446 = vmatpush1.xpose.msra.mxu0 0.0
    %2447 = vmatprep.subr.mxu0 0.0
    %2448 = vmatpush1.xpose.msra.mxu0 0.0
    %2449 = vmatprep.subr.mxu0 0.0
    %2450 = vmatpush1.xpose.msra.mxu0 0.0
    %2451 = vmatprep.subr.mxu0 0.0
    %2452 = vmatpush1.xpose.msra.mxu0 0.0
    %2453 = vmatprep.subr.mxu0 0.0
    %2454 = vmatpush1.xpose.msra.mxu0 0.0
    %2455 = vmatprep.subr.mxu0 0.0
    %2456 = vmatpush1.xpose.msra.mxu0 0.0
    %2457 = vmatprep.subr.mxu0 0.0
    %2458 = vmatpush1.xpose.msra.mxu0 0.0
    %2459 = vmatprep.subr.mxu0 0.0
    %2460 = vmatpush1.xpose.msra.mxu0 0.0
    %2461 = vmatprep.subr.mxu0 0.0
    %2462 = vmatpush1.xpose.msra.mxu0 0.0
    %2463 = vmatprep.subr.mxu0 0.0
    %2464 = vmatpush1.xpose.msra.mxu0 0.0
    %2465 = vmatprep.subr.mxu0 0.0
    %2466 = vmatpush1.xpose.msra.mxu0 0.0
    %2467 = vmatprep.subr.mxu0 0.0
    %2468 = vmatpush1.xpose.msra.mxu0 0.0
    %2469 = vmatprep.subr.mxu0 0.0
    %2470 = vmatpush1.xpose.msra.mxu0 0.0
    %2471 = vmatprep.subr.mxu0 0.0
    %2472 = vmatpush1.xpose.msra.mxu0 0.0
    %2473 = vmatprep.subr.mxu0 0.0
    %2474 = vmatpush1.xpose.msra.mxu0 0.0
    %2475 = vmatprep.subr.mxu0 0.0
    %2476 = vmatpush1.xpose.msra.mxu0 0.0
    %2477 = vmatprep.subr.mxu0 0.0
    %2478 = vmatpush1.xpose.msra.mxu0 0.0
    %2479 = vmatprep.subr.mxu0 0.0
    %2480 = vmatpush1.xpose.msra.mxu0 0.0
    %2481 = vmatprep.subr.mxu0 0.0
    %2482 = vmatpush1.xpose.msra.mxu0 0.0
    %2483 = vmatprep.subr.mxu0 0.0
    %2484 = vmatpush1.xpose.msra.mxu0 0.0
    %2485 = vmatprep.subr.mxu0 0.0
    %2486 = vmatpush1.xpose.msra.mxu0 0.0
    %2487 = vmatprep.subr.mxu0 0.0
    %2488 = vmatpush1.xpose.msra.mxu0 0.0
    %2489 = vmatprep.subr.mxu0 0.0
    %2490 = vmatpush1.xpose.msra.mxu0 0.0
    %2491 = vmatprep.subr.mxu0 0.0
    %2492 = vmatpush1.xpose.msra.mxu0 0.0
    %2493 = vmatprep.subr.mxu0 0.0
    %2494 = vmatpush1.xpose.msra.mxu0 0.0
    %2495 = vmatprep.subr.mxu0 0.0
    %2496 = vmatpush1.xpose.msra.mxu0 0.0
    %2497 = vmatprep.subr.mxu0 0.0
    %2498 = vmatpush1.xpose.msra.mxu0 0.0
    %2499 = vmatprep.subr.mxu0 0.0
    %2500 = vmatpush1.xpose.msra.mxu0 0.0
    %2501 = vmatprep.subr.mxu0 0.0
    %2502 = vmatpush1.xpose.msra.mxu0 0.0
    %2503 = vmatprep.subr.mxu0 0.0
    %2504 = vmatpush1.xpose.msra.mxu0 0.0
    %2505 = vmatprep.subr.mxu0 0.0
    %2506 = vmatpush1.xpose.msra.mxu0 0.0
    %2507 = vmatprep.mubr.f32.mxu0 0.0
    %2508 = vmatmul.mubr.f32.gmra.mrb[0].mxu0 %v2439
    %v2509 = vpop.f32.mrb[0].mxu0
    %v2510 = vadd.f32 %v252, %v2509
    %v2511 = vpop.f32.mrb[0].mxu0
    %2512 = vdwg.mxu0
    %2513 = vrot.lane.b32.xlu0 %v2054, 96
    %v2514 = vpop.permute.xlu0 %2513
    %v2515 = vsel %vm257, %v2054, 0
    %v2517 = vsel %vm257, %v2514, 0
    %2519 = vmatprep.subr.mxu0 0.0
    %2520 = vmatpush1.xpose.msra.mxu0 %v2517
    %2521 = vmatprep.subr.mxu0 0.0
    %2522 = vmatpush1.xpose.msra.mxu0 0.0
    %2523 = vmatprep.subr.mxu0 0.0
    %2524 = vmatpush1.xpose.msra.mxu0 0.0
    %2525 = vmatprep.subr.mxu0 0.0
    %2526 = vmatpush1.xpose.msra.mxu0 0.0
    %2527 = vmatprep.subr.mxu0 0.0
    %2528 = vmatpush1.xpose.msra.mxu0 0.0
    %2529 = vmatprep.subr.mxu0 0.0
    %2530 = vmatpush1.xpose.msra.mxu0 0.0
    %2531 = vmatprep.subr.mxu0 0.0
    %2532 = vmatpush1.xpose.msra.mxu0 0.0
    %2533 = vmatprep.subr.mxu0 0.0
    %2534 = vmatpush1.xpose.msra.mxu0 0.0
    %2535 = vmatprep.subr.mxu0 0.0
    %2536 = vmatpush1.xpose.msra.mxu0 0.0
    %2537 = vmatprep.subr.mxu0 0.0
    %2538 = vmatpush1.xpose.msra.mxu0 0.0
    %2539 = vmatprep.subr.mxu0 0.0
    %2540 = vmatpush1.xpose.msra.mxu0 0.0
    %2541 = vmatprep.subr.mxu0 0.0
    %2542 = vmatpush1.xpose.msra.mxu0 0.0
    %2543 = vmatprep.subr.mxu0 0.0
    %2544 = vmatpush1.xpose.msra.mxu0 0.0
    %2545 = vmatprep.subr.mxu0 0.0
    %2546 = vmatpush1.xpose.msra.mxu0 0.0
    %2547 = vmatprep.subr.mxu0 0.0
    %2548 = vmatpush1.xpose.msra.mxu0 0.0
    %2549 = vmatprep.subr.mxu0 0.0
    %2550 = vmatpush1.xpose.msra.mxu0 0.0
    %2551 = vmatprep.subr.mxu0 0.0
    %2552 = vmatpush1.xpose.msra.mxu0 0.0
    %2553 = vmatprep.subr.mxu0 0.0
    %2554 = vmatpush1.xpose.msra.mxu0 0.0
    %2555 = vmatprep.subr.mxu0 0.0
    %2556 = vmatpush1.xpose.msra.mxu0 0.0
    %2557 = vmatprep.subr.mxu0 0.0
    %2558 = vmatpush1.xpose.msra.mxu0 0.0
    %2559 = vmatprep.subr.mxu0 0.0
    %2560 = vmatpush1.xpose.msra.mxu0 0.0
    %2561 = vmatprep.subr.mxu0 0.0
    %2562 = vmatpush1.xpose.msra.mxu0 0.0
    %2563 = vmatprep.subr.mxu0 0.0
    %2564 = vmatpush1.xpose.msra.mxu0 0.0
    %2565 = vmatprep.subr.mxu0 0.0
    %2566 = vmatpush1.xpose.msra.mxu0 0.0
    %2567 = vmatprep.subr.mxu0 0.0
    %2568 = vmatpush1.xpose.msra.mxu0 0.0
    %2569 = vmatprep.subr.mxu0 0.0
    %2570 = vmatpush1.xpose.msra.mxu0 0.0
    %2571 = vmatprep.subr.mxu0 0.0
    %2572 = vmatpush1.xpose.msra.mxu0 0.0
    %2573 = vmatprep.subr.mxu0 0.0
    %2574 = vmatpush1.xpose.msra.mxu0 0.0
    %2575 = vmatprep.subr.mxu0 0.0
    %2576 = vmatpush1.xpose.msra.mxu0 0.0
    %2577 = vmatprep.subr.mxu0 0.0
    %2578 = vmatpush1.xpose.msra.mxu0 0.0
    %2579 = vmatprep.subr.mxu0 0.0
    %2580 = vmatpush1.xpose.msra.mxu0 0.0
    %2581 = vmatprep.subr.mxu0 0.0
    %2582 = vmatpush1.xpose.msra.mxu0 0.0
    %2583 = vmatprep.mubr.f32.mxu0 0.0
    %2584 = vmatmul.mubr.f32.gmra.mrb[0].mxu0 %v2515
    %v2585 = vpop.f32.mrb[0].mxu0
    %v2586 = vadd.f32 %v248, %v2585
    %v2587 = vpop.f32.mrb[0].mxu0
    %2588 = vdwg.mxu0
    %2589 = vrot.lane.b32.xlu0 %v2056, 96
    %v2590 = vpop.permute.xlu0 %2589
    %v2591 = vsel %vm257, %v2056, 0
    %v2593 = vsel %vm257, %v2590, 0
    %2595 = vmatprep.subr.mxu0 0.0
    %2596 = vmatpush1.xpose.msra.mxu0 %v2593
    %2597 = vmatprep.subr.mxu0 0.0
    %2598 = vmatpush1.xpose.msra.mxu0 0.0
    %2599 = vmatprep.subr.mxu0 0.0
    %2600 = vmatpush1.xpose.msra.mxu0 0.0
    %2601 = vmatprep.subr.mxu0 0.0
    %2602 = vmatpush1.xpose.msra.mxu0 0.0
    %2603 = vmatprep.subr.mxu0 0.0
    %2604 = vmatpush1.xpose.msra.mxu0 0.0
    %2605 = vmatprep.subr.mxu0 0.0
    %2606 = vmatpush1.xpose.msra.mxu0 0.0
    %2607 = vmatprep.subr.mxu0 0.0
    %2608 = vmatpush1.xpose.msra.mxu0 0.0
    %2609 = vmatprep.subr.mxu0 0.0
    %2610 = vmatpush1.xpose.msra.mxu0 0.0
    %2611 = vmatprep.subr.mxu0 0.0
    %2612 = vmatpush1.xpose.msra.mxu0 0.0
    %2613 = vmatprep.subr.mxu0 0.0
    %2614 = vmatpush1.xpose.msra.mxu0 0.0
    %2615 = vmatprep.subr.mxu0 0.0
    %2616 = vmatpush1.xpose.msra.mxu0 0.0
    %2617 = vmatprep.subr.mxu0 0.0
    %2618 = vmatpush1.xpose.msra.mxu0 0.0
    %2619 = vmatprep.subr.mxu0 0.0
    %2620 = vmatpush1.xpose.msra.mxu0 0.0
    %2621 = vmatprep.subr.mxu0 0.0
    %2622 = vmatpush1.xpose.msra.mxu0 0.0
    %2623 = vmatprep.subr.mxu0 0.0
    %2624 = vmatpush1.xpose.msra.mxu0 0.0
    %2625 = vmatprep.subr.mxu0 0.0
    %2626 = vmatpush1.xpose.msra.mxu0 0.0
    %2627 = vmatprep.subr.mxu0 0.0
    %2628 = vmatpush1.xpose.msra.mxu0 0.0
    %2629 = vmatprep.subr.mxu0 0.0
    %2630 = vmatpush1.xpose.msra.mxu0 0.0
    %2631 = vmatprep.subr.mxu0 0.0
    %2632 = vmatpush1.xpose.msra.mxu0 0.0
    %2633 = vmatprep.subr.mxu0 0.0
    %2634 = vmatpush1.xpose.msra.mxu0 0.0
    %2635 = vmatprep.subr.mxu0 0.0
    %2636 = vmatpush1.xpose.msra.mxu0 0.0
    %2637 = vmatprep.subr.mxu0 0.0
    %2638 = vmatpush1.xpose.msra.mxu0 0.0
    %2639 = vmatprep.subr.mxu0 0.0
    %2640 = vmatpush1.xpose.msra.mxu0 0.0
    %2641 = vmatprep.subr.mxu0 0.0
    %2642 = vmatpush1.xpose.msra.mxu0 0.0
    %2643 = vmatprep.subr.mxu0 0.0
    %2644 = vmatpush1.xpose.msra.mxu0 0.0
    %2645 = vmatprep.subr.mxu0 0.0
    %2646 = vmatpush1.xpose.msra.mxu0 0.0
    %2647 = vmatprep.subr.mxu0 0.0
    %2648 = vmatpush1.xpose.msra.mxu0 0.0
    %2649 = vmatprep.subr.mxu0 0.0
    %2650 = vmatpush1.xpose.msra.mxu0 0.0
    %2651 = vmatprep.subr.mxu0 0.0
    %2652 = vmatpush1.xpose.msra.mxu0 0.0
    %2653 = vmatprep.subr.mxu0 0.0
    %2654 = vmatpush1.xpose.msra.mxu0 0.0
    %2655 = vmatprep.subr.mxu0 0.0
    %2656 = vmatpush1.xpose.msra.mxu0 0.0
    %2657 = vmatprep.subr.mxu0 0.0
    %2658 = vmatpush1.xpose.msra.mxu0 0.0
    %2659 = vmatprep.mubr.f32.mxu0 0.0
    %2660 = vmatmul.mubr.f32.gmra.mrb[0].mxu0 %v2591
    %v2661 = vpop.f32.mrb[0].mxu0
    %v2662 = vadd.f32 %v252, %v2661
    %v2663 = vpop.f32.mrb[0].mxu0
    %2664 = vdwg.mxu0
    %v2665 = vsel %vm257, %v2130, -inf
    %2666 = vmax.xlane.f32.xlu0 %v2665
    %v2667 = vpop.xlane.xlu0 %2666
    %v2668 = vsel %vm257, %v2206, -inf
    %2669 = vmax.xlane.f32.xlu0 %v2668
    %v2670 = vpop.xlane.xlu0 %2669
    %v2671 = vsel %vm257, %v2282, -inf
    %2672 = vmax.xlane.f32.xlu0 %v2671
    %v2673 = vpop.xlane.xlu0 %2672
    %v2674 = vsel %vm257, %v2358, -inf
    %2675 = vmax.xlane.f32.xlu0 %v2674
    %v2676 = vpop.xlane.xlu0 %2675
    %v2677 = vsel %vm257, %v2434, -inf
    %2678 = vmax.xlane.f32.xlu0 %v2677
    %v2679 = vpop.xlane.xlu0 %2678
    %v2680 = vsel %vm257, %v2510, -inf
    %2681 = vmax.xlane.f32.xlu0 %v2680
    %v2682 = vpop.xlane.xlu0 %2681
    %v2683 = vsel %vm257, %v2586, -inf
    %2684 = vmax.xlane.f32.xlu0 %v2683
    %v2685 = vpop.xlane.xlu0 %2684
    %v2686 = vsel %vm257, %v2662, -inf
    %2687 = vmax.xlane.f32.xlu0 %v2686
    %v2688 = vpop.xlane.xlu0 %2687
    %v2689 = vsub.f32 %v2130, %v2667
    %v2690 = vsub.f32 %v2206, %v2670
    %v2691 = vsub.f32 %v2282, %v2673
    %v2692 = vsub.f32 %v2358, %v2676
    %v2693 = vsub.f32 %v2434, %v2679
    %v2694 = vsub.f32 %v2510, %v2682
    %v2695 = vsub.f32 %v2586, %v2685
    %v2696 = vsub.f32 %v2662, %v2688
    %v2697 = vmul.f32 %v2689, 1.442695
    %v2698 = vpow.pop %v2697
    %v2699 = vmul.f32 %v2690, 1.442695
    %v2700 = vpow.pop %v2699
    %v2701 = vmul.f32 %v2691, 1.442695
    %v2702 = vpow.pop %v2701
    %v2703 = vmul.f32 %v2692, 1.442695
    %v2704 = vpow.pop %v2703
    %v2705 = vmul.f32 %v2693, 1.442695
    %v2706 = vpow.pop %v2705
    %v2707 = vmul.f32 %v2694, 1.442695
    %v2708 = vpow.pop %v2707
    %v2709 = vmul.f32 %v2695, 1.442695
    %v2710 = vpow.pop %v2709
    %v2711 = vmul.f32 %v2696, 1.442695
    %v2712 = vpow.pop %v2711
    %v2713 = vsel %vm257, %v2698, 0.0
    %2714 = vadd.xlane.f32.xlu0 %v2713
    %v2715 = vpop.xlane.xlu0 %2714
    %v2716 = vsel %vm257, %v2700, 0.0
    %2717 = vadd.xlane.f32.xlu0 %v2716
    %v2718 = vpop.xlane.xlu0 %2717
    %v2719 = vsel %vm257, %v2702, 0.0
    %2720 = vadd.xlane.f32.xlu0 %v2719
    %v2721 = vpop.xlane.xlu0 %2720
    %v2722 = vsel %vm257, %v2704, 0.0
    %2723 = vadd.xlane.f32.xlu0 %v2722
    %v2724 = vpop.xlane.xlu0 %2723
    %v2725 = vsel %vm257, %v2706, 0.0
    %2726 = vadd.xlane.f32.xlu0 %v2725
    %v2727 = vpop.xlane.xlu0 %2726
    %v2728 = vsel %vm257, %v2708, 0.0
    %2729 = vadd.xlane.f32.xlu0 %v2728
    %v2730 = vpop.xlane.xlu0 %2729
    %v2731 = vsel %vm257, %v2710, 0.0
    %2732 = vadd.xlane.f32.xlu0 %v2731
    %v2733 = vpop.xlane.xlu0 %2732
    %v2734 = vsel %vm257, %v2712, 0.0
    %2735 = vadd.xlane.f32.xlu0 %v2734
    %v2736 = vpop.xlane.xlu0 %2735
    %v2737 = vrcp.pop %v2715
    %v2738 = vrcp.pop %v2718
    %v2739 = vrcp.pop %v2721
    %v2740 = vrcp.pop %v2724
    %v2741 = vrcp.pop %v2727
    %v2742 = vrcp.pop %v2730
    %v2743 = vrcp.pop %v2733
    %v2744 = vrcp.pop %v2736
    %v2745 = vmul.f32 %v2698, %v2737
    %v2746 = vmul.f32 %v2700, %v2738
    %v2747 = vmul.f32 %v2702, %v2739
    %v2748 = vmul.f32 %v2704, %v2740
    %v2749 = vmul.f32 %v2706, %v2741
    %v2750 = vmul.f32 %v2708, %v2742
    %v2751 = vmul.f32 %v2710, %v2743
    %v2752 = vmul.f32 %v2712, %v2744
    %2753 = vrot.lane.b32.xlu0 %v2035, 64
    %v2754 = vpop.permute.xlu0 %2753
    %v2757 = vsel %vm257, %v2745, 0
    %2759 = vmatprep.subr.mxu0 0.0
    %2760 = vmatpush1.msra.mxu0 %v2754
    %2761 = vmatprep.subr.mxu0 0.0
    %2762 = vmatpush1.msra.mxu0 0.0
    %2763 = vmatprep.subr.mxu0 0.0
    %2764 = vmatpush1.msra.mxu0 0.0
    %2765 = vmatprep.subr.mxu0 0.0
    %2766 = vmatpush1.msra.mxu0 0.0
    %2767 = vmatprep.subr.mxu0 0.0
    %2768 = vmatpush1.msra.mxu0 0.0
    %2769 = vmatprep.subr.mxu0 0.0
    %2770 = vmatpush1.msra.mxu0 0.0
    %2771 = vmatprep.subr.mxu0 0.0
    %2772 = vmatpush1.msra.mxu0 0.0
    %2773 = vmatprep.subr.mxu0 0.0
    %2774 = vmatpush1.msra.mxu0 0.0
    %2775 = vmatprep.subr.mxu0 0.0
    %2776 = vmatpush1.msra.mxu0 0.0
    %2777 = vmatprep.subr.mxu0 0.0
    %2778 = vmatpush1.msra.mxu0 0.0
    %2779 = vmatprep.subr.mxu0 0.0
    %2780 = vmatpush1.msra.mxu0 0.0
    %2781 = vmatprep.subr.mxu0 0.0
    %2782 = vmatpush1.msra.mxu0 0.0
    %2783 = vmatprep.subr.mxu0 0.0
    %2784 = vmatpush1.msra.mxu0 0.0
    %2785 = vmatprep.subr.mxu0 0.0
    %2786 = vmatpush1.msra.mxu0 0.0
    %2787 = vmatprep.subr.mxu0 0.0
    %2788 = vmatpush1.msra.mxu0 0.0
    %2789 = vmatprep.subr.mxu0 0.0
    %2790 = vmatpush1.msra.mxu0 0.0
    %2791 = vmatprep.subr.mxu0 0.0
    %2792 = vmatpush1.msra.mxu0 0.0
    %2793 = vmatprep.subr.mxu0 0.0
    %2794 = vmatpush1.msra.mxu0 0.0
    %2795 = vmatprep.subr.mxu0 0.0
    %2796 = vmatpush1.msra.mxu0 0.0
    %2797 = vmatprep.subr.mxu0 0.0
    %2798 = vmatpush1.msra.mxu0 0.0
    %2799 = vmatprep.subr.mxu0 0.0
    %2800 = vmatpush1.msra.mxu0 0.0
    %2801 = vmatprep.subr.mxu0 0.0
    %2802 = vmatpush1.msra.mxu0 0.0
    %2803 = vmatprep.subr.mxu0 0.0
    %2804 = vmatpush1.msra.mxu0 0.0
    %2805 = vmatprep.subr.mxu0 0.0
    %2806 = vmatpush1.msra.mxu0 0.0
    %2807 = vmatprep.subr.mxu0 0.0
    %2808 = vmatpush1.msra.mxu0 0.0
    %2809 = vmatprep.subr.mxu0 0.0
    %2810 = vmatpush1.msra.mxu0 0.0
    %2811 = vmatprep.subr.mxu0 0.0
    %2812 = vmatpush1.msra.mxu0 0.0
    %2813 = vmatprep.subr.mxu0 0.0
    %2814 = vmatpush1.msra.mxu0 0.0
    %2815 = vmatprep.subr.mxu0 0.0
    %2816 = vmatpush1.msra.mxu0 0.0
    %2817 = vmatprep.subr.mxu0 0.0
    %2818 = vmatpush1.msra.mxu0 0.0
    %2819 = vmatprep.subr.mxu0 0.0
    %2820 = vmatpush1.msra.mxu0 0.0
    %2821 = vmatprep.subr.mxu0 0.0
    %2822 = vmatpush1.msra.mxu0 0.0
    %2823 = vmatprep.mubr.f32.mxu0 0.0
    %2824 = vmatmul.mubr.f32.gmra.mrb[0].mxu0 %v2757
    %v2825 = vpop.f32.mrb[0].mxu0
    %v2826 = vadd.f32 0.0, %v2825
    %v2827 = vpop.f32.mrb[0].mxu0
    %2828 = vdwg.mxu0
    %2829 = vrot.lane.b32.xlu0 %v2040, 64
    %v2830 = vpop.permute.xlu0 %2829
    %v2833 = vsel %vm257, %v2746, 0
    %2835 = vmatprep.subr.mxu0 0.0
    %2836 = vmatpush1.msra.mxu0 %v2830
    %2837 = vmatprep.subr.mxu0 0.0
    %2838 = vmatpush1.msra.mxu0 0.0
    %2839 = vmatprep.subr.mxu0 0.0
    %2840 = vmatpush1.msra.mxu0 0.0
    %2841 = vmatprep.subr.mxu0 0.0
    %2842 = vmatpush1.msra.mxu0 0.0
    %2843 = vmatprep.subr.mxu0 0.0
    %2844 = vmatpush1.msra.mxu0 0.0
    %2845 = vmatprep.subr.mxu0 0.0
    %2846 = vmatpush1.msra.mxu0 0.0
    %2847 = vmatprep.subr.mxu0 0.0
    %2848 = vmatpush1.msra.mxu0 0.0
    %2849 = vmatprep.subr.mxu0 0.0
    %2850 = vmatpush1.msra.mxu0 0.0
    %2851 = vmatprep.subr.mxu0 0.0
    %2852 = vmatpush1.msra.mxu0 0.0
    %2853 = vmatprep.subr.mxu0 0.0
    %2854 = vmatpush1.msra.mxu0 0.0
    %2855 = vmatprep.subr.mxu0 0.0
    %2856 = vmatpush1.msra.mxu0 0.0
    %2857 = vmatprep.subr.mxu0 0.0
    %2858 = vmatpush1.msra.mxu0 0.0
    %2859 = vmatprep.subr.mxu0 0.0
    %2860 = vmatpush1.msra.mxu0 0.0
    %2861 = vmatprep.subr.mxu0 0.0
    %2862 = vmatpush1.msra.mxu0 0.0
    %2863 = vmatprep.subr.mxu0 0.0
    %2864 = vmatpush1.msra.mxu0 0.0
    %2865 = vmatprep.subr.mxu0 0.0
    %2866 = vmatpush1.msra.mxu0 0.0
    %2867 = vmatprep.subr.mxu0 0.0
    %2868 = vmatpush1.msra.mxu0 0.0
    %2869 = vmatprep.subr.mxu0 0.0
    %2870 = vmatpush1.msra.mxu0 0.0
    %2871 = vmatprep.subr.mxu0 0.0
    %2872 = vmatpush1.msra.mxu0 0.0
    %2873 = vmatprep.subr.mxu0 0.0
    %2874 = vmatpush1.msra.mxu0 0.0
    %2875 = vmatprep.subr.mxu0 0.0
    %2876 = vmatpush1.msra.mxu0 0.0
    %2877 = vmatprep.subr.mxu0 0.0
    %2878 = vmatpush1.msra.mxu0 0.0
    %2879 = vmatprep.subr.mxu0 0.0
    %2880 = vmatpush1.msra.mxu0 0.0
    %2881 = vmatprep.subr.mxu0 0.0
    %2882 = vmatpush1.msra.mxu0 0.0
    %2883 = vmatprep.subr.mxu0 0.0
    %2884 = vmatpush1.msra.mxu0 0.0
    %2885 = vmatprep.subr.mxu0 0.0
    %2886 = vmatpush1.msra.mxu0 0.0
    %2887 = vmatprep.subr.mxu0 0.0
    %2888 = vmatpush1.msra.mxu0 0.0
    %2889 = vmatprep.subr.mxu0 0.0
    %2890 = vmatpush1.msra.mxu0 0.0
    %2891 = vmatprep.subr.mxu0 0.0
    %2892 = vmatpush1.msra.mxu0 0.0
    %2893 = vmatprep.subr.mxu0 0.0
    %2894 = vmatpush1.msra.mxu0 0.0
    %2895 = vmatprep.subr.mxu0 0.0
    %2896 = vmatpush1.msra.mxu0 0.0
    %2897 = vmatprep.subr.mxu0 0.0
    %2898 = vmatpush1.msra.mxu0 0.0
    %2899 = vmatprep.mubr.f32.mxu0 0.0
    %2900 = vmatmul.mubr.f32.gmra.mrb[0].mxu0 %v2833
    %v2901 = vpop.f32.mrb[0].mxu0
    %v2902 = vadd.f32 0.0, %v2901
    %v2903 = vpop.f32.mrb[0].mxu0
    %2904 = vdwg.mxu0
    %2905 = vrot.lane.b32.xlu0 %v2046, 64
    %v2906 = vpop.permute.xlu0 %2905
    %v2909 = vsel %vm257, %v2747, 0
    %2911 = vmatprep.subr.mxu0 0.0
    %2912 = vmatpush1.msra.mxu0 %v2906
    %2913 = vmatprep.subr.mxu0 0.0
    %2914 = vmatpush1.msra.mxu0 0.0
    %2915 = vmatprep.subr.mxu0 0.0
    %2916 = vmatpush1.msra.mxu0 0.0
    %2917 = vmatprep.subr.mxu0 0.0
    %2918 = vmatpush1.msra.mxu0 0.0
    %2919 = vmatprep.subr.mxu0 0.0
    %2920 = vmatpush1.msra.mxu0 0.0
    %2921 = vmatprep.subr.mxu0 0.0
    %2922 = vmatpush1.msra.mxu0 0.0
    %2923 = vmatprep.subr.mxu0 0.0
    %2924 = vmatpush1.msra.mxu0 0.0
    %2925 = vmatprep.subr.mxu0 0.0
    %2926 = vmatpush1.msra.mxu0 0.0
    %2927 = vmatprep.subr.mxu0 0.0
    %2928 = vmatpush1.msra.mxu0 0.0
    %2929 = vmatprep.subr.mxu0 0.0
    %2930 = vmatpush1.msra.mxu0 0.0
    %2931 = vmatprep.subr.mxu0 0.0
    %2932 = vmatpush1.msra.mxu0 0.0
    %2933 = vmatprep.subr.mxu0 0.0
    %2934 = vmatpush1.msra.mxu0 0.0
    %2935 = vmatprep.subr.mxu0 0.0
    %2936 = vmatpush1.msra.mxu0 0.0
    %2937 = vmatprep.subr.mxu0 0.0
    %2938 = vmatpush1.msra.mxu0 0.0
    %2939 = vmatprep.subr.mxu0 0.0
    %2940 = vmatpush1.msra.mxu0 0.0
    %2941 = vmatprep.subr.mxu0 0.0
    %2942 = vmatpush1.msra.mxu0 0.0
    %2943 = vmatprep.subr.mxu0 0.0
    %2944 = vmatpush1.msra.mxu0 0.0
    %2945 = vmatprep.subr.mxu0 0.0
    %2946 = vmatpush1.msra.mxu0 0.0
    %2947 = vmatprep.subr.mxu0 0.0
    %2948 = vmatpush1.msra.mxu0 0.0
    %2949 = vmatprep.subr.mxu0 0.0
    %2950 = vmatpush1.msra.mxu0 0.0
    %2951 = vmatprep.subr.mxu0 0.0
    %2952 = vmatpush1.msra.mxu0 0.0
    %2953 = vmatprep.subr.mxu0 0.0
    %2954 = vmatpush1.msra.mxu0 0.0
    %2955 = vmatprep.subr.mxu0 0.0
    %2956 = vmatpush1.msra.mxu0 0.0
    %2957 = vmatprep.subr.mxu0 0.0
    %2958 = vmatpush1.msra.mxu0 0.0
    %2959 = vmatprep.subr.mxu0 0.0
    %2960 = vmatpush1.msra.mxu0 0.0
    %2961 = vmatprep.subr.mxu0 0.0
    %2962 = vmatpush1.msra.mxu0 0.0
    %2963 = vmatprep.subr.mxu0 0.0
    %2964 = vmatpush1.msra.mxu0 0.0
    %2965 = vmatprep.subr.mxu0 0.0
    %2966 = vmatpush1.msra.mxu0 0.0
    %2967 = vmatprep.subr.mxu0 0.0
    %2968 = vmatpush1.msra.mxu0 0.0
    %2969 = vmatprep.subr.mxu0 0.0
    %2970 = vmatpush1.msra.mxu0 0.0
    %2971 = vmatprep.subr.mxu0 0.0
    %2972 = vmatpush1.msra.mxu0 0.0
    %2973 = vmatprep.subr.mxu0 0.0
    %2974 = vmatpush1.msra.mxu0 0.0
    %2975 = vmatprep.mubr.f32.mxu0 0.0
    %2976 = vmatmul.mubr.f32.gmra.mrb[0].mxu0 %v2909
    %v2977 = vpop.f32.mrb[0].mxu0
    %v2978 = vadd.f32 0.0, %v2977
    %v2979 = vpop.f32.mrb[0].mxu0
    %2980 = vdwg.mxu0
    %2981 = vrot.lane.b32.xlu0 %v2048, 64
    %v2982 = vpop.permute.xlu0 %2981
    %v2985 = vsel %vm257, %v2748, 0
    %2987 = vmatprep.subr.mxu0 0.0
    %2988 = vmatpush1.msra.mxu0 %v2982
    %2989 = vmatprep.subr.mxu0 0.0
    %2990 = vmatpush1.msra.mxu0 0.0
    %2991 = vmatprep.subr.mxu0 0.0
    %2992 = vmatpush1.msra.mxu0 0.0
    %2993 = vmatprep.subr.mxu0 0.0
    %2994 = vmatpush1.msra.mxu0 0.0
    %2995 = vmatprep.subr.mxu0 0.0
    %2996 = vmatpush1.msra.mxu0 0.0
    %2997 = vmatprep.subr.mxu0 0.0
    %2998 = vmatpush1.msra.mxu0 0.0
    %2999 = vmatprep.subr.mxu0 0.0
    %3000 = vmatpush1.msra.mxu0 0.0
    %3001 = vmatprep.subr.mxu0 0.0
    %3002 = vmatpush1.msra.mxu0 0.0
    %3003 = vmatprep.subr.mxu0 0.0
    %3004 = vmatpush1.msra.mxu0 0.0
    %3005 = vmatprep.subr.mxu0 0.0
    %3006 = vmatpush1.msra.mxu0 0.0
    %3007 = vmatprep.subr.mxu0 0.0
    %3008 = vmatpush1.msra.mxu0 0.0
    %3009 = vmatprep.subr.mxu0 0.0
    %3010 = vmatpush1.msra.mxu0 0.0
    %3011 = vmatprep.subr.mxu0 0.0
    %3012 = vmatpush1.msra.mxu0 0.0
    %3013 = vmatprep.subr.mxu0 0.0
    %3014 = vmatpush1.msra.mxu0 0.0
    %3015 = vmatprep.subr.mxu0 0.0
    %3016 = vmatpush1.msra.mxu0 0.0
    %3017 = vmatprep.subr.mxu0 0.0
    %3018 = vmatpush1.msra.mxu0 0.0
    %3019 = vmatprep.subr.mxu0 0.0
    %3020 = vmatpush1.msra.mxu0 0.0
    %3021 = vmatprep.subr.mxu0 0.0
    %3022 = vmatpush1.msra.mxu0 0.0
    %3023 = vmatprep.subr.mxu0 0.0
    %3024 = vmatpush1.msra.mxu0 0.0
    %3025 = vmatprep.subr.mxu0 0.0
    %3026 = vmatpush1.msra.mxu0 0.0
    %3027 = vmatprep.subr.mxu0 0.0
    %3028 = vmatpush1.msra.mxu0 0.0
    %3029 = vmatprep.subr.mxu0 0.0
    %3030 = vmatpush1.msra.mxu0 0.0
    %3031 = vmatprep.subr.mxu0 0.0
    %3032 = vmatpush1.msra.mxu0 0.0
    %3033 = vmatprep.subr.mxu0 0.0
    %3034 = vmatpush1.msra.mxu0 0.0
    %3035 = vmatprep.subr.mxu0 0.0
    %3036 = vmatpush1.msra.mxu0 0.0
    %3037 = vmatprep.subr.mxu0 0.0
    %3038 = vmatpush1.msra.mxu0 0.0
    %3039 = vmatprep.subr.mxu0 0.0
    %3040 = vmatpush1.msra.mxu0 0.0
    %3041 = vmatprep.subr.mxu0 0.0
    %3042 = vmatpush1.msra.mxu0 0.0
    %3043 = vmatprep.subr.mxu0 0.0
    %3044 = vmatpush1.msra.mxu0 0.0
    %3045 = vmatprep.subr.mxu0 0.0
    %3046 = vmatpush1.msra.mxu0 0.0
    %3047 = vmatprep.subr.mxu0 0.0
    %3048 = vmatpush1.msra.mxu0 0.0
    %3049 = vmatprep.subr.mxu0 0.0
    %3050 = vmatpush1.msra.mxu0 0.0
    %3051 = vmatprep.mubr.f32.mxu0 0.0
    %3052 = vmatmul.mubr.f32.gmra.mrb[0].mxu0 %v2985
    %v3053 = vpop.f32.mrb[0].mxu0
    %v3054 = vadd.f32 0.0, %v3053
    %v3055 = vpop.f32.mrb[0].mxu0
    %3056 = vdwg.mxu0
    %3057 = vrot.lane.b32.xlu0 %v2050, 64
    %v3058 = vpop.permute.xlu0 %3057
    %v3061 = vsel %vm257, %v2749, 0
    %3063 = vmatprep.subr.mxu0 0.0
    %3064 = vmatpush1.msra.mxu0 %v3058
    %3065 = vmatprep.subr.mxu0 0.0
    %3066 = vmatpush1.msra.mxu0 0.0
    %3067 = vmatprep.subr.mxu0 0.0
    %3068 = vmatpush1.msra.mxu0 0.0
    %3069 = vmatprep.subr.mxu0 0.0
    %3070 = vmatpush1.msra.mxu0 0.0
    %3071 = vmatprep.subr.mxu0 0.0
    %3072 = vmatpush1.msra.mxu0 0.0
    %3073 = vmatprep.subr.mxu0 0.0
    %3074 = vmatpush1.msra.mxu0 0.0
    %3075 = vmatprep.subr.mxu0 0.0
    %3076 = vmatpush1.msra.mxu0 0.0
    %3077 = vmatprep.subr.mxu0 0.0
    %3078 = vmatpush1.msra.mxu0 0.0
    %3079 = vmatprep.subr.mxu0 0.0
    %3080 = vmatpush1.msra.mxu0 0.0
    %3081 = vmatprep.subr.mxu0 0.0
    %3082 = vmatpush1.msra.mxu0 0.0
    %3083 = vmatprep.subr.mxu0 0.0
    %3084 = vmatpush1.msra.mxu0 0.0
    %3085 = vmatprep.subr.mxu0 0.0
    %3086 = vmatpush1.msra.mxu0 0.0
    %3087 = vmatprep.subr.mxu0 0.0
    %3088 = vmatpush1.msra.mxu0 0.0
    %3089 = vmatprep.subr.mxu0 0.0
    %3090 = vmatpush1.msra.mxu0 0.0
    %3091 = vmatprep.subr.mxu0 0.0
    %3092 = vmatpush1.msra.mxu0 0.0
    %3093 = vmatprep.subr.mxu0 0.0
    %3094 = vmatpush1.msra.mxu0 0.0
    %3095 = vmatprep.subr.mxu0 0.0
    %3096 = vmatpush1.msra.mxu0 0.0
    %3097 = vmatprep.subr.mxu0 0.0
    %3098 = vmatpush1.msra.mxu0 0.0
    %3099 = vmatprep.subr.mxu0 0.0
    %3100 = vmatpush1.msra.mxu0 0.0
    %3101 = vmatprep.subr.mxu0 0.0
    %3102 = vmatpush1.msra.mxu0 0.0
    %3103 = vmatprep.subr.mxu0 0.0
    %3104 = vmatpush1.msra.mxu0 0.0
    %3105 = vmatprep.subr.mxu0 0.0
    %3106 = vmatpush1.msra.mxu0 0.0
    %3107 = vmatprep.subr.mxu0 0.0
    %3108 = vmatpush1.msra.mxu0 0.0
    %3109 = vmatprep.subr.mxu0 0.0
    %3110 = vmatpush1.msra.mxu0 0.0
    %3111 = vmatprep.subr.mxu0 0.0
    %3112 = vmatpush1.msra.mxu0 0.0
    %3113 = vmatprep.subr.mxu0 0.0
    %3114 = vmatpush1.msra.mxu0 0.0
    %3115 = vmatprep.subr.mxu0 0.0
    %3116 = vmatpush1.msra.mxu0 0.0
    %3117 = vmatprep.subr.mxu0 0.0
    %3118 = vmatpush1.msra.mxu0 0.0
    %3119 = vmatprep.subr.mxu0 0.0
    %3120 = vmatpush1.msra.mxu0 0.0
    %3121 = vmatprep.subr.mxu0 0.0
    %3122 = vmatpush1.msra.mxu0 0.0
    %3123 = vmatprep.subr.mxu0 0.0
    %3124 = vmatpush1.msra.mxu0 0.0
    %3125 = vmatprep.subr.mxu0 0.0
    %3126 = vmatpush1.msra.mxu0 0.0
    %3127 = vmatprep.mubr.f32.mxu0 0.0
    %3128 = vmatmul.mubr.f32.gmra.mrb[0].mxu0 %v3061
    %v3129 = vpop.f32.mrb[0].mxu0
    %v3130 = vadd.f32 0.0, %v3129
    %v3131 = vpop.f32.mrb[0].mxu0
    %3132 = vdwg.mxu0
    %3133 = vrot.lane.b32.xlu0 %v2052, 64
    %v3134 = vpop.permute.xlu0 %3133
    %v3137 = vsel %vm257, %v2750, 0
    %3139 = vmatprep.subr.mxu0 0.0
    %3140 = vmatpush1.msra.mxu0 %v3134
    %3141 = vmatprep.subr.mxu0 0.0
    %3142 = vmatpush1.msra.mxu0 0.0
    %3143 = vmatprep.subr.mxu0 0.0
    %3144 = vmatpush1.msra.mxu0 0.0
    %3145 = vmatprep.subr.mxu0 0.0
    %3146 = vmatpush1.msra.mxu0 0.0
    %3147 = vmatprep.subr.mxu0 0.0
    %3148 = vmatpush1.msra.mxu0 0.0
    %3149 = vmatprep.subr.mxu0 0.0
    %3150 = vmatpush1.msra.mxu0 0.0
    %3151 = vmatprep.subr.mxu0 0.0
    %3152 = vmatpush1.msra.mxu0 0.0
    %3153 = vmatprep.subr.mxu0 0.0
    %3154 = vmatpush1.msra.mxu0 0.0
    %3155 = vmatprep.subr.mxu0 0.0
    %3156 = vmatpush1.msra.mxu0 0.0
    %3157 = vmatprep.subr.mxu0 0.0
    %3158 = vmatpush1.msra.mxu0 0.0
    %3159 = vmatprep.subr.mxu0 0.0
    %3160 = vmatpush1.msra.mxu0 0.0
    %3161 = vmatprep.subr.mxu0 0.0
    %3162 = vmatpush1.msra.mxu0 0.0
    %3163 = vmatprep.subr.mxu0 0.0
    %3164 = vmatpush1.msra.mxu0 0.0
    %3165 = vmatprep.subr.mxu0 0.0
    %3166 = vmatpush1.msra.mxu0 0.0
    %3167 = vmatprep.subr.mxu0 0.0
    %3168 = vmatpush1.msra.mxu0 0.0
    %3169 = vmatprep.subr.mxu0 0.0
    %3170 = vmatpush1.msra.mxu0 0.0
    %3171 = vmatprep.subr.mxu0 0.0
    %3172 = vmatpush1.msra.mxu0 0.0
    %3173 = vmatprep.subr.mxu0 0.0
    %3174 = vmatpush1.msra.mxu0 0.0
    %3175 = vmatprep.subr.mxu0 0.0
    %3176 = vmatpush1.msra.mxu0 0.0
    %3177 = vmatprep.subr.mxu0 0.0
    %3178 = vmatpush1.msra.mxu0 0.0
    %3179 = vmatprep.subr.mxu0 0.0
    %3180 = vmatpush1.msra.mxu0 0.0
    %3181 = vmatprep.subr.mxu0 0.0
    %3182 = vmatpush1.msra.mxu0 0.0
    %3183 = vmatprep.subr.mxu0 0.0
    %3184 = vmatpush1.msra.mxu0 0.0
    %3185 = vmatprep.subr.mxu0 0.0
    %3186 = vmatpush1.msra.mxu0 0.0
    %3187 = vmatprep.subr.mxu0 0.0
    %3188 = vmatpush1.msra.mxu0 0.0
    %3189 = vmatprep.subr.mxu0 0.0
    %3190 = vmatpush1.msra.mxu0 0.0
    %3191 = vmatprep.subr.mxu0 0.0
    %3192 = vmatpush1.msra.mxu0 0.0
    %3193 = vmatprep.subr.mxu0 0.0
    %3194 = vmatpush1.msra.mxu0 0.0
    %3195 = vmatprep.subr.mxu0 0.0
    %3196 = vmatpush1.msra.mxu0 0.0
    %3197 = vmatprep.subr.mxu0 0.0
    %3198 = vmatpush1.msra.mxu0 0.0
    %3199 = vmatprep.subr.mxu0 0.0
    %3200 = vmatpush1.msra.mxu0 0.0
    %3201 = vmatprep.subr.mxu0 0.0
    %3202 = vmatpush1.msra.mxu0 0.0
    %3203 = vmatprep.mubr.f32.mxu0 0.0
    %3204 = vmatmul.mubr.f32.gmra.mrb[0].mxu0 %v3137
    %v3205 = vpop.f32.mrb[0].mxu0
    %v3206 = vadd.f32 0.0, %v3205
    %v3207 = vpop.f32.mrb[0].mxu0
    %3208 = vdwg.mxu0
    %3209 = vrot.lane.b32.xlu0 %v2054, 64
    %v3210 = vpop.permute.xlu0 %3209
    %v3213 = vsel %vm257, %v2751, 0
    %3215 = vmatprep.subr.mxu0 0.0
    %3216 = vmatpush1.msra.mxu0 %v3210
    %3217 = vmatprep.subr.mxu0 0.0
    %3218 = vmatpush1.msra.mxu0 0.0
    %3219 = vmatprep.subr.mxu0 0.0
    %3220 = vmatpush1.msra.mxu0 0.0
    %3221 = vmatprep.subr.mxu0 0.0
    %3222 = vmatpush1.msra.mxu0 0.0
    %3223 = vmatprep.subr.mxu0 0.0
    %3224 = vmatpush1.msra.mxu0 0.0
    %3225 = vmatprep.subr.mxu0 0.0
    %3226 = vmatpush1.msra.mxu0 0.0
    %3227 = vmatprep.subr.mxu0 0.0
    %3228 = vmatpush1.msra.mxu0 0.0
    %3229 = vmatprep.subr.mxu0 0.0
    %3230 = vmatpush1.msra.mxu0 0.0
    %3231 = vmatprep.subr.mxu0 0.0
    %3232 = vmatpush1.msra.mxu0 0.0
    %3233 = vmatprep.subr.mxu0 0.0
    %3234 = vmatpush1.msra.mxu0 0.0
    %3235 = vmatprep.subr.mxu0 0.0
    %3236 = vmatpush1.msra.mxu0 0.0
    %3237 = vmatprep.subr.mxu0 0.0
    %3238 = vmatpush1.msra.mxu0 0.0
    %3239 = vmatprep.subr.mxu0 0.0
    %3240 = vmatpush1.msra.mxu0 0.0
    %3241 = vmatprep.subr.mxu0 0.0
    %3242 = vmatpush1.msra.mxu0 0.0
    %3243 = vmatprep.subr.mxu0 0.0
    %3244 = vmatpush1.msra.mxu0 0.0
    %3245 = vmatprep.subr.mxu0 0.0
    %3246 = vmatpush1.msra.mxu0 0.0
    %3247 = vmatprep.subr.mxu0 0.0
    %3248 = vmatpush1.msra.mxu0 0.0
    %3249 = vmatprep.subr.mxu0 0.0
    %3250 = vmatpush1.msra.mxu0 0.0
    %3251 = vmatprep.subr.mxu0 0.0
    %3252 = vmatpush1.msra.mxu0 0.0
    %3253 = vmatprep.subr.mxu0 0.0
    %3254 = vmatpush1.msra.mxu0 0.0
    %3255 = vmatprep.subr.mxu0 0.0
    %3256 = vmatpush1.msra.mxu0 0.0
    %3257 = vmatprep.subr.mxu0 0.0
    %3258 = vmatpush1.msra.mxu0 0.0
    %3259 = vmatprep.subr.mxu0 0.0
    %3260 = vmatpush1.msra.mxu0 0.0
    %3261 = vmatprep.subr.mxu0 0.0
    %3262 = vmatpush1.msra.mxu0 0.0
    %3263 = vmatprep.subr.mxu0 0.0
    %3264 = vmatpush1.msra.mxu0 0.0
    %3265 = vmatprep.subr.mxu0 0.0
    %3266 = vmatpush1.msra.mxu0 0.0
    %3267 = vmatprep.subr.mxu0 0.0
    %3268 = vmatpush1.msra.mxu0 0.0
    %3269 = vmatprep.subr.mxu0 0.0
    %3270 = vmatpush1.msra.mxu0 0.0
    %3271 = vmatprep.subr.mxu0 0.0
    %3272 = vmatpush1.msra.mxu0 0.0
    %3273 = vmatprep.subr.mxu0 0.0
    %3274 = vmatpush1.msra.mxu0 0.0
    %3275 = vmatprep.subr.mxu0 0.0
    %3276 = vmatpush1.msra.mxu0 0.0
    %3277 = vmatprep.subr.mxu0 0.0
    %3278 = vmatpush1.msra.mxu0 0.0
    %3279 = vmatprep.mubr.f32.mxu0 0.0
    %3280 = vmatmul.mubr.f32.gmra.mrb[0].mxu0 %v3213
    %v3281 = vpop.f32.mrb[0].mxu0
    %v3282 = vadd.f32 0.0, %v3281
    %v3283 = vpop.f32.mrb[0].mxu0
    %3284 = vdwg.mxu0
    %3285 = vrot.lane.b32.xlu0 %v2056, 64
    %v3286 = vpop.permute.xlu0 %3285
    %v3289 = vsel %vm257, %v2752, 0
    %3291 = vmatprep.subr.mxu0 0.0
    %3292 = vmatpush1.msra.mxu0 %v3286
    %3293 = vmatprep.subr.mxu0 0.0
    %3294 = vmatpush1.msra.mxu0 0.0
    %3295 = vmatprep.subr.mxu0 0.0
    %3296 = vmatpush1.msra.mxu0 0.0
    %3297 = vmatprep.subr.mxu0 0.0
    %3298 = vmatpush1.msra.mxu0 0.0
    %3299 = vmatprep.subr.mxu0 0.0
    %3300 = vmatpush1.msra.mxu0 0.0
    %3301 = vmatprep.subr.mxu0 0.0
    %3302 = vmatpush1.msra.mxu0 0.0
    %3303 = vmatprep.subr.mxu0 0.0
    %3304 = vmatpush1.msra.mxu0 0.0
    %3305 = vmatprep.subr.mxu0 0.0
    %3306 = vmatpush1.msra.mxu0 0.0
    %3307 = vmatprep.subr.mxu0 0.0
    %3308 = vmatpush1.msra.mxu0 0.0
    %3309 = vmatprep.subr.mxu0 0.0
    %3310 = vmatpush1.msra.mxu0 0.0
    %3311 = vmatprep.subr.mxu0 0.0
    %3312 = vmatpush1.msra.mxu0 0.0
    %3313 = vmatprep.subr.mxu0 0.0
    %3314 = vmatpush1.msra.mxu0 0.0
    %3315 = vmatprep.subr.mxu0 0.0
    %3316 = vmatpush1.msra.mxu0 0.0
    %3317 = vmatprep.subr.mxu0 0.0
    %3318 = vmatpush1.msra.mxu0 0.0
    %3319 = vmatprep.subr.mxu0 0.0
    %3320 = vmatpush1.msra.mxu0 0.0
    %3321 = vmatprep.subr.mxu0 0.0
    %3322 = vmatpush1.msra.mxu0 0.0
    %3323 = vmatprep.subr.mxu0 0.0
    %3324 = vmatpush1.msra.mxu0 0.0
    %3325 = vmatprep.subr.mxu0 0.0
    %3326 = vmatpush1.msra.mxu0 0.0
    %3327 = vmatprep.subr.mxu0 0.0
    %3328 = vmatpush1.msra.mxu0 0.0
    %3329 = vmatprep.subr.mxu0 0.0
    %3330 = vmatpush1.msra.mxu0 0.0
    %3331 = vmatprep.subr.mxu0 0.0
    %3332 = vmatpush1.msra.mxu0 0.0
    %3333 = vmatprep.subr.mxu0 0.0
    %3334 = vmatpush1.msra.mxu0 0.0
    %3335 = vmatprep.subr.mxu0 0.0
    %3336 = vmatpush1.msra.mxu0 0.0
    %3337 = vmatprep.subr.mxu0 0.0
    %3338 = vmatpush1.msra.mxu0 0.0
    %3339 = vmatprep.subr.mxu0 0.0
    %3340 = vmatpush1.msra.mxu0 0.0
    %3341 = vmatprep.subr.mxu0 0.0
    %3342 = vmatpush1.msra.mxu0 0.0
    %3343 = vmatprep.subr.mxu0 0.0
    %3344 = vmatpush1.msra.mxu0 0.0
    %3345 = vmatprep.subr.mxu0 0.0
    %3346 = vmatpush1.msra.mxu0 0.0
    %3347 = vmatprep.subr.mxu0 0.0
    %3348 = vmatpush1.msra.mxu0 0.0
    %3349 = vmatprep.subr.mxu0 0.0
    %3350 = vmatpush1.msra.mxu0 0.0
    %3351 = vmatprep.subr.mxu0 0.0
    %3352 = vmatpush1.msra.mxu0 0.0
    %3353 = vmatprep.subr.mxu0 0.0
    %3354 = vmatpush1.msra.mxu0 0.0
    %3355 = vmatprep.mubr.f32.mxu0 0.0
    %3356 = vmatmul.mubr.f32.gmra.mrb[0].mxu0 %v3289
    %v3357 = vpop.f32.mrb[0].mxu0
    %v3358 = vadd.f32 0.0, %v3357
    %v3359 = vpop.f32.mrb[0].mxu0
    %3360 = vdwg.mxu0
    %3363 = vrot.lane.b32.xlu0 %v2978, 8
    %v3364 = vpop.permute.xlu0 %3363
    %3365 = vrot.lane.b32.xlu0 %v3054, 8
    %v3366 = vpop.permute.xlu0 %3365
    %3371 = vrot.lane.b32.xlu0 %v3130, 16
    %v3372 = vpop.permute.xlu0 %3371
    %3373 = vrot.lane.b32.xlu0 %v3206, 16
    %v3374 = vpop.permute.xlu0 %3373
    %3379 = vrot.lane.b32.xlu0 %v3282, 24
    %v3380 = vpop.permute.xlu0 %3379
    %3381 = vrot.lane.b32.xlu0 %v3358, 24
    %v3382 = vpop.permute.xlu0 %3381
    %v3385 = vsel %vm257, %v2826, %v3364
    %v3386 = vsel %vm257, %v2902, %v3366
    %v3387 = vsel %vm1586, %v3385, %v3372
    %v3388 = vsel %vm1586, %v3386, %v3374
    %v3389 = vsel %vm1589, %v3387, %v3380
    %v3390 = vsel %vm1589, %v3388, %v3382
    %v3391 = vld [vmem:[#allocation5 + $0xc0] sm:$0xff]
    %v3392 = vld [vmem:[#allocation5 + $0xc8] sm:$0xff]
    %v3393 = vld [vmem:[#allocation5 + $0xd0] sm:$0xff]
    %v3394 = vld [vmem:[#allocation5 + $0xd8] sm:$0xff]
    %v3395 = vld [vmem:[#allocation7 + $0x9] sm:$0x1]
    %v3396 = vlaneseq
    %v3397 = vshrl.u32 %v3396, 7
    %v3398 = vsub.s32 0, %v3397
    %v3399 = vrot.slane %v3395, %v3398
    %v3401 = vsel %vm99, %v3389, 0
    %v3404 = vsel %vm99, %v3390, 0
    %3406 = vmatprep.subr.mxu0 0.0
    %3407 = vmatpush1.msra.mxu0 %v3391
    %3408 = vmatprep.subr.mxu0 0.0
    %3409 = vmatpush1.msra.mxu0 %v3392
    %3410 = vmatprep.subr.mxu0 0.0
    %3411 = vmatpush1.msra.mxu0 %v3393
    %3412 = vmatprep.subr.mxu0 0.0
    %3413 = vmatpush1.msra.mxu0 %v3394
    %3414 = vmatprep.subr.mxu0 0.0
    %3415 = vmatpush1.msra.mxu0 0.0
    %3416 = vmatprep.subr.mxu0 0.0
    %3417 = vmatpush1.msra.mxu0 0.0
    %3418 = vmatprep.subr.mxu0 0.0
    %3419 = vmatpush1.msra.mxu0 0.0
    %3420 = vmatprep.subr.mxu0 0.0
    %3421 = vmatpush1.msra.mxu0 0.0
    %3422 = vmatprep.subr.mxu0 0.0
    %3423 = vmatpush1.msra.mxu0 0.0
    %3424 = vmatprep.subr.mxu0 0.0
    %3425 = vmatpush1.msra.mxu0 0.0
    %3426 = vmatprep.subr.mxu0 0.0
    %3427 = vmatpush1.msra.mxu0 0.0
    %3428 = vmatprep.subr.mxu0 0.0
    %3429 = vmatpush1.msra.mxu0 0.0
    %3430 = vmatprep.subr.mxu0 0.0
    %3431 = vmatpush1.msra.mxu0 0.0
    %3432 = vmatprep.subr.mxu0 0.0
    %3433 = vmatpush1.msra.mxu0 0.0
    %3434 = vmatprep.subr.mxu0 0.0
    %3435 = vmatpush1.msra.mxu0 0.0
    %3436 = vmatprep.subr.mxu0 0.0
    %3437 = vmatpush1.msra.mxu0 0.0
    %3438 = vmatprep.subr.mxu0 0.0
    %3439 = vmatpush1.msra.mxu0 0.0
    %3440 = vmatprep.subr.mxu0 0.0
    %3441 = vmatpush1.msra.mxu0 0.0
    %3442 = vmatprep.subr.mxu0 0.0
    %3443 = vmatpush1.msra.mxu0 0.0
    %3444 = vmatprep.subr.mxu0 0.0
    %3445 = vmatpush1.msra.mxu0 0.0
    %3446 = vmatprep.subr.mxu0 0.0
    %3447 = vmatpush1.msra.mxu0 0.0
    %3448 = vmatprep.subr.mxu0 0.0
    %3449 = vmatpush1.msra.mxu0 0.0
    %3450 = vmatprep.subr.mxu0 0.0
    %3451 = vmatpush1.msra.mxu0 0.0
    %3452 = vmatprep.subr.mxu0 0.0
    %3453 = vmatpush1.msra.mxu0 0.0
    %3454 = vmatprep.subr.mxu0 0.0
    %3455 = vmatpush1.msra.mxu0 0.0
    %3456 = vmatprep.subr.mxu0 0.0
    %3457 = vmatpush1.msra.mxu0 0.0
    %3458 = vmatprep.subr.mxu0 0.0
    %3459 = vmatpush1.msra.mxu0 0.0
    %3460 = vmatprep.subr.mxu0 0.0
    %3461 = vmatpush1.msra.mxu0 0.0
    %3462 = vmatprep.subr.mxu0 0.0
    %3463 = vmatpush1.msra.mxu0 0.0
    %3464 = vmatprep.subr.mxu0 0.0
    %3465 = vmatpush1.msra.mxu0 0.0
    %3466 = vmatprep.subr.mxu0 0.0
    %3467 = vmatpush1.msra.mxu0 0.0
    %3468 = vmatprep.subr.mxu0 0.0
    %3469 = vmatpush1.msra.mxu0 0.0
    %3470 = vmatprep.mubr.f32.mxu0 0.0
    %3471 = vmatmul.mubr.f32.gmra.mrb[0].mxu0 %v3401
    %v3472 = vpop.f32.mrb[0].mxu0
    %v3473 = vadd.f32 %v3399, %v3472
    %v3474 = vpop.f32.mrb[0].mxu0
    %3475 = vmatprep.mubr.f32.mxu0 0.0
    %3476 = vmatmul.mubr.f32.gmra.mrb[0].mxu0 %v3404
    %v3477 = vpop.f32.mrb[0].mxu0
    %v3478 = vadd.f32 %v3399, %v3477
    %v3479 = vpop.f32.mrb[0].mxu0
    %3480 = vdwg.mxu0
    %v3481 = vadd.f32 %v1911, %v3473
    %v3482 = vadd.f32 %v1912, %v3478
    %v3483 = vsel %vm99, %v3481, 0.0
    %3484 = vadd.xlane.f32.xlu0 %v3483
    %v3485 = vpop.xlane.xlu0 %3484
    %v3486 = vsel %vm99, %v3482, 0.0
    %3487 = vadd.xlane.f32.xlu0 %v3486
    %v3488 = vpop.xlane.xlu0 %3487
    %v3489 = vmul.f32 %v3485, %v106
    %v3490 = vmul.f32 %v3488, %v106
    %v3491 = vsub.f32 %v3481, %v3489
    %v3492 = vsub.f32 %v3482, %v3490
    %v3493 = vmul.f32 %v3491, %v3491
    %v3494 = vmul.f32 %v3492, %v3492
    %v3495 = vsel %vm99, %v3493, 0.0
    %3496 = vadd.xlane.f32.xlu0 %v3495
    %v3497 = vpop.xlane.xlu0 %3496
    %v3498 = vsel %vm99, %v3494, 0.0
    %3499 = vadd.xlane.f32.xlu0 %v3498
    %v3500 = vpop.xlane.xlu0 %3499
    %v3501 = vmul.f32 %v3497, %v106
    %v3502 = vmul.f32 %v3500, %v106
    %v3503 = vadd.f32 %v3501, 1e-06
    %v3504 = vadd.f32 %v3502, 1e-06
    %v3505 = vrsqrt.pop %v3503
    %v3506 = vrsqrt.pop %v3504
    %v3507 = vmul.f32 %v3491, %v3505
    %v3508 = vmul.f32 %v3492, %v3506
    %v3509 = vld [vmem:[#allocation7 + $0xe] sm:$0x1]
    %v3510 = vlaneseq
    %v3511 = vshrl.u32 %v3510, 7
    %v3512 = vsub.s32 0, %v3511
    %v3513 = vrot.slane %v3509, %v3512
    %v3514 = vmul.f32 %v3507, %v3513
    %v3515 = vmul.f32 %v3508, %v3513
    %v3516 = vld [vmem:[#allocation7 + $0xf] sm:$0x1]
    %v3517 = vlaneseq
    %v3518 = vshrl.u32 %v3517, 7
    %v3519 = vsub.s32 0, %v3518
    %v3520 = vrot.slane %v3516, %v3519
    %v3521 = vadd.f32 %v3514, %v3520
    %v3522 = vadd.f32 %v3515, %v3520
    %v3523 = vld [vmem:[#allocation5 + $0xe0] sm:$0xff]
    %v3524 = vld [vmem:[#allocation5 + $0xe8] sm:$0xff]
    %v3525 = vld [vmem:[#allocation5 + $0xf0] sm:$0xff]
    %v3526 = vld [vmem:[#allocation5 + $0xf8] sm:$0xff]
    %v3527 = vld [vmem:[#allocation7 + $0xc] sm:$0x1]
    %v3528 = vlaneseq
    %v3529 = vshrl.u32 %v3528, 7
    %v3530 = vsub.s32 0, %v3529
    %v3531 = vrot.slane %v3527, %v3530
    %v3533 = vsel %vm99, %v3521, 0
    %v3536 = vsel %vm99, %v3522, 0
    %3538 = vmatprep.subr.mxu0 0.0
    %3539 = vmatpush1.msra.mxu0 %v3523
    %3540 = vmatprep.subr.mxu0 0.0
    %3541 = vmatpush1.msra.mxu0 %v3524
    %3542 = vmatprep.subr.mxu0 0.0
    %3543 = vmatpush1.msra.mxu0 %v3525
    %3544 = vmatprep.subr.mxu0 0.0
    %3545 = vmatpush1.msra.mxu0 %v3526
    %3546 = vmatprep.subr.mxu0 0.0
    %3547 = vmatpush1.msra.mxu0 0.0
    %3548 = vmatprep.subr.mxu0 0.0
    %3549 = vmatpush1.msra.mxu0 0.0
    %3550 = vmatprep.subr.mxu0 0.0
    %3551 = vmatpush1.msra.mxu0 0.0
    %3552 = vmatprep.subr.mxu0 0.0
    %3553 = vmatpush1.msra.mxu0 0.0
    %3554 = vmatprep.subr.mxu0 0.0
    %3555 = vmatpush1.msra.mxu0 0.0
    %3556 = vmatprep.subr.mxu0 0.0
    %3557 = vmatpush1.msra.mxu0 0.0
    %3558 = vmatprep.subr.mxu0 0.0
    %3559 = vmatpush1.msra.mxu0 0.0
    %3560 = vmatprep.subr.mxu0 0.0
    %3561 = vmatpush1.msra.mxu0 0.0
    %3562 = vmatprep.subr.mxu0 0.0
    %3563 = vmatpush1.msra.mxu0 0.0
    %3564 = vmatprep.subr.mxu0 0.0
    %3565 = vmatpush1.msra.mxu0 0.0
    %3566 = vmatprep.subr.mxu0 0.0
    %3567 = vmatpush1.msra.mxu0 0.0
    %3568 = vmatprep.subr.mxu0 0.0
    %3569 = vmatpush1.msra.mxu0 0.0
    %3570 = vmatprep.subr.mxu0 0.0
    %3571 = vmatpush1.msra.mxu0 0.0
    %3572 = vmatprep.subr.mxu0 0.0
    %3573 = vmatpush1.msra.mxu0 0.0
    %3574 = vmatprep.subr.mxu0 0.0
    %3575 = vmatpush1.msra.mxu0 0.0
    %3576 = vmatprep.subr.mxu0 0.0
    %3577 = vmatpush1.msra.mxu0 0.0
    %3578 = vmatprep.subr.mxu0 0.0
    %3579 = vmatpush1.msra.mxu0 0.0
    %3580 = vmatprep.subr.mxu0 0.0
    %3581 = vmatpush1.msra.mxu0 0.0
    %3582 = vmatprep.subr.mxu0 0.0
    %3583 = vmatpush1.msra.mxu0 0.0
    %3584 = vmatprep.subr.mxu0 0.0
    %3585 = vmatpush1.msra.mxu0 0.0
    %3586 = vmatprep.subr.mxu0 0.0
    %3587 = vmatpush1.msra.mxu0 0.0
    %3588 = vmatprep.subr.mxu0 0.0
    %3589 = vmatpush1.msra.mxu0 0.0
    %3590 = vmatprep.subr.mxu0 0.0
    %3591 = vmatpush1.msra.mxu0 0.0
    %3592 = vmatprep.subr.mxu0 0.0
    %3593 = vmatpush1.msra.mxu0 0.0
    %3594 = vmatprep.subr.mxu0 0.0
    %3595 = vmatpush1.msra.mxu0 0.0
    %3596 = vmatprep.subr.mxu0 0.0
    %3597 = vmatpush1.msra.mxu0 0.0
    %3598 = vmatprep.subr.mxu0 0.0
    %3599 = vmatpush1.msra.mxu0 0.0
    %3600 = vmatprep.subr.mxu0 0.0
    %3601 = vmatpush1.msra.mxu0 0.0
    %3602 = vmatprep.mubr.f32.mxu0 0.0
    %3603 = vmatmul.mubr.f32.gmra.mrb[0].mxu0 %v3533
    %v3604 = vpop.f32.mrb[0].mxu0
    %v3605 = vadd.f32 %v3531, %v3604
    %v3606 = vpop.f32.mrb[0].mxu0
    %3607 = vmatprep.mubr.f32.mxu0 0.0
    %3608 = vmatmul.mubr.f32.gmra.mrb[0].mxu0 %v3536
    %v3609 = vpop.f32.mrb[0].mxu0
    %v3610 = vadd.f32 %v3531, %v3609
    %v3611 = vpop.f32.mrb[0].mxu0
    %3612 = vdwg.mxu0
    %v3613 = vmax.f32 %v3605, 0.0
    %v3614 = vmax.f32 %v3610, 0.0
    %v3615 = vld [vmem:[#allocation5 + $0x100] sm:$0xff]
    %v3616 = vld [vmem:[#allocation5 + $0x108] sm:$0xff]
    %v3617 = vld [vmem:[#allocation5 + $0x110] sm:$0xff]
    %v3618 = vld [vmem:[#allocation5 + $0x118] sm:$0xff]
    %v3619 = vld [vmem:[#allocation5 + $0x120] sm:$0xff]
    %v3620 = vld [vmem:[#allocation5 + $0x128] sm:$0xff]
    %v3621 = vld [vmem:[#allocation5 + $0x130] sm:$0xff]
    %v3622 = vld [vmem:[#allocation5 + $0x138] sm:$0xff]
    %v3623 = vld [vmem:[#allocation7 + $0xd] sm:$0x1]
    %v3624 = vlaneseq
    %v3625 = vshrl.u32 %v3624, 7
    %v3626 = vsub.s32 0, %v3625
    %v3627 = vrot.slane %v3623, %v3626
    %v3629 = vsel %vm1829, %v3613, 0
    %v3632 = vsel %vm1829, %v3614, 0
    %3634 = vmatprep.subr.mxu0 0.0
    %3635 = vmatpush1.msra.mxu0 %v3615
    %3636 = vmatprep.subr.mxu0 0.0
    %3637 = vmatpush1.msra.mxu0 %v3616
    %3638 = vmatprep.subr.mxu0 0.0
    %3639 = vmatpush1.msra.mxu0 %v3617
    %3640 = vmatprep.subr.mxu0 0.0
    %3641 = vmatpush1.msra.mxu0 %v3618
    %3642 = vmatprep.subr.mxu0 0.0
    %3643 = vmatpush1.msra.mxu0 %v3619
    %3644 = vmatprep.subr.mxu0 0.0
    %3645 = vmatpush1.msra.mxu0 %v3620
    %3646 = vmatprep.subr.mxu0 0.0
    %3647 = vmatpush1.msra.mxu0 %v3621
    %3648 = vmatprep.subr.mxu0 0.0
    %3649 = vmatpush1.msra.mxu0 %v3622
    %3650 = vmatprep.subr.mxu0 0.0
    %3651 = vmatpush1.msra.mxu0 0.0
    %3652 = vmatprep.subr.mxu0 0.0
    %3653 = vmatpush1.msra.mxu0 0.0
    %3654 = vmatprep.subr.mxu0 0.0
    %3655 = vmatpush1.msra.mxu0 0.0
    %3656 = vmatprep.subr.mxu0 0.0
    %3657 = vmatpush1.msra.mxu0 0.0
    %3658 = vmatprep.subr.mxu0 0.0
    %3659 = vmatpush1.msra.mxu0 0.0
    %3660 = vmatprep.subr.mxu0 0.0
    %3661 = vmatpush1.msra.mxu0 0.0
    %3662 = vmatprep.subr.mxu0 0.0
    %3663 = vmatpush1.msra.mxu0 0.0
    %3664 = vmatprep.subr.mxu0 0.0
    %3665 = vmatpush1.msra.mxu0 0.0
    %3666 = vmatprep.subr.mxu0 0.0
    %3667 = vmatpush1.msra.mxu0 0.0
    %3668 = vmatprep.subr.mxu0 0.0
    %3669 = vmatpush1.msra.mxu0 0.0
    %3670 = vmatprep.subr.mxu0 0.0
    %3671 = vmatpush1.msra.mxu0 0.0
    %3672 = vmatprep.subr.mxu0 0.0
    %3673 = vmatpush1.msra.mxu0 0.0
    %3674 = vmatprep.subr.mxu0 0.0
    %3675 = vmatpush1.msra.mxu0 0.0
    %3676 = vmatprep.subr.mxu0 0.0
    %3677 = vmatpush1.msra.mxu0 0.0
    %3678 = vmatprep.subr.mxu0 0.0
    %3679 = vmatpush1.msra.mxu0 0.0
    %3680 = vmatprep.subr.mxu0 0.0
    %3681 = vmatpush1.msra.mxu0 0.0
    %3682 = vmatprep.subr.mxu0 0.0
    %3683 = vmatpush1.msra.mxu0 0.0
    %3684 = vmatprep.subr.mxu0 0.0
    %3685 = vmatpush1.msra.mxu0 0.0
    %3686 = vmatprep.subr.mxu0 0.0
    %3687 = vmatpush1.msra.mxu0 0.0
    %3688 = vmatprep.subr.mxu0 0.0
    %3689 = vmatpush1.msra.mxu0 0.0
    %3690 = vmatprep.subr.mxu0 0.0
    %3691 = vmatpush1.msra.mxu0 0.0
    %3692 = vmatprep.subr.mxu0 0.0
    %3693 = vmatpush1.msra.mxu0 0.0
    %3694 = vmatprep.subr.mxu0 0.0
    %3695 = vmatpush1.msra.mxu0 0.0
    %3696 = vmatprep.subr.mxu0 0.0
    %3697 = vmatpush1.msra.mxu0 0.0
    %3698 = vmatprep.mubr.f32.mxu0 0.0
    %3699 = vmatmul.mubr.f32.gmra.mrb[0].mxu0 %v3629
    %v3700 = vpop.f32.mrb[0].mxu0
    %v3701 = vadd.f32 %v3627, %v3700
    %v3702 = vpop.f32.mrb[0].mxu0
    %3703 = vmatprep.mubr.f32.mxu0 0.0
    %3704 = vmatmul.mubr.f32.gmra.mrb[0].mxu0 %v3632
    %v3705 = vpop.f32.mrb[0].mxu0
    %v3706 = vadd.f32 %v3627, %v3705
    %v3707 = vpop.f32.mrb[0].mxu0
    %3708 = vdwg.mxu0
    %v3709 = vadd.f32 %v3481, %v3701
    %v3710 = vadd.f32 %v3482, %v3706
    %v3711 = vsel %vm99, %v3709, 0.0
    %3712 = vadd.xlane.f32.xlu0 %v3711
    %v3713 = vpop.xlane.xlu0 %3712
    %v3714 = vsel %vm99, %v3710, 0.0
    %3715 = vadd.xlane.f32.xlu0 %v3714
    %v3716 = vpop.xlane.xlu0 %3715
    %v3717 = vmul.f32 %v3713, %v106
    %v3718 = vmul.f32 %v3716, %v106
    %v3719 = vsub.f32 %v3709, %v3717
    %v3720 = vsub.f32 %v3710, %v3718
    %v3721 = vmul.f32 %v3719, %v3719
    %v3722 = vmul.f32 %v3720, %v3720
    %v3723 = vsel %vm99, %v3721, 0.0
    %3724 = vadd.xlane.f32.xlu0 %v3723
    %v3725 = vpop.xlane.xlu0 %3724
    %v3726 = vsel %vm99, %v3722, 0.0
    %3727 = vadd.xlane.f32.xlu0 %v3726
    %v3728 = vpop.xlane.xlu0 %3727
    %v3729 = vmul.f32 %v3725, %v106
    %v3730 = vmul.f32 %v3728, %v106
    %v3731 = vadd.f32 %v3729, 1e-06
    %v3732 = vadd.f32 %v3730, 1e-06
    %v3733 = vrsqrt.pop %v3731
    %v3734 = vrsqrt.pop %v3732
    %v3735 = vmul.f32 %v3719, %v3733
    %v3736 = vmul.f32 %v3720, %v3734
    %v3737 = vld [vmem:[#allocation7 + $0x28] sm:$0x1]
    %v3738 = vlaneseq
    %v3739 = vshrl.u32 %v3738, 7
    %v3740 = vsub.s32 0, %v3739
    %v3741 = vrot.slane %v3737, %v3740
    %v3742 = vmul.f32 %v3735, %v3741
    %v3743 = vmul.f32 %v3736, %v3741
    %v3744 = vld [vmem:[#allocation7 + $0x29] sm:$0x1]
    %v3745 = vlaneseq
    %v3746 = vshrl.u32 %v3745, 7
    %v3747 = vsub.s32 0, %v3746
    %v3748 = vrot.slane %v3744, %v3747
    %v3749 = vadd.f32 %v3742, %v3748
    %v3750 = vadd.f32 %v3743, %v3748
    %v3751 = vld [vmem:[#allocation2] sm:$0xff]
    %v3752 = vld [vmem:[#allocation2 + $0x8] sm:$0xff]
    %v3753 = vsel %vm99, %v3751, 0.0
    %3754 = vadd.xlane.f32.xlu0 %v3753
    %v3755 = vpop.xlane.xlu0 %3754
    %v3756 = vsel %vm99, %v3752, 0.0
    %3757 = vadd.xlane.f32.xlu0 %v3756
    %v3758 = vpop.xlane.xlu0 %3757
    %v3759 = vmul.f32 %v3755, %v106
    %v3760 = vmul.f32 %v3758, %v106
    %v3761 = vsub.f32 %v3751, %v3759
    %v3762 = vsub.f32 %v3752, %v3760
    %v3763 = vmul.f32 %v3761, %v3761
    %v3764 = vmul.f32 %v3762, %v3762
    %v3765 = vsel %vm99, %v3763, 0.0
    %3766 = vadd.xlane.f32.xlu0 %v3765
    %v3767 = vpop.xlane.xlu0 %3766
    %v3768 = vsel %vm99, %v3764, 0.0
    %3769 = vadd.xlane.f32.xlu0 %v3768
    %v3770 = vpop.xlane.xlu0 %3769
    %v3771 = vmul.f32 %v3767, %v106
    %v3772 = vmul.f32 %v3770, %v106
    %v3773 = vadd.f32 %v3771, 1e-06
    %v3774 = vadd.f32 %v3772, 1e-06
    %v3775 = vrsqrt.pop %v3773
    %v3776 = vrsqrt.pop %v3774
    %v3777 = vmul.f32 %v3761, %v3775
    %v3778 = vmul.f32 %v3762, %v3776
    %v3779 = vld [vmem:[#allocation7 + $0x12] sm:$0x1]
    %v3780 = vlaneseq
    %v3781 = vshrl.u32 %v3780, 7
    %v3782 = vsub.s32 0, %v3781
    %v3783 = vrot.slane %v3779, %v3782
    %v3784 = vmul.f32 %v3777, %v3783
    %v3785 = vmul.f32 %v3778, %v3783
    %v3786 = vld [vmem:[#allocation7 + $0x13] sm:$0x1]
    %v3787 = vlaneseq
    %v3788 = vshrl.u32 %v3787, 7
    %v3789 = vsub.s32 0, %v3788
    %v3790 = vrot.slane %v3786, %v3789
    %v3791 = vadd.f32 %v3784, %v3790
    %v3792 = vadd.f32 %v3785, %v3790
    %v3793 = vld [vmem:[#allocation5 + $0x140] sm:$0xff]
    %v3794 = vld [vmem:[#allocation5 + $0x148] sm:$0xff]
    %v3795 = vld [vmem:[#allocation5 + $0x150] sm:$0xff]
    %v3796 = vld [vmem:[#allocation5 + $0x158] sm:$0xff]
    %v3797 = vld [vmem:[#allocation7 + $0x10] sm:$0x1]
    %v3798 = vlaneseq
    %v3799 = vshrl.u32 %v3798, 7
    %v3800 = vsub.s32 0, %v3799
    %v3801 = vrot.slane %v3797, %v3800
    %v3803 = vsel %vm99, %v3791, 0
    %v3806 = vsel %vm99, %v3792, 0
    %3808 = vmatprep.subr.mxu0 0.0
    %3809 = vmatpush1.msra.mxu0 %v3793
    %3810 = vmatprep.subr.mxu0 0.0
    %3811 = vmatpush1.msra.mxu0 %v3794
    %3812 = vmatprep.subr.mxu0 0.0
    %3813 = vmatpush1.msra.mxu0 %v3795
    %3814 = vmatprep.subr.mxu0 0.0
    %3815 = vmatpush1.msra.mxu0 %v3796
    %3816 = vmatprep.subr.mxu0 0.0
    %3817 = vmatpush1.msra.mxu0 0.0
    %3818 = vmatprep.subr.mxu0 0.0
    %3819 = vmatpush1.msra.mxu0 0.0
    %3820 = vmatprep.subr.mxu0 0.0
    %3821 = vmatpush1.msra.mxu0 0.0
    %3822 = vmatprep.subr.mxu0 0.0
    %3823 = vmatpush1.msra.mxu0 0.0
    %3824 = vmatprep.subr.mxu0 0.0
    %3825 = vmatpush1.msra.mxu0 0.0
    %3826 = vmatprep.subr.mxu0 0.0
    %3827 = vmatpush1.msra.mxu0 0.0
    %3828 = vmatprep.subr.mxu0 0.0
    %3829 = vmatpush1.msra.mxu0 0.0
    %3830 = vmatprep.subr.mxu0 0.0
    %3831 = vmatpush1.msra.mxu0 0.0
    %3832 = vmatprep.subr.mxu0 0.0
    %3833 = vmatpush1.msra.mxu0 0.0
    %3834 = vmatprep.subr.mxu0 0.0
    %3835 = vmatpush1.msra.mxu0 0.0
    %3836 = vmatprep.subr.mxu0 0.0
    %3837 = vmatpush1.msra.mxu0 0.0
    %3838 = vmatprep.subr.mxu0 0.0
    %3839 = vmatpush1.msra.mxu0 0.0
    %3840 = vmatprep.subr.mxu0 0.0
    %3841 = vmatpush1.msra.mxu0 0.0
    %3842 = vmatprep.subr.mxu0 0.0
    %3843 = vmatpush1.msra.mxu0 0.0
    %3844 = vmatprep.subr.mxu0 0.0
    %3845 = vmatpush1.msra.mxu0 0.0
    %3846 = vmatprep.subr.mxu0 0.0
    %3847 = vmatpush1.msra.mxu0 0.0
    %3848 = vmatprep.subr.mxu0 0.0
    %3849 = vmatpush1.msra.mxu0 0.0
    %3850 = vmatprep.subr.mxu0 0.0
    %3851 = vmatpush1.msra.mxu0 0.0
    %3852 = vmatprep.subr.mxu0 0.0
    %3853 = vmatpush1.msra.mxu0 0.0
    %3854 = vmatprep.subr.mxu0 0.0
    %3855 = vmatpush1.msra.mxu0 0.0
    %3856 = vmatprep.subr.mxu0 0.0
    %3857 = vmatpush1.msra.mxu0 0.0
    %3858 = vmatprep.subr.mxu0 0.0
    %3859 = vmatpush1.msra.mxu0 0.0
    %3860 = vmatprep.subr.mxu0 0.0
    %3861 = vmatpush1.msra.mxu0 0.0
    %3862 = vmatprep.subr.mxu0 0.0
    %3863 = vmatpush1.msra.mxu0 0.0
    %3864 = vmatprep.subr.mxu0 0.0
    %3865 = vmatpush1.msra.mxu0 0.0
    %3866 = vmatprep.subr.mxu0 0.0
    %3867 = vmatpush1.msra.mxu0 0.0
    %3868 = vmatprep.subr.mxu0 0.0
    %3869 = vmatpush1.msra.mxu0 0.0
    %3870 = vmatprep.subr.mxu0 0.0
    %3871 = vmatpush1.msra.mxu0 0.0
    %3872 = vmatprep.mubr.f32.mxu0 0.0
    %3873 = vmatmul.mubr.f32.gmra.mrb[0].mxu0 %v3803
    %v3874 = vpop.f32.mrb[0].mxu0
    %v3875 = vadd.f32 %v3801, %v3874
    %v3876 = vpop.f32.mrb[0].mxu0
    %3877 = vmatprep.mubr.f32.mxu0 0.0
    %3878 = vmatmul.mubr.f32.gmra.mrb[0].mxu0 %v3806
    %v3879 = vpop.f32.mrb[0].mxu0
    %v3880 = vadd.f32 %v3801, %v3879
    %v3881 = vpop.f32.mrb[0].mxu0
    %3882 = vdwg.mxu0
    %3885 = vrot.lane.b32.xlu0 %v3875, 120
    %v3886 = vpop.permute.xlu0 %3885
    %3887 = vrot.lane.b32.xlu0 %v3880, 120
    %v3888 = vpop.permute.xlu0 %3887
    %3889 = vrot.lane.b32.xlu0 %v3875, 112
    %v3890 = vpop.permute.xlu0 %3889
    %3891 = vrot.lane.b32.xlu0 %v3880, 112
    %v3892 = vpop.permute.xlu0 %3891
    %3893 = vrot.lane.b32.xlu0 %v3875, 104
    %v3894 = vpop.permute.xlu0 %3893
    %3895 = vrot.lane.b32.xlu0 %v3880, 104
    %v3896 = vpop.permute.xlu0 %3895
    %3897 = vrot.lane.b32.xlu0 %v3875, 96
    %v3898 = vpop.permute.xlu0 %3897
    %v3899 = vsel %vm257, %v3875, 0
    %v3901 = vsel %vm257, %v3898, 0
    %3903 = vmatprep.subr.mxu0 0.0
    %3904 = vmatpush1.xpose.msra.mxu0 %v3901
    %3905 = vmatprep.subr.mxu0 0.0
    %3906 = vmatpush1.xpose.msra.mxu0 0.0
    %3907 = vmatprep.subr.mxu0 0.0
    %3908 = vmatpush1.xpose.msra.mxu0 0.0
    %3909 = vmatprep.subr.mxu0 0.0
    %3910 = vmatpush1.xpose.msra.mxu0 0.0
    %3911 = vmatprep.subr.mxu0 0.0
    %3912 = vmatpush1.xpose.msra.mxu0 0.0
    %3913 = vmatprep.subr.mxu0 0.0
    %3914 = vmatpush1.xpose.msra.mxu0 0.0
    %3915 = vmatprep.subr.mxu0 0.0
    %3916 = vmatpush1.xpose.msra.mxu0 0.0
    %3917 = vmatprep.subr.mxu0 0.0
    %3918 = vmatpush1.xpose.msra.mxu0 0.0
    %3919 = vmatprep.subr.mxu0 0.0
    %3920 = vmatpush1.xpose.msra.mxu0 0.0
    %3921 = vmatprep.subr.mxu0 0.0
    %3922 = vmatpush1.xpose.msra.mxu0 0.0
    %3923 = vmatprep.subr.mxu0 0.0
    %3924 = vmatpush1.xpose.msra.mxu0 0.0
    %3925 = vmatprep.subr.mxu0 0.0
    %3926 = vmatpush1.xpose.msra.mxu0 0.0
    %3927 = vmatprep.subr.mxu0 0.0
    %3928 = vmatpush1.xpose.msra.mxu0 0.0
    %3929 = vmatprep.subr.mxu0 0.0
    %3930 = vmatpush1.xpose.msra.mxu0 0.0
    %3931 = vmatprep.subr.mxu0 0.0
    %3932 = vmatpush1.xpose.msra.mxu0 0.0
    %3933 = vmatprep.subr.mxu0 0.0
    %3934 = vmatpush1.xpose.msra.mxu0 0.0
    %3935 = vmatprep.subr.mxu0 0.0
    %3936 = vmatpush1.xpose.msra.mxu0 0.0
    %3937 = vmatprep.subr.mxu0 0.0
    %3938 = vmatpush1.xpose.msra.mxu0 0.0
    %3939 = vmatprep.subr.mxu0 0.0
    %3940 = vmatpush1.xpose.msra.mxu0 0.0
    %3941 = vmatprep.subr.mxu0 0.0
    %3942 = vmatpush1.xpose.msra.mxu0 0.0
    %3943 = vmatprep.subr.mxu0 0.0
    %3944 = vmatpush1.xpose.msra.mxu0 0.0
    %3945 = vmatprep.subr.mxu0 0.0
    %3946 = vmatpush1.xpose.msra.mxu0 0.0
    %3947 = vmatprep.subr.mxu0 0.0
    %3948 = vmatpush1.xpose.msra.mxu0 0.0
    %3949 = vmatprep.subr.mxu0 0.0
    %3950 = vmatpush1.xpose.msra.mxu0 0.0
    %3951 = vmatprep.subr.mxu0 0.0
    %3952 = vmatpush1.xpose.msra.mxu0 0.0
    %3953 = vmatprep.subr.mxu0 0.0
    %3954 = vmatpush1.xpose.msra.mxu0 0.0
    %3955 = vmatprep.subr.mxu0 0.0
    %3956 = vmatpush1.xpose.msra.mxu0 0.0
    %3957 = vmatprep.subr.mxu0 0.0
    %3958 = vmatpush1.xpose.msra.mxu0 0.0
    %3959 = vmatprep.subr.mxu0 0.0
    %3960 = vmatpush1.xpose.msra.mxu0 0.0
    %3961 = vmatprep.subr.mxu0 0.0
    %3962 = vmatpush1.xpose.msra.mxu0 0.0
    %3963 = vmatprep.subr.mxu0 0.0
    %3964 = vmatpush1.xpose.msra.mxu0 0.0
    %3965 = vmatprep.subr.mxu0 0.0
    %3966 = vmatpush1.xpose.msra.mxu0 0.0
    %3967 = vmatprep.mubr.f32.mxu0 0.0
    %3968 = vmatmul.mubr.f32.gmra.mrb[0].mxu0 %v3899
    %v3969 = vpop.f32.mrb[0].mxu0
    %v3970 = vadd.f32 %v95, %v3969
    %v3971 = vpop.f32.mrb[0].mxu0
    %3972 = vdwg.mxu0
    %3973 = vrot.lane.b32.xlu0 %v3880, 96
    %v3974 = vpop.permute.xlu0 %3973
    %v3975 = vsel %vm257, %v3880, 0
    %v3977 = vsel %vm257, %v3974, 0
    %3979 = vmatprep.subr.mxu0 0.0
    %3980 = vmatpush1.xpose.msra.mxu0 %v3977
    %3981 = vmatprep.subr.mxu0 0.0
    %3982 = vmatpush1.xpose.msra.mxu0 0.0
    %3983 = vmatprep.subr.mxu0 0.0
    %3984 = vmatpush1.xpose.msra.mxu0 0.0
    %3985 = vmatprep.subr.mxu0 0.0
    %3986 = vmatpush1.xpose.msra.mxu0 0.0
    %3987 = vmatprep.subr.mxu0 0.0
    %3988 = vmatpush1.xpose.msra.mxu0 0.0
    %3989 = vmatprep.subr.mxu0 0.0
    %3990 = vmatpush1.xpose.msra.mxu0 0.0
    %3991 = vmatprep.subr.mxu0 0.0
    %3992 = vmatpush1.xpose.msra.mxu0 0.0
    %3993 = vmatprep.subr.mxu0 0.0
    %3994 = vmatpush1.xpose.msra.mxu0 0.0
    %3995 = vmatprep.subr.mxu0 0.0
    %3996 = vmatpush1.xpose.msra.mxu0 0.0
    %3997 = vmatprep.subr.mxu0 0.0
    %3998 = vmatpush1.xpose.msra.mxu0 0.0
    %3999 = vmatprep.subr.mxu0 0.0
    %4000 = vmatpush1.xpose.msra.mxu0 0.0
    %4001 = vmatprep.subr.mxu0 0.0
    %4002 = vmatpush1.xpose.msra.mxu0 0.0
    %4003 = vmatprep.subr.mxu0 0.0
    %4004 = vmatpush1.xpose.msra.mxu0 0.0
    %4005 = vmatprep.subr.mxu0 0.0
    %4006 = vmatpush1.xpose.msra.mxu0 0.0
    %4007 = vmatprep.subr.mxu0 0.0
    %4008 = vmatpush1.xpose.msra.mxu0 0.0
    %4009 = vmatprep.subr.mxu0 0.0
    %4010 = vmatpush1.xpose.msra.mxu0 0.0
    %4011 = vmatprep.subr.mxu0 0.0
    %4012 = vmatpush1.xpose.msra.mxu0 0.0
    %4013 = vmatprep.subr.mxu0 0.0
    %4014 = vmatpush1.xpose.msra.mxu0 0.0
    %4015 = vmatprep.subr.mxu0 0.0
    %4016 = vmatpush1.xpose.msra.mxu0 0.0
    %4017 = vmatprep.subr.mxu0 0.0
    %4018 = vmatpush1.xpose.msra.mxu0 0.0
    %4019 = vmatprep.subr.mxu0 0.0
    %4020 = vmatpush1.xpose.msra.mxu0 0.0
    %4021 = vmatprep.subr.mxu0 0.0
    %4022 = vmatpush1.xpose.msra.mxu0 0.0
    %4023 = vmatprep.subr.mxu0 0.0
    %4024 = vmatpush1.xpose.msra.mxu0 0.0
    %4025 = vmatprep.subr.mxu0 0.0
    %4026 = vmatpush1.xpose.msra.mxu0 0.0
    %4027 = vmatprep.subr.mxu0 0.0
    %4028 = vmatpush1.xpose.msra.mxu0 0.0
    %4029 = vmatprep.subr.mxu0 0.0
    %4030 = vmatpush1.xpose.msra.mxu0 0.0
    %4031 = vmatprep.subr.mxu0 0.0
    %4032 = vmatpush1.xpose.msra.mxu0 0.0
    %4033 = vmatprep.subr.mxu0 0.0
    %4034 = vmatpush1.xpose.msra.mxu0 0.0
    %4035 = vmatprep.subr.mxu0 0.0
    %4036 = vmatpush1.xpose.msra.mxu0 0.0
    %4037 = vmatprep.subr.mxu0 0.0
    %4038 = vmatpush1.xpose.msra.mxu0 0.0
    %4039 = vmatprep.subr.mxu0 0.0
    %4040 = vmatpush1.xpose.msra.mxu0 0.0
    %4041 = vmatprep.subr.mxu0 0.0
    %4042 = vmatpush1.xpose.msra.mxu0 0.0
    %4043 = vmatprep.mubr.f32.mxu0 0.0
    %4044 = vmatmul.mubr.f32.gmra.mrb[0].mxu0 %v3975
    %v4045 = vpop.f32.mrb[0].mxu0
    %v4046 = vadd.f32 %v96, %v4045
    %v4047 = vpop.f32.mrb[0].mxu0
    %4048 = vdwg.mxu0
    %4049 = vrot.lane.b32.xlu0 %v3886, 96
    %v4050 = vpop.permute.xlu0 %4049
    %v4051 = vsel %vm257, %v3886, 0
    %v4053 = vsel %vm257, %v4050, 0
    %4055 = vmatprep.subr.mxu0 0.0
    %4056 = vmatpush1.xpose.msra.mxu0 %v4053
    %4057 = vmatprep.subr.mxu0 0.0
    %4058 = vmatpush1.xpose.msra.mxu0 0.0
    %4059 = vmatprep.subr.mxu0 0.0
    %4060 = vmatpush1.xpose.msra.mxu0 0.0
    %4061 = vmatprep.subr.mxu0 0.0
    %4062 = vmatpush1.xpose.msra.mxu0 0.0
    %4063 = vmatprep.subr.mxu0 0.0
    %4064 = vmatpush1.xpose.msra.mxu0 0.0
    %4065 = vmatprep.subr.mxu0 0.0
    %4066 = vmatpush1.xpose.msra.mxu0 0.0
    %4067 = vmatprep.subr.mxu0 0.0
    %4068 = vmatpush1.xpose.msra.mxu0 0.0
    %4069 = vmatprep.subr.mxu0 0.0
    %4070 = vmatpush1.xpose.msra.mxu0 0.0
    %4071 = vmatprep.subr.mxu0 0.0
    %4072 = vmatpush1.xpose.msra.mxu0 0.0
    %4073 = vmatprep.subr.mxu0 0.0
    %4074 = vmatpush1.xpose.msra.mxu0 0.0
    %4075 = vmatprep.subr.mxu0 0.0
    %4076 = vmatpush1.xpose.msra.mxu0 0.0
    %4077 = vmatprep.subr.mxu0 0.0
    %4078 = vmatpush1.xpose.msra.mxu0 0.0
    %4079 = vmatprep.subr.mxu0 0.0
    %4080 = vmatpush1.xpose.msra.mxu0 0.0
    %4081 = vmatprep.subr.mxu0 0.0
    %4082 = vmatpush1.xpose.msra.mxu0 0.0
    %4083 = vmatprep.subr.mxu0 0.0
    %4084 = vmatpush1.xpose.msra.mxu0 0.0
    %4085 = vmatprep.subr.mxu0 0.0
    %4086 = vmatpush1.xpose.msra.mxu0 0.0
    %4087 = vmatprep.subr.mxu0 0.0
    %4088 = vmatpush1.xpose.msra.mxu0 0.0
    %4089 = vmatprep.subr.mxu0 0.0
    %4090 = vmatpush1.xpose.msra.mxu0 0.0
    %4091 = vmatprep.subr.mxu0 0.0
    %4092 = vmatpush1.xpose.msra.mxu0 0.0
    %4093 = vmatprep.subr.mxu0 0.0
    %4094 = vmatpush1.xpose.msra.mxu0 0.0
    %4095 = vmatprep.subr.mxu0 0.0
    %4096 = vmatpush1.xpose.msra.mxu0 0.0
    %4097 = vmatprep.subr.mxu0 0.0
    %4098 = vmatpush1.xpose.msra.mxu0 0.0
    %4099 = vmatprep.subr.mxu0 0.0
    %4100 = vmatpush1.xpose.msra.mxu0 0.0
    %4101 = vmatprep.subr.mxu0 0.0
    %4102 = vmatpush1.xpose.msra.mxu0 0.0
    %4103 = vmatprep.subr.mxu0 0.0
    %4104 = vmatpush1.xpose.msra.mxu0 0.0
    %4105 = vmatprep.subr.mxu0 0.0
    %4106 = vmatpush1.xpose.msra.mxu0 0.0
    %4107 = vmatprep.subr.mxu0 0.0
    %4108 = vmatpush1.xpose.msra.mxu0 0.0
    %4109 = vmatprep.subr.mxu0 0.0
    %4110 = vmatpush1.xpose.msra.mxu0 0.0
    %4111 = vmatprep.subr.mxu0 0.0
    %4112 = vmatpush1.xpose.msra.mxu0 0.0
    %4113 = vmatprep.subr.mxu0 0.0
    %4114 = vmatpush1.xpose.msra.mxu0 0.0
    %4115 = vmatprep.subr.mxu0 0.0
    %4116 = vmatpush1.xpose.msra.mxu0 0.0
    %4117 = vmatprep.subr.mxu0 0.0
    %4118 = vmatpush1.xpose.msra.mxu0 0.0
    %4119 = vmatprep.mubr.f32.mxu0 0.0
    %4120 = vmatmul.mubr.f32.gmra.mrb[0].mxu0 %v4051
    %v4121 = vpop.f32.mrb[0].mxu0
    %v4122 = vadd.f32 %v95, %v4121
    %v4123 = vpop.f32.mrb[0].mxu0
    %4124 = vdwg.mxu0
    %4125 = vrot.lane.b32.xlu0 %v3888, 96
    %v4126 = vpop.permute.xlu0 %4125
    %v4127 = vsel %vm257, %v3888, 0
    %v4129 = vsel %vm257, %v4126, 0
    %4131 = vmatprep.subr.mxu0 0.0
    %4132 = vmatpush1.xpose.msra.mxu0 %v4129
    %4133 = vmatprep.subr.mxu0 0.0
    %4134 = vmatpush1.xpose.msra.mxu0 0.0
    %4135 = vmatprep.subr.mxu0 0.0
    %4136 = vmatpush1.xpose.msra.mxu0 0.0
    %4137 = vmatprep.subr.mxu0 0.0
    %4138 = vmatpush1.xpose.msra.mxu0 0.0
    %4139 = vmatprep.subr.mxu0 0.0
    %4140 = vmatpush1.xpose.msra.mxu0 0.0
    %4141 = vmatprep.subr.mxu0 0.0
    %4142 = vmatpush1.xpose.msra.mxu0 0.0
    %4143 = vmatprep.subr.mxu0 0.0
    %4144 = vmatpush1.xpose.msra.mxu0 0.0
    %4145 = vmatprep.subr.mxu0 0.0
    %4146 = vmatpush1.xpose.msra.mxu0 0.0
    %4147 = vmatprep.subr.mxu0 0.0
    %4148 = vmatpush1.xpose.msra.mxu0 0.0
    %4149 = vmatprep.subr.mxu0 0.0
    %4150 = vmatpush1.xpose.msra.mxu0 0.0
    %4151 = vmatprep.subr.mxu0 0.0
    %4152 = vmatpush1.xpose.msra.mxu0 0.0
    %4153 = vmatprep.subr.mxu0 0.0
    %4154 = vmatpush1.xpose.msra.mxu0 0.0
    %4155 = vmatprep.subr.mxu0 0.0
    %4156 = vmatpush1.xpose.msra.mxu0 0.0
    %4157 = vmatprep.subr.mxu0 0.0
    %4158 = vmatpush1.xpose.msra.mxu0 0.0
    %4159 = vmatprep.subr.mxu0 0.0
    %4160 = vmatpush1.xpose.msra.mxu0 0.0
    %4161 = vmatprep.subr.mxu0 0.0
    %4162 = vmatpush1.xpose.msra.mxu0 0.0
    %4163 = vmatprep.subr.mxu0 0.0
    %4164 = vmatpush1.xpose.msra.mxu0 0.0
    %4165 = vmatprep.subr.mxu0 0.0
    %4166 = vmatpush1.xpose.msra.mxu0 0.0
    %4167 = vmatprep.subr.mxu0 0.0
    %4168 = vmatpush1.xpose.msra.mxu0 0.0
    %4169 = vmatprep.subr.mxu0 0.0
    %4170 = vmatpush1.xpose.msra.mxu0 0.0
    %4171 = vmatprep.subr.mxu0 0.0
    %4172 = vmatpush1.xpose.msra.mxu0 0.0
    %4173 = vmatprep.subr.mxu0 0.0
    %4174 = vmatpush1.xpose.msra.mxu0 0.0
    %4175 = vmatprep.subr.mxu0 0.0
    %4176 = vmatpush1.xpose.msra.mxu0 0.0
    %4177 = vmatprep.subr.mxu0 0.0
    %4178 = vmatpush1.xpose.msra.mxu0 0.0
    %4179 = vmatprep.subr.mxu0 0.0
    %4180 = vmatpush1.xpose.msra.mxu0 0.0
    %4181 = vmatprep.subr.mxu0 0.0
    %4182 = vmatpush1.xpose.msra.mxu0 0.0
    %4183 = vmatprep.subr.mxu0 0.0
    %4184 = vmatpush1.xpose.msra.mxu0 0.0
    %4185 = vmatprep.subr.mxu0 0.0
    %4186 = vmatpush1.xpose.msra.mxu0 0.0
    %4187 = vmatprep.subr.mxu0 0.0
    %4188 = vmatpush1.xpose.msra.mxu0 0.0
    %4189 = vmatprep.subr.mxu0 0.0
    %4190 = vmatpush1.xpose.msra.mxu0 0.0
    %4191 = vmatprep.subr.mxu0 0.0
    %4192 = vmatpush1.xpose.msra.mxu0 0.0
    %4193 = vmatprep.subr.mxu0 0.0
    %4194 = vmatpush1.xpose.msra.mxu0 0.0
    %4195 = vmatprep.mubr.f32.mxu0 0.0
    %4196 = vmatmul.mubr.f32.gmra.mrb[0].mxu0 %v4127
    %v4197 = vpop.f32.mrb[0].mxu0
    %v4198 = vadd.f32 %v96, %v4197
    %v4199 = vpop.f32.mrb[0].mxu0
    %4200 = vdwg.mxu0
    %4201 = vrot.lane.b32.xlu0 %v3890, 96
    %v4202 = vpop.permute.xlu0 %4201
    %v4203 = vsel %vm257, %v3890, 0
    %v4205 = vsel %vm257, %v4202, 0
    %4207 = vmatprep.subr.mxu0 0.0
    %4208 = vmatpush1.xpose.msra.mxu0 %v4205
    %4209 = vmatprep.subr.mxu0 0.0
    %4210 = vmatpush1.xpose.msra.mxu0 0.0
    %4211 = vmatprep.subr.mxu0 0.0
    %4212 = vmatpush1.xpose.msra.mxu0 0.0
    %4213 = vmatprep.subr.mxu0 0.0
    %4214 = vmatpush1.xpose.msra.mxu0 0.0
    %4215 = vmatprep.subr.mxu0 0.0
    %4216 = vmatpush1.xpose.msra.mxu0 0.0
    %4217 = vmatprep.subr.mxu0 0.0
    %4218 = vmatpush1.xpose.msra.mxu0 0.0
    %4219 = vmatprep.subr.mxu0 0.0
    %4220 = vmatpush1.xpose.msra.mxu0 0.0
    %4221 = vmatprep.subr.mxu0 0.0
    %4222 = vmatpush1.xpose.msra.mxu0 0.0
    %4223 = vmatprep.subr.mxu0 0.0
    %4224 = vmatpush1.xpose.msra.mxu0 0.0
    %4225 = vmatprep.subr.mxu0 0.0
    %4226 = vmatpush1.xpose.msra.mxu0 0.0
    %4227 = vmatprep.subr.mxu0 0.0
    %4228 = vmatpush1.xpose.msra.mxu0 0.0
    %4229 = vmatprep.subr.mxu0 0.0
    %4230 = vmatpush1.xpose.msra.mxu0 0.0
    %4231 = vmatprep.subr.mxu0 0.0
    %4232 = vmatpush1.xpose.msra.mxu0 0.0
    %4233 = vmatprep.subr.mxu0 0.0
    %4234 = vmatpush1.xpose.msra.mxu0 0.0
    %4235 = vmatprep.subr.mxu0 0.0
    %4236 = vmatpush1.xpose.msra.mxu0 0.0
    %4237 = vmatprep.subr.mxu0 0.0
    %4238 = vmatpush1.xpose.msra.mxu0 0.0
    %4239 = vmatprep.subr.mxu0 0.0
    %4240 = vmatpush1.xpose.msra.mxu0 0.0
    %4241 = vmatprep.subr.mxu0 0.0
    %4242 = vmatpush1.xpose.msra.mxu0 0.0
    %4243 = vmatprep.subr.mxu0 0.0
    %4244 = vmatpush1.xpose.msra.mxu0 0.0
    %4245 = vmatprep.subr.mxu0 0.0
    %4246 = vmatpush1.xpose.msra.mxu0 0.0
    %4247 = vmatprep.subr.mxu0 0.0
    %4248 = vmatpush1.xpose.msra.mxu0 0.0
    %4249 = vmatprep.subr.mxu0 0.0
    %4250 = vmatpush1.xpose.msra.mxu0 0.0
    %4251 = vmatprep.subr.mxu0 0.0
    %4252 = vmatpush1.xpose.msra.mxu0 0.0
    %4253 = vmatprep.subr.mxu0 0.0
    %4254 = vmatpush1.xpose.msra.mxu0 0.0
    %4255 = vmatprep.subr.mxu0 0.0
    %4256 = vmatpush1.xpose.msra.mxu0 0.0
    %4257 = vmatprep.subr.mxu0 0.0
    %4258 = vmatpush1.xpose.msra.mxu0 0.0
    %4259 = vmatprep.subr.mxu0 0.0
    %4260 = vmatpush1.xpose.msra.mxu0 0.0
    %4261 = vmatprep.subr.mxu0 0.0
    %4262 = vmatpush1.xpose.msra.mxu0 0.0
    %4263 = vmatprep.subr.mxu0 0.0
    %4264 = vmatpush1.xpose.msra.mxu0 0.0
    %4265 = vmatprep.subr.mxu0 0.0
    %4266 = vmatpush1.xpose.msra.mxu0 0.0
    %4267 = vmatprep.subr.mxu0 0.0
    %4268 = vmatpush1.xpose.msra.mxu0 0.0
    %4269 = vmatprep.subr.mxu0 0.0
    %4270 = vmatpush1.xpose.msra.mxu0 0.0
    %4271 = vmatprep.mubr.f32.mxu0 0.0
    %4272 = vmatmul.mubr.f32.gmra.mrb[0].mxu0 %v4203
    %v4273 = vpop.f32.mrb[0].mxu0
    %v4274 = vadd.f32 %v95, %v4273
    %v4275 = vpop.f32.mrb[0].mxu0
    %4276 = vdwg.mxu0
    %4277 = vrot.lane.b32.xlu0 %v3892, 96
    %v4278 = vpop.permute.xlu0 %4277
    %v4279 = vsel %vm257, %v3892, 0
    %v4281 = vsel %vm257, %v4278, 0
    %4283 = vmatprep.subr.mxu0 0.0
    %4284 = vmatpush1.xpose.msra.mxu0 %v4281
    %4285 = vmatprep.subr.mxu0 0.0
    %4286 = vmatpush1.xpose.msra.mxu0 0.0
    %4287 = vmatprep.subr.mxu0 0.0
    %4288 = vmatpush1.xpose.msra.mxu0 0.0
    %4289 = vmatprep.subr.mxu0 0.0
    %4290 = vmatpush1.xpose.msra.mxu0 0.0
    %4291 = vmatprep.subr.mxu0 0.0
    %4292 = vmatpush1.xpose.msra.mxu0 0.0
    %4293 = vmatprep.subr.mxu0 0.0
    %4294 = vmatpush1.xpose.msra.mxu0 0.0
    %4295 = vmatprep.subr.mxu0 0.0
    %4296 = vmatpush1.xpose.msra.mxu0 0.0
    %4297 = vmatprep.subr.mxu0 0.0
    %4298 = vmatpush1.xpose.msra.mxu0 0.0
    %4299 = vmatprep.subr.mxu0 0.0
    %4300 = vmatpush1.xpose.msra.mxu0 0.0
    %4301 = vmatprep.subr.mxu0 0.0
    %4302 = vmatpush1.xpose.msra.mxu0 0.0
    %4303 = vmatprep.subr.mxu0 0.0
    %4304 = vmatpush1.xpose.msra.mxu0 0.0
    %4305 = vmatprep.subr.mxu0 0.0
    %4306 = vmatpush1.xpose.msra.mxu0 0.0
    %4307 = vmatprep.subr.mxu0 0.0
    %4308 = vmatpush1.xpose.msra.mxu0 0.0
    %4309 = vmatprep.subr.mxu0 0.0
    %4310 = vmatpush1.xpose.msra.mxu0 0.0
    %4311 = vmatprep.subr.mxu0 0.0
    %4312 = vmatpush1.xpose.msra.mxu0 0.0
    %4313 = vmatprep.subr.mxu0 0.0
    %4314 = vmatpush1.xpose.msra.mxu0 0.0
    %4315 = vmatprep.subr.mxu0 0.0
    %4316 = vmatpush1.xpose.msra.mxu0 0.0
    %4317 = vmatprep.subr.mxu0 0.0
    %4318 = vmatpush1.xpose.msra.mxu0 0.0
    %4319 = vmatprep.subr.mxu0 0.0
    %4320 = vmatpush1.xpose.msra.mxu0 0.0
    %4321 = vmatprep.subr.mxu0 0.0
    %4322 = vmatpush1.xpose.msra.mxu0 0.0
    %4323 = vmatprep.subr.mxu0 0.0
    %4324 = vmatpush1.xpose.msra.mxu0 0.0
    %4325 = vmatprep.subr.mxu0 0.0
    %4326 = vmatpush1.xpose.msra.mxu0 0.0
    %4327 = vmatprep.subr.mxu0 0.0
    %4328 = vmatpush1.xpose.msra.mxu0 0.0
    %4329 = vmatprep.subr.mxu0 0.0
    %4330 = vmatpush1.xpose.msra.mxu0 0.0
    %4331 = vmatprep.subr.mxu0 0.0
    %4332 = vmatpush1.xpose.msra.mxu0 0.0
    %4333 = vmatprep.subr.mxu0 0.0
    %4334 = vmatpush1.xpose.msra.mxu0 0.0
    %4335 = vmatprep.subr.mxu0 0.0
    %4336 = vmatpush1.xpose.msra.mxu0 0.0
    %4337 = vmatprep.subr.mxu0 0.0
    %4338 = vmatpush1.xpose.msra.mxu0 0.0
    %4339 = vmatprep.subr.mxu0 0.0
    %4340 = vmatpush1.xpose.msra.mxu0 0.0
    %4341 = vmatprep.subr.mxu0 0.0
    %4342 = vmatpush1.xpose.msra.mxu0 0.0
    %4343 = vmatprep.subr.mxu0 0.0
    %4344 = vmatpush1.xpose.msra.mxu0 0.0
    %4345 = vmatprep.subr.mxu0 0.0
    %4346 = vmatpush1.xpose.msra.mxu0 0.0
    %4347 = vmatprep.mubr.f32.mxu0 0.0
    %4348 = vmatmul.mubr.f32.gmra.mrb[0].mxu0 %v4279
    %v4349 = vpop.f32.mrb[0].mxu0
    %v4350 = vadd.f32 %v96, %v4349
    %v4351 = vpop.f32.mrb[0].mxu0
    %4352 = vdwg.mxu0
    %4353 = vrot.lane.b32.xlu0 %v3894, 96
    %v4354 = vpop.permute.xlu0 %4353
    %v4355 = vsel %vm257, %v3894, 0
    %v4357 = vsel %vm257, %v4354, 0
    %4359 = vmatprep.subr.mxu0 0.0
    %4360 = vmatpush1.xpose.msra.mxu0 %v4357
    %4361 = vmatprep.subr.mxu0 0.0
    %4362 = vmatpush1.xpose.msra.mxu0 0.0
    %4363 = vmatprep.subr.mxu0 0.0
    %4364 = vmatpush1.xpose.msra.mxu0 0.0
    %4365 = vmatprep.subr.mxu0 0.0
    %4366 = vmatpush1.xpose.msra.mxu0 0.0
    %4367 = vmatprep.subr.mxu0 0.0
    %4368 = vmatpush1.xpose.msra.mxu0 0.0
    %4369 = vmatprep.subr.mxu0 0.0
    %4370 = vmatpush1.xpose.msra.mxu0 0.0
    %4371 = vmatprep.subr.mxu0 0.0
    %4372 = vmatpush1.xpose.msra.mxu0 0.0
    %4373 = vmatprep.subr.mxu0 0.0
    %4374 = vmatpush1.xpose.msra.mxu0 0.0
    %4375 = vmatprep.subr.mxu0 0.0
    %4376 = vmatpush1.xpose.msra.mxu0 0.0
    %4377 = vmatprep.subr.mxu0 0.0
    %4378 = vmatpush1.xpose.msra.mxu0 0.0
    %4379 = vmatprep.subr.mxu0 0.0
    %4380 = vmatpush1.xpose.msra.mxu0 0.0
    %4381 = vmatprep.subr.mxu0 0.0
    %4382 = vmatpush1.xpose.msra.mxu0 0.0
    %4383 = vmatprep.subr.mxu0 0.0
    %4384 = vmatpush1.xpose.msra.mxu0 0.0
    %4385 = vmatprep.subr.mxu0 0.0
    %4386 = vmatpush1.xpose.msra.mxu0 0.0
    %4387 = vmatprep.subr.mxu0 0.0
    %4388 = vmatpush1.xpose.msra.mxu0 0.0
    %4389 = vmatprep.subr.mxu0 0.0
    %4390 = vmatpush1.xpose.msra.mxu0 0.0
    %4391 = vmatprep.subr.mxu0 0.0
    %4392 = vmatpush1.xpose.msra.mxu0 0.0
    %4393 = vmatprep.subr.mxu0 0.0
    %4394 = vmatpush1.xpose.msra.mxu0 0.0
    %4395 = vmatprep.subr.mxu0 0.0
    %4396 = vmatpush1.xpose.msra.mxu0 0.0
    %4397 = vmatprep.subr.mxu0 0.0
    %4398 = vmatpush1.xpose.msra.mxu0 0.0
    %4399 = vmatprep.subr.mxu0 0.0
    %4400 = vmatpush1.xpose.msra.mxu0 0.0
    %4401 = vmatprep.subr.mxu0 0.0
    %4402 = vmatpush1.xpose.msra.mxu0 0.0
    %4403 = vmatprep.subr.mxu0 0.0
    %4404 = vmatpush1.xpose.msra.mxu0 0.0
    %4405 = vmatprep.subr.mxu0 0.0
    %4406 = vmatpush1.xpose.msra.mxu0 0.0
    %4407 = vmatprep.subr.mxu0 0.0
    %4408 = vmatpush1.xpose.msra.mxu0 0.0
    %4409 = vmatprep.subr.mxu0 0.0
    %4410 = vmatpush1.xpose.msra.mxu0 0.0
    %4411 = vmatprep.subr.mxu0 0.0
    %4412 = vmatpush1.xpose.msra.mxu0 0.0
    %4413 = vmatprep.subr.mxu0 0.0
    %4414 = vmatpush1.xpose.msra.mxu0 0.0
    %4415 = vmatprep.subr.mxu0 0.0
    %4416 = vmatpush1.xpose.msra.mxu0 0.0
    %4417 = vmatprep.subr.mxu0 0.0
    %4418 = vmatpush1.xpose.msra.mxu0 0.0
    %4419 = vmatprep.subr.mxu0 0.0
    %4420 = vmatpush1.xpose.msra.mxu0 0.0
    %4421 = vmatprep.subr.mxu0 0.0
    %4422 = vmatpush1.xpose.msra.mxu0 0.0
    %4423 = vmatprep.mubr.f32.mxu0 0.0
    %4424 = vmatmul.mubr.f32.gmra.mrb[0].mxu0 %v4355
    %v4425 = vpop.f32.mrb[0].mxu0
    %v4426 = vadd.f32 %v95, %v4425
    %v4427 = vpop.f32.mrb[0].mxu0
    %4428 = vdwg.mxu0
    %4429 = vrot.lane.b32.xlu0 %v3896, 96
    %v4430 = vpop.permute.xlu0 %4429
    %v4431 = vsel %vm257, %v3896, 0
    %v4433 = vsel %vm257, %v4430, 0
    %4435 = vmatprep.subr.mxu0 0.0
    %4436 = vmatpush1.xpose.msra.mxu0 %v4433
    %4437 = vmatprep.subr.mxu0 0.0
    %4438 = vmatpush1.xpose.msra.mxu0 0.0
    %4439 = vmatprep.subr.mxu0 0.0
    %4440 = vmatpush1.xpose.msra.mxu0 0.0
    %4441 = vmatprep.subr.mxu0 0.0
    %4442 = vmatpush1.xpose.msra.mxu0 0.0
    %4443 = vmatprep.subr.mxu0 0.0
    %4444 = vmatpush1.xpose.msra.mxu0 0.0
    %4445 = vmatprep.subr.mxu0 0.0
    %4446 = vmatpush1.xpose.msra.mxu0 0.0
    %4447 = vmatprep.subr.mxu0 0.0
    %4448 = vmatpush1.xpose.msra.mxu0 0.0
    %4449 = vmatprep.subr.mxu0 0.0
    %4450 = vmatpush1.xpose.msra.mxu0 0.0
    %4451 = vmatprep.subr.mxu0 0.0
    %4452 = vmatpush1.xpose.msra.mxu0 0.0
    %4453 = vmatprep.subr.mxu0 0.0
    %4454 = vmatpush1.xpose.msra.mxu0 0.0
    %4455 = vmatprep.subr.mxu0 0.0
    %4456 = vmatpush1.xpose.msra.mxu0 0.0
    %4457 = vmatprep.subr.mxu0 0.0
    %4458 = vmatpush1.xpose.msra.mxu0 0.0
    %4459 = vmatprep.subr.mxu0 0.0
    %4460 = vmatpush1.xpose.msra.mxu0 0.0
    %4461 = vmatprep.subr.mxu0 0.0
    %4462 = vmatpush1.xpose.msra.mxu0 0.0
    %4463 = vmatprep.subr.mxu0 0.0
    %4464 = vmatpush1.xpose.msra.mxu0 0.0
    %4465 = vmatprep.subr.mxu0 0.0
    %4466 = vmatpush1.xpose.msra.mxu0 0.0
    %4467 = vmatprep.subr.mxu0 0.0
    %4468 = vmatpush1.xpose.msra.mxu0 0.0
    %4469 = vmatprep.subr.mxu0 0.0
    %4470 = vmatpush1.xpose.msra.mxu0 0.0
    %4471 = vmatprep.subr.mxu0 0.0
    %4472 = vmatpush1.xpose.msra.mxu0 0.0
    %4473 = vmatprep.subr.mxu0 0.0
    %4474 = vmatpush1.xpose.msra.mxu0 0.0
    %4475 = vmatprep.subr.mxu0 0.0
    %4476 = vmatpush1.xpose.msra.mxu0 0.0
    %4477 = vmatprep.subr.mxu0 0.0
    %4478 = vmatpush1.xpose.msra.mxu0 0.0
    %4479 = vmatprep.subr.mxu0 0.0
    %4480 = vmatpush1.xpose.msra.mxu0 0.0
    %4481 = vmatprep.subr.mxu0 0.0
    %4482 = vmatpush1.xpose.msra.mxu0 0.0
    %4483 = vmatprep.subr.mxu0 0.0
    %4484 = vmatpush1.xpose.msra.mxu0 0.0
    %4485 = vmatprep.subr.mxu0 0.0
    %4486 = vmatpush1.xpose.msra.mxu0 0.0
    %4487 = vmatprep.subr.mxu0 0.0
    %4488 = vmatpush1.xpose.msra.mxu0 0.0
    %4489 = vmatprep.subr.mxu0 0.0
    %4490 = vmatpush1.xpose.msra.mxu0 0.0
    %4491 = vmatprep.subr.mxu0 0.0
    %4492 = vmatpush1.xpose.msra.mxu0 0.0
    %4493 = vmatprep.subr.mxu0 0.0
    %4494 = vmatpush1.xpose.msra.mxu0 0.0
    %4495 = vmatprep.subr.mxu0 0.0
    %4496 = vmatpush1.xpose.msra.mxu0 0.0
    %4497 = vmatprep.subr.mxu0 0.0
    %4498 = vmatpush1.xpose.msra.mxu0 0.0
    %4499 = vmatprep.mubr.f32.mxu0 0.0
    %4500 = vmatmul.mubr.f32.gmra.mrb[0].mxu0 %v4431
    %v4501 = vpop.f32.mrb[0].mxu0
    %v4502 = vadd.f32 %v96, %v4501
    %v4503 = vpop.f32.mrb[0].mxu0
    %4504 = vdwg.mxu0
    %v4505 = vsel %vm257, %v3970, -inf
    %4506 = vmax.xlane.f32.xlu0 %v4505
    %v4507 = vpop.xlane.xlu0 %4506
    %v4508 = vsel %vm257, %v4046, -inf
    %4509 = vmax.xlane.f32.xlu0 %v4508
    %v4510 = vpop.xlane.xlu0 %4509
    %v4511 = vsel %vm257, %v4122, -inf
    %4512 = vmax.xlane.f32.xlu0 %v4511
    %v4513 = vpop.xlane.xlu0 %4512
    %v4514 = vsel %vm257, %v4198, -inf
    %4515 = vmax.xlane.f32.xlu0 %v4514
    %v4516 = vpop.xlane.xlu0 %4515
    %v4517 = vsel %vm257, %v4274, -inf
    %4518 = vmax.xlane.f32.xlu0 %v4517
    %v4519 = vpop.xlane.xlu0 %4518
    %v4520 = vsel %vm257, %v4350, -inf
    %4521 = vmax.xlane.f32.xlu0 %v4520
    %v4522 = vpop.xlane.xlu0 %4521
    %v4523 = vsel %vm257, %v4426, -inf
    %4524 = vmax.xlane.f32.xlu0 %v4523
    %v4525 = vpop.xlane.xlu0 %4524
    %v4526 = vsel %vm257, %v4502, -inf
    %4527 = vmax.xlane.f32.xlu0 %v4526
    %v4528 = vpop.xlane.xlu0 %4527
    %v4529 = vsub.f32 %v3970, %v4507
    %v4530 = vsub.f32 %v4046, %v4510
    %v4531 = vsub.f32 %v4122, %v4513
    %v4532 = vsub.f32 %v4198, %v4516
    %v4533 = vsub.f32 %v4274, %v4519
    %v4534 = vsub.f32 %v4350, %v4522
    %v4535 = vsub.f32 %v4426, %v4525
    %v4536 = vsub.f32 %v4502, %v4528
    %v4537 = vmul.f32 %v4529, 1.442695
    %v4538 = vpow.pop %v4537
    %v4539 = vmul.f32 %v4530, 1.442695
    %v4540 = vpow.pop %v4539
    %v4541 = vmul.f32 %v4531, 1.442695
    %v4542 = vpow.pop %v4541
    %v4543 = vmul.f32 %v4532, 1.442695
    %v4544 = vpow.pop %v4543
    %v4545 = vmul.f32 %v4533, 1.442695
    %v4546 = vpow.pop %v4545
    %v4547 = vmul.f32 %v4534, 1.442695
    %v4548 = vpow.pop %v4547
    %v4549 = vmul.f32 %v4535, 1.442695
    %v4550 = vpow.pop %v4549
    %v4551 = vmul.f32 %v4536, 1.442695
    %v4552 = vpow.pop %v4551
    %v4553 = vsel %vm257, %v4538, 0.0
    %4554 = vadd.xlane.f32.xlu0 %v4553
    %v4555 = vpop.xlane.xlu0 %4554
    %v4556 = vsel %vm257, %v4540, 0.0
    %4557 = vadd.xlane.f32.xlu0 %v4556
    %v4558 = vpop.xlane.xlu0 %4557
    %v4559 = vsel %vm257, %v4542, 0.0
    %4560 = vadd.xlane.f32.xlu0 %v4559
    %v4561 = vpop.xlane.xlu0 %4560
    %v4562 = vsel %vm257, %v4544, 0.0
    %4563 = vadd.xlane.f32.xlu0 %v4562
    %v4564 = vpop.xlane.xlu0 %4563
    %v4565 = vsel %vm257, %v4546, 0.0
    %4566 = vadd.xlane.f32.xlu0 %v4565
    %v4567 = vpop.xlane.xlu0 %4566
    %v4568 = vsel %vm257, %v4548, 0.0
    %4569 = vadd.xlane.f32.xlu0 %v4568
    %v4570 = vpop.xlane.xlu0 %4569
    %v4571 = vsel %vm257, %v4550, 0.0
    %4572 = vadd.xlane.f32.xlu0 %v4571
    %v4573 = vpop.xlane.xlu0 %4572
    %v4574 = vsel %vm257, %v4552, 0.0
    %4575 = vadd.xlane.f32.xlu0 %v4574
    %v4576 = vpop.xlane.xlu0 %4575
    %v4577 = vrcp.pop %v4555
    %v4578 = vrcp.pop %v4558
    %v4579 = vrcp.pop %v4561
    %v4580 = vrcp.pop %v4564
    %v4581 = vrcp.pop %v4567
    %v4582 = vrcp.pop %v4570
    %v4583 = vrcp.pop %v4573
    %v4584 = vrcp.pop %v4576
    %v4585 = vmul.f32 %v4538, %v4577
    %v4586 = vmul.f32 %v4540, %v4578
    %v4587 = vmul.f32 %v4542, %v4579
    %v4588 = vmul.f32 %v4544, %v4580
    %v4589 = vmul.f32 %v4546, %v4581
    %v4590 = vmul.f32 %v4548, %v4582
    %v4591 = vmul.f32 %v4550, %v4583
    %v4592 = vmul.f32 %v4552, %v4584
    %4593 = vrot.lane.b32.xlu0 %v3875, 64
    %v4594 = vpop.permute.xlu0 %4593
    %v4597 = vsel %vm257, %v4585, 0
    %4599 = vmatprep.subr.mxu0 0.0
    %4600 = vmatpush1.msra.mxu0 %v4594
    %4601 = vmatprep.subr.mxu0 0.0
    %4602 = vmatpush1.msra.mxu0 0.0
    %4603 = vmatprep.subr.mxu0 0.0
    %4604 = vmatpush1.msra.mxu0 0.0
    %4605 = vmatprep.subr.mxu0 0.0
    %4606 = vmatpush1.msra.mxu0 0.0
    %4607 = vmatprep.subr.mxu0 0.0
    %4608 = vmatpush1.msra.mxu0 0.0
    %4609 = vmatprep.subr.mxu0 0.0
    %4610 = vmatpush1.msra.mxu0 0.0
    %4611 = vmatprep.subr.mxu0 0.0
    %4612 = vmatpush1.msra.mxu0 0.0
    %4613 = vmatprep.subr.mxu0 0.0
    %4614 = vmatpush1.msra.mxu0 0.0
    %4615 = vmatprep.subr.mxu0 0.0
    %4616 = vmatpush1.msra.mxu0 0.0
    %4617 = vmatprep.subr.mxu0 0.0
    %4618 = vmatpush1.msra.mxu0 0.0
    %4619 = vmatprep.subr.mxu0 0.0
    %4620 = vmatpush1.msra.mxu0 0.0
    %4621 = vmatprep.subr.mxu0 0.0
    %4622 = vmatpush1.msra.mxu0 0.0
    %4623 = vmatprep.subr.mxu0 0.0
    %4624 = vmatpush1.msra.mxu0 0.0
    %4625 = vmatprep.subr.mxu0 0.0
    %4626 = vmatpush1.msra.mxu0 0.0
    %4627 = vmatprep.subr.mxu0 0.0
    %4628 = vmatpush1.msra.mxu0 0.0
    %4629 = vmatprep.subr.mxu0 0.0
    %4630 = vmatpush1.msra.mxu0 0.0
    %4631 = vmatprep.subr.mxu0 0.0
    %4632 = vmatpush1.msra.mxu0 0.0
    %4633 = vmatprep.subr.mxu0 0.0
    %4634 = vmatpush1.msra.mxu0 0.0
    %4635 = vmatprep.subr.mxu0 0.0
    %4636 = vmatpush1.msra.mxu0 0.0
    %4637 = vmatprep.subr.mxu0 0.0
    %4638 = vmatpush1.msra.mxu0 0.0
    %4639 = vmatprep.subr.mxu0 0.0
    %4640 = vmatpush1.msra.mxu0 0.0
    %4641 = vmatprep.subr.mxu0 0.0
    %4642 = vmatpush1.msra.mxu0 0.0
    %4643 = vmatprep.subr.mxu0 0.0
    %4644 = vmatpush1.msra.mxu0 0.0
    %4645 = vmatprep.subr.mxu0 0.0
    %4646 = vmatpush1.msra.mxu0 0.0
    %4647 = vmatprep.subr.mxu0 0.0
    %4648 = vmatpush1.msra.mxu0 0.0
    %4649 = vmatprep.subr.mxu0 0.0
    %4650 = vmatpush1.msra.mxu0 0.0
    %4651 = vmatprep.subr.mxu0 0.0
    %4652 = vmatpush1.msra.mxu0 0.0
    %4653 = vmatprep.subr.mxu0 0.0
    %4654 = vmatpush1.msra.mxu0 0.0
    %4655 = vmatprep.subr.mxu0 0.0
    %4656 = vmatpush1.msra.mxu0 0.0
    %4657 = vmatprep.subr.mxu0 0.0
    %4658 = vmatpush1.msra.mxu0 0.0
    %4659 = vmatprep.subr.mxu0 0.0
    %4660 = vmatpush1.msra.mxu0 0.0
    %4661 = vmatprep.subr.mxu0 0.0
    %4662 = vmatpush1.msra.mxu0 0.0
    %4663 = vmatprep.mubr.f32.mxu0 0.0
    %4664 = vmatmul.mubr.f32.gmra.mrb[0].mxu0 %v4597
    %v4665 = vpop.f32.mrb[0].mxu0
    %v4666 = vadd.f32 0.0, %v4665
    %v4667 = vpop.f32.mrb[0].mxu0
    %4668 = vdwg.mxu0
    %4669 = vrot.lane.b32.xlu0 %v3880, 64
    %v4670 = vpop.permute.xlu0 %4669
    %v4673 = vsel %vm257, %v4586, 0
    %4675 = vmatprep.subr.mxu0 0.0
    %4676 = vmatpush1.msra.mxu0 %v4670
    %4677 = vmatprep.subr.mxu0 0.0
    %4678 = vmatpush1.msra.mxu0 0.0
    %4679 = vmatprep.subr.mxu0 0.0
    %4680 = vmatpush1.msra.mxu0 0.0
    %4681 = vmatprep.subr.mxu0 0.0
    %4682 = vmatpush1.msra.mxu0 0.0
    %4683 = vmatprep.subr.mxu0 0.0
    %4684 = vmatpush1.msra.mxu0 0.0
    %4685 = vmatprep.subr.mxu0 0.0
    %4686 = vmatpush1.msra.mxu0 0.0
    %4687 = vmatprep.subr.mxu0 0.0
    %4688 = vmatpush1.msra.mxu0 0.0
    %4689 = vmatprep.subr.mxu0 0.0
    %4690 = vmatpush1.msra.mxu0 0.0
    %4691 = vmatprep.subr.mxu0 0.0
    %4692 = vmatpush1.msra.mxu0 0.0
    %4693 = vmatprep.subr.mxu0 0.0
    %4694 = vmatpush1.msra.mxu0 0.0
    %4695 = vmatprep.subr.mxu0 0.0
    %4696 = vmatpush1.msra.mxu0 0.0
    %4697 = vmatprep.subr.mxu0 0.0
    %4698 = vmatpush1.msra.mxu0 0.0
    %4699 = vmatprep.subr.mxu0 0.0
    %4700 = vmatpush1.msra.mxu0 0.0
    %4701 = vmatprep.subr.mxu0 0.0
    %4702 = vmatpush1.msra.mxu0 0.0
    %4703 = vmatprep.subr.mxu0 0.0
    %4704 = vmatpush1.msra.mxu0 0.0
    %4705 = vmatprep.subr.mxu0 0.0
    %4706 = vmatpush1.msra.mxu0 0.0
    %4707 = vmatprep.subr.mxu0 0.0
    %4708 = vmatpush1.msra.mxu0 0.0
    %4709 = vmatprep.subr.mxu0 0.0
    %4710 = vmatpush1.msra.mxu0 0.0
    %4711 = vmatprep.subr.mxu0 0.0
    %4712 = vmatpush1.msra.mxu0 0.0
    %4713 = vmatprep.subr.mxu0 0.0
    %4714 = vmatpush1.msra.mxu0 0.0
    %4715 = vmatprep.subr.mxu0 0.0
    %4716 = vmatpush1.msra.mxu0 0.0
    %4717 = vmatprep.subr.mxu0 0.0
    %4718 = vmatpush1.msra.mxu0 0.0
    %4719 = vmatprep.subr.mxu0 0.0
    %4720 = vmatpush1.msra.mxu0 0.0
    %4721 = vmatprep.subr.mxu0 0.0
    %4722 = vmatpush1.msra.mxu0 0.0
    %4723 = vmatprep.subr.mxu0 0.0
    %4724 = vmatpush1.msra.mxu0 0.0
    %4725 = vmatprep.subr.mxu0 0.0
    %4726 = vmatpush1.msra.mxu0 0.0
    %4727 = vmatprep.subr.mxu0 0.0
    %4728 = vmatpush1.msra.mxu0 0.0
    %4729 = vmatprep.subr.mxu0 0.0
    %4730 = vmatpush1.msra.mxu0 0.0
    %4731 = vmatprep.subr.mxu0 0.0
    %4732 = vmatpush1.msra.mxu0 0.0
    %4733 = vmatprep.subr.mxu0 0.0
    %4734 = vmatpush1.msra.mxu0 0.0
    %4735 = vmatprep.subr.mxu0 0.0
    %4736 = vmatpush1.msra.mxu0 0.0
    %4737 = vmatprep.subr.mxu0 0.0
    %4738 = vmatpush1.msra.mxu0 0.0
    %4739 = vmatprep.mubr.f32.mxu0 0.0
    %4740 = vmatmul.mubr.f32.gmra.mrb[0].mxu0 %v4673
    %v4741 = vpop.f32.mrb[0].mxu0
    %v4742 = vadd.f32 0.0, %v4741
    %v4743 = vpop.f32.mrb[0].mxu0
    %4744 = vdwg.mxu0
    %4745 = vrot.lane.b32.xlu0 %v3886, 64
    %v4746 = vpop.permute.xlu0 %4745
    %v4749 = vsel %vm257, %v4587, 0
    %4751 = vmatprep.subr.mxu0 0.0
    %4752 = vmatpush1.msra.mxu0 %v4746
    %4753 = vmatprep.subr.mxu0 0.0
    %4754 = vmatpush1.msra.mxu0 0.0
    %4755 = vmatprep.subr.mxu0 0.0
    %4756 = vmatpush1.msra.mxu0 0.0
    %4757 = vmatprep.subr.mxu0 0.0
    %4758 = vmatpush1.msra.mxu0 0.0
    %4759 = vmatprep.subr.mxu0 0.0
    %4760 = vmatpush1.msra.mxu0 0.0
    %4761 = vmatprep.subr.mxu0 0.0
    %4762 = vmatpush1.msra.mxu0 0.0
    %4763 = vmatprep.subr.mxu0 0.0
    %4764 = vmatpush1.msra.mxu0 0.0
    %4765 = vmatprep.subr.mxu0 0.0
    %4766 = vmatpush1.msra.mxu0 0.0
    %4767 = vmatprep.subr.mxu0 0.0
    %4768 = vmatpush1.msra.mxu0 0.0
    %4769 = vmatprep.subr.mxu0 0.0
    %4770 = vmatpush1.msra.mxu0 0.0
    %4771 = vmatprep.subr.mxu0 0.0
    %4772 = vmatpush1.msra.mxu0 0.0
    %4773 = vmatprep.subr.mxu0 0.0
    %4774 = vmatpush1.msra.mxu0 0.0
    %4775 = vmatprep.subr.mxu0 0.0
    %4776 = vmatpush1.msra.mxu0 0.0
    %4777 = vmatprep.subr.mxu0 0.0
    %4778 = vmatpush1.msra.mxu0 0.0
    %4779 = vmatprep.subr.mxu0 0.0
    %4780 = vmatpush1.msra.mxu0 0.0
    %4781 = vmatprep.subr.mxu0 0.0
    %4782 = vmatpush1.msra.mxu0 0.0
    %4783 = vmatprep.subr.mxu0 0.0
    %4784 = vmatpush1.msra.mxu0 0.0
    %4785 = vmatprep.subr.mxu0 0.0
    %4786 = vmatpush1.msra.mxu0 0.0
    %4787 = vmatprep.subr.mxu0 0.0
    %4788 = vmatpush1.msra.mxu0 0.0
    %4789 = vmatprep.subr.mxu0 0.0
    %4790 = vmatpush1.msra.mxu0 0.0
    %4791 = vmatprep.subr.mxu0 0.0
    %4792 = vmatpush1.msra.mxu0 0.0
    %4793 = vmatprep.subr.mxu0 0.0
    %4794 = vmatpush1.msra.mxu0 0.0
    %4795 = vmatprep.subr.mxu0 0.0
    %4796 = vmatpush1.msra.mxu0 0.0
    %4797 = vmatprep.subr.mxu0 0.0
    %4798 = vmatpush1.msra.mxu0 0.0
    %4799 = vmatprep.subr.mxu0 0.0
    %4800 = vmatpush1.msra.mxu0 0.0
    %4801 = vmatprep.subr.mxu0 0.0
    %4802 = vmatpush1.msra.mxu0 0.0
    %4803 = vmatprep.subr.mxu0 0.0
    %4804 = vmatpush1.msra.mxu0 0.0
    %4805 = vmatprep.subr.mxu0 0.0
    %4806 = vmatpush1.msra.mxu0 0.0
    %4807 = vmatprep.subr.mxu0 0.0
    %4808 = vmatpush1.msra.mxu0 0.0
    %4809 = vmatprep.subr.mxu0 0.0
    %4810 = vmatpush1.msra.mxu0 0.0
    %4811 = vmatprep.subr.mxu0 0.0
    %4812 = vmatpush1.msra.mxu0 0.0
    %4813 = vmatprep.subr.mxu0 0.0
    %4814 = vmatpush1.msra.mxu0 0.0
    %4815 = vmatprep.mubr.f32.mxu0 0.0
    %4816 = vmatmul.mubr.f32.gmra.mrb[0].mxu0 %v4749
    %v4817 = vpop.f32.mrb[0].mxu0
    %v4818 = vadd.f32 0.0, %v4817
    %v4819 = vpop.f32.mrb[0].mxu0
    %4820 = vdwg.mxu0
    %4821 = vrot.lane.b32.xlu0 %v3888, 64
    %v4822 = vpop.permute.xlu0 %4821
    %v4825 = vsel %vm257, %v4588, 0
    %4827 = vmatprep.subr.mxu0 0.0
    %4828 = vmatpush1.msra.mxu0 %v4822
    %4829 = vmatprep.subr.mxu0 0.0
    %4830 = vmatpush1.msra.mxu0 0.0
    %4831 = vmatprep.subr.mxu0 0.0
    %4832 = vmatpush1.msra.mxu0 0.0
    %4833 = vmatprep.subr.mxu0 0.0
    %4834 = vmatpush1.msra.mxu0 0.0
    %4835 = vmatprep.subr.mxu0 0.0
    %4836 = vmatpush1.msra.mxu0 0.0
    %4837 = vmatprep.subr.mxu0 0.0
    %4838 = vmatpush1.msra.mxu0 0.0
    %4839 = vmatprep.subr.mxu0 0.0
    %4840 = vmatpush1.msra.mxu0 0.0
    %4841 = vmatprep.subr.mxu0 0.0
    %4842 = vmatpush1.msra.mxu0 0.0
    %4843 = vmatprep.subr.mxu0 0.0
    %4844 = vmatpush1.msra.mxu0 0.0
    %4845 = vmatprep.subr.mxu0 0.0
    %4846 = vmatpush1.msra.mxu0 0.0
    %4847 = vmatprep.subr.mxu0 0.0
    %4848 = vmatpush1.msra.mxu0 0.0
    %4849 = vmatprep.subr.mxu0 0.0
    %4850 = vmatpush1.msra.mxu0 0.0
    %4851 = vmatprep.subr.mxu0 0.0
    %4852 = vmatpush1.msra.mxu0 0.0
    %4853 = vmatprep.subr.mxu0 0.0
    %4854 = vmatpush1.msra.mxu0 0.0
    %4855 = vmatprep.subr.mxu0 0.0
    %4856 = vmatpush1.msra.mxu0 0.0
    %4857 = vmatprep.subr.mxu0 0.0
    %4858 = vmatpush1.msra.mxu0 0.0
    %4859 = vmatprep.subr.mxu0 0.0
    %4860 = vmatpush1.msra.mxu0 0.0
    %4861 = vmatprep.subr.mxu0 0.0
    %4862 = vmatpush1.msra.mxu0 0.0
    %4863 = vmatprep.subr.mxu0 0.0
    %4864 = vmatpush1.msra.mxu0 0.0
    %4865 = vmatprep.subr.mxu0 0.0
    %4866 = vmatpush1.msra.mxu0 0.0
    %4867 = vmatprep.subr.mxu0 0.0
    %4868 = vmatpush1.msra.mxu0 0.0
    %4869 = vmatprep.subr.mxu0 0.0
    %4870 = vmatpush1.msra.mxu0 0.0
    %4871 = vmatprep.subr.mxu0 0.0
    %4872 = vmatpush1.msra.mxu0 0.0
    %4873 = vmatprep.subr.mxu0 0.0
    %4874 = vmatpush1.msra.mxu0 0.0
    %4875 = vmatprep.subr.mxu0 0.0
    %4876 = vmatpush1.msra.mxu0 0.0
    %4877 = vmatprep.subr.mxu0 0.0
    %4878 = vmatpush1.msra.mxu0 0.0
    %4879 = vmatprep.subr.mxu0 0.0
    %4880 = vmatpush1.msra.mxu0 0.0
    %4881 = vmatprep.subr.mxu0 0.0
    %4882 = vmatpush1.msra.mxu0 0.0
    %4883 = vmatprep.subr.mxu0 0.0
    %4884 = vmatpush1.msra.mxu0 0.0
    %4885 = vmatprep.subr.mxu0 0.0
    %4886 = vmatpush1.msra.mxu0 0.0
    %4887 = vmatprep.subr.mxu0 0.0
    %4888 = vmatpush1.msra.mxu0 0.0
    %4889 = vmatprep.subr.mxu0 0.0
    %4890 = vmatpush1.msra.mxu0 0.0
    %4891 = vmatprep.mubr.f32.mxu0 0.0
    %4892 = vmatmul.mubr.f32.gmra.mrb[0].mxu0 %v4825
    %v4893 = vpop.f32.mrb[0].mxu0
    %v4894 = vadd.f32 0.0, %v4893
    %v4895 = vpop.f32.mrb[0].mxu0
    %4896 = vdwg.mxu0
    %4897 = vrot.lane.b32.xlu0 %v3890, 64
    %v4898 = vpop.permute.xlu0 %4897
    %v4901 = vsel %vm257, %v4589, 0
    %4903 = vmatprep.subr.mxu0 0.0
    %4904 = vmatpush1.msra.mxu0 %v4898
    %4905 = vmatprep.subr.mxu0 0.0
    %4906 = vmatpush1.msra.mxu0 0.0
    %4907 = vmatprep.subr.mxu0 0.0
    %4908 = vmatpush1.msra.mxu0 0.0
    %4909 = vmatprep.subr.mxu0 0.0
    %4910 = vmatpush1.msra.mxu0 0.0
    %4911 = vmatprep.subr.mxu0 0.0
    %4912 = vmatpush1.msra.mxu0 0.0
    %4913 = vmatprep.subr.mxu0 0.0
    %4914 = vmatpush1.msra.mxu0 0.0
    %4915 = vmatprep.subr.mxu0 0.0
    %4916 = vmatpush1.msra.mxu0 0.0
    %4917 = vmatprep.subr.mxu0 0.0
    %4918 = vmatpush1.msra.mxu0 0.0
    %4919 = vmatprep.subr.mxu0 0.0
    %4920 = vmatpush1.msra.mxu0 0.0
    %4921 = vmatprep.subr.mxu0 0.0
    %4922 = vmatpush1.msra.mxu0 0.0
    %4923 = vmatprep.subr.mxu0 0.0
    %4924 = vmatpush1.msra.mxu0 0.0
    %4925 = vmatprep.subr.mxu0 0.0
    %4926 = vmatpush1.msra.mxu0 0.0
    %4927 = vmatprep.subr.mxu0 0.0
    %4928 = vmatpush1.msra.mxu0 0.0
    %4929 = vmatprep.subr.mxu0 0.0
    %4930 = vmatpush1.msra.mxu0 0.0
    %4931 = vmatprep.subr.mxu0 0.0
    %4932 = vmatpush1.msra.mxu0 0.0
    %4933 = vmatprep.subr.mxu0 0.0
    %4934 = vmatpush1.msra.mxu0 0.0
    %4935 = vmatprep.subr.mxu0 0.0
    %4936 = vmatpush1.msra.mxu0 0.0
    %4937 = vmatprep.subr.mxu0 0.0
    %4938 = vmatpush1.msra.mxu0 0.0
    %4939 = vmatprep.subr.mxu0 0.0
    %4940 = vmatpush1.msra.mxu0 0.0
    %4941 = vmatprep.subr.mxu0 0.0
    %4942 = vmatpush1.msra.mxu0 0.0
    %4943 = vmatprep.subr.mxu0 0.0
    %4944 = vmatpush1.msra.mxu0 0.0
    %4945 = vmatprep.subr.mxu0 0.0
    %4946 = vmatpush1.msra.mxu0 0.0
    %4947 = vmatprep.subr.mxu0 0.0
    %4948 = vmatpush1.msra.mxu0 0.0
    %4949 = vmatprep.subr.mxu0 0.0
    %4950 = vmatpush1.msra.mxu0 0.0
    %4951 = vmatprep.subr.mxu0 0.0
    %4952 = vmatpush1.msra.mxu0 0.0
    %4953 = vmatprep.subr.mxu0 0.0
    %4954 = vmatpush1.msra.mxu0 0.0
    %4955 = vmatprep.subr.mxu0 0.0
    %4956 = vmatpush1.msra.mxu0 0.0
    %4957 = vmatprep.subr.mxu0 0.0
    %4958 = vmatpush1.msra.mxu0 0.0
    %4959 = vmatprep.subr.mxu0 0.0
    %4960 = vmatpush1.msra.mxu0 0.0
    %4961 = vmatprep.subr.mxu0 0.0
    %4962 = vmatpush1.msra.mxu0 0.0
    %4963 = vmatprep.subr.mxu0 0.0
    %4964 = vmatpush1.msra.mxu0 0.0
    %4965 = vmatprep.subr.mxu0 0.0
    %4966 = vmatpush1.msra.mxu0 0.0
    %4967 = vmatprep.mubr.f32.mxu0 0.0
    %4968 = vmatmul.mubr.f32.gmra.mrb[0].mxu0 %v4901
    %v4969 = vpop.f32.mrb[0].mxu0
    %v4970 = vadd.f32 0.0, %v4969
    %v4971 = vpop.f32.mrb[0].mxu0
    %4972 = vdwg.mxu0
    %4973 = vrot.lane.b32.xlu0 %v3892, 64
    %v4974 = vpop.permute.xlu0 %4973
    %v4977 = vsel %vm257, %v4590, 0
    %4979 = vmatprep.subr.mxu0 0.0
    %4980 = vmatpush1.msra.mxu0 %v4974
    %4981 = vmatprep.subr.mxu0 0.0
    %4982 = vmatpush1.msra.mxu0 0.0
    %4983 = vmatprep.subr.mxu0 0.0
    %4984 = vmatpush1.msra.mxu0 0.0
    %4985 = vmatprep.subr.mxu0 0.0
    %4986 = vmatpush1.msra.mxu0 0.0
    %4987 = vmatprep.subr.mxu0 0.0
    %4988 = vmatpush1.msra.mxu0 0.0
    %4989 = vmatprep.subr.mxu0 0.0
    %4990 = vmatpush1.msra.mxu0 0.0
    %4991 = vmatprep.subr.mxu0 0.0
    %4992 = vmatpush1.msra.mxu0 0.0
    %4993 = vmatprep.subr.mxu0 0.0
    %4994 = vmatpush1.msra.mxu0 0.0
    %4995 = vmatprep.subr.mxu0 0.0
    %4996 = vmatpush1.msra.mxu0 0.0
    %4997 = vmatprep.subr.mxu0 0.0
    %4998 = vmatpush1.msra.mxu0 0.0
    %4999 = vmatprep.subr.mxu0 0.0
    %5000 = vmatpush1.msra.mxu0 0.0
    %5001 = vmatprep.subr.mxu0 0.0
    %5002 = vmatpush1.msra.mxu0 0.0
    %5003 = vmatprep.subr.mxu0 0.0
    %5004 = vmatpush1.msra.mxu0 0.0
    %5005 = vmatprep.subr.mxu0 0.0
    %5006 = vmatpush1.msra.mxu0 0.0
    %5007 = vmatprep.subr.mxu0 0.0
    %5008 = vmatpush1.msra.mxu0 0.0
    %5009 = vmatprep.subr.mxu0 0.0
    %5010 = vmatpush1.msra.mxu0 0.0
    %5011 = vmatprep.subr.mxu0 0.0
    %5012 = vmatpush1.msra.mxu0 0.0
    %5013 = vmatprep.subr.mxu0 0.0
    %5014 = vmatpush1.msra.mxu0 0.0
    %5015 = vmatprep.subr.mxu0 0.0
    %5016 = vmatpush1.msra.mxu0 0.0
    %5017 = vmatprep.subr.mxu0 0.0
    %5018 = vmatpush1.msra.mxu0 0.0
    %5019 = vmatprep.subr.mxu0 0.0
    %5020 = vmatpush1.msra.mxu0 0.0
    %5021 = vmatprep.subr.mxu0 0.0
    %5022 = vmatpush1.msra.mxu0 0.0
    %5023 = vmatprep.subr.mxu0 0.0
    %5024 = vmatpush1.msra.mxu0 0.0
    %5025 = vmatprep.subr.mxu0 0.0
    %5026 = vmatpush1.msra.mxu0 0.0
    %5027 = vmatprep.subr.mxu0 0.0
    %5028 = vmatpush1.msra.mxu0 0.0
    %5029 = vmatprep.subr.mxu0 0.0
    %5030 = vmatpush1.msra.mxu0 0.0
    %5031 = vmatprep.subr.mxu0 0.0
    %5032 = vmatpush1.msra.mxu0 0.0
    %5033 = vmatprep.subr.mxu0 0.0
    %5034 = vmatpush1.msra.mxu0 0.0
    %5035 = vmatprep.subr.mxu0 0.0
    %5036 = vmatpush1.msra.mxu0 0.0
    %5037 = vmatprep.subr.mxu0 0.0
    %5038 = vmatpush1.msra.mxu0 0.0
    %5039 = vmatprep.subr.mxu0 0.0
    %5040 = vmatpush1.msra.mxu0 0.0
    %5041 = vmatprep.subr.mxu0 0.0
    %5042 = vmatpush1.msra.mxu0 0.0
    %5043 = vmatprep.mubr.f32.mxu0 0.0
    %5044 = vmatmul.mubr.f32.gmra.mrb[0].mxu0 %v4977
    %v5045 = vpop.f32.mrb[0].mxu0
    %v5046 = vadd.f32 0.0, %v5045
    %v5047 = vpop.f32.mrb[0].mxu0
    %5048 = vdwg.mxu0
    %5049 = vrot.lane.b32.xlu0 %v3894, 64
    %v5050 = vpop.permute.xlu0 %5049
    %v5053 = vsel %vm257, %v4591, 0
    %5055 = vmatprep.subr.mxu0 0.0
    %5056 = vmatpush1.msra.mxu0 %v5050
    %5057 = vmatprep.subr.mxu0 0.0
    %5058 = vmatpush1.msra.mxu0 0.0
    %5059 = vmatprep.subr.mxu0 0.0
    %5060 = vmatpush1.msra.mxu0 0.0
    %5061 = vmatprep.subr.mxu0 0.0
    %5062 = vmatpush1.msra.mxu0 0.0
    %5063 = vmatprep.subr.mxu0 0.0
    %5064 = vmatpush1.msra.mxu0 0.0
    %5065 = vmatprep.subr.mxu0 0.0
    %5066 = vmatpush1.msra.mxu0 0.0
    %5067 = vmatprep.subr.mxu0 0.0
    %5068 = vmatpush1.msra.mxu0 0.0
    %5069 = vmatprep.subr.mxu0 0.0
    %5070 = vmatpush1.msra.mxu0 0.0
    %5071 = vmatprep.subr.mxu0 0.0
    %5072 = vmatpush1.msra.mxu0 0.0
    %5073 = vmatprep.subr.mxu0 0.0
    %5074 = vmatpush1.msra.mxu0 0.0
    %5075 = vmatprep.subr.mxu0 0.0
    %5076 = vmatpush1.msra.mxu0 0.0
    %5077 = vmatprep.subr.mxu0 0.0
    %5078 = vmatpush1.msra.mxu0 0.0
    %5079 = vmatprep.subr.mxu0 0.0
    %5080 = vmatpush1.msra.mxu0 0.0
    %5081 = vmatprep.subr.mxu0 0.0
    %5082 = vmatpush1.msra.mxu0 0.0
    %5083 = vmatprep.subr.mxu0 0.0
    %5084 = vmatpush1.msra.mxu0 0.0
    %5085 = vmatprep.subr.mxu0 0.0
    %5086 = vmatpush1.msra.mxu0 0.0
    %5087 = vmatprep.subr.mxu0 0.0
    %5088 = vmatpush1.msra.mxu0 0.0
    %5089 = vmatprep.subr.mxu0 0.0
    %5090 = vmatpush1.msra.mxu0 0.0
    %5091 = vmatprep.subr.mxu0 0.0
    %5092 = vmatpush1.msra.mxu0 0.0
    %5093 = vmatprep.subr.mxu0 0.0
    %5094 = vmatpush1.msra.mxu0 0.0
    %5095 = vmatprep.subr.mxu0 0.0
    %5096 = vmatpush1.msra.mxu0 0.0
    %5097 = vmatprep.subr.mxu0 0.0
    %5098 = vmatpush1.msra.mxu0 0.0
    %5099 = vmatprep.subr.mxu0 0.0
    %5100 = vmatpush1.msra.mxu0 0.0
    %5101 = vmatprep.subr.mxu0 0.0
    %5102 = vmatpush1.msra.mxu0 0.0
    %5103 = vmatprep.subr.mxu0 0.0
    %5104 = vmatpush1.msra.mxu0 0.0
    %5105 = vmatprep.subr.mxu0 0.0
    %5106 = vmatpush1.msra.mxu0 0.0
    %5107 = vmatprep.subr.mxu0 0.0
    %5108 = vmatpush1.msra.mxu0 0.0
    %5109 = vmatprep.subr.mxu0 0.0
    %5110 = vmatpush1.msra.mxu0 0.0
    %5111 = vmatprep.subr.mxu0 0.0
    %5112 = vmatpush1.msra.mxu0 0.0
    %5113 = vmatprep.subr.mxu0 0.0
    %5114 = vmatpush1.msra.mxu0 0.0
    %5115 = vmatprep.subr.mxu0 0.0
    %5116 = vmatpush1.msra.mxu0 0.0
    %5117 = vmatprep.subr.mxu0 0.0
    %5118 = vmatpush1.msra.mxu0 0.0
    %5119 = vmatprep.mubr.f32.mxu0 0.0
    %5120 = vmatmul.mubr.f32.gmra.mrb[0].mxu0 %v5053
    %v5121 = vpop.f32.mrb[0].mxu0
    %v5122 = vadd.f32 0.0, %v5121
    %v5123 = vpop.f32.mrb[0].mxu0
    %5124 = vdwg.mxu0
    %5125 = vrot.lane.b32.xlu0 %v3896, 64
    %v5126 = vpop.permute.xlu0 %5125
    %v5129 = vsel %vm257, %v4592, 0
    %5131 = vmatprep.subr.mxu0 0.0
    %5132 = vmatpush1.msra.mxu0 %v5126
    %5133 = vmatprep.subr.mxu0 0.0
    %5134 = vmatpush1.msra.mxu0 0.0
    %5135 = vmatprep.subr.mxu0 0.0
    %5136 = vmatpush1.msra.mxu0 0.0
    %5137 = vmatprep.subr.mxu0 0.0
    %5138 = vmatpush1.msra.mxu0 0.0
    %5139 = vmatprep.subr.mxu0 0.0
    %5140 = vmatpush1.msra.mxu0 0.0
    %5141 = vmatprep.subr.mxu0 0.0
    %5142 = vmatpush1.msra.mxu0 0.0
    %5143 = vmatprep.subr.mxu0 0.0
    %5144 = vmatpush1.msra.mxu0 0.0
    %5145 = vmatprep.subr.mxu0 0.0
    %5146 = vmatpush1.msra.mxu0 0.0
    %5147 = vmatprep.subr.mxu0 0.0
    %5148 = vmatpush1.msra.mxu0 0.0
    %5149 = vmatprep.subr.mxu0 0.0
    %5150 = vmatpush1.msra.mxu0 0.0
    %5151 = vmatprep.subr.mxu0 0.0
    %5152 = vmatpush1.msra.mxu0 0.0
    %5153 = vmatprep.subr.mxu0 0.0
    %5154 = vmatpush1.msra.mxu0 0.0
    %5155 = vmatprep.subr.mxu0 0.0
    %5156 = vmatpush1.msra.mxu0 0.0
    %5157 = vmatprep.subr.mxu0 0.0
    %5158 = vmatpush1.msra.mxu0 0.0
    %5159 = vmatprep.subr.mxu0 0.0
    %5160 = vmatpush1.msra.mxu0 0.0
    %5161 = vmatprep.subr.mxu0 0.0
    %5162 = vmatpush1.msra.mxu0 0.0
    %5163 = vmatprep.subr.mxu0 0.0
    %5164 = vmatpush1.msra.mxu0 0.0
    %5165 = vmatprep.subr.mxu0 0.0
    %5166 = vmatpush1.msra.mxu0 0.0
    %5167 = vmatprep.subr.mxu0 0.0
    %5168 = vmatpush1.msra.mxu0 0.0
    %5169 = vmatprep.subr.mxu0 0.0
    %5170 = vmatpush1.msra.mxu0 0.0
    %5171 = vmatprep.subr.mxu0 0.0
    %5172 = vmatpush1.msra.mxu0 0.0
    %5173 = vmatprep.subr.mxu0 0.0
    %5174 = vmatpush1.msra.mxu0 0.0
    %5175 = vmatprep.subr.mxu0 0.0
    %5176 = vmatpush1.msra.mxu0 0.0
    %5177 = vmatprep.subr.mxu0 0.0
    %5178 = vmatpush1.msra.mxu0 0.0
    %5179 = vmatprep.subr.mxu0 0.0
    %5180 = vmatpush1.msra.mxu0 0.0
    %5181 = vmatprep.subr.mxu0 0.0
    %5182 = vmatpush1.msra.mxu0 0.0
    %5183 = vmatprep.subr.mxu0 0.0
    %5184 = vmatpush1.msra.mxu0 0.0
    %5185 = vmatprep.subr.mxu0 0.0
    %5186 = vmatpush1.msra.mxu0 0.0
    %5187 = vmatprep.subr.mxu0 0.0
    %5188 = vmatpush1.msra.mxu0 0.0
    %5189 = vmatprep.subr.mxu0 0.0
    %5190 = vmatpush1.msra.mxu0 0.0
    %5191 = vmatprep.subr.mxu0 0.0
    %5192 = vmatpush1.msra.mxu0 0.0
    %5193 = vmatprep.subr.mxu0 0.0
    %5194 = vmatpush1.msra.mxu0 0.0
    %5195 = vmatprep.mubr.f32.mxu0 0.0
    %5196 = vmatmul.mubr.f32.gmra.mrb[0].mxu0 %v5129
    %v5197 = vpop.f32.mrb[0].mxu0
    %v5198 = vadd.f32 0.0, %v5197
    %v5199 = vpop.f32.mrb[0].mxu0
    %5200 = vdwg.mxu0
    %5203 = vrot.lane.b32.xlu0 %v4818, 8
    %v5204 = vpop.permute.xlu0 %5203
    %5205 = vrot.lane.b32.xlu0 %v4894, 8
    %v5206 = vpop.permute.xlu0 %5205
    %5211 = vrot.lane.b32.xlu0 %v4970, 16
    %v5212 = vpop.permute.xlu0 %5211
    %5213 = vrot.lane.b32.xlu0 %v5046, 16
    %v5214 = vpop.permute.xlu0 %5213
    %5219 = vrot.lane.b32.xlu0 %v5122, 24
    %v5220 = vpop.permute.xlu0 %5219
    %5221 = vrot.lane.b32.xlu0 %v5198, 24
    %v5222 = vpop.permute.xlu0 %5221
    %v5225 = vsel %vm257, %v4666, %v5204
    %v5226 = vsel %vm257, %v4742, %v5206
    %v5227 = vsel %vm1586, %v5225, %v5212
    %v5228 = vsel %vm1586, %v5226, %v5214
    %v5229 = vsel %vm1589, %v5227, %v5220
    %v5230 = vsel %vm1589, %v5228, %v5222
    %v5231 = vld [vmem:[#allocation5 + $0x160] sm:$0xff]
    %v5232 = vld [vmem:[#allocation5 + $0x168] sm:$0xff]
    %v5233 = vld [vmem:[#allocation5 + $0x170] sm:$0xff]
    %v5234 = vld [vmem:[#allocation5 + $0x178] sm:$0xff]
    %v5235 = vld [vmem:[#allocation7 + $0x11] sm:$0x1]
    %v5236 = vlaneseq
    %v5237 = vshrl.u32 %v5236, 7
    %v5238 = vsub.s32 0, %v5237
    %v5239 = vrot.slane %v5235, %v5238
    %v5241 = vsel %vm99, %v5229, 0
    %v5244 = vsel %vm99, %v5230, 0
    %5246 = vmatprep.subr.mxu0 0.0
    %5247 = vmatpush1.msra.mxu0 %v5231
    %5248 = vmatprep.subr.mxu0 0.0
    %5249 = vmatpush1.msra.mxu0 %v5232
    %5250 = vmatprep.subr.mxu0 0.0
    %5251 = vmatpush1.msra.mxu0 %v5233
    %5252 = vmatprep.subr.mxu0 0.0
    %5253 = vmatpush1.msra.mxu0 %v5234
    %5254 = vmatprep.subr.mxu0 0.0
    %5255 = vmatpush1.msra.mxu0 0.0
    %5256 = vmatprep.subr.mxu0 0.0
    %5257 = vmatpush1.msra.mxu0 0.0
    %5258 = vmatprep.subr.mxu0 0.0
    %5259 = vmatpush1.msra.mxu0 0.0
    %5260 = vmatprep.subr.mxu0 0.0
    %5261 = vmatpush1.msra.mxu0 0.0
    %5262 = vmatprep.subr.mxu0 0.0
    %5263 = vmatpush1.msra.mxu0 0.0
    %5264 = vmatprep.subr.mxu0 0.0
    %5265 = vmatpush1.msra.mxu0 0.0
    %5266 = vmatprep.subr.mxu0 0.0
    %5267 = vmatpush1.msra.mxu0 0.0
    %5268 = vmatprep.subr.mxu0 0.0
    %5269 = vmatpush1.msra.mxu0 0.0
    %5270 = vmatprep.subr.mxu0 0.0
    %5271 = vmatpush1.msra.mxu0 0.0
    %5272 = vmatprep.subr.mxu0 0.0
    %5273 = vmatpush1.msra.mxu0 0.0
    %5274 = vmatprep.subr.mxu0 0.0
    %5275 = vmatpush1.msra.mxu0 0.0
    %5276 = vmatprep.subr.mxu0 0.0
    %5277 = vmatpush1.msra.mxu0 0.0
    %5278 = vmatprep.subr.mxu0 0.0
    %5279 = vmatpush1.msra.mxu0 0.0
    %5280 = vmatprep.subr.mxu0 0.0
    %5281 = vmatpush1.msra.mxu0 0.0
    %5282 = vmatprep.subr.mxu0 0.0
    %5283 = vmatpush1.msra.mxu0 0.0
    %5284 = vmatprep.subr.mxu0 0.0
    %5285 = vmatpush1.msra.mxu0 0.0
    %5286 = vmatprep.subr.mxu0 0.0
    %5287 = vmatpush1.msra.mxu0 0.0
    %5288 = vmatprep.subr.mxu0 0.0
    %5289 = vmatpush1.msra.mxu0 0.0
    %5290 = vmatprep.subr.mxu0 0.0
    %5291 = vmatpush1.msra.mxu0 0.0
    %5292 = vmatprep.subr.mxu0 0.0
    %5293 = vmatpush1.msra.mxu0 0.0
    %5294 = vmatprep.subr.mxu0 0.0
    %5295 = vmatpush1.msra.mxu0 0.0
    %5296 = vmatprep.subr.mxu0 0.0
    %5297 = vmatpush1.msra.mxu0 0.0
    %5298 = vmatprep.subr.mxu0 0.0
    %5299 = vmatpush1.msra.mxu0 0.0
    %5300 = vmatprep.subr.mxu0 0.0
    %5301 = vmatpush1.msra.mxu0 0.0
    %5302 = vmatprep.subr.mxu0 0.0
    %5303 = vmatpush1.msra.mxu0 0.0
    %5304 = vmatprep.subr.mxu0 0.0
    %5305 = vmatpush1.msra.mxu0 0.0
    %5306 = vmatprep.subr.mxu0 0.0
    %5307 = vmatpush1.msra.mxu0 0.0
    %5308 = vmatprep.subr.mxu0 0.0
    %5309 = vmatpush1.msra.mxu0 0.0
    %5310 = vmatprep.mubr.f32.mxu0 0.0
    %5311 = vmatmul.mubr.f32.gmra.mrb[0].mxu0 %v5241
    %v5312 = vpop.f32.mrb[0].mxu0
    %v5313 = vadd.f32 %v5239, %v5312
    %v5314 = vpop.f32.mrb[0].mxu0
    %5315 = vmatprep.mubr.f32.mxu0 0.0
    %5316 = vmatmul.mubr.f32.gmra.mrb[0].mxu0 %v5244
    %v5317 = vpop.f32.mrb[0].mxu0
    %v5318 = vadd.f32 %v5239, %v5317
    %v5319 = vpop.f32.mrb[0].mxu0
    %5320 = vdwg.mxu0
    %v5321 = vadd.f32 %v3751, %v5313
    %v5322 = vadd.f32 %v3752, %v5318
    %v5323 = vsel %vm99, %v5321, 0.0
    %5324 = vadd.xlane.f32.xlu0 %v5323
    %v5325 = vpop.xlane.xlu0 %5324
    %v5326 = vsel %vm99, %v5322, 0.0
    %5327 = vadd.xlane.f32.xlu0 %v5326
    %v5328 = vpop.xlane.xlu0 %5327
    %v5329 = vmul.f32 %v5325, %v106
    %v5330 = vmul.f32 %v5328, %v106
    %v5331 = vsub.f32 %v5321, %v5329
    %v5332 = vsub.f32 %v5322, %v5330
    %v5333 = vmul.f32 %v5331, %v5331
    %v5334 = vmul.f32 %v5332, %v5332
    %v5335 = vsel %vm99, %v5333, 0.0
    %5336 = vadd.xlane.f32.xlu0 %v5335
    %v5337 = vpop.xlane.xlu0 %5336
    %v5338 = vsel %vm99, %v5334, 0.0
    %5339 = vadd.xlane.f32.xlu0 %v5338
    %v5340 = vpop.xlane.xlu0 %5339
    %v5341 = vmul.f32 %v5337, %v106
    %v5342 = vmul.f32 %v5340, %v106
    %v5343 = vadd.f32 %v5341, 1e-06
    %v5344 = vadd.f32 %v5342, 1e-06
    %v5345 = vrsqrt.pop %v5343
    %v5346 = vrsqrt.pop %v5344
    %v5347 = vmul.f32 %v5331, %v5345
    %v5348 = vmul.f32 %v5332, %v5346
    %v5349 = vld [vmem:[#allocation7 + $0x16] sm:$0x1]
    %v5350 = vlaneseq
    %v5351 = vshrl.u32 %v5350, 7
    %v5352 = vsub.s32 0, %v5351
    %v5353 = vrot.slane %v5349, %v5352
    %v5354 = vmul.f32 %v5347, %v5353
    %v5355 = vmul.f32 %v5348, %v5353
    %v5356 = vld [vmem:[#allocation7 + $0x17] sm:$0x1]
    %v5357 = vlaneseq
    %v5358 = vshrl.u32 %v5357, 7
    %v5359 = vsub.s32 0, %v5358
    %v5360 = vrot.slane %v5356, %v5359
    %v5361 = vadd.f32 %v5354, %v5360
    %v5362 = vadd.f32 %v5355, %v5360
    %v5363 = vld [vmem:[#allocation5 + $0x180] sm:$0xff]
    %v5364 = vld [vmem:[#allocation5 + $0x188] sm:$0xff]
    %v5365 = vld [vmem:[#allocation5 + $0x190] sm:$0xff]
    %v5366 = vld [vmem:[#allocation5 + $0x198] sm:$0xff]
    %v5367 = vld [vmem:[#allocation7 + $0x14] sm:$0x1]
    %v5368 = vlaneseq
    %v5369 = vshrl.u32 %v5368, 7
    %v5370 = vsub.s32 0, %v5369
    %v5371 = vrot.slane %v5367, %v5370
    %v5373 = vsel %vm99, %v5361, 0
    %v5376 = vsel %vm99, %v5362, 0
    %5378 = vmatprep.subr.mxu0 0.0
    %5379 = vmatpush1.msra.mxu0 %v5363
    %5380 = vmatprep.subr.mxu0 0.0
    %5381 = vmatpush1.msra.mxu0 %v5364
    %5382 = vmatprep.subr.mxu0 0.0
    %5383 = vmatpush1.msra.mxu0 %v5365
    %5384 = vmatprep.subr.mxu0 0.0
    %5385 = vmatpush1.msra.mxu0 %v5366
    %5386 = vmatprep.subr.mxu0 0.0
    %5387 = vmatpush1.msra.mxu0 0.0
    %5388 = vmatprep.subr.mxu0 0.0
    %5389 = vmatpush1.msra.mxu0 0.0
    %5390 = vmatprep.subr.mxu0 0.0
    %5391 = vmatpush1.msra.mxu0 0.0
    %5392 = vmatprep.subr.mxu0 0.0
    %5393 = vmatpush1.msra.mxu0 0.0
    %5394 = vmatprep.subr.mxu0 0.0
    %5395 = vmatpush1.msra.mxu0 0.0
    %5396 = vmatprep.subr.mxu0 0.0
    %5397 = vmatpush1.msra.mxu0 0.0
    %5398 = vmatprep.subr.mxu0 0.0
    %5399 = vmatpush1.msra.mxu0 0.0
    %5400 = vmatprep.subr.mxu0 0.0
    %5401 = vmatpush1.msra.mxu0 0.0
    %5402 = vmatprep.subr.mxu0 0.0
    %5403 = vmatpush1.msra.mxu0 0.0
    %5404 = vmatprep.subr.mxu0 0.0
    %5405 = vmatpush1.msra.mxu0 0.0
    %5406 = vmatprep.subr.mxu0 0.0
    %5407 = vmatpush1.msra.mxu0 0.0
    %5408 = vmatprep.subr.mxu0 0.0
    %5409 = vmatpush1.msra.mxu0 0.0
    %5410 = vmatprep.subr.mxu0 0.0
    %5411 = vmatpush1.msra.mxu0 0.0
    %5412 = vmatprep.subr.mxu0 0.0
    %5413 = vmatpush1.msra.mxu0 0.0
    %5414 = vmatprep.subr.mxu0 0.0
    %5415 = vmatpush1.msra.mxu0 0.0
    %5416 = vmatprep.subr.mxu0 0.0
    %5417 = vmatpush1.msra.mxu0 0.0
    %5418 = vmatprep.subr.mxu0 0.0
    %5419 = vmatpush1.msra.mxu0 0.0
    %5420 = vmatprep.subr.mxu0 0.0
    %5421 = vmatpush1.msra.mxu0 0.0
    %5422 = vmatprep.subr.mxu0 0.0
    %5423 = vmatpush1.msra.mxu0 0.0
    %5424 = vmatprep.subr.mxu0 0.0
    %5425 = vmatpush1.msra.mxu0 0.0
    %5426 = vmatprep.subr.mxu0 0.0
    %5427 = vmatpush1.msra.mxu0 0.0
    %5428 = vmatprep.subr.mxu0 0.0
    %5429 = vmatpush1.msra.mxu0 0.0
    %5430 = vmatprep.subr.mxu0 0.0
    %5431 = vmatpush1.msra.mxu0 0.0
    %5432 = vmatprep.subr.mxu0 0.0
    %5433 = vmatpush1.msra.mxu0 0.0
    %5434 = vmatprep.subr.mxu0 0.0
    %5435 = vmatpush1.msra.mxu0 0.0
    %5436 = vmatprep.subr.mxu0 0.0
    %5437 = vmatpush1.msra.mxu0 0.0
    %5438 = vmatprep.subr.mxu0 0.0
    %5439 = vmatpush1.msra.mxu0 0.0
    %5440 = vmatprep.subr.mxu0 0.0
    %5441 = vmatpush1.msra.mxu0 0.0
    %5442 = vmatprep.mubr.f32.mxu0 0.0
    %5443 = vmatmul.mubr.f32.gmra.mrb[0].mxu0 %v5373
    %v5444 = vpop.f32.mrb[0].mxu0
    %v5445 = vadd.f32 %v5371, %v5444
    %v5446 = vpop.f32.mrb[0].mxu0
    %5447 = vmatprep.mubr.f32.mxu0 0.0
    %5448 = vmatmul.mubr.f32.gmra.mrb[0].mxu0 %v5376
    %v5449 = vpop.f32.mrb[0].mxu0
    %v5450 = vadd.f32 %v5371, %v5449
    %v5451 = vpop.f32.mrb[0].mxu0
    %5452 = vdwg.mxu0
    %5457 = vrot.lane.b32.xlu0 %v5363, 96
    %v5458 = vpop.permute.xlu0 %5457
    %5459 = vrot.lane.b32.xlu0 %v5364, 96
    %v5460 = vpop.permute.xlu0 %5459
    %5461 = vrot.lane.b32.xlu0 %v5365, 96
    %v5462 = vpop.permute.xlu0 %5461
    %5463 = vrot.lane.b32.xlu0 %v5366, 96
    %v5464 = vpop.permute.xlu0 %5463
    %5470 = vrot.lane.b32.xlu0 %v5371, 96
    %v5471 = vpop.permute.xlu0 %5470
    %v5474 = vsel %vm99, %v3749, 0
    %v5477 = vsel %vm99, %v3750, 0
    %5479 = vmatprep.subr.mxu0 0.0
    %5480 = vmatpush1.msra.mxu0 %v5458
    %5481 = vmatprep.subr.mxu0 0.0
    %5482 = vmatpush1.msra.mxu0 %v5460
    %5483 = vmatprep.subr.mxu0 0.0
    %5484 = vmatpush1.msra.mxu0 %v5462
    %5485 = vmatprep.subr.mxu0 0.0
    %5486 = vmatpush1.msra.mxu0 %v5464
    %5487 = vmatprep.subr.mxu0 0.0
    %5488 = vmatpush1.msra.mxu0 0.0
    %5489 = vmatprep.subr.mxu0 0.0
    %5490 = vmatpush1.msra.mxu0 0.0
    %5491 = vmatprep.subr.mxu0 0.0
    %5492 = vmatpush1.msra.mxu0 0.0
    %5493 = vmatprep.subr.mxu0 0.0
    %5494 = vmatpush1.msra.mxu0 0.0
    %5495 = vmatprep.subr.mxu0 0.0
    %5496 = vmatpush1.msra.mxu0 0.0
    %5497 = vmatprep.subr.mxu0 0.0
    %5498 = vmatpush1.msra.mxu0 0.0
    %5499 = vmatprep.subr.mxu0 0.0
    %5500 = vmatpush1.msra.mxu0 0.0
    %5501 = vmatprep.subr.mxu0 0.0
    %5502 = vmatpush1.msra.mxu0 0.0
    %5503 = vmatprep.subr.mxu0 0.0
    %5504 = vmatpush1.msra.mxu0 0.0
    %5505 = vmatprep.subr.mxu0 0.0
    %5506 = vmatpush1.msra.mxu0 0.0
    %5507 = vmatprep.subr.mxu0 0.0
    %5508 = vmatpush1.msra.mxu0 0.0
    %5509 = vmatprep.subr.mxu0 0.0
    %5510 = vmatpush1.msra.mxu0 0.0
    %5511 = vmatprep.subr.mxu0 0.0
    %5512 = vmatpush1.msra.mxu0 0.0
    %5513 = vmatprep.subr.mxu0 0.0
    %5514 = vmatpush1.msra.mxu0 0.0
    %5515 = vmatprep.subr.mxu0 0.0
    %5516 = vmatpush1.msra.mxu0 0.0
    %5517 = vmatprep.subr.mxu0 0.0
    %5518 = vmatpush1.msra.mxu0 0.0
    %5519 = vmatprep.subr.mxu0 0.0
    %5520 = vmatpush1.msra.mxu0 0.0
    %5521 = vmatprep.subr.mxu0 0.0
    %5522 = vmatpush1.msra.mxu0 0.0
    %5523 = vmatprep.subr.mxu0 0.0
    %5524 = vmatpush1.msra.mxu0 0.0
    %5525 = vmatprep.subr.mxu0 0.0
    %5526 = vmatpush1.msra.mxu0 0.0
    %5527 = vmatprep.subr.mxu0 0.0
    %5528 = vmatpush1.msra.mxu0 0.0
    %5529 = vmatprep.subr.mxu0 0.0
    %5530 = vmatpush1.msra.mxu0 0.0
    %5531 = vmatprep.subr.mxu0 0.0
    %5532 = vmatpush1.msra.mxu0 0.0
    %5533 = vmatprep.subr.mxu0 0.0
    %5534 = vmatpush1.msra.mxu0 0.0
    %5535 = vmatprep.subr.mxu0 0.0
    %5536 = vmatpush1.msra.mxu0 0.0
    %5537 = vmatprep.subr.mxu0 0.0
    %5538 = vmatpush1.msra.mxu0 0.0
    %5539 = vmatprep.subr.mxu0 0.0
    %5540 = vmatpush1.msra.mxu0 0.0
    %5541 = vmatprep.subr.mxu0 0.0
    %5542 = vmatpush1.msra.mxu0 0.0
    %5543 = vmatprep.mubr.f32.mxu0 0.0
    %5544 = vmatmul.mubr.f32.gmra.mrb[0].mxu0 %v5474
    %v5545 = vpop.f32.mrb[0].mxu0
    %v5546 = vadd.f32 %v5471, %v5545
    %v5547 = vpop.f32.mrb[0].mxu0
    %5548 = vmatprep.mubr.f32.mxu0 0.0
    %5549 = vmatmul.mubr.f32.gmra.mrb[0].mxu0 %v5477
    %v5550 = vpop.f32.mrb[0].mxu0
    %v5551 = vadd.f32 %v5471, %v5550
    %v5552 = vpop.f32.mrb[0].mxu0
    %5553 = vdwg.mxu0
    %5556 = vrot.lane.b32.xlu0 %v5445, 120
    %v5557 = vpop.permute.xlu0 %5556
    %5558 = vrot.lane.b32.xlu0 %v5450, 120
    %v5559 = vpop.permute.xlu0 %5558
    %5560 = vrot.lane.b32.xlu0 %v5445, 112
    %v5561 = vpop.permute.xlu0 %5560
    %5562 = vrot.lane.b32.xlu0 %v5450, 112
    %v5563 = vpop.permute.xlu0 %5562
    %5564 = vrot.lane.b32.xlu0 %v5445, 104
    %v5565 = vpop.permute.xlu0 %5564
    %5566 = vrot.lane.b32.xlu0 %v5450, 104
    %v5567 = vpop.permute.xlu0 %5566
    %5570 = vrot.lane.b32.xlu0 %v5546, 120
    %v5571 = vpop.permute.xlu0 %5570
    %5572 = vrot.lane.b32.xlu0 %v5551, 120
    %v5573 = vpop.permute.xlu0 %5572
    %5574 = vrot.lane.b32.xlu0 %v5546, 112
    %v5575 = vpop.permute.xlu0 %5574
    %5576 = vrot.lane.b32.xlu0 %v5551, 112
    %v5577 = vpop.permute.xlu0 %5576
    %5578 = vrot.lane.b32.xlu0 %v5546, 104
    %v5579 = vpop.permute.xlu0 %5578
    %5580 = vrot.lane.b32.xlu0 %v5551, 104
    %v5581 = vpop.permute.xlu0 %5580
    %v5582 = vsel %vm257, %v5445, 0
    %v5584 = vsel %vm257, %v5546, 0
    %5586 = vmatprep.subr.mxu0 0.0
    %5587 = vmatpush1.xpose.msra.mxu0 %v5584
    %5588 = vmatprep.subr.mxu0 0.0
    %5589 = vmatpush1.xpose.msra.mxu0 0.0
    %5590 = vmatprep.subr.mxu0 0.0
    %5591 = vmatpush1.xpose.msra.mxu0 0.0
    %5592 = vmatprep.subr.mxu0 0.0
    %5593 = vmatpush1.xpose.msra.mxu0 0.0
    %5594 = vmatprep.subr.mxu0 0.0
    %5595 = vmatpush1.xpose.msra.mxu0 0.0
    %5596 = vmatprep.subr.mxu0 0.0
    %5597 = vmatpush1.xpose.msra.mxu0 0.0
    %5598 = vmatprep.subr.mxu0 0.0
    %5599 = vmatpush1.xpose.msra.mxu0 0.0
    %5600 = vmatprep.subr.mxu0 0.0
    %5601 = vmatpush1.xpose.msra.mxu0 0.0
    %5602 = vmatprep.subr.mxu0 0.0
    %5603 = vmatpush1.xpose.msra.mxu0 0.0
    %5604 = vmatprep.subr.mxu0 0.0
    %5605 = vmatpush1.xpose.msra.mxu0 0.0
    %5606 = vmatprep.subr.mxu0 0.0
    %5607 = vmatpush1.xpose.msra.mxu0 0.0
    %5608 = vmatprep.subr.mxu0 0.0
    %5609 = vmatpush1.xpose.msra.mxu0 0.0
    %5610 = vmatprep.subr.mxu0 0.0
    %5611 = vmatpush1.xpose.msra.mxu0 0.0
    %5612 = vmatprep.subr.mxu0 0.0
    %5613 = vmatpush1.xpose.msra.mxu0 0.0
    %5614 = vmatprep.subr.mxu0 0.0
    %5615 = vmatpush1.xpose.msra.mxu0 0.0
    %5616 = vmatprep.subr.mxu0 0.0
    %5617 = vmatpush1.xpose.msra.mxu0 0.0
    %5618 = vmatprep.subr.mxu0 0.0
    %5619 = vmatpush1.xpose.msra.mxu0 0.0
    %5620 = vmatprep.subr.mxu0 0.0
    %5621 = vmatpush1.xpose.msra.mxu0 0.0
    %5622 = vmatprep.subr.mxu0 0.0
    %5623 = vmatpush1.xpose.msra.mxu0 0.0
    %5624 = vmatprep.subr.mxu0 0.0
    %5625 = vmatpush1.xpose.msra.mxu0 0.0
    %5626 = vmatprep.subr.mxu0 0.0
    %5627 = vmatpush1.xpose.msra.mxu0 0.0
    %5628 = vmatprep.subr.mxu0 0.0
    %5629 = vmatpush1.xpose.msra.mxu0 0.0
    %5630 = vmatprep.subr.mxu0 0.0
    %5631 = vmatpush1.xpose.msra.mxu0 0.0
    %5632 = vmatprep.subr.mxu0 0.0
    %5633 = vmatpush1.xpose.msra.mxu0 0.0
    %5634 = vmatprep.subr.mxu0 0.0
    %5635 = vmatpush1.xpose.msra.mxu0 0.0
    %5636 = vmatprep.subr.mxu0 0.0
    %5637 = vmatpush1.xpose.msra.mxu0 0.0
    %5638 = vmatprep.subr.mxu0 0.0
    %5639 = vmatpush1.xpose.msra.mxu0 0.0
    %5640 = vmatprep.subr.mxu0 0.0
    %5641 = vmatpush1.xpose.msra.mxu0 0.0
    %5642 = vmatprep.subr.mxu0 0.0
    %5643 = vmatpush1.xpose.msra.mxu0 0.0
    %5644 = vmatprep.subr.mxu0 0.0
    %5645 = vmatpush1.xpose.msra.mxu0 0.0
    %5646 = vmatprep.subr.mxu0 0.0
    %5647 = vmatpush1.xpose.msra.mxu0 0.0
    %5648 = vmatprep.subr.mxu0 0.0
    %5649 = vmatpush1.xpose.msra.mxu0 0.0
    %5650 = vmatprep.mubr.f32.mxu0 0.0
    %5651 = vmatmul.mubr.f32.gmra.mrb[0].mxu0 %v5582
    %v5652 = vpop.f32.mrb[0].mxu0
    %v5653 = vadd.f32 %v248, %v5652
    %v5654 = vpop.f32.mrb[0].mxu0
    %5655 = vdwg.mxu0
    %v5656 = vsel %vm257, %v5450, 0
    %v5658 = vsel %vm257, %v5551, 0
    %5660 = vmatprep.subr.mxu0 0.0
    %5661 = vmatpush1.xpose.msra.mxu0 %v5658
    %5662 = vmatprep.subr.mxu0 0.0
    %5663 = vmatpush1.xpose.msra.mxu0 0.0
    %5664 = vmatprep.subr.mxu0 0.0
    %5665 = vmatpush1.xpose.msra.mxu0 0.0
    %5666 = vmatprep.subr.mxu0 0.0
    %5667 = vmatpush1.xpose.msra.mxu0 0.0
    %5668 = vmatprep.subr.mxu0 0.0
    %5669 = vmatpush1.xpose.msra.mxu0 0.0
    %5670 = vmatprep.subr.mxu0 0.0
    %5671 = vmatpush1.xpose.msra.mxu0 0.0
    %5672 = vmatprep.subr.mxu0 0.0
    %5673 = vmatpush1.xpose.msra.mxu0 0.0
    %5674 = vmatprep.subr.mxu0 0.0
    %5675 = vmatpush1.xpose.msra.mxu0 0.0
    %5676 = vmatprep.subr.mxu0 0.0
    %5677 = vmatpush1.xpose.msra.mxu0 0.0
    %5678 = vmatprep.subr.mxu0 0.0
    %5679 = vmatpush1.xpose.msra.mxu0 0.0
    %5680 = vmatprep.subr.mxu0 0.0
    %5681 = vmatpush1.xpose.msra.mxu0 0.0
    %5682 = vmatprep.subr.mxu0 0.0
    %5683 = vmatpush1.xpose.msra.mxu0 0.0
    %5684 = vmatprep.subr.mxu0 0.0
    %5685 = vmatpush1.xpose.msra.mxu0 0.0
    %5686 = vmatprep.subr.mxu0 0.0
    %5687 = vmatpush1.xpose.msra.mxu0 0.0
    %5688 = vmatprep.subr.mxu0 0.0
    %5689 = vmatpush1.xpose.msra.mxu0 0.0
    %5690 = vmatprep.subr.mxu0 0.0
    %5691 = vmatpush1.xpose.msra.mxu0 0.0
    %5692 = vmatprep.subr.mxu0 0.0
    %5693 = vmatpush1.xpose.msra.mxu0 0.0
    %5694 = vmatprep.subr.mxu0 0.0
    %5695 = vmatpush1.xpose.msra.mxu0 0.0
    %5696 = vmatprep.subr.mxu0 0.0
    %5697 = vmatpush1.xpose.msra.mxu0 0.0
    %5698 = vmatprep.subr.mxu0 0.0
    %5699 = vmatpush1.xpose.msra.mxu0 0.0
    %5700 = vmatprep.subr.mxu0 0.0
    %5701 = vmatpush1.xpose.msra.mxu0 0.0
    %5702 = vmatprep.subr.mxu0 0.0
    %5703 = vmatpush1.xpose.msra.mxu0 0.0
    %5704 = vmatprep.subr.mxu0 0.0
    %5705 = vmatpush1.xpose.msra.mxu0 0.0
    %5706 = vmatprep.subr.mxu0 0.0
    %5707 = vmatpush1.xpose.msra.mxu0 0.0
    %5708 = vmatprep.subr.mxu0 0.0
    %5709 = vmatpush1.xpose.msra.mxu0 0.0
    %5710 = vmatprep.subr.mxu0 0.0
    %5711 = vmatpush1.xpose.msra.mxu0 0.0
    %5712 = vmatprep.subr.mxu0 0.0
    %5713 = vmatpush1.xpose.msra.mxu0 0.0
    %5714 = vmatprep.subr.mxu0 0.0
    %5715 = vmatpush1.xpose.msra.mxu0 0.0
    %5716 = vmatprep.subr.mxu0 0.0
    %5717 = vmatpush1.xpose.msra.mxu0 0.0
    %5718 = vmatprep.subr.mxu0 0.0
    %5719 = vmatpush1.xpose.msra.mxu0 0.0
    %5720 = vmatprep.subr.mxu0 0.0
    %5721 = vmatpush1.xpose.msra.mxu0 0.0
    %5722 = vmatprep.subr.mxu0 0.0
    %5723 = vmatpush1.xpose.msra.mxu0 0.0
    %5724 = vmatprep.mubr.f32.mxu0 0.0
    %5725 = vmatmul.mubr.f32.gmra.mrb[0].mxu0 %v5656
    %v5726 = vpop.f32.mrb[0].mxu0
    %v5727 = vadd.f32 %v252, %v5726
    %v5728 = vpop.f32.mrb[0].mxu0
    %5729 = vdwg.mxu0
    %v5730 = vsel %vm257, %v5557, 0
    %v5732 = vsel %vm257, %v5571, 0
    %5734 = vmatprep.subr.mxu0 0.0
    %5735 = vmatpush1.xpose.msra.mxu0 %v5732
    %5736 = vmatprep.subr.mxu0 0.0
    %5737 = vmatpush1.xpose.msra.mxu0 0.0
    %5738 = vmatprep.subr.mxu0 0.0
    %5739 = vmatpush1.xpose.msra.mxu0 0.0
    %5740 = vmatprep.subr.mxu0 0.0
    %5741 = vmatpush1.xpose.msra.mxu0 0.0
    %5742 = vmatprep.subr.mxu0 0.0
    %5743 = vmatpush1.xpose.msra.mxu0 0.0
    %5744 = vmatprep.subr.mxu0 0.0
    %5745 = vmatpush1.xpose.msra.mxu0 0.0
    %5746 = vmatprep.subr.mxu0 0.0
    %5747 = vmatpush1.xpose.msra.mxu0 0.0
    %5748 = vmatprep.subr.mxu0 0.0
    %5749 = vmatpush1.xpose.msra.mxu0 0.0
    %5750 = vmatprep.subr.mxu0 0.0
    %5751 = vmatpush1.xpose.msra.mxu0 0.0
    %5752 = vmatprep.subr.mxu0 0.0
    %5753 = vmatpush1.xpose.msra.mxu0 0.0
    %5754 = vmatprep.subr.mxu0 0.0
    %5755 = vmatpush1.xpose.msra.mxu0 0.0
    %5756 = vmatprep.subr.mxu0 0.0
    %5757 = vmatpush1.xpose.msra.mxu0 0.0
    %5758 = vmatprep.subr.mxu0 0.0
    %5759 = vmatpush1.xpose.msra.mxu0 0.0
    %5760 = vmatprep.subr.mxu0 0.0
    %5761 = vmatpush1.xpose.msra.mxu0 0.0
    %5762 = vmatprep.subr.mxu0 0.0
    %5763 = vmatpush1.xpose.msra.mxu0 0.0
    %5764 = vmatprep.subr.mxu0 0.0
    %5765 = vmatpush1.xpose.msra.mxu0 0.0
    %5766 = vmatprep.subr.mxu0 0.0
    %5767 = vmatpush1.xpose.msra.mxu0 0.0
    %5768 = vmatprep.subr.mxu0 0.0
    %5769 = vmatpush1.xpose.msra.mxu0 0.0
    %5770 = vmatprep.subr.mxu0 0.0
    %5771 = vmatpush1.xpose.msra.mxu0 0.0
    %5772 = vmatprep.subr.mxu0 0.0
    %5773 = vmatpush1.xpose.msra.mxu0 0.0
    %5774 = vmatprep.subr.mxu0 0.0
    %5775 = vmatpush1.xpose.msra.mxu0 0.0
    %5776 = vmatprep.subr.mxu0 0.0
    %5777 = vmatpush1.xpose.msra.mxu0 0.0
    %5778 = vmatprep.subr.mxu0 0.0
    %5779 = vmatpush1.xpose.msra.mxu0 0.0
    %5780 = vmatprep.subr.mxu0 0.0
    %5781 = vmatpush1.xpose.msra.mxu0 0.0
    %5782 = vmatprep.subr.mxu0 0.0
    %5783 = vmatpush1.xpose.msra.mxu0 0.0
    %5784 = vmatprep.subr.mxu0 0.0
    %5785 = vmatpush1.xpose.msra.mxu0 0.0
    %5786 = vmatprep.subr.mxu0 0.0
    %5787 = vmatpush1.xpose.msra.mxu0 0.0
    %5788 = vmatprep.subr.mxu0 0.0
    %5789 = vmatpush1.xpose.msra.mxu0 0.0
    %5790 = vmatprep.subr.mxu0 0.0
    %5791 = vmatpush1.xpose.msra.mxu0 0.0
    %5792 = vmatprep.subr.mxu0 0.0
    %5793 = vmatpush1.xpose.msra.mxu0 0.0
    %5794 = vmatprep.subr.mxu0 0.0
    %5795 = vmatpush1.xpose.msra.mxu0 0.0
    %5796 = vmatprep.subr.mxu0 0.0
    %5797 = vmatpush1.xpose.msra.mxu0 0.0
    %5798 = vmatprep.mubr.f32.mxu0 0.0
    %5799 = vmatmul.mubr.f32.gmra.mrb[0].mxu0 %v5730
    %v5800 = vpop.f32.mrb[0].mxu0
    %v5801 = vadd.f32 %v248, %v5800
    %v5802 = vpop.f32.mrb[0].mxu0
    %5803 = vdwg.mxu0
    %v5804 = vsel %vm257, %v5559, 0
    %v5806 = vsel %vm257, %v5573, 0
    %5808 = vmatprep.subr.mxu0 0.0
    %5809 = vmatpush1.xpose.msra.mxu0 %v5806
    %5810 = vmatprep.subr.mxu0 0.0
    %5811 = vmatpush1.xpose.msra.mxu0 0.0
    %5812 = vmatprep.subr.mxu0 0.0
    %5813 = vmatpush1.xpose.msra.mxu0 0.0
    %5814 = vmatprep.subr.mxu0 0.0
    %5815 = vmatpush1.xpose.msra.mxu0 0.0
    %5816 = vmatprep.subr.mxu0 0.0
    %5817 = vmatpush1.xpose.msra.mxu0 0.0
    %5818 = vmatprep.subr.mxu0 0.0
    %5819 = vmatpush1.xpose.msra.mxu0 0.0
    %5820 = vmatprep.subr.mxu0 0.0
    %5821 = vmatpush1.xpose.msra.mxu0 0.0
    %5822 = vmatprep.subr.mxu0 0.0
    %5823 = vmatpush1.xpose.msra.mxu0 0.0
    %5824 = vmatprep.subr.mxu0 0.0
    %5825 = vmatpush1.xpose.msra.mxu0 0.0
    %5826 = vmatprep.subr.mxu0 0.0
    %5827 = vmatpush1.xpose.msra.mxu0 0.0
    %5828 = vmatprep.subr.mxu0 0.0
    %5829 = vmatpush1.xpose.msra.mxu0 0.0
    %5830 = vmatprep.subr.mxu0 0.0
    %5831 = vmatpush1.xpose.msra.mxu0 0.0
    %5832 = vmatprep.subr.mxu0 0.0
    %5833 = vmatpush1.xpose.msra.mxu0 0.0
    %5834 = vmatprep.subr.mxu0 0.0
    %5835 = vmatpush1.xpose.msra.mxu0 0.0
    %5836 = vmatprep.subr.mxu0 0.0
    %5837 = vmatpush1.xpose.msra.mxu0 0.0
    %5838 = vmatprep.subr.mxu0 0.0
    %5839 = vmatpush1.xpose.msra.mxu0 0.0
    %5840 = vmatprep.subr.mxu0 0.0
    %5841 = vmatpush1.xpose.msra.mxu0 0.0
    %5842 = vmatprep.subr.mxu0 0.0
    %5843 = vmatpush1.xpose.msra.mxu0 0.0
    %5844 = vmatprep.subr.mxu0 0.0
    %5845 = vmatpush1.xpose.msra.mxu0 0.0
    %5846 = vmatprep.subr.mxu0 0.0
    %5847 = vmatpush1.xpose.msra.mxu0 0.0
    %5848 = vmatprep.subr.mxu0 0.0
    %5849 = vmatpush1.xpose.msra.mxu0 0.0
    %5850 = vmatprep.subr.mxu0 0.0
    %5851 = vmatpush1.xpose.msra.mxu0 0.0
    %5852 = vmatprep.subr.mxu0 0.0
    %5853 = vmatpush1.xpose.msra.mxu0 0.0
    %5854 = vmatprep.subr.mxu0 0.0
    %5855 = vmatpush1.xpose.msra.mxu0 0.0
    %5856 = vmatprep.subr.mxu0 0.0
    %5857 = vmatpush1.xpose.msra.mxu0 0.0
    %5858 = vmatprep.subr.mxu0 0.0
    %5859 = vmatpush1.xpose.msra.mxu0 0.0
    %5860 = vmatprep.subr.mxu0 0.0
    %5861 = vmatpush1.xpose.msra.mxu0 0.0
    %5862 = vmatprep.subr.mxu0 0.0
    %5863 = vmatpush1.xpose.msra.mxu0 0.0
    %5864 = vmatprep.subr.mxu0 0.0
    %5865 = vmatpush1.xpose.msra.mxu0 0.0
    %5866 = vmatprep.subr.mxu0 0.0
    %5867 = vmatpush1.xpose.msra.mxu0 0.0
    %5868 = vmatprep.subr.mxu0 0.0
    %5869 = vmatpush1.xpose.msra.mxu0 0.0
    %5870 = vmatprep.subr.mxu0 0.0
    %5871 = vmatpush1.xpose.msra.mxu0 0.0
    %5872 = vmatprep.mubr.f32.mxu0 0.0
    %5873 = vmatmul.mubr.f32.gmra.mrb[0].mxu0 %v5804
    %v5874 = vpop.f32.mrb[0].mxu0
    %v5875 = vadd.f32 %v252, %v5874
    %v5876 = vpop.f32.mrb[0].mxu0
    %5877 = vdwg.mxu0
    %v5878 = vsel %vm257, %v5561, 0
    %v5880 = vsel %vm257, %v5575, 0
    %5882 = vmatprep.subr.mxu0 0.0
    %5883 = vmatpush1.xpose.msra.mxu0 %v5880
    %5884 = vmatprep.subr.mxu0 0.0
    %5885 = vmatpush1.xpose.msra.mxu0 0.0
    %5886 = vmatprep.subr.mxu0 0.0
    %5887 = vmatpush1.xpose.msra.mxu0 0.0
    %5888 = vmatprep.subr.mxu0 0.0
    %5889 = vmatpush1.xpose.msra.mxu0 0.0
    %5890 = vmatprep.subr.mxu0 0.0
    %5891 = vmatpush1.xpose.msra.mxu0 0.0
    %5892 = vmatprep.subr.mxu0 0.0
    %5893 = vmatpush1.xpose.msra.mxu0 0.0
    %5894 = vmatprep.subr.mxu0 0.0
    %5895 = vmatpush1.xpose.msra.mxu0 0.0
    %5896 = vmatprep.subr.mxu0 0.0
    %5897 = vmatpush1.xpose.msra.mxu0 0.0
    %5898 = vmatprep.subr.mxu0 0.0
    %5899 = vmatpush1.xpose.msra.mxu0 0.0
    %5900 = vmatprep.subr.mxu0 0.0
    %5901 = vmatpush1.xpose.msra.mxu0 0.0
    %5902 = vmatprep.subr.mxu0 0.0
    %5903 = vmatpush1.xpose.msra.mxu0 0.0
    %5904 = vmatprep.subr.mxu0 0.0
    %5905 = vmatpush1.xpose.msra.mxu0 0.0
    %5906 = vmatprep.subr.mxu0 0.0
    %5907 = vmatpush1.xpose.msra.mxu0 0.0
    %5908 = vmatprep.subr.mxu0 0.0
    %5909 = vmatpush1.xpose.msra.mxu0 0.0
    %5910 = vmatprep.subr.mxu0 0.0
    %5911 = vmatpush1.xpose.msra.mxu0 0.0
    %5912 = vmatprep.subr.mxu0 0.0
    %5913 = vmatpush1.xpose.msra.mxu0 0.0
    %5914 = vmatprep.subr.mxu0 0.0
    %5915 = vmatpush1.xpose.msra.mxu0 0.0
    %5916 = vmatprep.subr.mxu0 0.0
    %5917 = vmatpush1.xpose.msra.mxu0 0.0
    %5918 = vmatprep.subr.mxu0 0.0
    %5919 = vmatpush1.xpose.msra.mxu0 0.0
    %5920 = vmatprep.subr.mxu0 0.0
    %5921 = vmatpush1.xpose.msra.mxu0 0.0
    %5922 = vmatprep.subr.mxu0 0.0
    %5923 = vmatpush1.xpose.msra.mxu0 0.0
    %5924 = vmatprep.subr.mxu0 0.0
    %5925 = vmatpush1.xpose.msra.mxu0 0.0
    %5926 = vmatprep.subr.mxu0 0.0
    %5927 = vmatpush1.xpose.msra.mxu0 0.0
    %5928 = vmatprep.subr.mxu0 0.0
    %5929 = vmatpush1.xpose.msra.mxu0 0.0
    %5930 = vmatprep.subr.mxu0 0.0
    %5931 = vmatpush1.xpose.msra.mxu0 0.0
    %5932 = vmatprep.subr.mxu0 0.0
    %5933 = vmatpush1.xpose.msra.mxu0 0.0
    %5934 = vmatprep.subr.mxu0 0.0
    %5935 = vmatpush1.xpose.msra.mxu0 0.0
    %5936 = vmatprep.subr.mxu0 0.0
    %5937 = vmatpush1.xpose.msra.mxu0 0.0
    %5938 = vmatprep.subr.mxu0 0.0
    %5939 = vmatpush1.xpose.msra.mxu0 0.0
    %5940 = vmatprep.subr.mxu0 0.0
    %5941 = vmatpush1.xpose.msra.mxu0 0.0
    %5942 = vmatprep.subr.mxu0 0.0
    %5943 = vmatpush1.xpose.msra.mxu0 0.0
    %5944 = vmatprep.subr.mxu0 0.0
    %5945 = vmatpush1.xpose.msra.mxu0 0.0
    %5946 = vmatprep.mubr.f32.mxu0 0.0
    %5947 = vmatmul.mubr.f32.gmra.mrb[0].mxu0 %v5878
    %v5948 = vpop.f32.mrb[0].mxu0
    %v5949 = vadd.f32 %v248, %v5948
    %v5950 = vpop.f32.mrb[0].mxu0
    %5951 = vdwg.mxu0
    %v5952 = vsel %vm257, %v5563, 0
    %v5954 = vsel %vm257, %v5577, 0
    %5956 = vmatprep.subr.mxu0 0.0
    %5957 = vmatpush1.xpose.msra.mxu0 %v5954
    %5958 = vmatprep.subr.mxu0 0.0
    %5959 = vmatpush1.xpose.msra.mxu0 0.0
    %5960 = vmatprep.subr.mxu0 0.0
    %5961 = vmatpush1.xpose.msra.mxu0 0.0
    %5962 = vmatprep.subr.mxu0 0.0
    %5963 = vmatpush1.xpose.msra.mxu0 0.0
    %5964 = vmatprep.subr.mxu0 0.0
    %5965 = vmatpush1.xpose.msra.mxu0 0.0
    %5966 = vmatprep.subr.mxu0 0.0
    %5967 = vmatpush1.xpose.msra.mxu0 0.0
    %5968 = vmatprep.subr.mxu0 0.0
    %5969 = vmatpush1.xpose.msra.mxu0 0.0
    %5970 = vmatprep.subr.mxu0 0.0
    %5971 = vmatpush1.xpose.msra.mxu0 0.0
    %5972 = vmatprep.subr.mxu0 0.0
    %5973 = vmatpush1.xpose.msra.mxu0 0.0
    %5974 = vmatprep.subr.mxu0 0.0
    %5975 = vmatpush1.xpose.msra.mxu0 0.0
    %5976 = vmatprep.subr.mxu0 0.0
    %5977 = vmatpush1.xpose.msra.mxu0 0.0
    %5978 = vmatprep.subr.mxu0 0.0
    %5979 = vmatpush1.xpose.msra.mxu0 0.0
    %5980 = vmatprep.subr.mxu0 0.0
    %5981 = vmatpush1.xpose.msra.mxu0 0.0
    %5982 = vmatprep.subr.mxu0 0.0
    %5983 = vmatpush1.xpose.msra.mxu0 0.0
    %5984 = vmatprep.subr.mxu0 0.0
    %5985 = vmatpush1.xpose.msra.mxu0 0.0
    %5986 = vmatprep.subr.mxu0 0.0
    %5987 = vmatpush1.xpose.msra.mxu0 0.0
    %5988 = vmatprep.subr.mxu0 0.0
    %5989 = vmatpush1.xpose.msra.mxu0 0.0
    %5990 = vmatprep.subr.mxu0 0.0
    %5991 = vmatpush1.xpose.msra.mxu0 0.0
    %5992 = vmatprep.subr.mxu0 0.0
    %5993 = vmatpush1.xpose.msra.mxu0 0.0
    %5994 = vmatprep.subr.mxu0 0.0
    %5995 = vmatpush1.xpose.msra.mxu0 0.0
    %5996 = vmatprep.subr.mxu0 0.0
    %5997 = vmatpush1.xpose.msra.mxu0 0.0
    %5998 = vmatprep.subr.mxu0 0.0
    %5999 = vmatpush1.xpose.msra.mxu0 0.0
    %6000 = vmatprep.subr.mxu0 0.0
    %6001 = vmatpush1.xpose.msra.mxu0 0.0
    %6002 = vmatprep.subr.mxu0 0.0
    %6003 = vmatpush1.xpose.msra.mxu0 0.0
    %6004 = vmatprep.subr.mxu0 0.0
    %6005 = vmatpush1.xpose.msra.mxu0 0.0
    %6006 = vmatprep.subr.mxu0 0.0
    %6007 = vmatpush1.xpose.msra.mxu0 0.0
    %6008 = vmatprep.subr.mxu0 0.0
    %6009 = vmatpush1.xpose.msra.mxu0 0.0
    %6010 = vmatprep.subr.mxu0 0.0
    %6011 = vmatpush1.xpose.msra.mxu0 0.0
    %6012 = vmatprep.subr.mxu0 0.0
    %6013 = vmatpush1.xpose.msra.mxu0 0.0
    %6014 = vmatprep.subr.mxu0 0.0
    %6015 = vmatpush1.xpose.msra.mxu0 0.0
    %6016 = vmatprep.subr.mxu0 0.0
    %6017 = vmatpush1.xpose.msra.mxu0 0.0
    %6018 = vmatprep.subr.mxu0 0.0
    %6019 = vmatpush1.xpose.msra.mxu0 0.0
    %6020 = vmatprep.mubr.f32.mxu0 0.0
    %6021 = vmatmul.mubr.f32.gmra.mrb[0].mxu0 %v5952
    %v6022 = vpop.f32.mrb[0].mxu0
    %v6023 = vadd.f32 %v252, %v6022
    %v6024 = vpop.f32.mrb[0].mxu0
    %6025 = vdwg.mxu0
    %v6026 = vsel %vm257, %v5565, 0
    %v6028 = vsel %vm257, %v5579, 0
    %6030 = vmatprep.subr.mxu0 0.0
    %6031 = vmatpush1.xpose.msra.mxu0 %v6028
    %6032 = vmatprep.subr.mxu0 0.0
    %6033 = vmatpush1.xpose.msra.mxu0 0.0
    %6034 = vmatprep.subr.mxu0 0.0
    %6035 = vmatpush1.xpose.msra.mxu0 0.0
    %6036 = vmatprep.subr.mxu0 0.0
    %6037 = vmatpush1.xpose.msra.mxu0 0.0
    %6038 = vmatprep.subr.mxu0 0.0
    %6039 = vmatpush1.xpose.msra.mxu0 0.0
    %6040 = vmatprep.subr.mxu0 0.0
    %6041 = vmatpush1.xpose.msra.mxu0 0.0
    %6042 = vmatprep.subr.mxu0 0.0
    %6043 = vmatpush1.xpose.msra.mxu0 0.0
    %6044 = vmatprep.subr.mxu0 0.0
    %6045 = vmatpush1.xpose.msra.mxu0 0.0
    %6046 = vmatprep.subr.mxu0 0.0
    %6047 = vmatpush1.xpose.msra.mxu0 0.0
    %6048 = vmatprep.subr.mxu0 0.0
    %6049 = vmatpush1.xpose.msra.mxu0 0.0
    %6050 = vmatprep.subr.mxu0 0.0
    %6051 = vmatpush1.xpose.msra.mxu0 0.0
    %6052 = vmatprep.subr.mxu0 0.0
    %6053 = vmatpush1.xpose.msra.mxu0 0.0
    %6054 = vmatprep.subr.mxu0 0.0
    %6055 = vmatpush1.xpose.msra.mxu0 0.0
    %6056 = vmatprep.subr.mxu0 0.0
    %6057 = vmatpush1.xpose.msra.mxu0 0.0
    %6058 = vmatprep.subr.mxu0 0.0
    %6059 = vmatpush1.xpose.msra.mxu0 0.0
    %6060 = vmatprep.subr.mxu0 0.0
    %6061 = vmatpush1.xpose.msra.mxu0 0.0
    %6062 = vmatprep.subr.mxu0 0.0
    %6063 = vmatpush1.xpose.msra.mxu0 0.0
    %6064 = vmatprep.subr.mxu0 0.0
    %6065 = vmatpush1.xpose.msra.mxu0 0.0
    %6066 = vmatprep.subr.mxu0 0.0
    %6067 = vmatpush1.xpose.msra.mxu0 0.0
    %6068 = vmatprep.subr.mxu0 0.0
    %6069 = vmatpush1.xpose.msra.mxu0 0.0
    %6070 = vmatprep.subr.mxu0 0.0
    %6071 = vmatpush1.xpose.msra.mxu0 0.0
    %6072 = vmatprep.subr.mxu0 0.0
    %6073 = vmatpush1.xpose.msra.mxu0 0.0
    %6074 = vmatprep.subr.mxu0 0.0
    %6075 = vmatpush1.xpose.msra.mxu0 0.0
    %6076 = vmatprep.subr.mxu0 0.0
    %6077 = vmatpush1.xpose.msra.mxu0 0.0
    %6078 = vmatprep.subr.mxu0 0.0
    %6079 = vmatpush1.xpose.msra.mxu0 0.0
    %6080 = vmatprep.subr.mxu0 0.0
    %6081 = vmatpush1.xpose.msra.mxu0 0.0
    %6082 = vmatprep.subr.mxu0 0.0
    %6083 = vmatpush1.xpose.msra.mxu0 0.0
    %6084 = vmatprep.subr.mxu0 0.0
    %6085 = vmatpush1.xpose.msra.mxu0 0.0
    %6086 = vmatprep.subr.mxu0 0.0
    %6087 = vmatpush1.xpose.msra.mxu0 0.0
    %6088 = vmatprep.subr.mxu0 0.0
    %6089 = vmatpush1.xpose.msra.mxu0 0.0
    %6090 = vmatprep.subr.mxu0 0.0
    %6091 = vmatpush1.xpose.msra.mxu0 0.0
    %6092 = vmatprep.subr.mxu0 0.0
    %6093 = vmatpush1.xpose.msra.mxu0 0.0
    %6094 = vmatprep.mubr.f32.mxu0 0.0
    %6095 = vmatmul.mubr.f32.gmra.mrb[0].mxu0 %v6026
    %v6096 = vpop.f32.mrb[0].mxu0
    %v6097 = vadd.f32 %v248, %v6096
    %v6098 = vpop.f32.mrb[0].mxu0
    %6099 = vdwg.mxu0
    %v6100 = vsel %vm257, %v5567, 0
    %v6102 = vsel %vm257, %v5581, 0
    %6104 = vmatprep.subr.mxu0 0.0
    %6105 = vmatpush1.xpose.msra.mxu0 %v6102
    %6106 = vmatprep.subr.mxu0 0.0
    %6107 = vmatpush1.xpose.msra.mxu0 0.0
    %6108 = vmatprep.subr.mxu0 0.0
    %6109 = vmatpush1.xpose.msra.mxu0 0.0
    %6110 = vmatprep.subr.mxu0 0.0
    %6111 = vmatpush1.xpose.msra.mxu0 0.0
    %6112 = vmatprep.subr.mxu0 0.0
    %6113 = vmatpush1.xpose.msra.mxu0 0.0
    %6114 = vmatprep.subr.mxu0 0.0
    %6115 = vmatpush1.xpose.msra.mxu0 0.0
    %6116 = vmatprep.subr.mxu0 0.0
    %6117 = vmatpush1.xpose.msra.mxu0 0.0
    %6118 = vmatprep.subr.mxu0 0.0
    %6119 = vmatpush1.xpose.msra.mxu0 0.0
    %6120 = vmatprep.subr.mxu0 0.0
    %6121 = vmatpush1.xpose.msra.mxu0 0.0
    %6122 = vmatprep.subr.mxu0 0.0
    %6123 = vmatpush1.xpose.msra.mxu0 0.0
    %6124 = vmatprep.subr.mxu0 0.0
    %6125 = vmatpush1.xpose.msra.mxu0 0.0
    %6126 = vmatprep.subr.mxu0 0.0
    %6127 = vmatpush1.xpose.msra.mxu0 0.0
    %6128 = vmatprep.subr.mxu0 0.0
    %6129 = vmatpush1.xpose.msra.mxu0 0.0
    %6130 = vmatprep.subr.mxu0 0.0
    %6131 = vmatpush1.xpose.msra.mxu0 0.0
    %6132 = vmatprep.subr.mxu0 0.0
    %6133 = vmatpush1.xpose.msra.mxu0 0.0
    %6134 = vmatprep.subr.mxu0 0.0
    %6135 = vmatpush1.xpose.msra.mxu0 0.0
    %6136 = vmatprep.subr.mxu0 0.0
    %6137 = vmatpush1.xpose.msra.mxu0 0.0
    %6138 = vmatprep.subr.mxu0 0.0
    %6139 = vmatpush1.xpose.msra.mxu0 0.0
    %6140 = vmatprep.subr.mxu0 0.0
    %6141 = vmatpush1.xpose.msra.mxu0 0.0
    %6142 = vmatprep.subr.mxu0 0.0
    %6143 = vmatpush1.xpose.msra.mxu0 0.0
    %6144 = vmatprep.subr.mxu0 0.0
    %6145 = vmatpush1.xpose.msra.mxu0 0.0
    %6146 = vmatprep.subr.mxu0 0.0
    %6147 = vmatpush1.xpose.msra.mxu0 0.0
    %6148 = vmatprep.subr.mxu0 0.0
    %6149 = vmatpush1.xpose.msra.mxu0 0.0
    %6150 = vmatprep.subr.mxu0 0.0
    %6151 = vmatpush1.xpose.msra.mxu0 0.0
    %6152 = vmatprep.subr.mxu0 0.0
    %6153 = vmatpush1.xpose.msra.mxu0 0.0
    %6154 = vmatprep.subr.mxu0 0.0
    %6155 = vmatpush1.xpose.msra.mxu0 0.0
    %6156 = vmatprep.subr.mxu0 0.0
    %6157 = vmatpush1.xpose.msra.mxu0 0.0
    %6158 = vmatprep.subr.mxu0 0.0
    %6159 = vmatpush1.xpose.msra.mxu0 0.0
    %6160 = vmatprep.subr.mxu0 0.0
    %6161 = vmatpush1.xpose.msra.mxu0 0.0
    %6162 = vmatprep.subr.mxu0 0.0
    %6163 = vmatpush1.xpose.msra.mxu0 0.0
    %6164 = vmatprep.subr.mxu0 0.0
    %6165 = vmatpush1.xpose.msra.mxu0 0.0
    %6166 = vmatprep.subr.mxu0 0.0
    %6167 = vmatpush1.xpose.msra.mxu0 0.0
    %6168 = vmatprep.mubr.f32.mxu0 0.0
    %6169 = vmatmul.mubr.f32.gmra.mrb[0].mxu0 %v6100
    %v6170 = vpop.f32.mrb[0].mxu0
    %v6171 = vadd.f32 %v252, %v6170
    %v6172 = vpop.f32.mrb[0].mxu0
    %6173 = vdwg.mxu0
    %v6174 = vsel %vm257, %v5653, -inf
    %6175 = vmax.xlane.f32.xlu0 %v6174
    %v6176 = vpop.xlane.xlu0 %6175
    %v6177 = vsel %vm257, %v5727, -inf
    %6178 = vmax.xlane.f32.xlu0 %v6177
    %v6179 = vpop.xlane.xlu0 %6178
    %v6180 = vsel %vm257, %v5801, -inf
    %6181 = vmax.xlane.f32.xlu0 %v6180
    %v6182 = vpop.xlane.xlu0 %6181
    %v6183 = vsel %vm257, %v5875, -inf
    %6184 = vmax.xlane.f32.xlu0 %v6183
    %v6185 = vpop.xlane.xlu0 %6184
    %v6186 = vsel %vm257, %v5949, -inf
    %6187 = vmax.xlane.f32.xlu0 %v6186
    %v6188 = vpop.xlane.xlu0 %6187
    %v6189 = vsel %vm257, %v6023, -inf
    %6190 = vmax.xlane.f32.xlu0 %v6189
    %v6191 = vpop.xlane.xlu0 %6190
    %v6192 = vsel %vm257, %v6097, -inf
    %6193 = vmax.xlane.f32.xlu0 %v6192
    %v6194 = vpop.xlane.xlu0 %6193
    %v6195 = vsel %vm257, %v6171, -inf
    %6196 = vmax.xlane.f32.xlu0 %v6195
    %v6197 = vpop.xlane.xlu0 %6196
    %v6198 = vsub.f32 %v5653, %v6176
    %v6199 = vsub.f32 %v5727, %v6179
    %v6200 = vsub.f32 %v5801, %v6182
    %v6201 = vsub.f32 %v5875, %v6185
    %v6202 = vsub.f32 %v5949, %v6188
    %v6203 = vsub.f32 %v6023, %v6191
    %v6204 = vsub.f32 %v6097, %v6194
    %v6205 = vsub.f32 %v6171, %v6197
    %v6206 = vmul.f32 %v6198, 1.442695
    %v6207 = vpow.pop %v6206
    %v6208 = vmul.f32 %v6199, 1.442695
    %v6209 = vpow.pop %v6208
    %v6210 = vmul.f32 %v6200, 1.442695
    %v6211 = vpow.pop %v6210
    %v6212 = vmul.f32 %v6201, 1.442695
    %v6213 = vpow.pop %v6212
    %v6214 = vmul.f32 %v6202, 1.442695
    %v6215 = vpow.pop %v6214
    %v6216 = vmul.f32 %v6203, 1.442695
    %v6217 = vpow.pop %v6216
    %v6218 = vmul.f32 %v6204, 1.442695
    %v6219 = vpow.pop %v6218
    %v6220 = vmul.f32 %v6205, 1.442695
    %v6221 = vpow.pop %v6220
    %v6222 = vsel %vm257, %v6207, 0.0
    %6223 = vadd.xlane.f32.xlu0 %v6222
    %v6224 = vpop.xlane.xlu0 %6223
    %v6225 = vsel %vm257, %v6209, 0.0
    %6226 = vadd.xlane.f32.xlu0 %v6225
    %v6227 = vpop.xlane.xlu0 %6226
    %v6228 = vsel %vm257, %v6211, 0.0
    %6229 = vadd.xlane.f32.xlu0 %v6228
    %v6230 = vpop.xlane.xlu0 %6229
    %v6231 = vsel %vm257, %v6213, 0.0
    %6232 = vadd.xlane.f32.xlu0 %v6231
    %v6233 = vpop.xlane.xlu0 %6232
    %v6234 = vsel %vm257, %v6215, 0.0
    %6235 = vadd.xlane.f32.xlu0 %v6234
    %v6236 = vpop.xlane.xlu0 %6235
    %v6237 = vsel %vm257, %v6217, 0.0
    %6238 = vadd.xlane.f32.xlu0 %v6237
    %v6239 = vpop.xlane.xlu0 %6238
    %v6240 = vsel %vm257, %v6219, 0.0
    %6241 = vadd.xlane.f32.xlu0 %v6240
    %v6242 = vpop.xlane.xlu0 %6241
    %v6243 = vsel %vm257, %v6221, 0.0
    %6244 = vadd.xlane.f32.xlu0 %v6243
    %v6245 = vpop.xlane.xlu0 %6244
    %v6246 = vrcp.pop %v6224
    %v6247 = vrcp.pop %v6227
    %v6248 = vrcp.pop %v6230
    %v6249 = vrcp.pop %v6233
    %v6250 = vrcp.pop %v6236
    %v6251 = vrcp.pop %v6239
    %v6252 = vrcp.pop %v6242
    %v6253 = vrcp.pop %v6245
    %v6254 = vmul.f32 %v6207, %v6246
    %v6255 = vmul.f32 %v6209, %v6247
    %v6256 = vmul.f32 %v6211, %v6248
    %v6257 = vmul.f32 %v6213, %v6249
    %v6258 = vmul.f32 %v6215, %v6250
    %v6259 = vmul.f32 %v6217, %v6251
    %v6260 = vmul.f32 %v6219, %v6252
    %v6261 = vmul.f32 %v6221, %v6253
    %6262 = vrot.lane.b32.xlu0 %v5546, 96
    %v6263 = vpop.permute.xlu0 %6262
    %v6266 = vsel %vm257, %v6254, 0
    %6268 = vmatprep.subr.mxu0 0.0
    %6269 = vmatpush1.msra.mxu0 %v6263
    %6270 = vmatprep.subr.mxu0 0.0
    %6271 = vmatpush1.msra.mxu0 0.0
    %6272 = vmatprep.subr.mxu0 0.0
    %6273 = vmatpush1.msra.mxu0 0.0
    %6274 = vmatprep.subr.mxu0 0.0
    %6275 = vmatpush1.msra.mxu0 0.0
    %6276 = vmatprep.subr.mxu0 0.0
    %6277 = vmatpush1.msra.mxu0 0.0
    %6278 = vmatprep.subr.mxu0 0.0
    %6279 = vmatpush1.msra.mxu0 0.0
    %6280 = vmatprep.subr.mxu0 0.0
    %6281 = vmatpush1.msra.mxu0 0.0
    %6282 = vmatprep.subr.mxu0 0.0
    %6283 = vmatpush1.msra.mxu0 0.0
    %6284 = vmatprep.subr.mxu0 0.0
    %6285 = vmatpush1.msra.mxu0 0.0
    %6286 = vmatprep.subr.mxu0 0.0
    %6287 = vmatpush1.msra.mxu0 0.0
    %6288 = vmatprep.subr.mxu0 0.0
    %6289 = vmatpush1.msra.mxu0 0.0
    %6290 = vmatprep.subr.mxu0 0.0
    %6291 = vmatpush1.msra.mxu0 0.0
    %6292 = vmatprep.subr.mxu0 0.0
    %6293 = vmatpush1.msra.mxu0 0.0
    %6294 = vmatprep.subr.mxu0 0.0
    %6295 = vmatpush1.msra.mxu0 0.0
    %6296 = vmatprep.subr.mxu0 0.0
    %6297 = vmatpush1.msra.mxu0 0.0
    %6298 = vmatprep.subr.mxu0 0.0
    %6299 = vmatpush1.msra.mxu0 0.0
    %6300 = vmatprep.subr.mxu0 0.0
    %6301 = vmatpush1.msra.mxu0 0.0
    %6302 = vmatprep.subr.mxu0 0.0
    %6303 = vmatpush1.msra.mxu0 0.0
    %6304 = vmatprep.subr.mxu0 0.0
    %6305 = vmatpush1.msra.mxu0 0.0
    %6306 = vmatprep.subr.mxu0 0.0
    %6307 = vmatpush1.msra.mxu0 0.0
    %6308 = vmatprep.subr.mxu0 0.0
    %6309 = vmatpush1.msra.mxu0 0.0
    %6310 = vmatprep.subr.mxu0 0.0
    %6311 = vmatpush1.msra.mxu0 0.0
    %6312 = vmatprep.subr.mxu0 0.0
    %6313 = vmatpush1.msra.mxu0 0.0
    %6314 = vmatprep.subr.mxu0 0.0
    %6315 = vmatpush1.msra.mxu0 0.0
    %6316 = vmatprep.subr.mxu0 0.0
    %6317 = vmatpush1.msra.mxu0 0.0
    %6318 = vmatprep.subr.mxu0 0.0
    %6319 = vmatpush1.msra.mxu0 0.0
    %6320 = vmatprep.subr.mxu0 0.0
    %6321 = vmatpush1.msra.mxu0 0.0
    %6322 = vmatprep.subr.mxu0 0.0
    %6323 = vmatpush1.msra.mxu0 0.0
    %6324 = vmatprep.subr.mxu0 0.0
    %6325 = vmatpush1.msra.mxu0 0.0
    %6326 = vmatprep.subr.mxu0 0.0
    %6327 = vmatpush1.msra.mxu0 0.0
    %6328 = vmatprep.subr.mxu0 0.0
    %6329 = vmatpush1.msra.mxu0 0.0
    %6330 = vmatprep.subr.mxu0 0.0
    %6331 = vmatpush1.msra.mxu0 0.0
    %6332 = vmatprep.mubr.f32.mxu0 0.0
    %6333 = vmatmul.mubr.f32.gmra.mrb[0].mxu0 %v6266
    %v6334 = vpop.f32.mrb[0].mxu0
    %v6335 = vadd.f32 0.0, %v6334
    %v6336 = vpop.f32.mrb[0].mxu0
    %6337 = vdwg.mxu0
    %6338 = vrot.lane.b32.xlu0 %v5551, 96
    %v6339 = vpop.permute.xlu0 %6338
    %v6342 = vsel %vm257, %v6255, 0
    %6344 = vmatprep.subr.mxu0 0.0
    %6345 = vmatpush1.msra.mxu0 %v6339
    %6346 = vmatprep.subr.mxu0 0.0
    %6347 = vmatpush1.msra.mxu0 0.0
    %6348 = vmatprep.subr.mxu0 0.0
    %6349 = vmatpush1.msra.mxu0 0.0
    %6350 = vmatprep.subr.mxu0 0.0
    %6351 = vmatpush1.msra.mxu0 0.0
    %6352 = vmatprep.subr.mxu0 0.0
    %6353 = vmatpush1.msra.mxu0 0.0
    %6354 = vmatprep.subr.mxu0 0.0
    %6355 = vmatpush1.msra.mxu0 0.0
    %6356 = vmatprep.subr.mxu0 0.0
    %6357 = vmatpush1.msra.mxu0 0.0
    %6358 = vmatprep.subr.mxu0 0.0
    %6359 = vmatpush1.msra.mxu0 0.0
    %6360 = vmatprep.subr.mxu0 0.0
    %6361 = vmatpush1.msra.mxu0 0.0
    %6362 = vmatprep.subr.mxu0 0.0
    %6363 = vmatpush1.msra.mxu0 0.0
    %6364 = vmatprep.subr.mxu0 0.0
    %6365 = vmatpush1.msra.mxu0 0.0
    %6366 = vmatprep.subr.mxu0 0.0
    %6367 = vmatpush1.msra.mxu0 0.0
    %6368 = vmatprep.subr.mxu0 0.0
    %6369 = vmatpush1.msra.mxu0 0.0
    %6370 = vmatprep.subr.mxu0 0.0
    %6371 = vmatpush1.msra.mxu0 0.0
    %6372 = vmatprep.subr.mxu0 0.0
    %6373 = vmatpush1.msra.mxu0 0.0
    %6374 = vmatprep.subr.mxu0 0.0
    %6375 = vmatpush1.msra.mxu0 0.0
    %6376 = vmatprep.subr.mxu0 0.0
    %6377 = vmatpush1.msra.mxu0 0.0
    %6378 = vmatprep.subr.mxu0 0.0
    %6379 = vmatpush1.msra.mxu0 0.0
    %6380 = vmatprep.subr.mxu0 0.0
    %6381 = vmatpush1.msra.mxu0 0.0
    %6382 = vmatprep.subr.mxu0 0.0
    %6383 = vmatpush1.msra.mxu0 0.0
    %6384 = vmatprep.subr.mxu0 0.0
    %6385 = vmatpush1.msra.mxu0 0.0
    %6386 = vmatprep.subr.mxu0 0.0
    %6387 = vmatpush1.msra.mxu0 0.0
    %6388 = vmatprep.subr.mxu0 0.0
    %6389 = vmatpush1.msra.mxu0 0.0
    %6390 = vmatprep.subr.mxu0 0.0
    %6391 = vmatpush1.msra.mxu0 0.0
    %6392 = vmatprep.subr.mxu0 0.0
    %6393 = vmatpush1.msra.mxu0 0.0
    %6394 = vmatprep.subr.mxu0 0.0
    %6395 = vmatpush1.msra.mxu0 0.0
    %6396 = vmatprep.subr.mxu0 0.0
    %6397 = vmatpush1.msra.mxu0 0.0
    %6398 = vmatprep.subr.mxu0 0.0
    %6399 = vmatpush1.msra.mxu0 0.0
    %6400 = vmatprep.subr.mxu0 0.0
    %6401 = vmatpush1.msra.mxu0 0.0
    %6402 = vmatprep.subr.mxu0 0.0
    %6403 = vmatpush1.msra.mxu0 0.0
    %6404 = vmatprep.subr.mxu0 0.0
    %6405 = vmatpush1.msra.mxu0 0.0
    %6406 = vmatprep.subr.mxu0 0.0
    %6407 = vmatpush1.msra.mxu0 0.0
    %6408 = vmatprep.mubr.f32.mxu0 0.0
    %6409 = vmatmul.mubr.f32.gmra.mrb[0].mxu0 %v6342
    %v6410 = vpop.f32.mrb[0].mxu0
    %v6411 = vadd.f32 0.0, %v6410
    %v6412 = vpop.f32.mrb[0].mxu0
    %6413 = vdwg.mxu0
    %6414 = vrot.lane.b32.xlu0 %v5571, 96
    %v6415 = vpop.permute.xlu0 %6414
    %v6418 = vsel %vm257, %v6256, 0
    %6420 = vmatprep.subr.mxu0 0.0
    %6421 = vmatpush1.msra.mxu0 %v6415
    %6422 = vmatprep.subr.mxu0 0.0
    %6423 = vmatpush1.msra.mxu0 0.0
    %6424 = vmatprep.subr.mxu0 0.0
    %6425 = vmatpush1.msra.mxu0 0.0
    %6426 = vmatprep.subr.mxu0 0.0
    %6427 = vmatpush1.msra.mxu0 0.0
    %6428 = vmatprep.subr.mxu0 0.0
    %6429 = vmatpush1.msra.mxu0 0.0
    %6430 = vmatprep.subr.mxu0 0.0
    %6431 = vmatpush1.msra.mxu0 0.0
    %6432 = vmatprep.subr.mxu0 0.0
    %6433 = vmatpush1.msra.mxu0 0.0
    %6434 = vmatprep.subr.mxu0 0.0
    %6435 = vmatpush1.msra.mxu0 0.0
    %6436 = vmatprep.subr.mxu0 0.0
    %6437 = vmatpush1.msra.mxu0 0.0
    %6438 = vmatprep.subr.mxu0 0.0
    %6439 = vmatpush1.msra.mxu0 0.0
    %6440 = vmatprep.subr.mxu0 0.0
    %6441 = vmatpush1.msra.mxu0 0.0
    %6442 = vmatprep.subr.mxu0 0.0
    %6443 = vmatpush1.msra.mxu0 0.0
    %6444 = vmatprep.subr.mxu0 0.0
    %6445 = vmatpush1.msra.mxu0 0.0
    %6446 = vmatprep.subr.mxu0 0.0
    %6447 = vmatpush1.msra.mxu0 0.0
    %6448 = vmatprep.subr.mxu0 0.0
    %6449 = vmatpush1.msra.mxu0 0.0
    %6450 = vmatprep.subr.mxu0 0.0
    %6451 = vmatpush1.msra.mxu0 0.0
    %6452 = vmatprep.subr.mxu0 0.0
    %6453 = vmatpush1.msra.mxu0 0.0
    %6454 = vmatprep.subr.mxu0 0.0
    %6455 = vmatpush1.msra.mxu0 0.0
    %6456 = vmatprep.subr.mxu0 0.0
    %6457 = vmatpush1.msra.mxu0 0.0
    %6458 = vmatprep.subr.mxu0 0.0
    %6459 = vmatpush1.msra.mxu0 0.0
    %6460 = vmatprep.subr.mxu0 0.0
    %6461 = vmatpush1.msra.mxu0 0.0
    %6462 = vmatprep.subr.mxu0 0.0
    %6463 = vmatpush1.msra.mxu0 0.0
    %6464 = vmatprep.subr.mxu0 0.0
    %6465 = vmatpush1.msra.mxu0 0.0
    %6466 = vmatprep.subr.mxu0 0.0
    %6467 = vmatpush1.msra.mxu0 0.0
    %6468 = vmatprep.subr.mxu0 0.0
    %6469 = vmatpush1.msra.mxu0 0.0
    %6470 = vmatprep.subr.mxu0 0.0
    %6471 = vmatpush1.msra.mxu0 0.0
    %6472 = vmatprep.subr.mxu0 0.0
    %6473 = vmatpush1.msra.mxu0 0.0
    %6474 = vmatprep.subr.mxu0 0.0
    %6475 = vmatpush1.msra.mxu0 0.0
    %6476 = vmatprep.subr.mxu0 0.0
    %6477 = vmatpush1.msra.mxu0 0.0
    %6478 = vmatprep.subr.mxu0 0.0
    %6479 = vmatpush1.msra.mxu0 0.0
    %6480 = vmatprep.subr.mxu0 0.0
    %6481 = vmatpush1.msra.mxu0 0.0
    %6482 = vmatprep.subr.mxu0 0.0
    %6483 = vmatpush1.msra.mxu0 0.0
    %6484 = vmatprep.mubr.f32.mxu0 0.0
    %6485 = vmatmul.mubr.f32.gmra.mrb[0].mxu0 %v6418
    %v6486 = vpop.f32.mrb[0].mxu0
    %v6487 = vadd.f32 0.0, %v6486
    %v6488 = vpop.f32.mrb[0].mxu0
    %6489 = vdwg.mxu0
    %6490 = vrot.lane.b32.xlu0 %v5573, 96
    %v6491 = vpop.permute.xlu0 %6490
    %v6494 = vsel %vm257, %v6257, 0
    %6496 = vmatprep.subr.mxu0 0.0
    %6497 = vmatpush1.msra.mxu0 %v6491
    %6498 = vmatprep.subr.mxu0 0.0
    %6499 = vmatpush1.msra.mxu0 0.0
    %6500 = vmatprep.subr.mxu0 0.0
    %6501 = vmatpush1.msra.mxu0 0.0
    %6502 = vmatprep.subr.mxu0 0.0
    %6503 = vmatpush1.msra.mxu0 0.0
    %6504 = vmatprep.subr.mxu0 0.0
    %6505 = vmatpush1.msra.mxu0 0.0
    %6506 = vmatprep.subr.mxu0 0.0
    %6507 = vmatpush1.msra.mxu0 0.0
    %6508 = vmatprep.subr.mxu0 0.0
    %6509 = vmatpush1.msra.mxu0 0.0
    %6510 = vmatprep.subr.mxu0 0.0
    %6511 = vmatpush1.msra.mxu0 0.0
    %6512 = vmatprep.subr.mxu0 0.0
    %6513 = vmatpush1.msra.mxu0 0.0
    %6514 = vmatprep.subr.mxu0 0.0
    %6515 = vmatpush1.msra.mxu0 0.0
    %6516 = vmatprep.subr.mxu0 0.0
    %6517 = vmatpush1.msra.mxu0 0.0
    %6518 = vmatprep.subr.mxu0 0.0
    %6519 = vmatpush1.msra.mxu0 0.0
    %6520 = vmatprep.subr.mxu0 0.0
    %6521 = vmatpush1.msra.mxu0 0.0
    %6522 = vmatprep.subr.mxu0 0.0
    %6523 = vmatpush1.msra.mxu0 0.0
    %6524 = vmatprep.subr.mxu0 0.0
    %6525 = vmatpush1.msra.mxu0 0.0
    %6526 = vmatprep.subr.mxu0 0.0
    %6527 = vmatpush1.msra.mxu0 0.0
    %6528 = vmatprep.subr.mxu0 0.0
    %6529 = vmatpush1.msra.mxu0 0.0
    %6530 = vmatprep.subr.mxu0 0.0
    %6531 = vmatpush1.msra.mxu0 0.0
    %6532 = vmatprep.subr.mxu0 0.0
    %6533 = vmatpush1.msra.mxu0 0.0
    %6534 = vmatprep.subr.mxu0 0.0
    %6535 = vmatpush1.msra.mxu0 0.0
    %6536 = vmatprep.subr.mxu0 0.0
    %6537 = vmatpush1.msra.mxu0 0.0
    %6538 = vmatprep.subr.mxu0 0.0
    %6539 = vmatpush1.msra.mxu0 0.0
    %6540 = vmatprep.subr.mxu0 0.0
    %6541 = vmatpush1.msra.mxu0 0.0
    %6542 = vmatprep.subr.mxu0 0.0
    %6543 = vmatpush1.msra.mxu0 0.0
    %6544 = vmatprep.subr.mxu0 0.0
    %6545 = vmatpush1.msra.mxu0 0.0
    %6546 = vmatprep.subr.mxu0 0.0
    %6547 = vmatpush1.msra.mxu0 0.0
    %6548 = vmatprep.subr.mxu0 0.0
    %6549 = vmatpush1.msra.mxu0 0.0
    %6550 = vmatprep.subr.mxu0 0.0
    %6551 = vmatpush1.msra.mxu0 0.0
    %6552 = vmatprep.subr.mxu0 0.0
    %6553 = vmatpush1.msra.mxu0 0.0
    %6554 = vmatprep.subr.mxu0 0.0
    %6555 = vmatpush1.msra.mxu0 0.0
    %6556 = vmatprep.subr.mxu0 0.0
    %6557 = vmatpush1.msra.mxu0 0.0
    %6558 = vmatprep.subr.mxu0 0.0
    %6559 = vmatpush1.msra.mxu0 0.0
    %6560 = vmatprep.mubr.f32.mxu0 0.0
    %6561 = vmatmul.mubr.f32.gmra.mrb[0].mxu0 %v6494
    %v6562 = vpop.f32.mrb[0].mxu0
    %v6563 = vadd.f32 0.0, %v6562
    %v6564 = vpop.f32.mrb[0].mxu0
    %6565 = vdwg.mxu0
    %6566 = vrot.lane.b32.xlu0 %v5575, 96
    %v6567 = vpop.permute.xlu0 %6566
    %v6570 = vsel %vm257, %v6258, 0
    %6572 = vmatprep.subr.mxu0 0.0
    %6573 = vmatpush1.msra.mxu0 %v6567
    %6574 = vmatprep.subr.mxu0 0.0
    %6575 = vmatpush1.msra.mxu0 0.0
    %6576 = vmatprep.subr.mxu0 0.0
    %6577 = vmatpush1.msra.mxu0 0.0
    %6578 = vmatprep.subr.mxu0 0.0
    %6579 = vmatpush1.msra.mxu0 0.0
    %6580 = vmatprep.subr.mxu0 0.0
    %6581 = vmatpush1.msra.mxu0 0.0
    %6582 = vmatprep.subr.mxu0 0.0
    %6583 = vmatpush1.msra.mxu0 0.0
    %6584 = vmatprep.subr.mxu0 0.0
    %6585 = vmatpush1.msra.mxu0 0.0
    %6586 = vmatprep.subr.mxu0 0.0
    %6587 = vmatpush1.msra.mxu0 0.0
    %6588 = vmatprep.subr.mxu0 0.0
    %6589 = vmatpush1.msra.mxu0 0.0
    %6590 = vmatprep.subr.mxu0 0.0
    %6591 = vmatpush1.msra.mxu0 0.0
    %6592 = vmatprep.subr.mxu0 0.0
    %6593 = vmatpush1.msra.mxu0 0.0
    %6594 = vmatprep.subr.mxu0 0.0
    %6595 = vmatpush1.msra.mxu0 0.0
    %6596 = vmatprep.subr.mxu0 0.0
    %6597 = vmatpush1.msra.mxu0 0.0
    %6598 = vmatprep.subr.mxu0 0.0
    %6599 = vmatpush1.msra.mxu0 0.0
    %6600 = vmatprep.subr.mxu0 0.0
    %6601 = vmatpush1.msra.mxu0 0.0
    %6602 = vmatprep.subr.mxu0 0.0
    %6603 = vmatpush1.msra.mxu0 0.0
    %6604 = vmatprep.subr.mxu0 0.0
    %6605 = vmatpush1.msra.mxu0 0.0
    %6606 = vmatprep.subr.mxu0 0.0
    %6607 = vmatpush1.msra.mxu0 0.0
    %6608 = vmatprep.subr.mxu0 0.0
    %6609 = vmatpush1.msra.mxu0 0.0
    %6610 = vmatprep.subr.mxu0 0.0
    %6611 = vmatpush1.msra.mxu0 0.0
    %6612 = vmatprep.subr.mxu0 0.0
    %6613 = vmatpush1.msra.mxu0 0.0
    %6614 = vmatprep.subr.mxu0 0.0
    %6615 = vmatpush1.msra.mxu0 0.0
    %6616 = vmatprep.subr.mxu0 0.0
    %6617 = vmatpush1.msra.mxu0 0.0
    %6618 = vmatprep.subr.mxu0 0.0
    %6619 = vmatpush1.msra.mxu0 0.0
    %6620 = vmatprep.subr.mxu0 0.0
    %6621 = vmatpush1.msra.mxu0 0.0
    %6622 = vmatprep.subr.mxu0 0.0
    %6623 = vmatpush1.msra.mxu0 0.0
    %6624 = vmatprep.subr.mxu0 0.0
    %6625 = vmatpush1.msra.mxu0 0.0
    %6626 = vmatprep.subr.mxu0 0.0
    %6627 = vmatpush1.msra.mxu0 0.0
    %6628 = vmatprep.subr.mxu0 0.0
    %6629 = vmatpush1.msra.mxu0 0.0
    %6630 = vmatprep.subr.mxu0 0.0
    %6631 = vmatpush1.msra.mxu0 0.0
    %6632 = vmatprep.subr.mxu0 0.0
    %6633 = vmatpush1.msra.mxu0 0.0
    %6634 = vmatprep.subr.mxu0 0.0
    %6635 = vmatpush1.msra.mxu0 0.0
    %6636 = vmatprep.mubr.f32.mxu0 0.0
    %6637 = vmatmul.mubr.f32.gmra.mrb[0].mxu0 %v6570
    %v6638 = vpop.f32.mrb[0].mxu0
    %v6639 = vadd.f32 0.0, %v6638
    %v6640 = vpop.f32.mrb[0].mxu0
    %6641 = vdwg.mxu0
    %6642 = vrot.lane.b32.xlu0 %v5577, 96
    %v6643 = vpop.permute.xlu0 %6642
    %v6646 = vsel %vm257, %v6259, 0
    %6648 = vmatprep.subr.mxu0 0.0
    %6649 = vmatpush1.msra.mxu0 %v6643
    %6650 = vmatprep.subr.mxu0 0.0
    %6651 = vmatpush1.msra.mxu0 0.0
    %6652 = vmatprep.subr.mxu0 0.0
    %6653 = vmatpush1.msra.mxu0 0.0
    %6654 = vmatprep.subr.mxu0 0.0
    %6655 = vmatpush1.msra.mxu0 0.0
    %6656 = vmatprep.subr.mxu0 0.0
    %6657 = vmatpush1.msra.mxu0 0.0
    %6658 = vmatprep.subr.mxu0 0.0
    %6659 = vmatpush1.msra.mxu0 0.0
    %6660 = vmatprep.subr.mxu0 0.0
    %6661 = vmatpush1.msra.mxu0 0.0
    %6662 = vmatprep.subr.mxu0 0.0
    %6663 = vmatpush1.msra.mxu0 0.0
    %6664 = vmatprep.subr.mxu0 0.0
    %6665 = vmatpush1.msra.mxu0 0.0
    %6666 = vmatprep.subr.mxu0 0.0
    %6667 = vmatpush1.msra.mxu0 0.0
    %6668 = vmatprep.subr.mxu0 0.0
    %6669 = vmatpush1.msra.mxu0 0.0
    %6670 = vmatprep.subr.mxu0 0.0
    %6671 = vmatpush1.msra.mxu0 0.0
    %6672 = vmatprep.subr.mxu0 0.0
    %6673 = vmatpush1.msra.mxu0 0.0
    %6674 = vmatprep.subr.mxu0 0.0
    %6675 = vmatpush1.msra.mxu0 0.0
    %6676 = vmatprep.subr.mxu0 0.0
    %6677 = vmatpush1.msra.mxu0 0.0
    %6678 = vmatprep.subr.mxu0 0.0
    %6679 = vmatpush1.msra.mxu0 0.0
    %6680 = vmatprep.subr.mxu0 0.0
    %6681 = vmatpush1.msra.mxu0 0.0
    %6682 = vmatprep.subr.mxu0 0.0
    %6683 = vmatpush1.msra.mxu0 0.0
    %6684 = vmatprep.subr.mxu0 0.0
    %6685 = vmatpush1.msra.mxu0 0.0
    %6686 = vmatprep.subr.mxu0 0.0
    %6687 = vmatpush1.msra.mxu0 0.0
    %6688 = vmatprep.subr.mxu0 0.0
    %6689 = vmatpush1.msra.mxu0 0.0
    %6690 = vmatprep.subr.mxu0 0.0
    %6691 = vmatpush1.msra.mxu0 0.0
    %6692 = vmatprep.subr.mxu0 0.0
    %6693 = vmatpush1.msra.mxu0 0.0
    %6694 = vmatprep.subr.mxu0 0.0
    %6695 = vmatpush1.msra.mxu0 0.0
    %6696 = vmatprep.subr.mxu0 0.0
    %6697 = vmatpush1.msra.mxu0 0.0
    %6698 = vmatprep.subr.mxu0 0.0
    %6699 = vmatpush1.msra.mxu0 0.0
    %6700 = vmatprep.subr.mxu0 0.0
    %6701 = vmatpush1.msra.mxu0 0.0
    %6702 = vmatprep.subr.mxu0 0.0
    %6703 = vmatpush1.msra.mxu0 0.0
    %6704 = vmatprep.subr.mxu0 0.0
    %6705 = vmatpush1.msra.mxu0 0.0
    %6706 = vmatprep.subr.mxu0 0.0
    %6707 = vmatpush1.msra.mxu0 0.0
    %6708 = vmatprep.subr.mxu0 0.0
    %6709 = vmatpush1.msra.mxu0 0.0
    %6710 = vmatprep.subr.mxu0 0.0
    %6711 = vmatpush1.msra.mxu0 0.0
    %6712 = vmatprep.mubr.f32.mxu0 0.0
    %6713 = vmatmul.mubr.f32.gmra.mrb[0].mxu0 %v6646
    %v6714 = vpop.f32.mrb[0].mxu0
    %v6715 = vadd.f32 0.0, %v6714
    %v6716 = vpop.f32.mrb[0].mxu0
    %6717 = vdwg.mxu0
    %6718 = vrot.lane.b32.xlu0 %v5579, 96
    %v6719 = vpop.permute.xlu0 %6718
    %v6722 = vsel %vm257, %v6260, 0
    %6724 = vmatprep.subr.mxu0 0.0
    %6725 = vmatpush1.msra.mxu0 %v6719
    %6726 = vmatprep.subr.mxu0 0.0
    %6727 = vmatpush1.msra.mxu0 0.0
    %6728 = vmatprep.subr.mxu0 0.0
    %6729 = vmatpush1.msra.mxu0 0.0
    %6730 = vmatprep.subr.mxu0 0.0
    %6731 = vmatpush1.msra.mxu0 0.0
    %6732 = vmatprep.subr.mxu0 0.0
    %6733 = vmatpush1.msra.mxu0 0.0
    %6734 = vmatprep.subr.mxu0 0.0
    %6735 = vmatpush1.msra.mxu0 0.0
    %6736 = vmatprep.subr.mxu0 0.0
    %6737 = vmatpush1.msra.mxu0 0.0
    %6738 = vmatprep.subr.mxu0 0.0
    %6739 = vmatpush1.msra.mxu0 0.0
    %6740 = vmatprep.subr.mxu0 0.0
    %6741 = vmatpush1.msra.mxu0 0.0
    %6742 = vmatprep.subr.mxu0 0.0
    %6743 = vmatpush1.msra.mxu0 0.0
    %6744 = vmatprep.subr.mxu0 0.0
    %6745 = vmatpush1.msra.mxu0 0.0
    %6746 = vmatprep.subr.mxu0 0.0
    %6747 = vmatpush1.msra.mxu0 0.0
    %6748 = vmatprep.subr.mxu0 0.0
    %6749 = vmatpush1.msra.mxu0 0.0
    %6750 = vmatprep.subr.mxu0 0.0
    %6751 = vmatpush1.msra.mxu0 0.0
    %6752 = vmatprep.subr.mxu0 0.0
    %6753 = vmatpush1.msra.mxu0 0.0
    %6754 = vmatprep.subr.mxu0 0.0
    %6755 = vmatpush1.msra.mxu0 0.0
    %6756 = vmatprep.subr.mxu0 0.0
    %6757 = vmatpush1.msra.mxu0 0.0
    %6758 = vmatprep.subr.mxu0 0.0
    %6759 = vmatpush1.msra.mxu0 0.0
    %6760 = vmatprep.subr.mxu0 0.0
    %6761 = vmatpush1.msra.mxu0 0.0
    %6762 = vmatprep.subr.mxu0 0.0
    %6763 = vmatpush1.msra.mxu0 0.0
    %6764 = vmatprep.subr.mxu0 0.0
    %6765 = vmatpush1.msra.mxu0 0.0
    %6766 = vmatprep.subr.mxu0 0.0
    %6767 = vmatpush1.msra.mxu0 0.0
    %6768 = vmatprep.subr.mxu0 0.0
    %6769 = vmatpush1.msra.mxu0 0.0
    %6770 = vmatprep.subr.mxu0 0.0
    %6771 = vmatpush1.msra.mxu0 0.0
    %6772 = vmatprep.subr.mxu0 0.0
    %6773 = vmatpush1.msra.mxu0 0.0
    %6774 = vmatprep.subr.mxu0 0.0
    %6775 = vmatpush1.msra.mxu0 0.0
    %6776 = vmatprep.subr.mxu0 0.0
    %6777 = vmatpush1.msra.mxu0 0.0
    %6778 = vmatprep.subr.mxu0 0.0
    %6779 = vmatpush1.msra.mxu0 0.0
    %6780 = vmatprep.subr.mxu0 0.0
    %6781 = vmatpush1.msra.mxu0 0.0
    %6782 = vmatprep.subr.mxu0 0.0
    %6783 = vmatpush1.msra.mxu0 0.0
    %6784 = vmatprep.subr.mxu0 0.0
    %6785 = vmatpush1.msra.mxu0 0.0
    %6786 = vmatprep.subr.mxu0 0.0
    %6787 = vmatpush1.msra.mxu0 0.0
    %6788 = vmatprep.mubr.f32.mxu0 0.0
    %6789 = vmatmul.mubr.f32.gmra.mrb[0].mxu0 %v6722
    %v6790 = vpop.f32.mrb[0].mxu0
    %v6791 = vadd.f32 0.0, %v6790
    %v6792 = vpop.f32.mrb[0].mxu0
    %6793 = vdwg.mxu0
    %6794 = vrot.lane.b32.xlu0 %v5581, 96
    %v6795 = vpop.permute.xlu0 %6794
    %v6798 = vsel %vm257, %v6261, 0
    %6800 = vmatprep.subr.mxu0 0.0
    %6801 = vmatpush1.msra.mxu0 %v6795
    %6802 = vmatprep.subr.mxu0 0.0
    %6803 = vmatpush1.msra.mxu0 0.0
    %6804 = vmatprep.subr.mxu0 0.0
    %6805 = vmatpush1.msra.mxu0 0.0
    %6806 = vmatprep.subr.mxu0 0.0
    %6807 = vmatpush1.msra.mxu0 0.0
    %6808 = vmatprep.subr.mxu0 0.0
    %6809 = vmatpush1.msra.mxu0 0.0
    %6810 = vmatprep.subr.mxu0 0.0
    %6811 = vmatpush1.msra.mxu0 0.0
    %6812 = vmatprep.subr.mxu0 0.0
    %6813 = vmatpush1.msra.mxu0 0.0
    %6814 = vmatprep.subr.mxu0 0.0
    %6815 = vmatpush1.msra.mxu0 0.0
    %6816 = vmatprep.subr.mxu0 0.0
    %6817 = vmatpush1.msra.mxu0 0.0
    %6818 = vmatprep.subr.mxu0 0.0
    %6819 = vmatpush1.msra.mxu0 0.0
    %6820 = vmatprep.subr.mxu0 0.0
    %6821 = vmatpush1.msra.mxu0 0.0
    %6822 = vmatprep.subr.mxu0 0.0
    %6823 = vmatpush1.msra.mxu0 0.0
    %6824 = vmatprep.subr.mxu0 0.0
    %6825 = vmatpush1.msra.mxu0 0.0
    %6826 = vmatprep.subr.mxu0 0.0
    %6827 = vmatpush1.msra.mxu0 0.0
    %6828 = vmatprep.subr.mxu0 0.0
    %6829 = vmatpush1.msra.mxu0 0.0
    %6830 = vmatprep.subr.mxu0 0.0
    %6831 = vmatpush1.msra.mxu0 0.0
    %6832 = vmatprep.subr.mxu0 0.0
    %6833 = vmatpush1.msra.mxu0 0.0
    %6834 = vmatprep.subr.mxu0 0.0
    %6835 = vmatpush1.msra.mxu0 0.0
    %6836 = vmatprep.subr.mxu0 0.0
    %6837 = vmatpush1.msra.mxu0 0.0
    %6838 = vmatprep.subr.mxu0 0.0
    %6839 = vmatpush1.msra.mxu0 0.0
    %6840 = vmatprep.subr.mxu0 0.0
    %6841 = vmatpush1.msra.mxu0 0.0
    %6842 = vmatprep.subr.mxu0 0.0
    %6843 = vmatpush1.msra.mxu0 0.0
    %6844 = vmatprep.subr.mxu0 0.0
    %6845 = vmatpush1.msra.mxu0 0.0
    %6846 = vmatprep.subr.mxu0 0.0
    %6847 = vmatpush1.msra.mxu0 0.0
    %6848 = vmatprep.subr.mxu0 0.0
    %6849 = vmatpush1.msra.mxu0 0.0
    %6850 = vmatprep.subr.mxu0 0.0
    %6851 = vmatpush1.msra.mxu0 0.0
    %6852 = vmatprep.subr.mxu0 0.0
    %6853 = vmatpush1.msra.mxu0 0.0
    %6854 = vmatprep.subr.mxu0 0.0
    %6855 = vmatpush1.msra.mxu0 0.0
    %6856 = vmatprep.subr.mxu0 0.0
    %6857 = vmatpush1.msra.mxu0 0.0
    %6858 = vmatprep.subr.mxu0 0.0
    %6859 = vmatpush1.msra.mxu0 0.0
    %6860 = vmatprep.subr.mxu0 0.0
    %6861 = vmatpush1.msra.mxu0 0.0
    %6862 = vmatprep.subr.mxu0 0.0
    %6863 = vmatpush1.msra.mxu0 0.0
    %6864 = vmatprep.mubr.f32.mxu0 0.0
    %6865 = vmatmul.mubr.f32.gmra.mrb[0].mxu0 %v6798
    %v6866 = vpop.f32.mrb[0].mxu0
    %v6867 = vadd.f32 0.0, %v6866
    %v6868 = vpop.f32.mrb[0].mxu0
    %6869 = vdwg.mxu0
    %6872 = vrot.lane.b32.xlu0 %v6487, 8
    %v6873 = vpop.permute.xlu0 %6872
    %6874 = vrot.lane.b32.xlu0 %v6563, 8
    %v6875 = vpop.permute.xlu0 %6874
    %6880 = vrot.lane.b32.xlu0 %v6639, 16
    %v6881 = vpop.permute.xlu0 %6880
    %6882 = vrot.lane.b32.xlu0 %v6715, 16
    %v6883 = vpop.permute.xlu0 %6882
    %6888 = vrot.lane.b32.xlu0 %v6791, 24
    %v6889 = vpop.permute.xlu0 %6888
    %6890 = vrot.lane.b32.xlu0 %v6867, 24
    %v6891 = vpop.permute.xlu0 %6890
    %v6894 = vsel %vm257, %v6335, %v6873
    %v6895 = vsel %vm257, %v6411, %v6875
    %v6896 = vsel %vm1586, %v6894, %v6881
    %v6897 = vsel %vm1586, %v6895, %v6883
    %v6898 = vsel %vm1589, %v6896, %v6889
    %v6899 = vsel %vm1589, %v6897, %v6891
    %v6900 = vld [vmem:[#allocation5 + $0x1a0] sm:$0xff]
    %v6901 = vld [vmem:[#allocation5 + $0x1a8] sm:$0xff]
    %v6902 = vld [vmem:[#allocation5 + $0x1b0] sm:$0xff]
    %v6903 = vld [vmem:[#allocation5 + $0x1b8] sm:$0xff]
    %v6904 = vld [vmem:[#allocation7 + $0x15] sm:$0x1]
    %v6905 = vlaneseq
    %v6906 = vshrl.u32 %v6905, 7
    %v6907 = vsub.s32 0, %v6906
    %v6908 = vrot.slane %v6904, %v6907
    %v6910 = vsel %vm99, %v6898, 0
    %v6913 = vsel %vm99, %v6899, 0
    %6915 = vmatprep.subr.mxu0 0.0
    %6916 = vmatpush1.msra.mxu0 %v6900
    %6917 = vmatprep.subr.mxu0 0.0
    %6918 = vmatpush1.msra.mxu0 %v6901
    %6919 = vmatprep.subr.mxu0 0.0
    %6920 = vmatpush1.msra.mxu0 %v6902
    %6921 = vmatprep.subr.mxu0 0.0
    %6922 = vmatpush1.msra.mxu0 %v6903
    %6923 = vmatprep.subr.mxu0 0.0
    %6924 = vmatpush1.msra.mxu0 0.0
    %6925 = vmatprep.subr.mxu0 0.0
    %6926 = vmatpush1.msra.mxu0 0.0
    %6927 = vmatprep.subr.mxu0 0.0
    %6928 = vmatpush1.msra.mxu0 0.0
    %6929 = vmatprep.subr.mxu0 0.0
    %6930 = vmatpush1.msra.mxu0 0.0
    %6931 = vmatprep.subr.mxu0 0.0
    %6932 = vmatpush1.msra.mxu0 0.0
    %6933 = vmatprep.subr.mxu0 0.0
    %6934 = vmatpush1.msra.mxu0 0.0
    %6935 = vmatprep.subr.mxu0 0.0
    %6936 = vmatpush1.msra.mxu0 0.0
    %6937 = vmatprep.subr.mxu0 0.0
    %6938 = vmatpush1.msra.mxu0 0.0
    %6939 = vmatprep.subr.mxu0 0.0
    %6940 = vmatpush1.msra.mxu0 0.0
    %6941 = vmatprep.subr.mxu0 0.0
    %6942 = vmatpush1.msra.mxu0 0.0
    %6943 = vmatprep.subr.mxu0 0.0
    %6944 = vmatpush1.msra.mxu0 0.0
    %6945 = vmatprep.subr.mxu0 0.0
    %6946 = vmatpush1.msra.mxu0 0.0
    %6947 = vmatprep.subr.mxu0 0.0
    %6948 = vmatpush1.msra.mxu0 0.0
    %6949 = vmatprep.subr.mxu0 0.0
    %6950 = vmatpush1.msra.mxu0 0.0
    %6951 = vmatprep.subr.mxu0 0.0
    %6952 = vmatpush1.msra.mxu0 0.0
    %6953 = vmatprep.subr.mxu0 0.0
    %6954 = vmatpush1.msra.mxu0 0.0
    %6955 = vmatprep.subr.mxu0 0.0
    %6956 = vmatpush1.msra.mxu0 0.0
    %6957 = vmatprep.subr.mxu0 0.0
    %6958 = vmatpush1.msra.mxu0 0.0
    %6959 = vmatprep.subr.mxu0 0.0
    %6960 = vmatpush1.msra.mxu0 0.0
    %6961 = vmatprep.subr.mxu0 0.0
    %6962 = vmatpush1.msra.mxu0 0.0
    %6963 = vmatprep.subr.mxu0 0.0
    %6964 = vmatpush1.msra.mxu0 0.0
    %6965 = vmatprep.subr.mxu0 0.0
    %6966 = vmatpush1.msra.mxu0 0.0
    %6967 = vmatprep.subr.mxu0 0.0
    %6968 = vmatpush1.msra.mxu0 0.0
    %6969 = vmatprep.subr.mxu0 0.0
    %6970 = vmatpush1.msra.mxu0 0.0
    %6971 = vmatprep.subr.mxu0 0.0
    %6972 = vmatpush1.msra.mxu0 0.0
    %6973 = vmatprep.subr.mxu0 0.0
    %6974 = vmatpush1.msra.mxu0 0.0
    %6975 = vmatprep.subr.mxu0 0.0
    %6976 = vmatpush1.msra.mxu0 0.0
    %6977 = vmatprep.subr.mxu0 0.0
    %6978 = vmatpush1.msra.mxu0 0.0
    %6979 = vmatprep.mubr.f32.mxu0 0.0
    %6980 = vmatmul.mubr.f32.gmra.mrb[0].mxu0 %v6910
    %v6981 = vpop.f32.mrb[0].mxu0
    %v6982 = vadd.f32 %v6908, %v6981
    %v6983 = vpop.f32.mrb[0].mxu0
    %6984 = vmatprep.mubr.f32.mxu0 0.0
    %6985 = vmatmul.mubr.f32.gmra.mrb[0].mxu0 %v6913
    %v6986 = vpop.f32.mrb[0].mxu0
    %v6987 = vadd.f32 %v6908, %v6986
    %v6988 = vpop.f32.mrb[0].mxu0
    %6989 = vdwg.mxu0
    %v6990 = vadd.f32 %v5321, %v6982
    %v6991 = vadd.f32 %v5322, %v6987
    %v6992 = vsel %vm99, %v6990, 0.0
    %6993 = vadd.xlane.f32.xlu0 %v6992
    %v6994 = vpop.xlane.xlu0 %6993
    %v6995 = vsel %vm99, %v6991, 0.0
    %6996 = vadd.xlane.f32.xlu0 %v6995
    %v6997 = vpop.xlane.xlu0 %6996
    %v6998 = vmul.f32 %v6994, %v106
    %v6999 = vmul.f32 %v6997, %v106
    %v7000 = vsub.f32 %v6990, %v6998
    %v7001 = vsub.f32 %v6991, %v6999
    %v7002 = vmul.f32 %v7000, %v7000
    %v7003 = vmul.f32 %v7001, %v7001
    %v7004 = vsel %vm99, %v7002, 0.0
    %7005 = vadd.xlane.f32.xlu0 %v7004
    %v7006 = vpop.xlane.xlu0 %7005
    %v7007 = vsel %vm99, %v7003, 0.0
    %7008 = vadd.xlane.f32.xlu0 %v7007
    %v7009 = vpop.xlane.xlu0 %7008
    %v7010 = vmul.f32 %v7006, %v106
    %v7011 = vmul.f32 %v7009, %v106
    %v7012 = vadd.f32 %v7010, 1e-06
    %v7013 = vadd.f32 %v7011, 1e-06
    %v7014 = vrsqrt.pop %v7012
    %v7015 = vrsqrt.pop %v7013
    %v7016 = vmul.f32 %v7000, %v7014
    %v7017 = vmul.f32 %v7001, %v7015
    %v7018 = vld [vmem:[#allocation7 + $0x1a] sm:$0x1]
    %v7019 = vlaneseq
    %v7020 = vshrl.u32 %v7019, 7
    %v7021 = vsub.s32 0, %v7020
    %v7022 = vrot.slane %v7018, %v7021
    %v7023 = vmul.f32 %v7016, %v7022
    %v7024 = vmul.f32 %v7017, %v7022
    %v7025 = vld [vmem:[#allocation7 + $0x1b] sm:$0x1]
    %v7026 = vlaneseq
    %v7027 = vshrl.u32 %v7026, 7
    %v7028 = vsub.s32 0, %v7027
    %v7029 = vrot.slane %v7025, %v7028
    %v7030 = vadd.f32 %v7023, %v7029
    %v7031 = vadd.f32 %v7024, %v7029
    %v7032 = vld [vmem:[#allocation5 + $0x1c0] sm:$0xff]
    %v7033 = vld [vmem:[#allocation5 + $0x1c8] sm:$0xff]
    %v7034 = vld [vmem:[#allocation5 + $0x1d0] sm:$0xff]
    %v7035 = vld [vmem:[#allocation5 + $0x1d8] sm:$0xff]
    %v7036 = vld [vmem:[#allocation7 + $0x18] sm:$0x1]
    %v7037 = vlaneseq
    %v7038 = vshrl.u32 %v7037, 7
    %v7039 = vsub.s32 0, %v7038
    %v7040 = vrot.slane %v7036, %v7039
    %v7042 = vsel %vm99, %v7030, 0
    %v7045 = vsel %vm99, %v7031, 0
    %7047 = vmatprep.subr.mxu0 0.0
    %7048 = vmatpush1.msra.mxu0 %v7032
    %7049 = vmatprep.subr.mxu0 0.0
    %7050 = vmatpush1.msra.mxu0 %v7033
    %7051 = vmatprep.subr.mxu0 0.0
    %7052 = vmatpush1.msra.mxu0 %v7034
    %7053 = vmatprep.subr.mxu0 0.0
    %7054 = vmatpush1.msra.mxu0 %v7035
    %7055 = vmatprep.subr.mxu0 0.0
    %7056 = vmatpush1.msra.mxu0 0.0
    %7057 = vmatprep.subr.mxu0 0.0
    %7058 = vmatpush1.msra.mxu0 0.0
    %7059 = vmatprep.subr.mxu0 0.0
    %7060 = vmatpush1.msra.mxu0 0.0
    %7061 = vmatprep.subr.mxu0 0.0
    %7062 = vmatpush1.msra.mxu0 0.0
    %7063 = vmatprep.subr.mxu0 0.0
    %7064 = vmatpush1.msra.mxu0 0.0
    %7065 = vmatprep.subr.mxu0 0.0
    %7066 = vmatpush1.msra.mxu0 0.0
    %7067 = vmatprep.subr.mxu0 0.0
    %7068 = vmatpush1.msra.mxu0 0.0
    %7069 = vmatprep.subr.mxu0 0.0
    %7070 = vmatpush1.msra.mxu0 0.0
    %7071 = vmatprep.subr.mxu0 0.0
    %7072 = vmatpush1.msra.mxu0 0.0
    %7073 = vmatprep.subr.mxu0 0.0
    %7074 = vmatpush1.msra.mxu0 0.0
    %7075 = vmatprep.subr.mxu0 0.0
    %7076 = vmatpush1.msra.mxu0 0.0
    %7077 = vmatprep.subr.mxu0 0.0
    %7078 = vmatpush1.msra.mxu0 0.0
    %7079 = vmatprep.subr.mxu0 0.0
    %7080 = vmatpush1.msra.mxu0 0.0
    %7081 = vmatprep.subr.mxu0 0.0
    %7082 = vmatpush1.msra.mxu0 0.0
    %7083 = vmatprep.subr.mxu0 0.0
    %7084 = vmatpush1.msra.mxu0 0.0
    %7085 = vmatprep.subr.mxu0 0.0
    %7086 = vmatpush1.msra.mxu0 0.0
    %7087 = vmatprep.subr.mxu0 0.0
    %7088 = vmatpush1.msra.mxu0 0.0
    %7089 = vmatprep.subr.mxu0 0.0
    %7090 = vmatpush1.msra.mxu0 0.0
    %7091 = vmatprep.subr.mxu0 0.0
    %7092 = vmatpush1.msra.mxu0 0.0
    %7093 = vmatprep.subr.mxu0 0.0
    %7094 = vmatpush1.msra.mxu0 0.0
    %7095 = vmatprep.subr.mxu0 0.0
    %7096 = vmatpush1.msra.mxu0 0.0
    %7097 = vmatprep.subr.mxu0 0.0
    %7098 = vmatpush1.msra.mxu0 0.0
    %7099 = vmatprep.subr.mxu0 0.0
    %7100 = vmatpush1.msra.mxu0 0.0
    %7101 = vmatprep.subr.mxu0 0.0
    %7102 = vmatpush1.msra.mxu0 0.0
    %7103 = vmatprep.subr.mxu0 0.0
    %7104 = vmatpush1.msra.mxu0 0.0
    %7105 = vmatprep.subr.mxu0 0.0
    %7106 = vmatpush1.msra.mxu0 0.0
    %7107 = vmatprep.subr.mxu0 0.0
    %7108 = vmatpush1.msra.mxu0 0.0
    %7109 = vmatprep.subr.mxu0 0.0
    %7110 = vmatpush1.msra.mxu0 0.0
    %7111 = vmatprep.mubr.f32.mxu0 0.0
    %7112 = vmatmul.mubr.f32.gmra.mrb[0].mxu0 %v7042
    %v7113 = vpop.f32.mrb[0].mxu0
    %v7114 = vadd.f32 %v7040, %v7113
    %v7115 = vpop.f32.mrb[0].mxu0
    %7116 = vmatprep.mubr.f32.mxu0 0.0
    %7117 = vmatmul.mubr.f32.gmra.mrb[0].mxu0 %v7045
    %v7118 = vpop.f32.mrb[0].mxu0
    %v7119 = vadd.f32 %v7040, %v7118
    %v7120 = vpop.f32.mrb[0].mxu0
    %7121 = vdwg.mxu0
    %v7122 = vmax.f32 %v7114, 0.0
    %v7123 = vmax.f32 %v7119, 0.0
    %v7124 = vld [vmem:[#allocation5 + $0x1e0] sm:$0xff]
    %v7125 = vld [vmem:[#allocation5 + $0x1e8] sm:$0xff]
    %v7126 = vld [vmem:[#allocation5 + $0x1f0] sm:$0xff]
    %v7127 = vld [vmem:[#allocation5 + $0x1f8] sm:$0xff]
    %v7128 = vld [vmem:[#allocation5 + $0x200] sm:$0xff]
    %v7129 = vld [vmem:[#allocation5 + $0x208] sm:$0xff]
    %v7130 = vld [vmem:[#allocation5 + $0x210] sm:$0xff]
    %v7131 = vld [vmem:[#allocation5 + $0x218] sm:$0xff]
    %v7132 = vld [vmem:[#allocation7 + $0x19] sm:$0x1]
    %v7133 = vlaneseq
    %v7134 = vshrl.u32 %v7133, 7
    %v7135 = vsub.s32 0, %v7134
    %v7136 = vrot.slane %v7132, %v7135
    %v7138 = vsel %vm1829, %v7122, 0
    %v7141 = vsel %vm1829, %v7123, 0
    %7143 = vmatprep.subr.mxu0 0.0
    %7144 = vmatpush1.msra.mxu0 %v7124
    %7145 = vmatprep.subr.mxu0 0.0
    %7146 = vmatpush1.msra.mxu0 %v7125
    %7147 = vmatprep.subr.mxu0 0.0
    %7148 = vmatpush1.msra.mxu0 %v7126
    %7149 = vmatprep.subr.mxu0 0.0
    %7150 = vmatpush1.msra.mxu0 %v7127
    %7151 = vmatprep.subr.mxu0 0.0
    %7152 = vmatpush1.msra.mxu0 %v7128
    %7153 = vmatprep.subr.mxu0 0.0
    %7154 = vmatpush1.msra.mxu0 %v7129
    %7155 = vmatprep.subr.mxu0 0.0
    %7156 = vmatpush1.msra.mxu0 %v7130
    %7157 = vmatprep.subr.mxu0 0.0
    %7158 = vmatpush1.msra.mxu0 %v7131
    %7159 = vmatprep.subr.mxu0 0.0
    %7160 = vmatpush1.msra.mxu0 0.0
    %7161 = vmatprep.subr.mxu0 0.0
    %7162 = vmatpush1.msra.mxu0 0.0
    %7163 = vmatprep.subr.mxu0 0.0
    %7164 = vmatpush1.msra.mxu0 0.0
    %7165 = vmatprep.subr.mxu0 0.0
    %7166 = vmatpush1.msra.mxu0 0.0
    %7167 = vmatprep.subr.mxu0 0.0
    %7168 = vmatpush1.msra.mxu0 0.0
    %7169 = vmatprep.subr.mxu0 0.0
    %7170 = vmatpush1.msra.mxu0 0.0
    %7171 = vmatprep.subr.mxu0 0.0
    %7172 = vmatpush1.msra.mxu0 0.0
    %7173 = vmatprep.subr.mxu0 0.0
    %7174 = vmatpush1.msra.mxu0 0.0
    %7175 = vmatprep.subr.mxu0 0.0
    %7176 = vmatpush1.msra.mxu0 0.0
    %7177 = vmatprep.subr.mxu0 0.0
    %7178 = vmatpush1.msra.mxu0 0.0
    %7179 = vmatprep.subr.mxu0 0.0
    %7180 = vmatpush1.msra.mxu0 0.0
    %7181 = vmatprep.subr.mxu0 0.0
    %7182 = vmatpush1.msra.mxu0 0.0
    %7183 = vmatprep.subr.mxu0 0.0
    %7184 = vmatpush1.msra.mxu0 0.0
    %7185 = vmatprep.subr.mxu0 0.0
    %7186 = vmatpush1.msra.mxu0 0.0
    %7187 = vmatprep.subr.mxu0 0.0
    %7188 = vmatpush1.msra.mxu0 0.0
    %7189 = vmatprep.subr.mxu0 0.0
    %7190 = vmatpush1.msra.mxu0 0.0
    %7191 = vmatprep.subr.mxu0 0.0
    %7192 = vmatpush1.msra.mxu0 0.0
    %7193 = vmatprep.subr.mxu0 0.0
    %7194 = vmatpush1.msra.mxu0 0.0
    %7195 = vmatprep.subr.mxu0 0.0
    %7196 = vmatpush1.msra.mxu0 0.0
    %7197 = vmatprep.subr.mxu0 0.0
    %7198 = vmatpush1.msra.mxu0 0.0
    %7199 = vmatprep.subr.mxu0 0.0
    %7200 = vmatpush1.msra.mxu0 0.0
    %7201 = vmatprep.subr.mxu0 0.0
    %7202 = vmatpush1.msra.mxu0 0.0
    %7203 = vmatprep.subr.mxu0 0.0
    %7204 = vmatpush1.msra.mxu0 0.0
    %7205 = vmatprep.subr.mxu0 0.0
    %7206 = vmatpush1.msra.mxu0 0.0
    %7207 = vmatprep.mubr.f32.mxu0 0.0
    %7208 = vmatmul.mubr.f32.gmra.mrb[0].mxu0 %v7138
    %v7209 = vpop.f32.mrb[0].mxu0
    %v7210 = vadd.f32 %v7136, %v7209
    %v7211 = vpop.f32.mrb[0].mxu0
    %7212 = vmatprep.mubr.f32.mxu0 0.0
    %7213 = vmatmul.mubr.f32.gmra.mrb[0].mxu0 %v7141
    %v7214 = vpop.f32.mrb[0].mxu0
    %v7215 = vadd.f32 %v7136, %v7214
    %v7216 = vpop.f32.mrb[0].mxu0
    %7217 = vdwg.mxu0
    %v7218 = vadd.f32 %v6990, %v7210
    %v7219 = vadd.f32 %v6991, %v7215
    %v7220 = vsel %vm99, %v7218, 0.0
    %7221 = vadd.xlane.f32.xlu0 %v7220
    %v7222 = vpop.xlane.xlu0 %7221
    %v7223 = vsel %vm99, %v7219, 0.0
    %7224 = vadd.xlane.f32.xlu0 %v7223
    %v7225 = vpop.xlane.xlu0 %7224
    %v7226 = vmul.f32 %v7222, %v106
    %v7227 = vmul.f32 %v7225, %v106
    %v7228 = vsub.f32 %v7218, %v7226
    %v7229 = vsub.f32 %v7219, %v7227
    %v7230 = vmul.f32 %v7228, %v7228
    %v7231 = vmul.f32 %v7229, %v7229
    %v7232 = vsel %vm99, %v7230, 0.0
    %7233 = vadd.xlane.f32.xlu0 %v7232
    %v7234 = vpop.xlane.xlu0 %7233
    %v7235 = vsel %vm99, %v7231, 0.0
    %7236 = vadd.xlane.f32.xlu0 %v7235
    %v7237 = vpop.xlane.xlu0 %7236
    %v7238 = vmul.f32 %v7234, %v106
    %v7239 = vmul.f32 %v7237, %v106
    %v7240 = vadd.f32 %v7238, 1e-06
    %v7241 = vadd.f32 %v7239, 1e-06
    %v7242 = vrsqrt.pop %v7240
    %v7243 = vrsqrt.pop %v7241
    %v7244 = vmul.f32 %v7228, %v7242
    %v7245 = vmul.f32 %v7229, %v7243
    %v7246 = vld [vmem:[#allocation7 + $0x1e] sm:$0x1]
    %v7247 = vlaneseq
    %v7248 = vshrl.u32 %v7247, 7
    %v7249 = vsub.s32 0, %v7248
    %v7250 = vrot.slane %v7246, %v7249
    %v7251 = vmul.f32 %v7244, %v7250
    %v7252 = vmul.f32 %v7245, %v7250
    %v7253 = vld [vmem:[#allocation7 + $0x1f] sm:$0x1]
    %v7254 = vlaneseq
    %v7255 = vshrl.u32 %v7254, 7
    %v7256 = vsub.s32 0, %v7255
    %v7257 = vrot.slane %v7253, %v7256
    %v7258 = vadd.f32 %v7251, %v7257
    %v7259 = vadd.f32 %v7252, %v7257
    %v7260 = vld [vmem:[#allocation5 + $0x220] sm:$0xff]
    %v7261 = vld [vmem:[#allocation5 + $0x228] sm:$0xff]
    %v7262 = vld [vmem:[#allocation5 + $0x230] sm:$0xff]
    %v7263 = vld [vmem:[#allocation5 + $0x238] sm:$0xff]
    %v7264 = vld [vmem:[#allocation7 + $0x1c] sm:$0x1]
    %v7265 = vlaneseq
    %v7266 = vshrl.u32 %v7265, 7
    %v7267 = vsub.s32 0, %v7266
    %v7268 = vrot.slane %v7264, %v7267
    %v7270 = vsel %vm99, %v7258, 0
    %v7273 = vsel %vm99, %v7259, 0
    %7275 = vmatprep.subr.mxu0 0.0
    %7276 = vmatpush1.msra.mxu0 %v7260
    %7277 = vmatprep.subr.mxu0 0.0
    %7278 = vmatpush1.msra.mxu0 %v7261
    %7279 = vmatprep.subr.mxu0 0.0
    %7280 = vmatpush1.msra.mxu0 %v7262
    %7281 = vmatprep.subr.mxu0 0.0
    %7282 = vmatpush1.msra.mxu0 %v7263
    %7283 = vmatprep.subr.mxu0 0.0
    %7284 = vmatpush1.msra.mxu0 0.0
    %7285 = vmatprep.subr.mxu0 0.0
    %7286 = vmatpush1.msra.mxu0 0.0
    %7287 = vmatprep.subr.mxu0 0.0
    %7288 = vmatpush1.msra.mxu0 0.0
    %7289 = vmatprep.subr.mxu0 0.0
    %7290 = vmatpush1.msra.mxu0 0.0
    %7291 = vmatprep.subr.mxu0 0.0
    %7292 = vmatpush1.msra.mxu0 0.0
    %7293 = vmatprep.subr.mxu0 0.0
    %7294 = vmatpush1.msra.mxu0 0.0
    %7295 = vmatprep.subr.mxu0 0.0
    %7296 = vmatpush1.msra.mxu0 0.0
    %7297 = vmatprep.subr.mxu0 0.0
    %7298 = vmatpush1.msra.mxu0 0.0
    %7299 = vmatprep.subr.mxu0 0.0
    %7300 = vmatpush1.msra.mxu0 0.0
    %7301 = vmatprep.subr.mxu0 0.0
    %7302 = vmatpush1.msra.mxu0 0.0
    %7303 = vmatprep.subr.mxu0 0.0
    %7304 = vmatpush1.msra.mxu0 0.0
    %7305 = vmatprep.subr.mxu0 0.0
    %7306 = vmatpush1.msra.mxu0 0.0
    %7307 = vmatprep.subr.mxu0 0.0
    %7308 = vmatpush1.msra.mxu0 0.0
    %7309 = vmatprep.subr.mxu0 0.0
    %7310 = vmatpush1.msra.mxu0 0.0
    %7311 = vmatprep.subr.mxu0 0.0
    %7312 = vmatpush1.msra.mxu0 0.0
    %7313 = vmatprep.subr.mxu0 0.0
    %7314 = vmatpush1.msra.mxu0 0.0
    %7315 = vmatprep.subr.mxu0 0.0
    %7316 = vmatpush1.msra.mxu0 0.0
    %7317 = vmatprep.subr.mxu0 0.0
    %7318 = vmatpush1.msra.mxu0 0.0
    %7319 = vmatprep.subr.mxu0 0.0
    %7320 = vmatpush1.msra.mxu0 0.0
    %7321 = vmatprep.subr.mxu0 0.0
    %7322 = vmatpush1.msra.mxu0 0.0
    %7323 = vmatprep.subr.mxu0 0.0
    %7324 = vmatpush1.msra.mxu0 0.0
    %7325 = vmatprep.subr.mxu0 0.0
    %7326 = vmatpush1.msra.mxu0 0.0
    %7327 = vmatprep.subr.mxu0 0.0
    %7328 = vmatpush1.msra.mxu0 0.0
    %7329 = vmatprep.subr.mxu0 0.0
    %7330 = vmatpush1.msra.mxu0 0.0
    %7331 = vmatprep.subr.mxu0 0.0
    %7332 = vmatpush1.msra.mxu0 0.0
    %7333 = vmatprep.subr.mxu0 0.0
    %7334 = vmatpush1.msra.mxu0 0.0
    %7335 = vmatprep.subr.mxu0 0.0
    %7336 = vmatpush1.msra.mxu0 0.0
    %7337 = vmatprep.subr.mxu0 0.0
    %7338 = vmatpush1.msra.mxu0 0.0
    %7339 = vmatprep.mubr.f32.mxu0 0.0
    %7340 = vmatmul.mubr.f32.gmra.mrb[0].mxu0 %v7270
    %v7341 = vpop.f32.mrb[0].mxu0
    %v7342 = vadd.f32 %v7268, %v7341
    %v7343 = vpop.f32.mrb[0].mxu0
    %7344 = vmatprep.mubr.f32.mxu0 0.0
    %7345 = vmatmul.mubr.f32.gmra.mrb[0].mxu0 %v7273
    %v7346 = vpop.f32.mrb[0].mxu0
    %v7347 = vadd.f32 %v7268, %v7346
    %v7348 = vpop.f32.mrb[0].mxu0
    %7349 = vdwg.mxu0
    %7352 = vrot.lane.b32.xlu0 %v7342, 120
    %v7353 = vpop.permute.xlu0 %7352
    %7354 = vrot.lane.b32.xlu0 %v7347, 120
    %v7355 = vpop.permute.xlu0 %7354
    %7356 = vrot.lane.b32.xlu0 %v7342, 112
    %v7357 = vpop.permute.xlu0 %7356
    %7358 = vrot.lane.b32.xlu0 %v7347, 112
    %v7359 = vpop.permute.xlu0 %7358
    %7360 = vrot.lane.b32.xlu0 %v7342, 104
    %v7361 = vpop.permute.xlu0 %7360
    %7362 = vrot.lane.b32.xlu0 %v7347, 104
    %v7363 = vpop.permute.xlu0 %7362
    %7364 = vrot.lane.b32.xlu0 %v7342, 96
    %v7365 = vpop.permute.xlu0 %7364
    %v7366 = vsel %vm257, %v7342, 0
    %v7368 = vsel %vm257, %v7365, 0
    %7370 = vmatprep.subr.mxu0 0.0
    %7371 = vmatpush1.xpose.msra.mxu0 %v7368
    %7372 = vmatprep.subr.mxu0 0.0
    %7373 = vmatpush1.xpose.msra.mxu0 0.0
    %7374 = vmatprep.subr.mxu0 0.0
    %7375 = vmatpush1.xpose.msra.mxu0 0.0
    %7376 = vmatprep.subr.mxu0 0.0
    %7377 = vmatpush1.xpose.msra.mxu0 0.0
    %7378 = vmatprep.subr.mxu0 0.0
    %7379 = vmatpush1.xpose.msra.mxu0 0.0
    %7380 = vmatprep.subr.mxu0 0.0
    %7381 = vmatpush1.xpose.msra.mxu0 0.0
    %7382 = vmatprep.subr.mxu0 0.0
    %7383 = vmatpush1.xpose.msra.mxu0 0.0
    %7384 = vmatprep.subr.mxu0 0.0
    %7385 = vmatpush1.xpose.msra.mxu0 0.0
    %7386 = vmatprep.subr.mxu0 0.0
    %7387 = vmatpush1.xpose.msra.mxu0 0.0
    %7388 = vmatprep.subr.mxu0 0.0
    %7389 = vmatpush1.xpose.msra.mxu0 0.0
    %7390 = vmatprep.subr.mxu0 0.0
    %7391 = vmatpush1.xpose.msra.mxu0 0.0
    %7392 = vmatprep.subr.mxu0 0.0
    %7393 = vmatpush1.xpose.msra.mxu0 0.0
    %7394 = vmatprep.subr.mxu0 0.0
    %7395 = vmatpush1.xpose.msra.mxu0 0.0
    %7396 = vmatprep.subr.mxu0 0.0
    %7397 = vmatpush1.xpose.msra.mxu0 0.0
    %7398 = vmatprep.subr.mxu0 0.0
    %7399 = vmatpush1.xpose.msra.mxu0 0.0
    %7400 = vmatprep.subr.mxu0 0.0
    %7401 = vmatpush1.xpose.msra.mxu0 0.0
    %7402 = vmatprep.subr.mxu0 0.0
    %7403 = vmatpush1.xpose.msra.mxu0 0.0
    %7404 = vmatprep.subr.mxu0 0.0
    %7405 = vmatpush1.xpose.msra.mxu0 0.0
    %7406 = vmatprep.subr.mxu0 0.0
    %7407 = vmatpush1.xpose.msra.mxu0 0.0
    %7408 = vmatprep.subr.mxu0 0.0
    %7409 = vmatpush1.xpose.msra.mxu0 0.0
    %7410 = vmatprep.subr.mxu0 0.0
    %7411 = vmatpush1.xpose.msra.mxu0 0.0
    %7412 = vmatprep.subr.mxu0 0.0
    %7413 = vmatpush1.xpose.msra.mxu0 0.0
    %7414 = vmatprep.subr.mxu0 0.0
    %7415 = vmatpush1.xpose.msra.mxu0 0.0
    %7416 = vmatprep.subr.mxu0 0.0
    %7417 = vmatpush1.xpose.msra.mxu0 0.0
    %7418 = vmatprep.subr.mxu0 0.0
    %7419 = vmatpush1.xpose.msra.mxu0 0.0
    %7420 = vmatprep.subr.mxu0 0.0
    %7421 = vmatpush1.xpose.msra.mxu0 0.0
    %7422 = vmatprep.subr.mxu0 0.0
    %7423 = vmatpush1.xpose.msra.mxu0 0.0
    %7424 = vmatprep.subr.mxu0 0.0
    %7425 = vmatpush1.xpose.msra.mxu0 0.0
    %7426 = vmatprep.subr.mxu0 0.0
    %7427 = vmatpush1.xpose.msra.mxu0 0.0
    %7428 = vmatprep.subr.mxu0 0.0
    %7429 = vmatpush1.xpose.msra.mxu0 0.0
    %7430 = vmatprep.subr.mxu0 0.0
    %7431 = vmatpush1.xpose.msra.mxu0 0.0
    %7432 = vmatprep.subr.mxu0 0.0
    %7433 = vmatpush1.xpose.msra.mxu0 0.0
    %7434 = vmatprep.mubr.f32.mxu0 0.0
    %7435 = vmatmul.mubr.f32.gmra.mrb[0].mxu0 %v7366
    %v7436 = vpop.f32.mrb[0].mxu0
    %v7437 = vadd.f32 %v95, %v7436
    %v7438 = vpop.f32.mrb[0].mxu0
    %7439 = vdwg.mxu0
    %7440 = vrot.lane.b32.xlu0 %v7347, 96
    %v7441 = vpop.permute.xlu0 %7440
    %v7442 = vsel %vm257, %v7347, 0
    %v7444 = vsel %vm257, %v7441, 0
    %7446 = vmatprep.subr.mxu0 0.0
    %7447 = vmatpush1.xpose.msra.mxu0 %v7444
    %7448 = vmatprep.subr.mxu0 0.0
    %7449 = vmatpush1.xpose.msra.mxu0 0.0
    %7450 = vmatprep.subr.mxu0 0.0
    %7451 = vmatpush1.xpose.msra.mxu0 0.0
    %7452 = vmatprep.subr.mxu0 0.0
    %7453 = vmatpush1.xpose.msra.mxu0 0.0
    %7454 = vmatprep.subr.mxu0 0.0
    %7455 = vmatpush1.xpose.msra.mxu0 0.0
    %7456 = vmatprep.subr.mxu0 0.0
    %7457 = vmatpush1.xpose.msra.mxu0 0.0
    %7458 = vmatprep.subr.mxu0 0.0
    %7459 = vmatpush1.xpose.msra.mxu0 0.0
    %7460 = vmatprep.subr.mxu0 0.0
    %7461 = vmatpush1.xpose.msra.mxu0 0.0
    %7462 = vmatprep.subr.mxu0 0.0
    %7463 = vmatpush1.xpose.msra.mxu0 0.0
    %7464 = vmatprep.subr.mxu0 0.0
    %7465 = vmatpush1.xpose.msra.mxu0 0.0
    %7466 = vmatprep.subr.mxu0 0.0
    %7467 = vmatpush1.xpose.msra.mxu0 0.0
    %7468 = vmatprep.subr.mxu0 0.0
    %7469 = vmatpush1.xpose.msra.mxu0 0.0
    %7470 = vmatprep.subr.mxu0 0.0
    %7471 = vmatpush1.xpose.msra.mxu0 0.0
    %7472 = vmatprep.subr.mxu0 0.0
    %7473 = vmatpush1.xpose.msra.mxu0 0.0
    %7474 = vmatprep.subr.mxu0 0.0
    %7475 = vmatpush1.xpose.msra.mxu0 0.0
    %7476 = vmatprep.subr.mxu0 0.0
    %7477 = vmatpush1.xpose.msra.mxu0 0.0
    %7478 = vmatprep.subr.mxu0 0.0
    %7479 = vmatpush1.xpose.msra.mxu0 0.0
    %7480 = vmatprep.subr.mxu0 0.0
    %7481 = vmatpush1.xpose.msra.mxu0 0.0
    %7482 = vmatprep.subr.mxu0 0.0
    %7483 = vmatpush1.xpose.msra.mxu0 0.0
    %7484 = vmatprep.subr.mxu0 0.0
    %7485 = vmatpush1.xpose.msra.mxu0 0.0
    %7486 = vmatprep.subr.mxu0 0.0
    %7487 = vmatpush1.xpose.msra.mxu0 0.0
    %7488 = vmatprep.subr.mxu0 0.0
    %7489 = vmatpush1.xpose.msra.mxu0 0.0
    %7490 = vmatprep.subr.mxu0 0.0
    %7491 = vmatpush1.xpose.msra.mxu0 0.0
    %7492 = vmatprep.subr.mxu0 0.0
    %7493 = vmatpush1.xpose.msra.mxu0 0.0
    %7494 = vmatprep.subr.mxu0 0.0
    %7495 = vmatpush1.xpose.msra.mxu0 0.0
    %7496 = vmatprep.subr.mxu0 0.0
    %7497 = vmatpush1.xpose.msra.mxu0 0.0
    %7498 = vmatprep.subr.mxu0 0.0
    %7499 = vmatpush1.xpose.msra.mxu0 0.0
    %7500 = vmatprep.subr.mxu0 0.0
    %7501 = vmatpush1.xpose.msra.mxu0 0.0
    %7502 = vmatprep.subr.mxu0 0.0
    %7503 = vmatpush1.xpose.msra.mxu0 0.0
    %7504 = vmatprep.subr.mxu0 0.0
    %7505 = vmatpush1.xpose.msra.mxu0 0.0
    %7506 = vmatprep.subr.mxu0 0.0
    %7507 = vmatpush1.xpose.msra.mxu0 0.0
    %7508 = vmatprep.subr.mxu0 0.0
    %7509 = vmatpush1.xpose.msra.mxu0 0.0
    %7510 = vmatprep.mubr.f32.mxu0 0.0
    %7511 = vmatmul.mubr.f32.gmra.mrb[0].mxu0 %v7442
    %v7512 = vpop.f32.mrb[0].mxu0
    %v7513 = vadd.f32 %v96, %v7512
    %v7514 = vpop.f32.mrb[0].mxu0
    %7515 = vdwg.mxu0
    %7516 = vrot.lane.b32.xlu0 %v7353, 96
    %v7517 = vpop.permute.xlu0 %7516
    %v7518 = vsel %vm257, %v7353, 0
    %v7520 = vsel %vm257, %v7517, 0
    %7522 = vmatprep.subr.mxu0 0.0
    %7523 = vmatpush1.xpose.msra.mxu0 %v7520
    %7524 = vmatprep.subr.mxu0 0.0
    %7525 = vmatpush1.xpose.msra.mxu0 0.0
    %7526 = vmatprep.subr.mxu0 0.0
    %7527 = vmatpush1.xpose.msra.mxu0 0.0
    %7528 = vmatprep.subr.mxu0 0.0
    %7529 = vmatpush1.xpose.msra.mxu0 0.0
    %7530 = vmatprep.subr.mxu0 0.0
    %7531 = vmatpush1.xpose.msra.mxu0 0.0
    %7532 = vmatprep.subr.mxu0 0.0
    %7533 = vmatpush1.xpose.msra.mxu0 0.0
    %7534 = vmatprep.subr.mxu0 0.0
    %7535 = vmatpush1.xpose.msra.mxu0 0.0
    %7536 = vmatprep.subr.mxu0 0.0
    %7537 = vmatpush1.xpose.msra.mxu0 0.0
    %7538 = vmatprep.subr.mxu0 0.0
    %7539 = vmatpush1.xpose.msra.mxu0 0.0
    %7540 = vmatprep.subr.mxu0 0.0
    %7541 = vmatpush1.xpose.msra.mxu0 0.0
    %7542 = vmatprep.subr.mxu0 0.0
    %7543 = vmatpush1.xpose.msra.mxu0 0.0
    %7544 = vmatprep.subr.mxu0 0.0
    %7545 = vmatpush1.xpose.msra.mxu0 0.0
    %7546 = vmatprep.subr.mxu0 0.0
    %7547 = vmatpush1.xpose.msra.mxu0 0.0
    %7548 = vmatprep.subr.mxu0 0.0
    %7549 = vmatpush1.xpose.msra.mxu0 0.0
    %7550 = vmatprep.subr.mxu0 0.0
    %7551 = vmatpush1.xpose.msra.mxu0 0.0
    %7552 = vmatprep.subr.mxu0 0.0
    %7553 = vmatpush1.xpose.msra.mxu0 0.0
    %7554 = vmatprep.subr.mxu0 0.0
    %7555 = vmatpush1.xpose.msra.mxu0 0.0
    %7556 = vmatprep.subr.mxu0 0.0
    %7557 = vmatpush1.xpose.msra.mxu0 0.0
    %7558 = vmatprep.subr.mxu0 0.0
    %7559 = vmatpush1.xpose.msra.mxu0 0.0
    %7560 = vmatprep.subr.mxu0 0.0
    %7561 = vmatpush1.xpose.msra.mxu0 0.0
    %7562 = vmatprep.subr.mxu0 0.0
    %7563 = vmatpush1.xpose.msra.mxu0 0.0
    %7564 = vmatprep.subr.mxu0 0.0
    %7565 = vmatpush1.xpose.msra.mxu0 0.0
    %7566 = vmatprep.subr.mxu0 0.0
    %7567 = vmatpush1.xpose.msra.mxu0 0.0
    %7568 = vmatprep.subr.mxu0 0.0
    %7569 = vmatpush1.xpose.msra.mxu0 0.0
    %7570 = vmatprep.subr.mxu0 0.0
    %7571 = vmatpush1.xpose.msra.mxu0 0.0
    %7572 = vmatprep.subr.mxu0 0.0
    %7573 = vmatpush1.xpose.msra.mxu0 0.0
    %7574 = vmatprep.subr.mxu0 0.0
    %7575 = vmatpush1.xpose.msra.mxu0 0.0
    %7576 = vmatprep.subr.mxu0 0.0
    %7577 = vmatpush1.xpose.msra.mxu0 0.0
    %7578 = vmatprep.subr.mxu0 0.0
    %7579 = vmatpush1.xpose.msra.mxu0 0.0
    %7580 = vmatprep.subr.mxu0 0.0
    %7581 = vmatpush1.xpose.msra.mxu0 0.0
    %7582 = vmatprep.subr.mxu0 0.0
    %7583 = vmatpush1.xpose.msra.mxu0 0.0
    %7584 = vmatprep.subr.mxu0 0.0
    %7585 = vmatpush1.xpose.msra.mxu0 0.0
    %7586 = vmatprep.mubr.f32.mxu0 0.0
    %7587 = vmatmul.mubr.f32.gmra.mrb[0].mxu0 %v7518
    %v7588 = vpop.f32.mrb[0].mxu0
    %v7589 = vadd.f32 %v95, %v7588
    %v7590 = vpop.f32.mrb[0].mxu0
    %7591 = vdwg.mxu0
    %7592 = vrot.lane.b32.xlu0 %v7355, 96
    %v7593 = vpop.permute.xlu0 %7592
    %v7594 = vsel %vm257, %v7355, 0
    %v7596 = vsel %vm257, %v7593, 0
    %7598 = vmatprep.subr.mxu0 0.0
    %7599 = vmatpush1.xpose.msra.mxu0 %v7596
    %7600 = vmatprep.subr.mxu0 0.0
    %7601 = vmatpush1.xpose.msra.mxu0 0.0
    %7602 = vmatprep.subr.mxu0 0.0
    %7603 = vmatpush1.xpose.msra.mxu0 0.0
    %7604 = vmatprep.subr.mxu0 0.0
    %7605 = vmatpush1.xpose.msra.mxu0 0.0
    %7606 = vmatprep.subr.mxu0 0.0
    %7607 = vmatpush1.xpose.msra.mxu0 0.0
    %7608 = vmatprep.subr.mxu0 0.0
    %7609 = vmatpush1.xpose.msra.mxu0 0.0
    %7610 = vmatprep.subr.mxu0 0.0
    %7611 = vmatpush1.xpose.msra.mxu0 0.0
    %7612 = vmatprep.subr.mxu0 0.0
    %7613 = vmatpush1.xpose.msra.mxu0 0.0
    %7614 = vmatprep.subr.mxu0 0.0
    %7615 = vmatpush1.xpose.msra.mxu0 0.0
    %7616 = vmatprep.subr.mxu0 0.0
    %7617 = vmatpush1.xpose.msra.mxu0 0.0
    %7618 = vmatprep.subr.mxu0 0.0
    %7619 = vmatpush1.xpose.msra.mxu0 0.0
    %7620 = vmatprep.subr.mxu0 0.0
    %7621 = vmatpush1.xpose.msra.mxu0 0.0
    %7622 = vmatprep.subr.mxu0 0.0
    %7623 = vmatpush1.xpose.msra.mxu0 0.0
    %7624 = vmatprep.subr.mxu0 0.0
    %7625 = vmatpush1.xpose.msra.mxu0 0.0
    %7626 = vmatprep.subr.mxu0 0.0
    %7627 = vmatpush1.xpose.msra.mxu0 0.0
    %7628 = vmatprep.subr.mxu0 0.0
    %7629 = vmatpush1.xpose.msra.mxu0 0.0
    %7630 = vmatprep.subr.mxu0 0.0
    %7631 = vmatpush1.xpose.msra.mxu0 0.0
    %7632 = vmatprep.subr.mxu0 0.0
    %7633 = vmatpush1.xpose.msra.mxu0 0.0
    %7634 = vmatprep.subr.mxu0 0.0
    %7635 = vmatpush1.xpose.msra.mxu0 0.0
    %7636 = vmatprep.subr.mxu0 0.0
    %7637 = vmatpush1.xpose.msra.mxu0 0.0
    %7638 = vmatprep.subr.mxu0 0.0
    %7639 = vmatpush1.xpose.msra.mxu0 0.0
    %7640 = vmatprep.subr.mxu0 0.0
    %7641 = vmatpush1.xpose.msra.mxu0 0.0
    %7642 = vmatprep.subr.mxu0 0.0
    %7643 = vmatpush1.xpose.msra.mxu0 0.0
    %7644 = vmatprep.subr.mxu0 0.0
    %7645 = vmatpush1.xpose.msra.mxu0 0.0
    %7646 = vmatprep.subr.mxu0 0.0
    %7647 = vmatpush1.xpose.msra.mxu0 0.0
    %7648 = vmatprep.subr.mxu0 0.0
    %7649 = vmatpush1.xpose.msra.mxu0 0.0
    %7650 = vmatprep.subr.mxu0 0.0
    %7651 = vmatpush1.xpose.msra.mxu0 0.0
    %7652 = vmatprep.subr.mxu0 0.0
    %7653 = vmatpush1.xpose.msra.mxu0 0.0
    %7654 = vmatprep.subr.mxu0 0.0
    %7655 = vmatpush1.xpose.msra.mxu0 0.0
    %7656 = vmatprep.subr.mxu0 0.0
    %7657 = vmatpush1.xpose.msra.mxu0 0.0
    %7658 = vmatprep.subr.mxu0 0.0
    %7659 = vmatpush1.xpose.msra.mxu0 0.0
    %7660 = vmatprep.subr.mxu0 0.0
    %7661 = vmatpush1.xpose.msra.mxu0 0.0
    %7662 = vmatprep.mubr.f32.mxu0 0.0
    %7663 = vmatmul.mubr.f32.gmra.mrb[0].mxu0 %v7594
    %v7664 = vpop.f32.mrb[0].mxu0
    %v7665 = vadd.f32 %v96, %v7664
    %v7666 = vpop.f32.mrb[0].mxu0
    %7667 = vdwg.mxu0
    %7668 = vrot.lane.b32.xlu0 %v7357, 96
    %v7669 = vpop.permute.xlu0 %7668
    %v7670 = vsel %vm257, %v7357, 0
    %v7672 = vsel %vm257, %v7669, 0
    %7674 = vmatprep.subr.mxu0 0.0
    %7675 = vmatpush1.xpose.msra.mxu0 %v7672
    %7676 = vmatprep.subr.mxu0 0.0
    %7677 = vmatpush1.xpose.msra.mxu0 0.0
    %7678 = vmatprep.subr.mxu0 0.0
    %7679 = vmatpush1.xpose.msra.mxu0 0.0
    %7680 = vmatprep.subr.mxu0 0.0
    %7681 = vmatpush1.xpose.msra.mxu0 0.0
    %7682 = vmatprep.subr.mxu0 0.0
    %7683 = vmatpush1.xpose.msra.mxu0 0.0
    %7684 = vmatprep.subr.mxu0 0.0
    %7685 = vmatpush1.xpose.msra.mxu0 0.0
    %7686 = vmatprep.subr.mxu0 0.0
    %7687 = vmatpush1.xpose.msra.mxu0 0.0
    %7688 = vmatprep.subr.mxu0 0.0
    %7689 = vmatpush1.xpose.msra.mxu0 0.0
    %7690 = vmatprep.subr.mxu0 0.0
    %7691 = vmatpush1.xpose.msra.mxu0 0.0
    %7692 = vmatprep.subr.mxu0 0.0
    %7693 = vmatpush1.xpose.msra.mxu0 0.0
    %7694 = vmatprep.subr.mxu0 0.0
    %7695 = vmatpush1.xpose.msra.mxu0 0.0
    %7696 = vmatprep.subr.mxu0 0.0
    %7697 = vmatpush1.xpose.msra.mxu0 0.0
    %7698 = vmatprep.subr.mxu0 0.0
    %7699 = vmatpush1.xpose.msra.mxu0 0.0
    %7700 = vmatprep.subr.mxu0 0.0
    %7701 = vmatpush1.xpose.msra.mxu0 0.0
    %7702 = vmatprep.subr.mxu0 0.0
    %7703 = vmatpush1.xpose.msra.mxu0 0.0
    %7704 = vmatprep.subr.mxu0 0.0
    %7705 = vmatpush1.xpose.msra.mxu0 0.0
    %7706 = vmatprep.subr.mxu0 0.0
    %7707 = vmatpush1.xpose.msra.mxu0 0.0
    %7708 = vmatprep.subr.mxu0 0.0
    %7709 = vmatpush1.xpose.msra.mxu0 0.0
    %7710 = vmatprep.subr.mxu0 0.0
    %7711 = vmatpush1.xpose.msra.mxu0 0.0
    %7712 = vmatprep.subr.mxu0 0.0
    %7713 = vmatpush1.xpose.msra.mxu0 0.0
    %7714 = vmatprep.subr.mxu0 0.0
    %7715 = vmatpush1.xpose.msra.mxu0 0.0
    %7716 = vmatprep.subr.mxu0 0.0
    %7717 = vmatpush1.xpose.msra.mxu0 0.0
    %7718 = vmatprep.subr.mxu0 0.0
    %7719 = vmatpush1.xpose.msra.mxu0 0.0
    %7720 = vmatprep.subr.mxu0 0.0
    %7721 = vmatpush1.xpose.msra.mxu0 0.0
    %7722 = vmatprep.subr.mxu0 0.0
    %7723 = vmatpush1.xpose.msra.mxu0 0.0
    %7724 = vmatprep.subr.mxu0 0.0
    %7725 = vmatpush1.xpose.msra.mxu0 0.0
    %7726 = vmatprep.subr.mxu0 0.0
    %7727 = vmatpush1.xpose.msra.mxu0 0.0
    %7728 = vmatprep.subr.mxu0 0.0
    %7729 = vmatpush1.xpose.msra.mxu0 0.0
    %7730 = vmatprep.subr.mxu0 0.0
    %7731 = vmatpush1.xpose.msra.mxu0 0.0
    %7732 = vmatprep.subr.mxu0 0.0
    %7733 = vmatpush1.xpose.msra.mxu0 0.0
    %7734 = vmatprep.subr.mxu0 0.0
    %7735 = vmatpush1.xpose.msra.mxu0 0.0
    %7736 = vmatprep.subr.mxu0 0.0
    %7737 = vmatpush1.xpose.msra.mxu0 0.0
    %7738 = vmatprep.mubr.f32.mxu0 0.0
    %7739 = vmatmul.mubr.f32.gmra.mrb[0].mxu0 %v7670
    %v7740 = vpop.f32.mrb[0].mxu0
    %v7741 = vadd.f32 %v95, %v7740
    %v7742 = vpop.f32.mrb[0].mxu0
    %7743 = vdwg.mxu0
    %7744 = vrot.lane.b32.xlu0 %v7359, 96
    %v7745 = vpop.permute.xlu0 %7744
    %v7746 = vsel %vm257, %v7359, 0
    %v7748 = vsel %vm257, %v7745, 0
    %7750 = vmatprep.subr.mxu0 0.0
    %7751 = vmatpush1.xpose.msra.mxu0 %v7748
    %7752 = vmatprep.subr.mxu0 0.0
    %7753 = vmatpush1.xpose.msra.mxu0 0.0
    %7754 = vmatprep.subr.mxu0 0.0
    %7755 = vmatpush1.xpose.msra.mxu0 0.0
    %7756 = vmatprep.subr.mxu0 0.0
    %7757 = vmatpush1.xpose.msra.mxu0 0.0
    %7758 = vmatprep.subr.mxu0 0.0
    %7759 = vmatpush1.xpose.msra.mxu0 0.0
    %7760 = vmatprep.subr.mxu0 0.0
    %7761 = vmatpush1.xpose.msra.mxu0 0.0
    %7762 = vmatprep.subr.mxu0 0.0
    %7763 = vmatpush1.xpose.msra.mxu0 0.0
    %7764 = vmatprep.subr.mxu0 0.0
    %7765 = vmatpush1.xpose.msra.mxu0 0.0
    %7766 = vmatprep.subr.mxu0 0.0
    %7767 = vmatpush1.xpose.msra.mxu0 0.0
    %7768 = vmatprep.subr.mxu0 0.0
    %7769 = vmatpush1.xpose.msra.mxu0 0.0
    %7770 = vmatprep.subr.mxu0 0.0
    %7771 = vmatpush1.xpose.msra.mxu0 0.0
    %7772 = vmatprep.subr.mxu0 0.0
    %7773 = vmatpush1.xpose.msra.mxu0 0.0
    %7774 = vmatprep.subr.mxu0 0.0
    %7775 = vmatpush1.xpose.msra.mxu0 0.0
    %7776 = vmatprep.subr.mxu0 0.0
    %7777 = vmatpush1.xpose.msra.mxu0 0.0
    %7778 = vmatprep.subr.mxu0 0.0
    %7779 = vmatpush1.xpose.msra.mxu0 0.0
    %7780 = vmatprep.subr.mxu0 0.0
    %7781 = vmatpush1.xpose.msra.mxu0 0.0
    %7782 = vmatprep.subr.mxu0 0.0
    %7783 = vmatpush1.xpose.msra.mxu0 0.0
    %7784 = vmatprep.subr.mxu0 0.0
    %7785 = vmatpush1.xpose.msra.mxu0 0.0
    %7786 = vmatprep.subr.mxu0 0.0
    %7787 = vmatpush1.xpose.msra.mxu0 0.0
    %7788 = vmatprep.subr.mxu0 0.0
    %7789 = vmatpush1.xpose.msra.mxu0 0.0
    %7790 = vmatprep.subr.mxu0 0.0
    %7791 = vmatpush1.xpose.msra.mxu0 0.0
    %7792 = vmatprep.subr.mxu0 0.0
    %7793 = vmatpush1.xpose.msra.mxu0 0.0
    %7794 = vmatprep.subr.mxu0 0.0
    %7795 = vmatpush1.xpose.msra.mxu0 0.0
    %7796 = vmatprep.subr.mxu0 0.0
    %7797 = vmatpush1.xpose.msra.mxu0 0.0
    %7798 = vmatprep.subr.mxu0 0.0
    %7799 = vmatpush1.xpose.msra.mxu0 0.0
    %7800 = vmatprep.subr.mxu0 0.0
    %7801 = vmatpush1.xpose.msra.mxu0 0.0
    %7802 = vmatprep.subr.mxu0 0.0
    %7803 = vmatpush1.xpose.msra.mxu0 0.0
    %7804 = vmatprep.subr.mxu0 0.0
    %7805 = vmatpush1.xpose.msra.mxu0 0.0
    %7806 = vmatprep.subr.mxu0 0.0
    %7807 = vmatpush1.xpose.msra.mxu0 0.0
    %7808 = vmatprep.subr.mxu0 0.0
    %7809 = vmatpush1.xpose.msra.mxu0 0.0
    %7810 = vmatprep.subr.mxu0 0.0
    %7811 = vmatpush1.xpose.msra.mxu0 0.0
    %7812 = vmatprep.subr.mxu0 0.0
    %7813 = vmatpush1.xpose.msra.mxu0 0.0
    %7814 = vmatprep.mubr.f32.mxu0 0.0
    %7815 = vmatmul.mubr.f32.gmra.mrb[0].mxu0 %v7746
    %v7816 = vpop.f32.mrb[0].mxu0
    %v7817 = vadd.f32 %v96, %v7816
    %v7818 = vpop.f32.mrb[0].mxu0
    %7819 = vdwg.mxu0
    %7820 = vrot.lane.b32.xlu0 %v7361, 96
    %v7821 = vpop.permute.xlu0 %7820
    %v7822 = vsel %vm257, %v7361, 0
    %v7824 = vsel %vm257, %v7821, 0
    %7826 = vmatprep.subr.mxu0 0.0
    %7827 = vmatpush1.xpose.msra.mxu0 %v7824
    %7828 = vmatprep.subr.mxu0 0.0
    %7829 = vmatpush1.xpose.msra.mxu0 0.0
    %7830 = vmatprep.subr.mxu0 0.0
    %7831 = vmatpush1.xpose.msra.mxu0 0.0
    %7832 = vmatprep.subr.mxu0 0.0
    %7833 = vmatpush1.xpose.msra.mxu0 0.0
    %7834 = vmatprep.subr.mxu0 0.0
    %7835 = vmatpush1.xpose.msra.mxu0 0.0
    %7836 = vmatprep.subr.mxu0 0.0
    %7837 = vmatpush1.xpose.msra.mxu0 0.0
    %7838 = vmatprep.subr.mxu0 0.0
    %7839 = vmatpush1.xpose.msra.mxu0 0.0
    %7840 = vmatprep.subr.mxu0 0.0
    %7841 = vmatpush1.xpose.msra.mxu0 0.0
    %7842 = vmatprep.subr.mxu0 0.0
    %7843 = vmatpush1.xpose.msra.mxu0 0.0
    %7844 = vmatprep.subr.mxu0 0.0
    %7845 = vmatpush1.xpose.msra.mxu0 0.0
    %7846 = vmatprep.subr.mxu0 0.0
    %7847 = vmatpush1.xpose.msra.mxu0 0.0
    %7848 = vmatprep.subr.mxu0 0.0
    %7849 = vmatpush1.xpose.msra.mxu0 0.0
    %7850 = vmatprep.subr.mxu0 0.0
    %7851 = vmatpush1.xpose.msra.mxu0 0.0
    %7852 = vmatprep.subr.mxu0 0.0
    %7853 = vmatpush1.xpose.msra.mxu0 0.0
    %7854 = vmatprep.subr.mxu0 0.0
    %7855 = vmatpush1.xpose.msra.mxu0 0.0
    %7856 = vmatprep.subr.mxu0 0.0
    %7857 = vmatpush1.xpose.msra.mxu0 0.0
    %7858 = vmatprep.subr.mxu0 0.0
    %7859 = vmatpush1.xpose.msra.mxu0 0.0
    %7860 = vmatprep.subr.mxu0 0.0
    %7861 = vmatpush1.xpose.msra.mxu0 0.0
    %7862 = vmatprep.subr.mxu0 0.0
    %7863 = vmatpush1.xpose.msra.mxu0 0.0
    %7864 = vmatprep.subr.mxu0 0.0
    %7865 = vmatpush1.xpose.msra.mxu0 0.0
    %7866 = vmatprep.subr.mxu0 0.0
    %7867 = vmatpush1.xpose.msra.mxu0 0.0
    %7868 = vmatprep.subr.mxu0 0.0
    %7869 = vmatpush1.xpose.msra.mxu0 0.0
    %7870 = vmatprep.subr.mxu0 0.0
    %7871 = vmatpush1.xpose.msra.mxu0 0.0
    %7872 = vmatprep.subr.mxu0 0.0
    %7873 = vmatpush1.xpose.msra.mxu0 0.0
    %7874 = vmatprep.subr.mxu0 0.0
    %7875 = vmatpush1.xpose.msra.mxu0 0.0
    %7876 = vmatprep.subr.mxu0 0.0
    %7877 = vmatpush1.xpose.msra.mxu0 0.0
    %7878 = vmatprep.subr.mxu0 0.0
    %7879 = vmatpush1.xpose.msra.mxu0 0.0
    %7880 = vmatprep.subr.mxu0 0.0
    %7881 = vmatpush1.xpose.msra.mxu0 0.0
    %7882 = vmatprep.subr.mxu0 0.0
    %7883 = vmatpush1.xpose.msra.mxu0 0.0
    %7884 = vmatprep.subr.mxu0 0.0
    %7885 = vmatpush1.xpose.msra.mxu0 0.0
    %7886 = vmatprep.subr.mxu0 0.0
    %7887 = vmatpush1.xpose.msra.mxu0 0.0
    %7888 = vmatprep.subr.mxu0 0.0
    %7889 = vmatpush1.xpose.msra.mxu0 0.0
    %7890 = vmatprep.mubr.f32.mxu0 0.0
    %7891 = vmatmul.mubr.f32.gmra.mrb[0].mxu0 %v7822
    %v7892 = vpop.f32.mrb[0].mxu0
    %v7893 = vadd.f32 %v95, %v7892
    %v7894 = vpop.f32.mrb[0].mxu0
    %7895 = vdwg.mxu0
    %7896 = vrot.lane.b32.xlu0 %v7363, 96
    %v7897 = vpop.permute.xlu0 %7896
    %v7898 = vsel %vm257, %v7363, 0
    %v7900 = vsel %vm257, %v7897, 0
    %7902 = vmatprep.subr.mxu0 0.0
    %7903 = vmatpush1.xpose.msra.mxu0 %v7900
    %7904 = vmatprep.subr.mxu0 0.0
    %7905 = vmatpush1.xpose.msra.mxu0 0.0
    %7906 = vmatprep.subr.mxu0 0.0
    %7907 = vmatpush1.xpose.msra.mxu0 0.0
    %7908 = vmatprep.subr.mxu0 0.0
    %7909 = vmatpush1.xpose.msra.mxu0 0.0
    %7910 = vmatprep.subr.mxu0 0.0
    %7911 = vmatpush1.xpose.msra.mxu0 0.0
    %7912 = vmatprep.subr.mxu0 0.0
    %7913 = vmatpush1.xpose.msra.mxu0 0.0
    %7914 = vmatprep.subr.mxu0 0.0
    %7915 = vmatpush1.xpose.msra.mxu0 0.0
    %7916 = vmatprep.subr.mxu0 0.0
    %7917 = vmatpush1.xpose.msra.mxu0 0.0
    %7918 = vmatprep.subr.mxu0 0.0
    %7919 = vmatpush1.xpose.msra.mxu0 0.0
    %7920 = vmatprep.subr.mxu0 0.0
    %7921 = vmatpush1.xpose.msra.mxu0 0.0
    %7922 = vmatprep.subr.mxu0 0.0
    %7923 = vmatpush1.xpose.msra.mxu0 0.0
    %7924 = vmatprep.subr.mxu0 0.0
    %7925 = vmatpush1.xpose.msra.mxu0 0.0
    %7926 = vmatprep.subr.mxu0 0.0
    %7927 = vmatpush1.xpose.msra.mxu0 0.0
    %7928 = vmatprep.subr.mxu0 0.0
    %7929 = vmatpush1.xpose.msra.mxu0 0.0
    %7930 = vmatprep.subr.mxu0 0.0
    %7931 = vmatpush1.xpose.msra.mxu0 0.0
    %7932 = vmatprep.subr.mxu0 0.0
    %7933 = vmatpush1.xpose.msra.mxu0 0.0
    %7934 = vmatprep.subr.mxu0 0.0
    %7935 = vmatpush1.xpose.msra.mxu0 0.0
    %7936 = vmatprep.subr.mxu0 0.0
    %7937 = vmatpush1.xpose.msra.mxu0 0.0
    %7938 = vmatprep.subr.mxu0 0.0
    %7939 = vmatpush1.xpose.msra.mxu0 0.0
    %7940 = vmatprep.subr.mxu0 0.0
    %7941 = vmatpush1.xpose.msra.mxu0 0.0
    %7942 = vmatprep.subr.mxu0 0.0
    %7943 = vmatpush1.xpose.msra.mxu0 0.0
    %7944 = vmatprep.subr.mxu0 0.0
    %7945 = vmatpush1.xpose.msra.mxu0 0.0
    %7946 = vmatprep.subr.mxu0 0.0
    %7947 = vmatpush1.xpose.msra.mxu0 0.0
    %7948 = vmatprep.subr.mxu0 0.0
    %7949 = vmatpush1.xpose.msra.mxu0 0.0
    %7950 = vmatprep.subr.mxu0 0.0
    %7951 = vmatpush1.xpose.msra.mxu0 0.0
    %7952 = vmatprep.subr.mxu0 0.0
    %7953 = vmatpush1.xpose.msra.mxu0 0.0
    %7954 = vmatprep.subr.mxu0 0.0
    %7955 = vmatpush1.xpose.msra.mxu0 0.0
    %7956 = vmatprep.subr.mxu0 0.0
    %7957 = vmatpush1.xpose.msra.mxu0 0.0
    %7958 = vmatprep.subr.mxu0 0.0
    %7959 = vmatpush1.xpose.msra.mxu0 0.0
    %7960 = vmatprep.subr.mxu0 0.0
    %7961 = vmatpush1.xpose.msra.mxu0 0.0
    %7962 = vmatprep.subr.mxu0 0.0
    %7963 = vmatpush1.xpose.msra.mxu0 0.0
    %7964 = vmatprep.subr.mxu0 0.0
    %7965 = vmatpush1.xpose.msra.mxu0 0.0
    %7966 = vmatprep.mubr.f32.mxu0 0.0
    %7967 = vmatmul.mubr.f32.gmra.mrb[0].mxu0 %v7898
    %v7968 = vpop.f32.mrb[0].mxu0
    %v7969 = vadd.f32 %v96, %v7968
    %v7970 = vpop.f32.mrb[0].mxu0
    %7971 = vdwg.mxu0
    %v7972 = vsel %vm257, %v7437, -inf
    %7973 = vmax.xlane.f32.xlu0 %v7972
    %v7974 = vpop.xlane.xlu0 %7973
    %v7975 = vsel %vm257, %v7513, -inf
    %7976 = vmax.xlane.f32.xlu0 %v7975
    %v7977 = vpop.xlane.xlu0 %7976
    %v7978 = vsel %vm257, %v7589, -inf
    %7979 = vmax.xlane.f32.xlu0 %v7978
    %v7980 = vpop.xlane.xlu0 %7979
    %v7981 = vsel %vm257, %v7665, -inf
    %7982 = vmax.xlane.f32.xlu0 %v7981
    %v7983 = vpop.xlane.xlu0 %7982
    %v7984 = vsel %vm257, %v7741, -inf
    %7985 = vmax.xlane.f32.xlu0 %v7984
    %v7986 = vpop.xlane.xlu0 %7985
    %v7987 = vsel %vm257, %v7817, -inf
    %7988 = vmax.xlane.f32.xlu0 %v7987
    %v7989 = vpop.xlane.xlu0 %7988
    %v7990 = vsel %vm257, %v7893, -inf
    %7991 = vmax.xlane.f32.xlu0 %v7990
    %v7992 = vpop.xlane.xlu0 %7991
    %v7993 = vsel %vm257, %v7969, -inf
    %7994 = vmax.xlane.f32.xlu0 %v7993
    %v7995 = vpop.xlane.xlu0 %7994
    %v7996 = vsub.f32 %v7437, %v7974
    %v7997 = vsub.f32 %v7513, %v7977
    %v7998 = vsub.f32 %v7589, %v7980
    %v7999 = vsub.f32 %v7665, %v7983
    %v8000 = vsub.f32 %v7741, %v7986
    %v8001 = vsub.f32 %v7817, %v7989
    %v8002 = vsub.f32 %v7893, %v7992
    %v8003 = vsub.f32 %v7969, %v7995
    %v8004 = vmul.f32 %v7996, 1.442695
    %v8005 = vpow.pop %v8004
    %v8006 = vmul.f32 %v7997, 1.442695
    %v8007 = vpow.pop %v8006
    %v8008 = vmul.f32 %v7998, 1.442695
    %v8009 = vpow.pop %v8008
    %v8010 = vmul.f32 %v7999, 1.442695
    %v8011 = vpow.pop %v8010
    %v8012 = vmul.f32 %v8000, 1.442695
    %v8013 = vpow.pop %v8012
    %v8014 = vmul.f32 %v8001, 1.442695
    %v8015 = vpow.pop %v8014
    %v8016 = vmul.f32 %v8002, 1.442695
    %v8017 = vpow.pop %v8016
    %v8018 = vmul.f32 %v8003, 1.442695
    %v8019 = vpow.pop %v8018
    %v8020 = vsel %vm257, %v8005, 0.0
    %8021 = vadd.xlane.f32.xlu0 %v8020
    %v8022 = vpop.xlane.xlu0 %8021
    %v8023 = vsel %vm257, %v8007, 0.0
    %8024 = vadd.xlane.f32.xlu0 %v8023
    %v8025 = vpop.xlane.xlu0 %8024
    %v8026 = vsel %vm257, %v8009, 0.0
    %8027 = vadd.xlane.f32.xlu0 %v8026
    %v8028 = vpop.xlane.xlu0 %8027
    %v8029 = vsel %vm257, %v8011, 0.0
    %8030 = vadd.xlane.f32.xlu0 %v8029
    %v8031 = vpop.xlane.xlu0 %8030
    %v8032 = vsel %vm257, %v8013, 0.0
    %8033 = vadd.xlane.f32.xlu0 %v8032
    %v8034 = vpop.xlane.xlu0 %8033
    %v8035 = vsel %vm257, %v8015, 0.0
    %8036 = vadd.xlane.f32.xlu0 %v8035
    %v8037 = vpop.xlane.xlu0 %8036
    %v8038 = vsel %vm257, %v8017, 0.0
    %8039 = vadd.xlane.f32.xlu0 %v8038
    %v8040 = vpop.xlane.xlu0 %8039
    %v8041 = vsel %vm257, %v8019, 0.0
    %8042 = vadd.xlane.f32.xlu0 %v8041
    %v8043 = vpop.xlane.xlu0 %8042
    %v8044 = vrcp.pop %v8022
    %v8045 = vrcp.pop %v8025
    %v8046 = vrcp.pop %v8028
    %v8047 = vrcp.pop %v8031
    %v8048 = vrcp.pop %v8034
    %v8049 = vrcp.pop %v8037
    %v8050 = vrcp.pop %v8040
    %v8051 = vrcp.pop %v8043
    %v8052 = vmul.f32 %v8005, %v8044
    %v8053 = vmul.f32 %v8007, %v8045
    %v8054 = vmul.f32 %v8009, %v8046
    %v8055 = vmul.f32 %v8011, %v8047
    %v8056 = vmul.f32 %v8013, %v8048
    %v8057 = vmul.f32 %v8015, %v8049
    %v8058 = vmul.f32 %v8017, %v8050
    %v8059 = vmul.f32 %v8019, %v8051
    %8060 = vrot.lane.b32.xlu0 %v7342, 64
    %v8061 = vpop.permute.xlu0 %8060
    %v8064 = vsel %vm257, %v8052, 0
    %8066 = vmatprep.subr.mxu0 0.0
    %8067 = vmatpush1.msra.mxu0 %v8061
    %8068 = vmatprep.subr.mxu0 0.0
    %8069 = vmatpush1.msra.mxu0 0.0
    %8070 = vmatprep.subr.mxu0 0.0
    %8071 = vmatpush1.msra.mxu0 0.0
    %8072 = vmatprep.subr.mxu0 0.0
    %8073 = vmatpush1.msra.mxu0 0.0
    %8074 = vmatprep.subr.mxu0 0.0
    %8075 = vmatpush1.msra.mxu0 0.0
    %8076 = vmatprep.subr.mxu0 0.0
    %8077 = vmatpush1.msra.mxu0 0.0
    %8078 = vmatprep.subr.mxu0 0.0
    %8079 = vmatpush1.msra.mxu0 0.0
    %8080 = vmatprep.subr.mxu0 0.0
    %8081 = vmatpush1.msra.mxu0 0.0
    %8082 = vmatprep.subr.mxu0 0.0
    %8083 = vmatpush1.msra.mxu0 0.0
    %8084 = vmatprep.subr.mxu0 0.0
    %8085 = vmatpush1.msra.mxu0 0.0
    %8086 = vmatprep.subr.mxu0 0.0
    %8087 = vmatpush1.msra.mxu0 0.0
    %8088 = vmatprep.subr.mxu0 0.0
    %8089 = vmatpush1.msra.mxu0 0.0
    %8090 = vmatprep.subr.mxu0 0.0
    %8091 = vmatpush1.msra.mxu0 0.0
    %8092 = vmatprep.subr.mxu0 0.0
    %8093 = vmatpush1.msra.mxu0 0.0
    %8094 = vmatprep.subr.mxu0 0.0
    %8095 = vmatpush1.msra.mxu0 0.0
    %8096 = vmatprep.subr.mxu0 0.0
    %8097 = vmatpush1.msra.mxu0 0.0
    %8098 = vmatprep.subr.mxu0 0.0
    %8099 = vmatpush1.msra.mxu0 0.0
    %8100 = vmatprep.subr.mxu0 0.0
    %8101 = vmatpush1.msra.mxu0 0.0
    %8102 = vmatprep.subr.mxu0 0.0
    %8103 = vmatpush1.msra.mxu0 0.0
    %8104 = vmatprep.subr.mxu0 0.0
    %8105 = vmatpush1.msra.mxu0 0.0
    %8106 = vmatprep.subr.mxu0 0.0
    %8107 = vmatpush1.msra.mxu0 0.0
    %8108 = vmatprep.subr.mxu0 0.0
    %8109 = vmatpush1.msra.mxu0 0.0
    %8110 = vmatprep.subr.mxu0 0.0
    %8111 = vmatpush1.msra.mxu0 0.0
    %8112 = vmatprep.subr.mxu0 0.0
    %8113 = vmatpush1.msra.mxu0 0.0
    %8114 = vmatprep.subr.mxu0 0.0
    %8115 = vmatpush1.msra.mxu0 0.0
    %8116 = vmatprep.subr.mxu0 0.0
    %8117 = vmatpush1.msra.mxu0 0.0
    %8118 = vmatprep.subr.mxu0 0.0
    %8119 = vmatpush1.msra.mxu0 0.0
    %8120 = vmatprep.subr.mxu0 0.0
    %8121 = vmatpush1.msra.mxu0 0.0
    %8122 = vmatprep.subr.mxu0 0.0
    %8123 = vmatpush1.msra.mxu0 0.0
    %8124 = vmatprep.subr.mxu0 0.0
    %8125 = vmatpush1.msra.mxu0 0.0
    %8126 = vmatprep.subr.mxu0 0.0
    %8127 = vmatpush1.msra.mxu0 0.0
    %8128 = vmatprep.subr.mxu0 0.0
    %8129 = vmatpush1.msra.mxu0 0.0
    %8130 = vmatprep.mubr.f32.mxu0 0.0
    %8131 = vmatmul.mubr.f32.gmra.mrb[0].mxu0 %v8064
    %v8132 = vpop.f32.mrb[0].mxu0
    %v8133 = vadd.f32 0.0, %v8132
    %v8134 = vpop.f32.mrb[0].mxu0
    %8135 = vdwg.mxu0
    %8136 = vrot.lane.b32.xlu0 %v7347, 64
    %v8137 = vpop.permute.xlu0 %8136
    %v8140 = vsel %vm257, %v8053, 0
    %8142 = vmatprep.subr.mxu0 0.0
    %8143 = vmatpush1.msra.mxu0 %v8137
    %8144 = vmatprep.subr.mxu0 0.0
    %8145 = vmatpush1.msra.mxu0 0.0
    %8146 = vmatprep.subr.mxu0 0.0
    %8147 = vmatpush1.msra.mxu0 0.0
    %8148 = vmatprep.subr.mxu0 0.0
    %8149 = vmatpush1.msra.mxu0 0.0
    %8150 = vmatprep.subr.mxu0 0.0
    %8151 = vmatpush1.msra.mxu0 0.0
    %8152 = vmatprep.subr.mxu0 0.0
    %8153 = vmatpush1.msra.mxu0 0.0
    %8154 = vmatprep.subr.mxu0 0.0
    %8155 = vmatpush1.msra.mxu0 0.0
    %8156 = vmatprep.subr.mxu0 0.0
    %8157 = vmatpush1.msra.mxu0 0.0
    %8158 = vmatprep.subr.mxu0 0.0
    %8159 = vmatpush1.msra.mxu0 0.0
    %8160 = vmatprep.subr.mxu0 0.0
    %8161 = vmatpush1.msra.mxu0 0.0
    %8162 = vmatprep.subr.mxu0 0.0
    %8163 = vmatpush1.msra.mxu0 0.0
    %8164 = vmatprep.subr.mxu0 0.0
    %8165 = vmatpush1.msra.mxu0 0.0
    %8166 = vmatprep.subr.mxu0 0.0
    %8167 = vmatpush1.msra.mxu0 0.0
    %8168 = vmatprep.subr.mxu0 0.0
    %8169 = vmatpush1.msra.mxu0 0.0
    %8170 = vmatprep.subr.mxu0 0.0
    %8171 = vmatpush1.msra.mxu0 0.0
    %8172 = vmatprep.subr.mxu0 0.0
    %8173 = vmatpush1.msra.mxu0 0.0
    %8174 = vmatprep.subr.mxu0 0.0
    %8175 = vmatpush1.msra.mxu0 0.0
    %8176 = vmatprep.subr.mxu0 0.0
    %8177 = vmatpush1.msra.mxu0 0.0
    %8178 = vmatprep.subr.mxu0 0.0
    %8179 = vmatpush1.msra.mxu0 0.0
    %8180 = vmatprep.subr.mxu0 0.0
    %8181 = vmatpush1.msra.mxu0 0.0
    %8182 = vmatprep.subr.mxu0 0.0
    %8183 = vmatpush1.msra.mxu0 0.0
    %8184 = vmatprep.subr.mxu0 0.0
    %8185 = vmatpush1.msra.mxu0 0.0
    %8186 = vmatprep.subr.mxu0 0.0
    %8187 = vmatpush1.msra.mxu0 0.0
    %8188 = vmatprep.subr.mxu0 0.0
    %8189 = vmatpush1.msra.mxu0 0.0
    %8190 = vmatprep.subr.mxu0 0.0
    %8191 = vmatpush1.msra.mxu0 0.0
    %8192 = vmatprep.subr.mxu0 0.0
    %8193 = vmatpush1.msra.mxu0 0.0
    %8194 = vmatprep.subr.mxu0 0.0
    %8195 = vmatpush1.msra.mxu0 0.0
    %8196 = vmatprep.subr.mxu0 0.0
    %8197 = vmatpush1.msra.mxu0 0.0
    %8198 = vmatprep.subr.mxu0 0.0
    %8199 = vmatpush1.msra.mxu0 0.0
    %8200 = vmatprep.subr.mxu0 0.0
    %8201 = vmatpush1.msra.mxu0 0.0
    %8202 = vmatprep.subr.mxu0 0.0
    %8203 = vmatpush1.msra.mxu0 0.0
    %8204 = vmatprep.subr.mxu0 0.0
    %8205 = vmatpush1.msra.mxu0 0.0
    %8206 = vmatprep.mubr.f32.mxu0 0.0
    %8207 = vmatmul.mubr.f32.gmra.mrb[0].mxu0 %v8140
    %v8208 = vpop.f32.mrb[0].mxu0
    %v8209 = vadd.f32 0.0, %v8208
    %v8210 = vpop.f32.mrb[0].mxu0
    %8211 = vdwg.mxu0
    %8212 = vrot.lane.b32.xlu0 %v7353, 64
    %v8213 = vpop.permute.xlu0 %8212
    %v8216 = vsel %vm257, %v8054, 0
    %8218 = vmatprep.subr.mxu0 0.0
    %8219 = vmatpush1.msra.mxu0 %v8213
    %8220 = vmatprep.subr.mxu0 0.0
    %8221 = vmatpush1.msra.mxu0 0.0
    %8222 = vmatprep.subr.mxu0 0.0
    %8223 = vmatpush1.msra.mxu0 0.0
    %8224 = vmatprep.subr.mxu0 0.0
    %8225 = vmatpush1.msra.mxu0 0.0
    %8226 = vmatprep.subr.mxu0 0.0
    %8227 = vmatpush1.msra.mxu0 0.0
    %8228 = vmatprep.subr.mxu0 0.0
    %8229 = vmatpush1.msra.mxu0 0.0
    %8230 = vmatprep.subr.mxu0 0.0
    %8231 = vmatpush1.msra.mxu0 0.0
    %8232 = vmatprep.subr.mxu0 0.0
    %8233 = vmatpush1.msra.mxu0 0.0
    %8234 = vmatprep.subr.mxu0 0.0
    %8235 = vmatpush1.msra.mxu0 0.0
    %8236 = vmatprep.subr.mxu0 0.0
    %8237 = vmatpush1.msra.mxu0 0.0
    %8238 = vmatprep.subr.mxu0 0.0
    %8239 = vmatpush1.msra.mxu0 0.0
    %8240 = vmatprep.subr.mxu0 0.0
    %8241 = vmatpush1.msra.mxu0 0.0
    %8242 = vmatprep.subr.mxu0 0.0
    %8243 = vmatpush1.msra.mxu0 0.0
    %8244 = vmatprep.subr.mxu0 0.0
    %8245 = vmatpush1.msra.mxu0 0.0
    %8246 = vmatprep.subr.mxu0 0.0
    %8247 = vmatpush1.msra.mxu0 0.0
    %8248 = vmatprep.subr.mxu0 0.0
    %8249 = vmatpush1.msra.mxu0 0.0
    %8250 = vmatprep.subr.mxu0 0.0
    %8251 = vmatpush1.msra.mxu0 0.0
    %8252 = vmatprep.subr.mxu0 0.0
    %8253 = vmatpush1.msra.mxu0 0.0
    %8254 = vmatprep.subr.mxu0 0.0
    %8255 = vmatpush1.msra.mxu0 0.0
    %8256 = vmatprep.subr.mxu0 0.0
    %8257 = vmatpush1.msra.mxu0 0.0
    %8258 = vmatprep.subr.mxu0 0.0
    %8259 = vmatpush1.msra.mxu0 0.0
    %8260 = vmatprep.subr.mxu0 0.0
    %8261 = vmatpush1.msra.mxu0 0.0
    %8262 = vmatprep.subr.mxu0 0.0
    %8263 = vmatpush1.msra.mxu0 0.0
    %8264 = vmatprep.subr.mxu0 0.0
    %8265 = vmatpush1.msra.mxu0 0.0
    %8266 = vmatprep.subr.mxu0 0.0
    %8267 = vmatpush1.msra.mxu0 0.0
    %8268 = vmatprep.subr.mxu0 0.0
    %8269 = vmatpush1.msra.mxu0 0.0
    %8270 = vmatprep.subr.mxu0 0.0
    %8271 = vmatpush1.msra.mxu0 0.0
    %8272 = vmatprep.subr.mxu0 0.0
    %8273 = vmatpush1.msra.mxu0 0.0
    %8274 = vmatprep.subr.mxu0 0.0
    %8275 = vmatpush1.msra.mxu0 0.0
    %8276 = vmatprep.subr.mxu0 0.0
    %8277 = vmatpush1.msra.mxu0 0.0
    %8278 = vmatprep.subr.mxu0 0.0
    %8279 = vmatpush1.msra.mxu0 0.0
    %8280 = vmatprep.subr.mxu0 0.0
    %8281 = vmatpush1.msra.mxu0 0.0
    %8282 = vmatprep.mubr.f32.mxu0 0.0
    %8283 = vmatmul.mubr.f32.gmra.mrb[0].mxu0 %v8216
    %v8284 = vpop.f32.mrb[0].mxu0
    %v8285 = vadd.f32 0.0, %v8284
    %v8286 = vpop.f32.mrb[0].mxu0
    %8287 = vdwg.mxu0
    %8288 = vrot.lane.b32.xlu0 %v7355, 64
    %v8289 = vpop.permute.xlu0 %8288
    %v8292 = vsel %vm257, %v8055, 0
    %8294 = vmatprep.subr.mxu0 0.0
    %8295 = vmatpush1.msra.mxu0 %v8289
    %8296 = vmatprep.subr.mxu0 0.0
    %8297 = vmatpush1.msra.mxu0 0.0
    %8298 = vmatprep.subr.mxu0 0.0
    %8299 = vmatpush1.msra.mxu0 0.0
    %8300 = vmatprep.subr.mxu0 0.0
    %8301 = vmatpush1.msra.mxu0 0.0
    %8302 = vmatprep.subr.mxu0 0.0
    %8303 = vmatpush1.msra.mxu0 0.0
    %8304 = vmatprep.subr.mxu0 0.0
    %8305 = vmatpush1.msra.mxu0 0.0
    %8306 = vmatprep.subr.mxu0 0.0
    %8307 = vmatpush1.msra.mxu0 0.0
    %8308 = vmatprep.subr.mxu0 0.0
    %8309 = vmatpush1.msra.mxu0 0.0
    %8310 = vmatprep.subr.mxu0 0.0
    %8311 = vmatpush1.msra.mxu0 0.0
    %8312 = vmatprep.subr.mxu0 0.0
    %8313 = vmatpush1.msra.mxu0 0.0
    %8314 = vmatprep.subr.mxu0 0.0
    %8315 = vmatpush1.msra.mxu0 0.0
    %8316 = vmatprep.subr.mxu0 0.0
    %8317 = vmatpush1.msra.mxu0 0.0
    %8318 = vmatprep.subr.mxu0 0.0
    %8319 = vmatpush1.msra.mxu0 0.0
    %8320 = vmatprep.subr.mxu0 0.0
    %8321 = vmatpush1.msra.mxu0 0.0
    %8322 = vmatprep.subr.mxu0 0.0
    %8323 = vmatpush1.msra.mxu0 0.0
    %8324 = vmatprep.subr.mxu0 0.0
    %8325 = vmatpush1.msra.mxu0 0.0
    %8326 = vmatprep.subr.mxu0 0.0
    %8327 = vmatpush1.msra.mxu0 0.0
    %8328 = vmatprep.subr.mxu0 0.0
    %8329 = vmatpush1.msra.mxu0 0.0
    %8330 = vmatprep.subr.mxu0 0.0
    %8331 = vmatpush1.msra.mxu0 0.0
    %8332 = vmatprep.subr.mxu0 0.0
    %8333 = vmatpush1.msra.mxu0 0.0
    %8334 = vmatprep.subr.mxu0 0.0
    %8335 = vmatpush1.msra.mxu0 0.0
    %8336 = vmatprep.subr.mxu0 0.0
    %8337 = vmatpush1.msra.mxu0 0.0
    %8338 = vmatprep.subr.mxu0 0.0
    %8339 = vmatpush1.msra.mxu0 0.0
    %8340 = vmatprep.subr.mxu0 0.0
    %8341 = vmatpush1.msra.mxu0 0.0
    %8342 = vmatprep.subr.mxu0 0.0
    %8343 = vmatpush1.msra.mxu0 0.0
    %8344 = vmatprep.subr.mxu0 0.0
    %8345 = vmatpush1.msra.mxu0 0.0
    %8346 = vmatprep.subr.mxu0 0.0
    %8347 = vmatpush1.msra.mxu0 0.0
    %8348 = vmatprep.subr.mxu0 0.0
    %8349 = vmatpush1.msra.mxu0 0.0
    %8350 = vmatprep.subr.mxu0 0.0
    %8351 = vmatpush1.msra.mxu0 0.0
    %8352 = vmatprep.subr.mxu0 0.0
    %8353 = vmatpush1.msra.mxu0 0.0
    %8354 = vmatprep.subr.mxu0 0.0
    %8355 = vmatpush1.msra.mxu0 0.0
    %8356 = vmatprep.subr.mxu0 0.0
    %8357 = vmatpush1.msra.mxu0 0.0
    %8358 = vmatprep.mubr.f32.mxu0 0.0
    %8359 = vmatmul.mubr.f32.gmra.mrb[0].mxu0 %v8292
    %v8360 = vpop.f32.mrb[0].mxu0
    %v8361 = vadd.f32 0.0, %v8360
    %v8362 = vpop.f32.mrb[0].mxu0
    %8363 = vdwg.mxu0
    %8364 = vrot.lane.b32.xlu0 %v7357, 64
    %v8365 = vpop.permute.xlu0 %8364
    %v8368 = vsel %vm257, %v8056, 0
    %8370 = vmatprep.subr.mxu0 0.0
    %8371 = vmatpush1.msra.mxu0 %v8365
    %8372 = vmatprep.subr.mxu0 0.0
    %8373 = vmatpush1.msra.mxu0 0.0
    %8374 = vmatprep.subr.mxu0 0.0
    %8375 = vmatpush1.msra.mxu0 0.0
    %8376 = vmatprep.subr.mxu0 0.0
    %8377 = vmatpush1.msra.mxu0 0.0
    %8378 = vmatprep.subr.mxu0 0.0
    %8379 = vmatpush1.msra.mxu0 0.0
    %8380 = vmatprep.subr.mxu0 0.0
    %8381 = vmatpush1.msra.mxu0 0.0
    %8382 = vmatprep.subr.mxu0 0.0
    %8383 = vmatpush1.msra.mxu0 0.0
    %8384 = vmatprep.subr.mxu0 0.0
    %8385 = vmatpush1.msra.mxu0 0.0
    %8386 = vmatprep.subr.mxu0 0.0
    %8387 = vmatpush1.msra.mxu0 0.0
    %8388 = vmatprep.subr.mxu0 0.0
    %8389 = vmatpush1.msra.mxu0 0.0
    %8390 = vmatprep.subr.mxu0 0.0
    %8391 = vmatpush1.msra.mxu0 0.0
    %8392 = vmatprep.subr.mxu0 0.0
    %8393 = vmatpush1.msra.mxu0 0.0
    %8394 = vmatprep.subr.mxu0 0.0
    %8395 = vmatpush1.msra.mxu0 0.0
    %8396 = vmatprep.subr.mxu0 0.0
    %8397 = vmatpush1.msra.mxu0 0.0
    %8398 = vmatprep.subr.mxu0 0.0
    %8399 = vmatpush1.msra.mxu0 0.0
    %8400 = vmatprep.subr.mxu0 0.0
    %8401 = vmatpush1.msra.mxu0 0.0
    %8402 = vmatprep.subr.mxu0 0.0
    %8403 = vmatpush1.msra.mxu0 0.0
    %8404 = vmatprep.subr.mxu0 0.0
    %8405 = vmatpush1.msra.mxu0 0.0
    %8406 = vmatprep.subr.mxu0 0.0
    %8407 = vmatpush1.msra.mxu0 0.0
    %8408 = vmatprep.subr.mxu0 0.0
    %8409 = vmatpush1.msra.mxu0 0.0
    %8410 = vmatprep.subr.mxu0 0.0
    %8411 = vmatpush1.msra.mxu0 0.0
    %8412 = vmatprep.subr.mxu0 0.0
    %8413 = vmatpush1.msra.mxu0 0.0
    %8414 = vmatprep.subr.mxu0 0.0
    %8415 = vmatpush1.msra.mxu0 0.0
    %8416 = vmatprep.subr.mxu0 0.0
    %8417 = vmatpush1.msra.mxu0 0.0
    %8418 = vmatprep.subr.mxu0 0.0
    %8419 = vmatpush1.msra.mxu0 0.0
    %8420 = vmatprep.subr.mxu0 0.0
    %8421 = vmatpush1.msra.mxu0 0.0
    %8422 = vmatprep.subr.mxu0 0.0
    %8423 = vmatpush1.msra.mxu0 0.0
    %8424 = vmatprep.subr.mxu0 0.0
    %8425 = vmatpush1.msra.mxu0 0.0
    %8426 = vmatprep.subr.mxu0 0.0
    %8427 = vmatpush1.msra.mxu0 0.0
    %8428 = vmatprep.subr.mxu0 0.0
    %8429 = vmatpush1.msra.mxu0 0.0
    %8430 = vmatprep.subr.mxu0 0.0
    %8431 = vmatpush1.msra.mxu0 0.0
    %8432 = vmatprep.subr.mxu0 0.0
    %8433 = vmatpush1.msra.mxu0 0.0
    %8434 = vmatprep.mubr.f32.mxu0 0.0
    %8435 = vmatmul.mubr.f32.gmra.mrb[0].mxu0 %v8368
    %v8436 = vpop.f32.mrb[0].mxu0
    %v8437 = vadd.f32 0.0, %v8436
    %v8438 = vpop.f32.mrb[0].mxu0
    %8439 = vdwg.mxu0
    %8440 = vrot.lane.b32.xlu0 %v7359, 64
    %v8441 = vpop.permute.xlu0 %8440
    %v8444 = vsel %vm257, %v8057, 0
    %8446 = vmatprep.subr.mxu0 0.0
    %8447 = vmatpush1.msra.mxu0 %v8441
    %8448 = vmatprep.subr.mxu0 0.0
    %8449 = vmatpush1.msra.mxu0 0.0
    %8450 = vmatprep.subr.mxu0 0.0
    %8451 = vmatpush1.msra.mxu0 0.0
    %8452 = vmatprep.subr.mxu0 0.0
    %8453 = vmatpush1.msra.mxu0 0.0
    %8454 = vmatprep.subr.mxu0 0.0
    %8455 = vmatpush1.msra.mxu0 0.0
    %8456 = vmatprep.subr.mxu0 0.0
    %8457 = vmatpush1.msra.mxu0 0.0
    %8458 = vmatprep.subr.mxu0 0.0
    %8459 = vmatpush1.msra.mxu0 0.0
    %8460 = vmatprep.subr.mxu0 0.0
    %8461 = vmatpush1.msra.mxu0 0.0
    %8462 = vmatprep.subr.mxu0 0.0
    %8463 = vmatpush1.msra.mxu0 0.0
    %8464 = vmatprep.subr.mxu0 0.0
    %8465 = vmatpush1.msra.mxu0 0.0
    %8466 = vmatprep.subr.mxu0 0.0
    %8467 = vmatpush1.msra.mxu0 0.0
    %8468 = vmatprep.subr.mxu0 0.0
    %8469 = vmatpush1.msra.mxu0 0.0
    %8470 = vmatprep.subr.mxu0 0.0
    %8471 = vmatpush1.msra.mxu0 0.0
    %8472 = vmatprep.subr.mxu0 0.0
    %8473 = vmatpush1.msra.mxu0 0.0
    %8474 = vmatprep.subr.mxu0 0.0
    %8475 = vmatpush1.msra.mxu0 0.0
    %8476 = vmatprep.subr.mxu0 0.0
    %8477 = vmatpush1.msra.mxu0 0.0
    %8478 = vmatprep.subr.mxu0 0.0
    %8479 = vmatpush1.msra.mxu0 0.0
    %8480 = vmatprep.subr.mxu0 0.0
    %8481 = vmatpush1.msra.mxu0 0.0
    %8482 = vmatprep.subr.mxu0 0.0
    %8483 = vmatpush1.msra.mxu0 0.0
    %8484 = vmatprep.subr.mxu0 0.0
    %8485 = vmatpush1.msra.mxu0 0.0
    %8486 = vmatprep.subr.mxu0 0.0
    %8487 = vmatpush1.msra.mxu0 0.0
    %8488 = vmatprep.subr.mxu0 0.0
    %8489 = vmatpush1.msra.mxu0 0.0
    %8490 = vmatprep.subr.mxu0 0.0
    %8491 = vmatpush1.msra.mxu0 0.0
    %8492 = vmatprep.subr.mxu0 0.0
    %8493 = vmatpush1.msra.mxu0 0.0
    %8494 = vmatprep.subr.mxu0 0.0
    %8495 = vmatpush1.msra.mxu0 0.0
    %8496 = vmatprep.subr.mxu0 0.0
    %8497 = vmatpush1.msra.mxu0 0.0
    %8498 = vmatprep.subr.mxu0 0.0
    %8499 = vmatpush1.msra.mxu0 0.0
    %8500 = vmatprep.subr.mxu0 0.0
    %8501 = vmatpush1.msra.mxu0 0.0
    %8502 = vmatprep.subr.mxu0 0.0
    %8503 = vmatpush1.msra.mxu0 0.0
    %8504 = vmatprep.subr.mxu0 0.0
    %8505 = vmatpush1.msra.mxu0 0.0
    %8506 = vmatprep.subr.mxu0 0.0
    %8507 = vmatpush1.msra.mxu0 0.0
    %8508 = vmatprep.subr.mxu0 0.0
    %8509 = vmatpush1.msra.mxu0 0.0
    %8510 = vmatprep.mubr.f32.mxu0 0.0
    %8511 = vmatmul.mubr.f32.gmra.mrb[0].mxu0 %v8444
    %v8512 = vpop.f32.mrb[0].mxu0
    %v8513 = vadd.f32 0.0, %v8512
    %v8514 = vpop.f32.mrb[0].mxu0
    %8515 = vdwg.mxu0
    %8516 = vrot.lane.b32.xlu0 %v7361, 64
    %v8517 = vpop.permute.xlu0 %8516
    %v8520 = vsel %vm257, %v8058, 0
    %8522 = vmatprep.subr.mxu0 0.0
    %8523 = vmatpush1.msra.mxu0 %v8517
    %8524 = vmatprep.subr.mxu0 0.0
    %8525 = vmatpush1.msra.mxu0 0.0
    %8526 = vmatprep.subr.mxu0 0.0
    %8527 = vmatpush1.msra.mxu0 0.0
    %8528 = vmatprep.subr.mxu0 0.0
    %8529 = vmatpush1.msra.mxu0 0.0
    %8530 = vmatprep.subr.mxu0 0.0
    %8531 = vmatpush1.msra.mxu0 0.0
    %8532 = vmatprep.subr.mxu0 0.0
    %8533 = vmatpush1.msra.mxu0 0.0
    %8534 = vmatprep.subr.mxu0 0.0
    %8535 = vmatpush1.msra.mxu0 0.0
    %8536 = vmatprep.subr.mxu0 0.0
    %8537 = vmatpush1.msra.mxu0 0.0
    %8538 = vmatprep.subr.mxu0 0.0
    %8539 = vmatpush1.msra.mxu0 0.0
    %8540 = vmatprep.subr.mxu0 0.0
    %8541 = vmatpush1.msra.mxu0 0.0
    %8542 = vmatprep.subr.mxu0 0.0
    %8543 = vmatpush1.msra.mxu0 0.0
    %8544 = vmatprep.subr.mxu0 0.0
    %8545 = vmatpush1.msra.mxu0 0.0
    %8546 = vmatprep.subr.mxu0 0.0
    %8547 = vmatpush1.msra.mxu0 0.0
    %8548 = vmatprep.subr.mxu0 0.0
    %8549 = vmatpush1.msra.mxu0 0.0
    %8550 = vmatprep.subr.mxu0 0.0
    %8551 = vmatpush1.msra.mxu0 0.0
    %8552 = vmatprep.subr.mxu0 0.0
    %8553 = vmatpush1.msra.mxu0 0.0
    %8554 = vmatprep.subr.mxu0 0.0
    %8555 = vmatpush1.msra.mxu0 0.0
    %8556 = vmatprep.subr.mxu0 0.0
    %8557 = vmatpush1.msra.mxu0 0.0
    %8558 = vmatprep.subr.mxu0 0.0
    %8559 = vmatpush1.msra.mxu0 0.0
    %8560 = vmatprep.subr.mxu0 0.0
    %8561 = vmatpush1.msra.mxu0 0.0
    %8562 = vmatprep.subr.mxu0 0.0
    %8563 = vmatpush1.msra.mxu0 0.0
    %8564 = vmatprep.subr.mxu0 0.0
    %8565 = vmatpush1.msra.mxu0 0.0
    %8566 = vmatprep.subr.mxu0 0.0
    %8567 = vmatpush1.msra.mxu0 0.0
    %8568 = vmatprep.subr.mxu0 0.0
    %8569 = vmatpush1.msra.mxu0 0.0
    %8570 = vmatprep.subr.mxu0 0.0
    %8571 = vmatpush1.msra.mxu0 0.0
    %8572 = vmatprep.subr.mxu0 0.0
    %8573 = vmatpush1.msra.mxu0 0.0
    %8574 = vmatprep.subr.mxu0 0.0
    %8575 = vmatpush1.msra.mxu0 0.0
    %8576 = vmatprep.subr.mxu0 0.0
    %8577 = vmatpush1.msra.mxu0 0.0
    %8578 = vmatprep.subr.mxu0 0.0
    %8579 = vmatpush1.msra.mxu0 0.0
    %8580 = vmatprep.subr.mxu0 0.0
    %8581 = vmatpush1.msra.mxu0 0.0
    %8582 = vmatprep.subr.mxu0 0.0
    %8583 = vmatpush1.msra.mxu0 0.0
    %8584 = vmatprep.subr.mxu0 0.0
    %8585 = vmatpush1.msra.mxu0 0.0
    %8586 = vmatprep.mubr.f32.mxu0 0.0
    %8587 = vmatmul.mubr.f32.gmra.mrb[0].mxu0 %v8520
    %v8588 = vpop.f32.mrb[0].mxu0
    %v8589 = vadd.f32 0.0, %v8588
    %v8590 = vpop.f32.mrb[0].mxu0
    %8591 = vdwg.mxu0
    %8592 = vrot.lane.b32.xlu0 %v7363, 64
    %v8593 = vpop.permute.xlu0 %8592
    %v8596 = vsel %vm257, %v8059, 0
    %8598 = vmatprep.subr.mxu0 0.0
    %8599 = vmatpush1.msra.mxu0 %v8593
    %8600 = vmatprep.subr.mxu0 0.0
    %8601 = vmatpush1.msra.mxu0 0.0
    %8602 = vmatprep.subr.mxu0 0.0
    %8603 = vmatpush1.msra.mxu0 0.0
    %8604 = vmatprep.subr.mxu0 0.0
    %8605 = vmatpush1.msra.mxu0 0.0
    %8606 = vmatprep.subr.mxu0 0.0
    %8607 = vmatpush1.msra.mxu0 0.0
    %8608 = vmatprep.subr.mxu0 0.0
    %8609 = vmatpush1.msra.mxu0 0.0
    %8610 = vmatprep.subr.mxu0 0.0
    %8611 = vmatpush1.msra.mxu0 0.0
    %8612 = vmatprep.subr.mxu0 0.0
    %8613 = vmatpush1.msra.mxu0 0.0
    %8614 = vmatprep.subr.mxu0 0.0
    %8615 = vmatpush1.msra.mxu0 0.0
    %8616 = vmatprep.subr.mxu0 0.0
    %8617 = vmatpush1.msra.mxu0 0.0
    %8618 = vmatprep.subr.mxu0 0.0
    %8619 = vmatpush1.msra.mxu0 0.0
    %8620 = vmatprep.subr.mxu0 0.0
    %8621 = vmatpush1.msra.mxu0 0.0
    %8622 = vmatprep.subr.mxu0 0.0
    %8623 = vmatpush1.msra.mxu0 0.0
    %8624 = vmatprep.subr.mxu0 0.0
    %8625 = vmatpush1.msra.mxu0 0.0
    %8626 = vmatprep.subr.mxu0 0.0
    %8627 = vmatpush1.msra.mxu0 0.0
    %8628 = vmatprep.subr.mxu0 0.0
    %8629 = vmatpush1.msra.mxu0 0.0
    %8630 = vmatprep.subr.mxu0 0.0
    %8631 = vmatpush1.msra.mxu0 0.0
    %8632 = vmatprep.subr.mxu0 0.0
    %8633 = vmatpush1.msra.mxu0 0.0
    %8634 = vmatprep.subr.mxu0 0.0
    %8635 = vmatpush1.msra.mxu0 0.0
    %8636 = vmatprep.subr.mxu0 0.0
    %8637 = vmatpush1.msra.mxu0 0.0
    %8638 = vmatprep.subr.mxu0 0.0
    %8639 = vmatpush1.msra.mxu0 0.0
    %8640 = vmatprep.subr.mxu0 0.0
    %8641 = vmatpush1.msra.mxu0 0.0
    %8642 = vmatprep.subr.mxu0 0.0
    %8643 = vmatpush1.msra.mxu0 0.0
    %8644 = vmatprep.subr.mxu0 0.0
    %8645 = vmatpush1.msra.mxu0 0.0
    %8646 = vmatprep.subr.mxu0 0.0
    %8647 = vmatpush1.msra.mxu0 0.0
    %8648 = vmatprep.subr.mxu0 0.0
    %8649 = vmatpush1.msra.mxu0 0.0
    %8650 = vmatprep.subr.mxu0 0.0
    %8651 = vmatpush1.msra.mxu0 0.0
    %8652 = vmatprep.subr.mxu0 0.0
    %8653 = vmatpush1.msra.mxu0 0.0
    %8654 = vmatprep.subr.mxu0 0.0
    %8655 = vmatpush1.msra.mxu0 0.0
    %8656 = vmatprep.subr.mxu0 0.0
    %8657 = vmatpush1.msra.mxu0 0.0
    %8658 = vmatprep.subr.mxu0 0.0
    %8659 = vmatpush1.msra.mxu0 0.0
    %8660 = vmatprep.subr.mxu0 0.0
    %8661 = vmatpush1.msra.mxu0 0.0
    %8662 = vmatprep.mubr.f32.mxu0 0.0
    %8663 = vmatmul.mubr.f32.gmra.mrb[0].mxu0 %v8596
    %v8664 = vpop.f32.mrb[0].mxu0
    %v8665 = vadd.f32 0.0, %v8664
    %v8666 = vpop.f32.mrb[0].mxu0
    %8667 = vdwg.mxu0
    %8670 = vrot.lane.b32.xlu0 %v8285, 8
    %v8671 = vpop.permute.xlu0 %8670
    %8672 = vrot.lane.b32.xlu0 %v8361, 8
    %v8673 = vpop.permute.xlu0 %8672
    %8678 = vrot.lane.b32.xlu0 %v8437, 16
    %v8679 = vpop.permute.xlu0 %8678
    %8680 = vrot.lane.b32.xlu0 %v8513, 16
    %v8681 = vpop.permute.xlu0 %8680
    %8686 = vrot.lane.b32.xlu0 %v8589, 24
    %v8687 = vpop.permute.xlu0 %8686
    %8688 = vrot.lane.b32.xlu0 %v8665, 24
    %v8689 = vpop.permute.xlu0 %8688
    %v8692 = vsel %vm257, %v8133, %v8671
    %v8693 = vsel %vm257, %v8209, %v8673
    %v8694 = vsel %vm1586, %v8692, %v8679
    %v8695 = vsel %vm1586, %v8693, %v8681
    %v8696 = vsel %vm1589, %v8694, %v8687
    %v8697 = vsel %vm1589, %v8695, %v8689
    %v8698 = vld [vmem:[#allocation5 + $0x240] sm:$0xff]
    %v8699 = vld [vmem:[#allocation5 + $0x248] sm:$0xff]
    %v8700 = vld [vmem:[#allocation5 + $0x250] sm:$0xff]
    %v8701 = vld [vmem:[#allocation5 + $0x258] sm:$0xff]
    %v8702 = vld [vmem:[#allocation7 + $0x1d] sm:$0x1]
    %v8703 = vlaneseq
    %v8704 = vshrl.u32 %v8703, 7
    %v8705 = vsub.s32 0, %v8704
    %v8706 = vrot.slane %v8702, %v8705
    %v8708 = vsel %vm99, %v8696, 0
    %v8711 = vsel %vm99, %v8697, 0
    %8713 = vmatprep.subr.mxu0 0.0
    %8714 = vmatpush1.msra.mxu0 %v8698
    %8715 = vmatprep.subr.mxu0 0.0
    %8716 = vmatpush1.msra.mxu0 %v8699
    %8717 = vmatprep.subr.mxu0 0.0
    %8718 = vmatpush1.msra.mxu0 %v8700
    %8719 = vmatprep.subr.mxu0 0.0
    %8720 = vmatpush1.msra.mxu0 %v8701
    %8721 = vmatprep.subr.mxu0 0.0
    %8722 = vmatpush1.msra.mxu0 0.0
    %8723 = vmatprep.subr.mxu0 0.0
    %8724 = vmatpush1.msra.mxu0 0.0
    %8725 = vmatprep.subr.mxu0 0.0
    %8726 = vmatpush1.msra.mxu0 0.0
    %8727 = vmatprep.subr.mxu0 0.0
    %8728 = vmatpush1.msra.mxu0 0.0
    %8729 = vmatprep.subr.mxu0 0.0
    %8730 = vmatpush1.msra.mxu0 0.0
    %8731 = vmatprep.subr.mxu0 0.0
    %8732 = vmatpush1.msra.mxu0 0.0
    %8733 = vmatprep.subr.mxu0 0.0
    %8734 = vmatpush1.msra.mxu0 0.0
    %8735 = vmatprep.subr.mxu0 0.0
    %8736 = vmatpush1.msra.mxu0 0.0
    %8737 = vmatprep.subr.mxu0 0.0
    %8738 = vmatpush1.msra.mxu0 0.0
    %8739 = vmatprep.subr.mxu0 0.0
    %8740 = vmatpush1.msra.mxu0 0.0
    %8741 = vmatprep.subr.mxu0 0.0
    %8742 = vmatpush1.msra.mxu0 0.0
    %8743 = vmatprep.subr.mxu0 0.0
    %8744 = vmatpush1.msra.mxu0 0.0
    %8745 = vmatprep.subr.mxu0 0.0
    %8746 = vmatpush1.msra.mxu0 0.0
    %8747 = vmatprep.subr.mxu0 0.0
    %8748 = vmatpush1.msra.mxu0 0.0
    %8749 = vmatprep.subr.mxu0 0.0
    %8750 = vmatpush1.msra.mxu0 0.0
    %8751 = vmatprep.subr.mxu0 0.0
    %8752 = vmatpush1.msra.mxu0 0.0
    %8753 = vmatprep.subr.mxu0 0.0
    %8754 = vmatpush1.msra.mxu0 0.0
    %8755 = vmatprep.subr.mxu0 0.0
    %8756 = vmatpush1.msra.mxu0 0.0
    %8757 = vmatprep.subr.mxu0 0.0
    %8758 = vmatpush1.msra.mxu0 0.0
    %8759 = vmatprep.subr.mxu0 0.0
    %8760 = vmatpush1.msra.mxu0 0.0
    %8761 = vmatprep.subr.mxu0 0.0
    %8762 = vmatpush1.msra.mxu0 0.0
    %8763 = vmatprep.subr.mxu0 0.0
    %8764 = vmatpush1.msra.mxu0 0.0
    %8765 = vmatprep.subr.mxu0 0.0
    %8766 = vmatpush1.msra.mxu0 0.0
    %8767 = vmatprep.subr.mxu0 0.0
    %8768 = vmatpush1.msra.mxu0 0.0
    %8769 = vmatprep.subr.mxu0 0.0
    %8770 = vmatpush1.msra.mxu0 0.0
    %8771 = vmatprep.subr.mxu0 0.0
    %8772 = vmatpush1.msra.mxu0 0.0
    %8773 = vmatprep.subr.mxu0 0.0
    %8774 = vmatpush1.msra.mxu0 0.0
    %8775 = vmatprep.subr.mxu0 0.0
    %8776 = vmatpush1.msra.mxu0 0.0
    %8777 = vmatprep.mubr.f32.mxu0 0.0
    %8778 = vmatmul.mubr.f32.gmra.mrb[0].mxu0 %v8708
    %v8779 = vpop.f32.mrb[0].mxu0
    %v8780 = vadd.f32 %v8706, %v8779
    %v8781 = vpop.f32.mrb[0].mxu0
    %8782 = vmatprep.mubr.f32.mxu0 0.0
    %8783 = vmatmul.mubr.f32.gmra.mrb[0].mxu0 %v8711
    %v8784 = vpop.f32.mrb[0].mxu0
    %v8785 = vadd.f32 %v8706, %v8784
    %v8786 = vpop.f32.mrb[0].mxu0
    %8787 = vdwg.mxu0
    %v8788 = vadd.f32 %v7218, %v8780
    %v8789 = vadd.f32 %v7219, %v8785
    %v8790 = vsel %vm99, %v8788, 0.0
    %8791 = vadd.xlane.f32.xlu0 %v8790
    %v8792 = vpop.xlane.xlu0 %8791
    %v8793 = vsel %vm99, %v8789, 0.0
    %8794 = vadd.xlane.f32.xlu0 %v8793
    %v8795 = vpop.xlane.xlu0 %8794
    %v8796 = vmul.f32 %v8792, %v106
    %v8797 = vmul.f32 %v8795, %v106
    %v8798 = vsub.f32 %v8788, %v8796
    %v8799 = vsub.f32 %v8789, %v8797
    %v8800 = vmul.f32 %v8798, %v8798
    %v8801 = vmul.f32 %v8799, %v8799
    %v8802 = vsel %vm99, %v8800, 0.0
    %8803 = vadd.xlane.f32.xlu0 %v8802
    %v8804 = vpop.xlane.xlu0 %8803
    %v8805 = vsel %vm99, %v8801, 0.0
    %8806 = vadd.xlane.f32.xlu0 %v8805
    %v8807 = vpop.xlane.xlu0 %8806
    %v8808 = vmul.f32 %v8804, %v106
    %v8809 = vmul.f32 %v8807, %v106
    %v8810 = vadd.f32 %v8808, 1e-06
    %v8811 = vadd.f32 %v8809, 1e-06
    %v8812 = vrsqrt.pop %v8810
    %v8813 = vrsqrt.pop %v8811
    %v8814 = vmul.f32 %v8798, %v8812
    %v8815 = vmul.f32 %v8799, %v8813
    %v8816 = vld [vmem:[#allocation7 + $0x22] sm:$0x1]
    %v8817 = vlaneseq
    %v8818 = vshrl.u32 %v8817, 7
    %v8819 = vsub.s32 0, %v8818
    %v8820 = vrot.slane %v8816, %v8819
    %v8821 = vmul.f32 %v8814, %v8820
    %v8822 = vmul.f32 %v8815, %v8820
    %v8823 = vld [vmem:[#allocation7 + $0x23] sm:$0x1]
    %v8824 = vlaneseq
    %v8825 = vshrl.u32 %v8824, 7
    %v8826 = vsub.s32 0, %v8825
    %v8827 = vrot.slane %v8823, %v8826
    %v8828 = vadd.f32 %v8821, %v8827
    %v8829 = vadd.f32 %v8822, %v8827
    %v8830 = vld [vmem:[#allocation5 + $0x260] sm:$0xff]
    %v8831 = vld [vmem:[#allocation5 + $0x268] sm:$0xff]
    %v8832 = vld [vmem:[#allocation5 + $0x270] sm:$0xff]
    %v8833 = vld [vmem:[#allocation5 + $0x278] sm:$0xff]
    %v8834 = vld [vmem:[#allocation7 + $0x20] sm:$0x1]
    %v8835 = vlaneseq
    %v8836 = vshrl.u32 %v8835, 7
    %v8837 = vsub.s32 0, %v8836
    %v8838 = vrot.slane %v8834, %v8837
    %v8840 = vsel %vm99, %v8828, 0
    %v8843 = vsel %vm99, %v8829, 0
    %8845 = vmatprep.subr.mxu0 0.0
    %8846 = vmatpush1.msra.mxu0 %v8830
    %8847 = vmatprep.subr.mxu0 0.0
    %8848 = vmatpush1.msra.mxu0 %v8831
    %8849 = vmatprep.subr.mxu0 0.0
    %8850 = vmatpush1.msra.mxu0 %v8832
    %8851 = vmatprep.subr.mxu0 0.0
    %8852 = vmatpush1.msra.mxu0 %v8833
    %8853 = vmatprep.subr.mxu0 0.0
    %8854 = vmatpush1.msra.mxu0 0.0
    %8855 = vmatprep.subr.mxu0 0.0
    %8856 = vmatpush1.msra.mxu0 0.0
    %8857 = vmatprep.subr.mxu0 0.0
    %8858 = vmatpush1.msra.mxu0 0.0
    %8859 = vmatprep.subr.mxu0 0.0
    %8860 = vmatpush1.msra.mxu0 0.0
    %8861 = vmatprep.subr.mxu0 0.0
    %8862 = vmatpush1.msra.mxu0 0.0
    %8863 = vmatprep.subr.mxu0 0.0
    %8864 = vmatpush1.msra.mxu0 0.0
    %8865 = vmatprep.subr.mxu0 0.0
    %8866 = vmatpush1.msra.mxu0 0.0
    %8867 = vmatprep.subr.mxu0 0.0
    %8868 = vmatpush1.msra.mxu0 0.0
    %8869 = vmatprep.subr.mxu0 0.0
    %8870 = vmatpush1.msra.mxu0 0.0
    %8871 = vmatprep.subr.mxu0 0.0
    %8872 = vmatpush1.msra.mxu0 0.0
    %8873 = vmatprep.subr.mxu0 0.0
    %8874 = vmatpush1.msra.mxu0 0.0
    %8875 = vmatprep.subr.mxu0 0.0
    %8876 = vmatpush1.msra.mxu0 0.0
    %8877 = vmatprep.subr.mxu0 0.0
    %8878 = vmatpush1.msra.mxu0 0.0
    %8879 = vmatprep.subr.mxu0 0.0
    %8880 = vmatpush1.msra.mxu0 0.0
    %8881 = vmatprep.subr.mxu0 0.0
    %8882 = vmatpush1.msra.mxu0 0.0
    %8883 = vmatprep.subr.mxu0 0.0
    %8884 = vmatpush1.msra.mxu0 0.0
    %8885 = vmatprep.subr.mxu0 0.0
    %8886 = vmatpush1.msra.mxu0 0.0
    %8887 = vmatprep.subr.mxu0 0.0
    %8888 = vmatpush1.msra.mxu0 0.0
    %8889 = vmatprep.subr.mxu0 0.0
    %8890 = vmatpush1.msra.mxu0 0.0
    %8891 = vmatprep.subr.mxu0 0.0
    %8892 = vmatpush1.msra.mxu0 0.0
    %8893 = vmatprep.subr.mxu0 0.0
    %8894 = vmatpush1.msra.mxu0 0.0
    %8895 = vmatprep.subr.mxu0 0.0
    %8896 = vmatpush1.msra.mxu0 0.0
    %8897 = vmatprep.subr.mxu0 0.0
    %8898 = vmatpush1.msra.mxu0 0.0
    %8899 = vmatprep.subr.mxu0 0.0
    %8900 = vmatpush1.msra.mxu0 0.0
    %8901 = vmatprep.subr.mxu0 0.0
    %8902 = vmatpush1.msra.mxu0 0.0
    %8903 = vmatprep.subr.mxu0 0.0
    %8904 = vmatpush1.msra.mxu0 0.0
    %8905 = vmatprep.subr.mxu0 0.0
    %8906 = vmatpush1.msra.mxu0 0.0
    %8907 = vmatprep.subr.mxu0 0.0
    %8908 = vmatpush1.msra.mxu0 0.0
    %8909 = vmatprep.mubr.f32.mxu0 0.0
    %8910 = vmatmul.mubr.f32.gmra.mrb[0].mxu0 %v8840
    %v8911 = vpop.f32.mrb[0].mxu0
    %v8912 = vadd.f32 %v8838, %v8911
    %v8913 = vpop.f32.mrb[0].mxu0
    %8914 = vmatprep.mubr.f32.mxu0 0.0
    %8915 = vmatmul.mubr.f32.gmra.mrb[0].mxu0 %v8843
    %v8916 = vpop.f32.mrb[0].mxu0
    %v8917 = vadd.f32 %v8838, %v8916
    %v8918 = vpop.f32.mrb[0].mxu0
    %8919 = vdwg.mxu0
    %8924 = vrot.lane.b32.xlu0 %v8830, 96
    %v8925 = vpop.permute.xlu0 %8924
    %8926 = vrot.lane.b32.xlu0 %v8831, 96
    %v8927 = vpop.permute.xlu0 %8926
    %8928 = vrot.lane.b32.xlu0 %v8832, 96
    %v8929 = vpop.permute.xlu0 %8928
    %8930 = vrot.lane.b32.xlu0 %v8833, 96
    %v8931 = vpop.permute.xlu0 %8930
    %8937 = vrot.lane.b32.xlu0 %v8838, 96
    %v8938 = vpop.permute.xlu0 %8937
    %8940 = vmatprep.subr.mxu0 0.0
    %8941 = vmatpush1.msra.mxu0 %v8925
    %8942 = vmatprep.subr.mxu0 0.0
    %8943 = vmatpush1.msra.mxu0 %v8927
    %8944 = vmatprep.subr.mxu0 0.0
    %8945 = vmatpush1.msra.mxu0 %v8929
    %8946 = vmatprep.subr.mxu0 0.0
    %8947 = vmatpush1.msra.mxu0 %v8931
    %8948 = vmatprep.subr.mxu0 0.0
    %8949 = vmatpush1.msra.mxu0 0.0
    %8950 = vmatprep.subr.mxu0 0.0
    %8951 = vmatpush1.msra.mxu0 0.0
    %8952 = vmatprep.subr.mxu0 0.0
    %8953 = vmatpush1.msra.mxu0 0.0
    %8954 = vmatprep.subr.mxu0 0.0
    %8955 = vmatpush1.msra.mxu0 0.0
    %8956 = vmatprep.subr.mxu0 0.0
    %8957 = vmatpush1.msra.mxu0 0.0
    %8958 = vmatprep.subr.mxu0 0.0
    %8959 = vmatpush1.msra.mxu0 0.0
    %8960 = vmatprep.subr.mxu0 0.0
    %8961 = vmatpush1.msra.mxu0 0.0
    %8962 = vmatprep.subr.mxu0 0.0
    %8963 = vmatpush1.msra.mxu0 0.0
    %8964 = vmatprep.subr.mxu0 0.0
    %8965 = vmatpush1.msra.mxu0 0.0
    %8966 = vmatprep.subr.mxu0 0.0
    %8967 = vmatpush1.msra.mxu0 0.0
    %8968 = vmatprep.subr.mxu0 0.0
    %8969 = vmatpush1.msra.mxu0 0.0
    %8970 = vmatprep.subr.mxu0 0.0
    %8971 = vmatpush1.msra.mxu0 0.0
    %8972 = vmatprep.subr.mxu0 0.0
    %8973 = vmatpush1.msra.mxu0 0.0
    %8974 = vmatprep.subr.mxu0 0.0
    %8975 = vmatpush1.msra.mxu0 0.0
    %8976 = vmatprep.subr.mxu0 0.0
    %8977 = vmatpush1.msra.mxu0 0.0
    %8978 = vmatprep.subr.mxu0 0.0
    %8979 = vmatpush1.msra.mxu0 0.0
    %8980 = vmatprep.subr.mxu0 0.0
    %8981 = vmatpush1.msra.mxu0 0.0
    %8982 = vmatprep.subr.mxu0 0.0
    %8983 = vmatpush1.msra.mxu0 0.0
    %8984 = vmatprep.subr.mxu0 0.0
    %8985 = vmatpush1.msra.mxu0 0.0
    %8986 = vmatprep.subr.mxu0 0.0
    %8987 = vmatpush1.msra.mxu0 0.0
    %8988 = vmatprep.subr.mxu0 0.0
    %8989 = vmatpush1.msra.mxu0 0.0
    %8990 = vmatprep.subr.mxu0 0.0
    %8991 = vmatpush1.msra.mxu0 0.0
    %8992 = vmatprep.subr.mxu0 0.0
    %8993 = vmatpush1.msra.mxu0 0.0
    %8994 = vmatprep.subr.mxu0 0.0
    %8995 = vmatpush1.msra.mxu0 0.0
    %8996 = vmatprep.subr.mxu0 0.0
    %8997 = vmatpush1.msra.mxu0 0.0
    %8998 = vmatprep.subr.mxu0 0.0
    %8999 = vmatpush1.msra.mxu0 0.0
    %9000 = vmatprep.subr.mxu0 0.0
    %9001 = vmatpush1.msra.mxu0 0.0
    %9002 = vmatprep.subr.mxu0 0.0
    %9003 = vmatpush1.msra.mxu0 0.0
    %9004 = vmatprep.mubr.f32.mxu0 0.0
    %9005 = vmatmul.mubr.f32.gmra.mrb[0].mxu0 %v5474
    %v9006 = vpop.f32.mrb[0].mxu0
    %v9007 = vadd.f32 %v8938, %v9006
    %v9008 = vpop.f32.mrb[0].mxu0
    %9009 = vmatprep.mubr.f32.mxu0 0.0
    %9010 = vmatmul.mubr.f32.gmra.mrb[0].mxu0 %v5477
    %v9011 = vpop.f32.mrb[0].mxu0
    %v9012 = vadd.f32 %v8938, %v9011
    %v9013 = vpop.f32.mrb[0].mxu0
    %9014 = vdwg.mxu0
    %9017 = vrot.lane.b32.xlu0 %v8912, 120
    %v9018 = vpop.permute.xlu0 %9017
    %9019 = vrot.lane.b32.xlu0 %v8917, 120
    %v9020 = vpop.permute.xlu0 %9019
    %9021 = vrot.lane.b32.xlu0 %v8912, 112
    %v9022 = vpop.permute.xlu0 %9021
    %9023 = vrot.lane.b32.xlu0 %v8917, 112
    %v9024 = vpop.permute.xlu0 %9023
    %9025 = vrot.lane.b32.xlu0 %v8912, 104
    %v9026 = vpop.permute.xlu0 %9025
    %9027 = vrot.lane.b32.xlu0 %v8917, 104
    %v9028 = vpop.permute.xlu0 %9027
    %9031 = vrot.lane.b32.xlu0 %v9007, 120
    %v9032 = vpop.permute.xlu0 %9031
    %9033 = vrot.lane.b32.xlu0 %v9012, 120
    %v9034 = vpop.permute.xlu0 %9033
    %9035 = vrot.lane.b32.xlu0 %v9007, 112
    %v9036 = vpop.permute.xlu0 %9035
    %9037 = vrot.lane.b32.xlu0 %v9012, 112
    %v9038 = vpop.permute.xlu0 %9037
    %9039 = vrot.lane.b32.xlu0 %v9007, 104
    %v9040 = vpop.permute.xlu0 %9039
    %9041 = vrot.lane.b32.xlu0 %v9012, 104
    %v9042 = vpop.permute.xlu0 %9041
    %v9043 = vsel %vm257, %v8912, 0
    %v9045 = vsel %vm257, %v9007, 0
    %9047 = vmatprep.subr.mxu0 0.0
    %9048 = vmatpush1.xpose.msra.mxu0 %v9045
    %9049 = vmatprep.subr.mxu0 0.0
    %9050 = vmatpush1.xpose.msra.mxu0 0.0
    %9051 = vmatprep.subr.mxu0 0.0
    %9052 = vmatpush1.xpose.msra.mxu0 0.0
    %9053 = vmatprep.subr.mxu0 0.0
    %9054 = vmatpush1.xpose.msra.mxu0 0.0
    %9055 = vmatprep.subr.mxu0 0.0
    %9056 = vmatpush1.xpose.msra.mxu0 0.0
    %9057 = vmatprep.subr.mxu0 0.0
    %9058 = vmatpush1.xpose.msra.mxu0 0.0
    %9059 = vmatprep.subr.mxu0 0.0
    %9060 = vmatpush1.xpose.msra.mxu0 0.0
    %9061 = vmatprep.subr.mxu0 0.0
    %9062 = vmatpush1.xpose.msra.mxu0 0.0
    %9063 = vmatprep.subr.mxu0 0.0
    %9064 = vmatpush1.xpose.msra.mxu0 0.0
    %9065 = vmatprep.subr.mxu0 0.0
    %9066 = vmatpush1.xpose.msra.mxu0 0.0
    %9067 = vmatprep.subr.mxu0 0.0
    %9068 = vmatpush1.xpose.msra.mxu0 0.0
    %9069 = vmatprep.subr.mxu0 0.0
    %9070 = vmatpush1.xpose.msra.mxu0 0.0
    %9071 = vmatprep.subr.mxu0 0.0
    %9072 = vmatpush1.xpose.msra.mxu0 0.0
    %9073 = vmatprep.subr.mxu0 0.0
    %9074 = vmatpush1.xpose.msra.mxu0 0.0
    %9075 = vmatprep.subr.mxu0 0.0
    %9076 = vmatpush1.xpose.msra.mxu0 0.0
    %9077 = vmatprep.subr.mxu0 0.0
    %9078 = vmatpush1.xpose.msra.mxu0 0.0
    %9079 = vmatprep.subr.mxu0 0.0
    %9080 = vmatpush1.xpose.msra.mxu0 0.0
    %9081 = vmatprep.subr.mxu0 0.0
    %9082 = vmatpush1.xpose.msra.mxu0 0.0
    %9083 = vmatprep.subr.mxu0 0.0
    %9084 = vmatpush1.xpose.msra.mxu0 0.0
    %9085 = vmatprep.subr.mxu0 0.0
    %9086 = vmatpush1.xpose.msra.mxu0 0.0
    %9087 = vmatprep.subr.mxu0 0.0
    %9088 = vmatpush1.xpose.msra.mxu0 0.0
    %9089 = vmatprep.subr.mxu0 0.0
    %9090 = vmatpush1.xpose.msra.mxu0 0.0
    %9091 = vmatprep.subr.mxu0 0.0
    %9092 = vmatpush1.xpose.msra.mxu0 0.0
    %9093 = vmatprep.subr.mxu0 0.0
    %9094 = vmatpush1.xpose.msra.mxu0 0.0
    %9095 = vmatprep.subr.mxu0 0.0
    %9096 = vmatpush1.xpose.msra.mxu0 0.0
    %9097 = vmatprep.subr.mxu0 0.0
    %9098 = vmatpush1.xpose.msra.mxu0 0.0
    %9099 = vmatprep.subr.mxu0 0.0
    %9100 = vmatpush1.xpose.msra.mxu0 0.0
    %9101 = vmatprep.subr.mxu0 0.0
    %9102 = vmatpush1.xpose.msra.mxu0 0.0
    %9103 = vmatprep.subr.mxu0 0.0
    %9104 = vmatpush1.xpose.msra.mxu0 0.0
    %9105 = vmatprep.subr.mxu0 0.0
    %9106 = vmatpush1.xpose.msra.mxu0 0.0
    %9107 = vmatprep.subr.mxu0 0.0
    %9108 = vmatpush1.xpose.msra.mxu0 0.0
    %9109 = vmatprep.subr.mxu0 0.0
    %9110 = vmatpush1.xpose.msra.mxu0 0.0
    %9111 = vmatprep.mubr.f32.mxu0 0.0
    %9112 = vmatmul.mubr.f32.gmra.mrb[0].mxu0 %v9043
    %v9113 = vpop.f32.mrb[0].mxu0
    %v9114 = vadd.f32 %v248, %v9113
    %v9115 = vpop.f32.mrb[0].mxu0
    %9116 = vdwg.mxu0
    %v9117 = vsel %vm257, %v8917, 0
    %v9119 = vsel %vm257, %v9012, 0
    %9121 = vmatprep.subr.mxu0 0.0
    %9122 = vmatpush1.xpose.msra.mxu0 %v9119
    %9123 = vmatprep.subr.mxu0 0.0
    %9124 = vmatpush1.xpose.msra.mxu0 0.0
    %9125 = vmatprep.subr.mxu0 0.0
    %9126 = vmatpush1.xpose.msra.mxu0 0.0
    %9127 = vmatprep.subr.mxu0 0.0
    %9128 = vmatpush1.xpose.msra.mxu0 0.0
    %9129 = vmatprep.subr.mxu0 0.0
    %9130 = vmatpush1.xpose.msra.mxu0 0.0
    %9131 = vmatprep.subr.mxu0 0.0
    %9132 = vmatpush1.xpose.msra.mxu0 0.0
    %9133 = vmatprep.subr.mxu0 0.0
    %9134 = vmatpush1.xpose.msra.mxu0 0.0
    %9135 = vmatprep.subr.mxu0 0.0
    %9136 = vmatpush1.xpose.msra.mxu0 0.0
    %9137 = vmatprep.subr.mxu0 0.0
    %9138 = vmatpush1.xpose.msra.mxu0 0.0
    %9139 = vmatprep.subr.mxu0 0.0
    %9140 = vmatpush1.xpose.msra.mxu0 0.0
    %9141 = vmatprep.subr.mxu0 0.0
    %9142 = vmatpush1.xpose.msra.mxu0 0.0
    %9143 = vmatprep.subr.mxu0 0.0
    %9144 = vmatpush1.xpose.msra.mxu0 0.0
    %9145 = vmatprep.subr.mxu0 0.0
    %9146 = vmatpush1.xpose.msra.mxu0 0.0
    %9147 = vmatprep.subr.mxu0 0.0
    %9148 = vmatpush1.xpose.msra.mxu0 0.0
    %9149 = vmatprep.subr.mxu0 0.0
    %9150 = vmatpush1.xpose.msra.mxu0 0.0
    %9151 = vmatprep.subr.mxu0 0.0
    %9152 = vmatpush1.xpose.msra.mxu0 0.0
    %9153 = vmatprep.subr.mxu0 0.0
    %9154 = vmatpush1.xpose.msra.mxu0 0.0
    %9155 = vmatprep.subr.mxu0 0.0
    %9156 = vmatpush1.xpose.msra.mxu0 0.0
    %9157 = vmatprep.subr.mxu0 0.0
    %9158 = vmatpush1.xpose.msra.mxu0 0.0
    %9159 = vmatprep.subr.mxu0 0.0
    %9160 = vmatpush1.xpose.msra.mxu0 0.0
    %9161 = vmatprep.subr.mxu0 0.0
    %9162 = vmatpush1.xpose.msra.mxu0 0.0
    %9163 = vmatprep.subr.mxu0 0.0
    %9164 = vmatpush1.xpose.msra.mxu0 0.0
    %9165 = vmatprep.subr.mxu0 0.0
    %9166 = vmatpush1.xpose.msra.mxu0 0.0
    %9167 = vmatprep.subr.mxu0 0.0
    %9168 = vmatpush1.xpose.msra.mxu0 0.0
    %9169 = vmatprep.subr.mxu0 0.0
    %9170 = vmatpush1.xpose.msra.mxu0 0.0
    %9171 = vmatprep.subr.mxu0 0.0
    %9172 = vmatpush1.xpose.msra.mxu0 0.0
    %9173 = vmatprep.subr.mxu0 0.0
    %9174 = vmatpush1.xpose.msra.mxu0 0.0
    %9175 = vmatprep.subr.mxu0 0.0
    %9176 = vmatpush1.xpose.msra.mxu0 0.0
    %9177 = vmatprep.subr.mxu0 0.0
    %9178 = vmatpush1.xpose.msra.mxu0 0.0
    %9179 = vmatprep.subr.mxu0 0.0
    %9180 = vmatpush1.xpose.msra.mxu0 0.0
    %9181 = vmatprep.subr.mxu0 0.0
    %9182 = vmatpush1.xpose.msra.mxu0 0.0
    %9183 = vmatprep.subr.mxu0 0.0
    %9184 = vmatpush1.xpose.msra.mxu0 0.0
    %9185 = vmatprep.mubr.f32.mxu0 0.0
    %9186 = vmatmul.mubr.f32.gmra.mrb[0].mxu0 %v9117
    %v9187 = vpop.f32.mrb[0].mxu0
    %v9188 = vadd.f32 %v252, %v9187
    %v9189 = vpop.f32.mrb[0].mxu0
    %9190 = vdwg.mxu0
    %v9191 = vsel %vm257, %v9018, 0
    %v9193 = vsel %vm257, %v9032, 0
    %9195 = vmatprep.subr.mxu0 0.0
    %9196 = vmatpush1.xpose.msra.mxu0 %v9193
    %9197 = vmatprep.subr.mxu0 0.0
    %9198 = vmatpush1.xpose.msra.mxu0 0.0
    %9199 = vmatprep.subr.mxu0 0.0
    %9200 = vmatpush1.xpose.msra.mxu0 0.0
    %9201 = vmatprep.subr.mxu0 0.0
    %9202 = vmatpush1.xpose.msra.mxu0 0.0
    %9203 = vmatprep.subr.mxu0 0.0
    %9204 = vmatpush1.xpose.msra.mxu0 0.0
    %9205 = vmatprep.subr.mxu0 0.0
    %9206 = vmatpush1.xpose.msra.mxu0 0.0
    %9207 = vmatprep.subr.mxu0 0.0
    %9208 = vmatpush1.xpose.msra.mxu0 0.0
    %9209 = vmatprep.subr.mxu0 0.0
    %9210 = vmatpush1.xpose.msra.mxu0 0.0
    %9211 = vmatprep.subr.mxu0 0.0
    %9212 = vmatpush1.xpose.msra.mxu0 0.0
    %9213 = vmatprep.subr.mxu0 0.0
    %9214 = vmatpush1.xpose.msra.mxu0 0.0
    %9215 = vmatprep.subr.mxu0 0.0
    %9216 = vmatpush1.xpose.msra.mxu0 0.0
    %9217 = vmatprep.subr.mxu0 0.0
    %9218 = vmatpush1.xpose.msra.mxu0 0.0
    %9219 = vmatprep.subr.mxu0 0.0
    %9220 = vmatpush1.xpose.msra.mxu0 0.0
    %9221 = vmatprep.subr.mxu0 0.0
    %9222 = vmatpush1.xpose.msra.mxu0 0.0
    %9223 = vmatprep.subr.mxu0 0.0
    %9224 = vmatpush1.xpose.msra.mxu0 0.0
    %9225 = vmatprep.subr.mxu0 0.0
    %9226 = vmatpush1.xpose.msra.mxu0 0.0
    %9227 = vmatprep.subr.mxu0 0.0
    %9228 = vmatpush1.xpose.msra.mxu0 0.0
    %9229 = vmatprep.subr.mxu0 0.0
    %9230 = vmatpush1.xpose.msra.mxu0 0.0
    %9231 = vmatprep.subr.mxu0 0.0
    %9232 = vmatpush1.xpose.msra.mxu0 0.0
    %9233 = vmatprep.subr.mxu0 0.0
    %9234 = vmatpush1.xpose.msra.mxu0 0.0
    %9235 = vmatprep.subr.mxu0 0.0
    %9236 = vmatpush1.xpose.msra.mxu0 0.0
    %9237 = vmatprep.subr.mxu0 0.0
    %9238 = vmatpush1.xpose.msra.mxu0 0.0
    %9239 = vmatprep.subr.mxu0 0.0
    %9240 = vmatpush1.xpose.msra.mxu0 0.0
    %9241 = vmatprep.subr.mxu0 0.0
    %9242 = vmatpush1.xpose.msra.mxu0 0.0
    %9243 = vmatprep.subr.mxu0 0.0
    %9244 = vmatpush1.xpose.msra.mxu0 0.0
    %9245 = vmatprep.subr.mxu0 0.0
    %9246 = vmatpush1.xpose.msra.mxu0 0.0
    %9247 = vmatprep.subr.mxu0 0.0
    %9248 = vmatpush1.xpose.msra.mxu0 0.0
    %9249 = vmatprep.subr.mxu0 0.0
    %9250 = vmatpush1.xpose.msra.mxu0 0.0
    %9251 = vmatprep.subr.mxu0 0.0
    %9252 = vmatpush1.xpose.msra.mxu0 0.0
    %9253 = vmatprep.subr.mxu0 0.0
    %9254 = vmatpush1.xpose.msra.mxu0 0.0
    %9255 = vmatprep.subr.mxu0 0.0
    %9256 = vmatpush1.xpose.msra.mxu0 0.0
    %9257 = vmatprep.subr.mxu0 0.0
    %9258 = vmatpush1.xpose.msra.mxu0 0.0
    %9259 = vmatprep.mubr.f32.mxu0 0.0
    %9260 = vmatmul.mubr.f32.gmra.mrb[0].mxu0 %v9191
    %v9261 = vpop.f32.mrb[0].mxu0
    %v9262 = vadd.f32 %v248, %v9261
    %v9263 = vpop.f32.mrb[0].mxu0
    %9264 = vdwg.mxu0
    %v9265 = vsel %vm257, %v9020, 0
    %v9267 = vsel %vm257, %v9034, 0
    %9269 = vmatprep.subr.mxu0 0.0
    %9270 = vmatpush1.xpose.msra.mxu0 %v9267
    %9271 = vmatprep.subr.mxu0 0.0
    %9272 = vmatpush1.xpose.msra.mxu0 0.0
    %9273 = vmatprep.subr.mxu0 0.0
    %9274 = vmatpush1.xpose.msra.mxu0 0.0
    %9275 = vmatprep.subr.mxu0 0.0
    %9276 = vmatpush1.xpose.msra.mxu0 0.0
    %9277 = vmatprep.subr.mxu0 0.0
    %9278 = vmatpush1.xpose.msra.mxu0 0.0
    %9279 = vmatprep.subr.mxu0 0.0
    %9280 = vmatpush1.xpose.msra.mxu0 0.0
    %9281 = vmatprep.subr.mxu0 0.0
    %9282 = vmatpush1.xpose.msra.mxu0 0.0
    %9283 = vmatprep.subr.mxu0 0.0
    %9284 = vmatpush1.xpose.msra.mxu0 0.0
    %9285 = vmatprep.subr.mxu0 0.0
    %9286 = vmatpush1.xpose.msra.mxu0 0.0
    %9287 = vmatprep.subr.mxu0 0.0
    %9288 = vmatpush1.xpose.msra.mxu0 0.0
    %9289 = vmatprep.subr.mxu0 0.0
    %9290 = vmatpush1.xpose.msra.mxu0 0.0
    %9291 = vmatprep.subr.mxu0 0.0
    %9292 = vmatpush1.xpose.msra.mxu0 0.0
    %9293 = vmatprep.subr.mxu0 0.0
    %9294 = vmatpush1.xpose.msra.mxu0 0.0
    %9295 = vmatprep.subr.mxu0 0.0
    %9296 = vmatpush1.xpose.msra.mxu0 0.0
    %9297 = vmatprep.subr.mxu0 0.0
    %9298 = vmatpush1.xpose.msra.mxu0 0.0
    %9299 = vmatprep.subr.mxu0 0.0
    %9300 = vmatpush1.xpose.msra.mxu0 0.0
    %9301 = vmatprep.subr.mxu0 0.0
    %9302 = vmatpush1.xpose.msra.mxu0 0.0
    %9303 = vmatprep.subr.mxu0 0.0
    %9304 = vmatpush1.xpose.msra.mxu0 0.0
    %9305 = vmatprep.subr.mxu0 0.0
    %9306 = vmatpush1.xpose.msra.mxu0 0.0
    %9307 = vmatprep.subr.mxu0 0.0
    %9308 = vmatpush1.xpose.msra.mxu0 0.0
    %9309 = vmatprep.subr.mxu0 0.0
    %9310 = vmatpush1.xpose.msra.mxu0 0.0
    %9311 = vmatprep.subr.mxu0 0.0
    %9312 = vmatpush1.xpose.msra.mxu0 0.0
    %9313 = vmatprep.subr.mxu0 0.0
    %9314 = vmatpush1.xpose.msra.mxu0 0.0
    %9315 = vmatprep.subr.mxu0 0.0
    %9316 = vmatpush1.xpose.msra.mxu0 0.0
    %9317 = vmatprep.subr.mxu0 0.0
    %9318 = vmatpush1.xpose.msra.mxu0 0.0
    %9319 = vmatprep.subr.mxu0 0.0
    %9320 = vmatpush1.xpose.msra.mxu0 0.0
    %9321 = vmatprep.subr.mxu0 0.0
    %9322 = vmatpush1.xpose.msra.mxu0 0.0
    %9323 = vmatprep.subr.mxu0 0.0
    %9324 = vmatpush1.xpose.msra.mxu0 0.0
    %9325 = vmatprep.subr.mxu0 0.0
    %9326 = vmatpush1.xpose.msra.mxu0 0.0
    %9327 = vmatprep.subr.mxu0 0.0
    %9328 = vmatpush1.xpose.msra.mxu0 0.0
    %9329 = vmatprep.subr.mxu0 0.0
    %9330 = vmatpush1.xpose.msra.mxu0 0.0
    %9331 = vmatprep.subr.mxu0 0.0
    %9332 = vmatpush1.xpose.msra.mxu0 0.0
    %9333 = vmatprep.mubr.f32.mxu0 0.0
    %9334 = vmatmul.mubr.f32.gmra.mrb[0].mxu0 %v9265
    %v9335 = vpop.f32.mrb[0].mxu0
    %v9336 = vadd.f32 %v252, %v9335
    %v9337 = vpop.f32.mrb[0].mxu0
    %9338 = vdwg.mxu0
    %v9339 = vsel %vm257, %v9022, 0
    %v9341 = vsel %vm257, %v9036, 0
    %9343 = vmatprep.subr.mxu0 0.0
    %9344 = vmatpush1.xpose.msra.mxu0 %v9341
    %9345 = vmatprep.subr.mxu0 0.0
    %9346 = vmatpush1.xpose.msra.mxu0 0.0
    %9347 = vmatprep.subr.mxu0 0.0
    %9348 = vmatpush1.xpose.msra.mxu0 0.0
    %9349 = vmatprep.subr.mxu0 0.0
    %9350 = vmatpush1.xpose.msra.mxu0 0.0
    %9351 = vmatprep.subr.mxu0 0.0
    %9352 = vmatpush1.xpose.msra.mxu0 0.0
    %9353 = vmatprep.subr.mxu0 0.0
    %9354 = vmatpush1.xpose.msra.mxu0 0.0
    %9355 = vmatprep.subr.mxu0 0.0
    %9356 = vmatpush1.xpose.msra.mxu0 0.0
    %9357 = vmatprep.subr.mxu0 0.0
    %9358 = vmatpush1.xpose.msra.mxu0 0.0
    %9359 = vmatprep.subr.mxu0 0.0
    %9360 = vmatpush1.xpose.msra.mxu0 0.0
    %9361 = vmatprep.subr.mxu0 0.0
    %9362 = vmatpush1.xpose.msra.mxu0 0.0
    %9363 = vmatprep.subr.mxu0 0.0
    %9364 = vmatpush1.xpose.msra.mxu0 0.0
    %9365 = vmatprep.subr.mxu0 0.0
    %9366 = vmatpush1.xpose.msra.mxu0 0.0
    %9367 = vmatprep.subr.mxu0 0.0
    %9368 = vmatpush1.xpose.msra.mxu0 0.0
    %9369 = vmatprep.subr.mxu0 0.0
    %9370 = vmatpush1.xpose.msra.mxu0 0.0
    %9371 = vmatprep.subr.mxu0 0.0
    %9372 = vmatpush1.xpose.msra.mxu0 0.0
    %9373 = vmatprep.subr.mxu0 0.0
    %9374 = vmatpush1.xpose.msra.mxu0 0.0
    %9375 = vmatprep.subr.mxu0 0.0
    %9376 = vmatpush1.xpose.msra.mxu0 0.0
    %9377 = vmatprep.subr.mxu0 0.0
    %9378 = vmatpush1.xpose.msra.mxu0 0.0
    %9379 = vmatprep.subr.mxu0 0.0
    %9380 = vmatpush1.xpose.msra.mxu0 0.0
    %9381 = vmatprep.subr.mxu0 0.0
    %9382 = vmatpush1.xpose.msra.mxu0 0.0
    %9383 = vmatprep.subr.mxu0 0.0
    %9384 = vmatpush1.xpose.msra.mxu0 0.0
    %9385 = vmatprep.subr.mxu0 0.0
    %9386 = vmatpush1.xpose.msra.mxu0 0.0
    %9387 = vmatprep.subr.mxu0 0.0
    %9388 = vmatpush1.xpose.msra.mxu0 0.0
    %9389 = vmatprep.subr.mxu0 0.0
    %9390 = vmatpush1.xpose.msra.mxu0 0.0
    %9391 = vmatprep.subr.mxu0 0.0
    %9392 = vmatpush1.xpose.msra.mxu0 0.0
    %9393 = vmatprep.subr.mxu0 0.0
    %9394 = vmatpush1.xpose.msra.mxu0 0.0
    %9395 = vmatprep.subr.mxu0 0.0
    %9396 = vmatpush1.xpose.msra.mxu0 0.0
    %9397 = vmatprep.subr.mxu0 0.0
    %9398 = vmatpush1.xpose.msra.mxu0 0.0
    %9399 = vmatprep.subr.mxu0 0.0
    %9400 = vmatpush1.xpose.msra.mxu0 0.0
    %9401 = vmatprep.subr.mxu0 0.0
    %9402 = vmatpush1.xpose.msra.mxu0 0.0
    %9403 = vmatprep.subr.mxu0 0.0
    %9404 = vmatpush1.xpose.msra.mxu0 0.0
    %9405 = vmatprep.subr.mxu0 0.0
    %9406 = vmatpush1.xpose.msra.mxu0 0.0
    %9407 = vmatprep.mubr.f32.mxu0 0.0
    %9408 = vmatmul.mubr.f32.gmra.mrb[0].mxu0 %v9339
    %v9409 = vpop.f32.mrb[0].mxu0
    %v9410 = vadd.f32 %v248, %v9409
    %v9411 = vpop.f32.mrb[0].mxu0
    %9412 = vdwg.mxu0
    %v9413 = vsel %vm257, %v9024, 0
    %v9415 = vsel %vm257, %v9038, 0
    %9417 = vmatprep.subr.mxu0 0.0
    %9418 = vmatpush1.xpose.msra.mxu0 %v9415
    %9419 = vmatprep.subr.mxu0 0.0
    %9420 = vmatpush1.xpose.msra.mxu0 0.0
    %9421 = vmatprep.subr.mxu0 0.0
    %9422 = vmatpush1.xpose.msra.mxu0 0.0
    %9423 = vmatprep.subr.mxu0 0.0
    %9424 = vmatpush1.xpose.msra.mxu0 0.0
    %9425 = vmatprep.subr.mxu0 0.0
    %9426 = vmatpush1.xpose.msra.mxu0 0.0
    %9427 = vmatprep.subr.mxu0 0.0
    %9428 = vmatpush1.xpose.msra.mxu0 0.0
    %9429 = vmatprep.subr.mxu0 0.0
    %9430 = vmatpush1.xpose.msra.mxu0 0.0
    %9431 = vmatprep.subr.mxu0 0.0
    %9432 = vmatpush1.xpose.msra.mxu0 0.0
    %9433 = vmatprep.subr.mxu0 0.0
    %9434 = vmatpush1.xpose.msra.mxu0 0.0
    %9435 = vmatprep.subr.mxu0 0.0
    %9436 = vmatpush1.xpose.msra.mxu0 0.0
    %9437 = vmatprep.subr.mxu0 0.0
    %9438 = vmatpush1.xpose.msra.mxu0 0.0
    %9439 = vmatprep.subr.mxu0 0.0
    %9440 = vmatpush1.xpose.msra.mxu0 0.0
    %9441 = vmatprep.subr.mxu0 0.0
    %9442 = vmatpush1.xpose.msra.mxu0 0.0
    %9443 = vmatprep.subr.mxu0 0.0
    %9444 = vmatpush1.xpose.msra.mxu0 0.0
    %9445 = vmatprep.subr.mxu0 0.0
    %9446 = vmatpush1.xpose.msra.mxu0 0.0
    %9447 = vmatprep.subr.mxu0 0.0
    %9448 = vmatpush1.xpose.msra.mxu0 0.0
    %9449 = vmatprep.subr.mxu0 0.0
    %9450 = vmatpush1.xpose.msra.mxu0 0.0
    %9451 = vmatprep.subr.mxu0 0.0
    %9452 = vmatpush1.xpose.msra.mxu0 0.0
    %9453 = vmatprep.subr.mxu0 0.0
    %9454 = vmatpush1.xpose.msra.mxu0 0.0
    %9455 = vmatprep.subr.mxu0 0.0
    %9456 = vmatpush1.xpose.msra.mxu0 0.0
    %9457 = vmatprep.subr.mxu0 0.0
    %9458 = vmatpush1.xpose.msra.mxu0 0.0
    %9459 = vmatprep.subr.mxu0 0.0
    %9460 = vmatpush1.xpose.msra.mxu0 0.0
    %9461 = vmatprep.subr.mxu0 0.0
    %9462 = vmatpush1.xpose.msra.mxu0 0.0
    %9463 = vmatprep.subr.mxu0 0.0
    %9464 = vmatpush1.xpose.msra.mxu0 0.0
    %9465 = vmatprep.subr.mxu0 0.0
    %9466 = vmatpush1.xpose.msra.mxu0 0.0
    %9467 = vmatprep.subr.mxu0 0.0
    %9468 = vmatpush1.xpose.msra.mxu0 0.0
    %9469 = vmatprep.subr.mxu0 0.0
    %9470 = vmatpush1.xpose.msra.mxu0 0.0
    %9471 = vmatprep.subr.mxu0 0.0
    %9472 = vmatpush1.xpose.msra.mxu0 0.0
    %9473 = vmatprep.subr.mxu0 0.0
    %9474 = vmatpush1.xpose.msra.mxu0 0.0
    %9475 = vmatprep.subr.mxu0 0.0
    %9476 = vmatpush1.xpose.msra.mxu0 0.0
    %9477 = vmatprep.subr.mxu0 0.0
    %9478 = vmatpush1.xpose.msra.mxu0 0.0
    %9479 = vmatprep.subr.mxu0 0.0
    %9480 = vmatpush1.xpose.msra.mxu0 0.0
    %9481 = vmatprep.mubr.f32.mxu0 0.0
    %9482 = vmatmul.mubr.f32.gmra.mrb[0].mxu0 %v9413
    %v9483 = vpop.f32.mrb[0].mxu0
    %v9484 = vadd.f32 %v252, %v9483
    %v9485 = vpop.f32.mrb[0].mxu0
    %9486 = vdwg.mxu0
    %v9487 = vsel %vm257, %v9026, 0
    %v9489 = vsel %vm257, %v9040, 0
    %9491 = vmatprep.subr.mxu0 0.0
    %9492 = vmatpush1.xpose.msra.mxu0 %v9489
    %9493 = vmatprep.subr.mxu0 0.0
    %9494 = vmatpush1.xpose.msra.mxu0 0.0
    %9495 = vmatprep.subr.mxu0 0.0
    %9496 = vmatpush1.xpose.msra.mxu0 0.0
    %9497 = vmatprep.subr.mxu0 0.0
    %9498 = vmatpush1.xpose.msra.mxu0 0.0
    %9499 = vmatprep.subr.mxu0 0.0
    %9500 = vmatpush1.xpose.msra.mxu0 0.0
    %9501 = vmatprep.subr.mxu0 0.0
    %9502 = vmatpush1.xpose.msra.mxu0 0.0
    %9503 = vmatprep.subr.mxu0 0.0
    %9504 = vmatpush1.xpose.msra.mxu0 0.0
    %9505 = vmatprep.subr.mxu0 0.0
    %9506 = vmatpush1.xpose.msra.mxu0 0.0
    %9507 = vmatprep.subr.mxu0 0.0
    %9508 = vmatpush1.xpose.msra.mxu0 0.0
    %9509 = vmatprep.subr.mxu0 0.0
    %9510 = vmatpush1.xpose.msra.mxu0 0.0
    %9511 = vmatprep.subr.mxu0 0.0
    %9512 = vmatpush1.xpose.msra.mxu0 0.0
    %9513 = vmatprep.subr.mxu0 0.0
    %9514 = vmatpush1.xpose.msra.mxu0 0.0
    %9515 = vmatprep.subr.mxu0 0.0
    %9516 = vmatpush1.xpose.msra.mxu0 0.0
    %9517 = vmatprep.subr.mxu0 0.0
    %9518 = vmatpush1.xpose.msra.mxu0 0.0
    %9519 = vmatprep.subr.mxu0 0.0
    %9520 = vmatpush1.xpose.msra.mxu0 0.0
    %9521 = vmatprep.subr.mxu0 0.0
    %9522 = vmatpush1.xpose.msra.mxu0 0.0
    %9523 = vmatprep.subr.mxu0 0.0
    %9524 = vmatpush1.xpose.msra.mxu0 0.0
    %9525 = vmatprep.subr.mxu0 0.0
    %9526 = vmatpush1.xpose.msra.mxu0 0.0
    %9527 = vmatprep.subr.mxu0 0.0
    %9528 = vmatpush1.xpose.msra.mxu0 0.0
    %9529 = vmatprep.subr.mxu0 0.0
    %9530 = vmatpush1.xpose.msra.mxu0 0.0
    %9531 = vmatprep.subr.mxu0 0.0
    %9532 = vmatpush1.xpose.msra.mxu0 0.0
    %9533 = vmatprep.subr.mxu0 0.0
    %9534 = vmatpush1.xpose.msra.mxu0 0.0
    %9535 = vmatprep.subr.mxu0 0.0
    %9536 = vmatpush1.xpose.msra.mxu0 0.0
    %9537 = vmatprep.subr.mxu0 0.0
    %9538 = vmatpush1.xpose.msra.mxu0 0.0
    %9539 = vmatprep.subr.mxu0 0.0
    %9540 = vmatpush1.xpose.msra.mxu0 0.0
    %9541 = vmatprep.subr.mxu0 0.0
    %9542 = vmatpush1.xpose.msra.mxu0 0.0
    %9543 = vmatprep.subr.mxu0 0.0
    %9544 = vmatpush1.xpose.msra.mxu0 0.0
    %9545 = vmatprep.subr.mxu0 0.0
    %9546 = vmatpush1.xpose.msra.mxu0 0.0
    %9547 = vmatprep.subr.mxu0 0.0
    %9548 = vmatpush1.xpose.msra.mxu0 0.0
    %9549 = vmatprep.subr.mxu0 0.0
    %9550 = vmatpush1.xpose.msra.mxu0 0.0
    %9551 = vmatprep.subr.mxu0 0.0
    %9552 = vmatpush1.xpose.msra.mxu0 0.0
    %9553 = vmatprep.subr.mxu0 0.0
    %9554 = vmatpush1.xpose.msra.mxu0 0.0
    %9555 = vmatprep.mubr.f32.mxu0 0.0
    %9556 = vmatmul.mubr.f32.gmra.mrb[0].mxu0 %v9487
    %v9557 = vpop.f32.mrb[0].mxu0
    %v9558 = vadd.f32 %v248, %v9557
    %v9559 = vpop.f32.mrb[0].mxu0
    %9560 = vdwg.mxu0
    %v9561 = vsel %vm257, %v9028, 0
    %v9563 = vsel %vm257, %v9042, 0
    %9565 = vmatprep.subr.mxu0 0.0
    %9566 = vmatpush1.xpose.msra.mxu0 %v9563
    %9567 = vmatprep.subr.mxu0 0.0
    %9568 = vmatpush1.xpose.msra.mxu0 0.0
    %9569 = vmatprep.subr.mxu0 0.0
    %9570 = vmatpush1.xpose.msra.mxu0 0.0
    %9571 = vmatprep.subr.mxu0 0.0
    %9572 = vmatpush1.xpose.msra.mxu0 0.0
    %9573 = vmatprep.subr.mxu0 0.0
    %9574 = vmatpush1.xpose.msra.mxu0 0.0
    %9575 = vmatprep.subr.mxu0 0.0
    %9576 = vmatpush1.xpose.msra.mxu0 0.0
    %9577 = vmatprep.subr.mxu0 0.0
    %9578 = vmatpush1.xpose.msra.mxu0 0.0
    %9579 = vmatprep.subr.mxu0 0.0
    %9580 = vmatpush1.xpose.msra.mxu0 0.0
    %9581 = vmatprep.subr.mxu0 0.0
    %9582 = vmatpush1.xpose.msra.mxu0 0.0
    %9583 = vmatprep.subr.mxu0 0.0
    %9584 = vmatpush1.xpose.msra.mxu0 0.0
    %9585 = vmatprep.subr.mxu0 0.0
    %9586 = vmatpush1.xpose.msra.mxu0 0.0
    %9587 = vmatprep.subr.mxu0 0.0
    %9588 = vmatpush1.xpose.msra.mxu0 0.0
    %9589 = vmatprep.subr.mxu0 0.0
    %9590 = vmatpush1.xpose.msra.mxu0 0.0
    %9591 = vmatprep.subr.mxu0 0.0
    %9592 = vmatpush1.xpose.msra.mxu0 0.0
    %9593 = vmatprep.subr.mxu0 0.0
    %9594 = vmatpush1.xpose.msra.mxu0 0.0
    %9595 = vmatprep.subr.mxu0 0.0
    %9596 = vmatpush1.xpose.msra.mxu0 0.0
    %9597 = vmatprep.subr.mxu0 0.0
    %9598 = vmatpush1.xpose.msra.mxu0 0.0
    %9599 = vmatprep.subr.mxu0 0.0
    %9600 = vmatpush1.xpose.msra.mxu0 0.0
    %9601 = vmatprep.subr.mxu0 0.0
    %9602 = vmatpush1.xpose.msra.mxu0 0.0
    %9603 = vmatprep.subr.mxu0 0.0
    %9604 = vmatpush1.xpose.msra.mxu0 0.0
    %9605 = vmatprep.subr.mxu0 0.0
    %9606 = vmatpush1.xpose.msra.mxu0 0.0
    %9607 = vmatprep.subr.mxu0 0.0
    %9608 = vmatpush1.xpose.msra.mxu0 0.0
    %9609 = vmatprep.subr.mxu0 0.0
    %9610 = vmatpush1.xpose.msra.mxu0 0.0
    %9611 = vmatprep.subr.mxu0 0.0
    %9612 = vmatpush1.xpose.msra.mxu0 0.0
    %9613 = vmatprep.subr.mxu0 0.0
    %9614 = vmatpush1.xpose.msra.mxu0 0.0
    %9615 = vmatprep.subr.mxu0 0.0
    %9616 = vmatpush1.xpose.msra.mxu0 0.0
    %9617 = vmatprep.subr.mxu0 0.0
    %9618 = vmatpush1.xpose.msra.mxu0 0.0
    %9619 = vmatprep.subr.mxu0 0.0
    %9620 = vmatpush1.xpose.msra.mxu0 0.0
    %9621 = vmatprep.subr.mxu0 0.0
    %9622 = vmatpush1.xpose.msra.mxu0 0.0
    %9623 = vmatprep.subr.mxu0 0.0
    %9624 = vmatpush1.xpose.msra.mxu0 0.0
    %9625 = vmatprep.subr.mxu0 0.0
    %9626 = vmatpush1.xpose.msra.mxu0 0.0
    %9627 = vmatprep.subr.mxu0 0.0
    %9628 = vmatpush1.xpose.msra.mxu0 0.0
    %9629 = vmatprep.mubr.f32.mxu0 0.0
    %9630 = vmatmul.mubr.f32.gmra.mrb[0].mxu0 %v9561
    %v9631 = vpop.f32.mrb[0].mxu0
    %v9632 = vadd.f32 %v252, %v9631
    %v9633 = vpop.f32.mrb[0].mxu0
    %9634 = vdwg.mxu0
    %v9635 = vsel %vm257, %v9114, -inf
    %9636 = vmax.xlane.f32.xlu0 %v9635
    %v9637 = vpop.xlane.xlu0 %9636
    %v9638 = vsel %vm257, %v9188, -inf
    %9639 = vmax.xlane.f32.xlu0 %v9638
    %v9640 = vpop.xlane.xlu0 %9639
    %v9641 = vsel %vm257, %v9262, -inf
    %9642 = vmax.xlane.f32.xlu0 %v9641
    %v9643 = vpop.xlane.xlu0 %9642
    %v9644 = vsel %vm257, %v9336, -inf
    %9645 = vmax.xlane.f32.xlu0 %v9644
    %v9646 = vpop.xlane.xlu0 %9645
    %v9647 = vsel %vm257, %v9410, -inf
    %9648 = vmax.xlane.f32.xlu0 %v9647
    %v9649 = vpop.xlane.xlu0 %9648
    %v9650 = vsel %vm257, %v9484, -inf
    %9651 = vmax.xlane.f32.xlu0 %v9650
    %v9652 = vpop.xlane.xlu0 %9651
    %v9653 = vsel %vm257, %v9558, -inf
    %9654 = vmax.xlane.f32.xlu0 %v9653
    %v9655 = vpop.xlane.xlu0 %9654
    %v9656 = vsel %vm257, %v9632, -inf
    %9657 = vmax.xlane.f32.xlu0 %v9656
    %v9658 = vpop.xlane.xlu0 %9657
    %v9659 = vsub.f32 %v9114, %v9637
    %v9660 = vsub.f32 %v9188, %v9640
    %v9661 = vsub.f32 %v9262, %v9643
    %v9662 = vsub.f32 %v9336, %v9646
    %v9663 = vsub.f32 %v9410, %v9649
    %v9664 = vsub.f32 %v9484, %v9652
    %v9665 = vsub.f32 %v9558, %v9655
    %v9666 = vsub.f32 %v9632, %v9658
    %v9667 = vmul.f32 %v9659, 1.442695
    %v9668 = vpow.pop %v9667
    %v9669 = vmul.f32 %v9660, 1.442695
    %v9670 = vpow.pop %v9669
    %v9671 = vmul.f32 %v9661, 1.442695
    %v9672 = vpow.pop %v9671
    %v9673 = vmul.f32 %v9662, 1.442695
    %v9674 = vpow.pop %v9673
    %v9675 = vmul.f32 %v9663, 1.442695
    %v9676 = vpow.pop %v9675
    %v9677 = vmul.f32 %v9664, 1.442695
    %v9678 = vpow.pop %v9677
    %v9679 = vmul.f32 %v9665, 1.442695
    %v9680 = vpow.pop %v9679
    %v9681 = vmul.f32 %v9666, 1.442695
    %v9682 = vpow.pop %v9681
    %v9683 = vsel %vm257, %v9668, 0.0
    %9684 = vadd.xlane.f32.xlu0 %v9683
    %v9685 = vpop.xlane.xlu0 %9684
    %v9686 = vsel %vm257, %v9670, 0.0
    %9687 = vadd.xlane.f32.xlu0 %v9686
    %v9688 = vpop.xlane.xlu0 %9687
    %v9689 = vsel %vm257, %v9672, 0.0
    %9690 = vadd.xlane.f32.xlu0 %v9689
    %v9691 = vpop.xlane.xlu0 %9690
    %v9692 = vsel %vm257, %v9674, 0.0
    %9693 = vadd.xlane.f32.xlu0 %v9692
    %v9694 = vpop.xlane.xlu0 %9693
    %v9695 = vsel %vm257, %v9676, 0.0
    %9696 = vadd.xlane.f32.xlu0 %v9695
    %v9697 = vpop.xlane.xlu0 %9696
    %v9698 = vsel %vm257, %v9678, 0.0
    %9699 = vadd.xlane.f32.xlu0 %v9698
    %v9700 = vpop.xlane.xlu0 %9699
    %v9701 = vsel %vm257, %v9680, 0.0
    %9702 = vadd.xlane.f32.xlu0 %v9701
    %v9703 = vpop.xlane.xlu0 %9702
    %v9704 = vsel %vm257, %v9682, 0.0
    %9705 = vadd.xlane.f32.xlu0 %v9704
    %v9706 = vpop.xlane.xlu0 %9705
    %v9707 = vrcp.pop %v9685
    %v9708 = vrcp.pop %v9688
    %v9709 = vrcp.pop %v9691
    %v9710 = vrcp.pop %v9694
    %v9711 = vrcp.pop %v9697
    %v9712 = vrcp.pop %v9700
    %v9713 = vrcp.pop %v9703
    %v9714 = vrcp.pop %v9706
    %v9715 = vmul.f32 %v9668, %v9707
    %v9716 = vmul.f32 %v9670, %v9708
    %v9717 = vmul.f32 %v9672, %v9709
    %v9718 = vmul.f32 %v9674, %v9710
    %v9719 = vmul.f32 %v9676, %v9711
    %v9720 = vmul.f32 %v9678, %v9712
    %v9721 = vmul.f32 %v9680, %v9713
    %v9722 = vmul.f32 %v9682, %v9714
    %9723 = vrot.lane.b32.xlu0 %v9007, 96
    %v9724 = vpop.permute.xlu0 %9723
    %v9727 = vsel %vm257, %v9715, 0
    %9729 = vmatprep.subr.mxu0 0.0
    %9730 = vmatpush1.msra.mxu0 %v9724
    %9731 = vmatprep.subr.mxu0 0.0
    %9732 = vmatpush1.msra.mxu0 0.0
    %9733 = vmatprep.subr.mxu0 0.0
    %9734 = vmatpush1.msra.mxu0 0.0
    %9735 = vmatprep.subr.mxu0 0.0
    %9736 = vmatpush1.msra.mxu0 0.0
    %9737 = vmatprep.subr.mxu0 0.0
    %9738 = vmatpush1.msra.mxu0 0.0
    %9739 = vmatprep.subr.mxu0 0.0
    %9740 = vmatpush1.msra.mxu0 0.0
    %9741 = vmatprep.subr.mxu0 0.0
    %9742 = vmatpush1.msra.mxu0 0.0
    %9743 = vmatprep.subr.mxu0 0.0
    %9744 = vmatpush1.msra.mxu0 0.0
    %9745 = vmatprep.subr.mxu0 0.0
    %9746 = vmatpush1.msra.mxu0 0.0
    %9747 = vmatprep.subr.mxu0 0.0
    %9748 = vmatpush1.msra.mxu0 0.0
    %9749 = vmatprep.subr.mxu0 0.0
    %9750 = vmatpush1.msra.mxu0 0.0
    %9751 = vmatprep.subr.mxu0 0.0
    %9752 = vmatpush1.msra.mxu0 0.0
    %9753 = vmatprep.subr.mxu0 0.0
    %9754 = vmatpush1.msra.mxu0 0.0
    %9755 = vmatprep.subr.mxu0 0.0
    %9756 = vmatpush1.msra.mxu0 0.0
    %9757 = vmatprep.subr.mxu0 0.0
    %9758 = vmatpush1.msra.mxu0 0.0
    %9759 = vmatprep.subr.mxu0 0.0
    %9760 = vmatpush1.msra.mxu0 0.0
    %9761 = vmatprep.subr.mxu0 0.0
    %9762 = vmatpush1.msra.mxu0 0.0
    %9763 = vmatprep.subr.mxu0 0.0
    %9764 = vmatpush1.msra.mxu0 0.0
    %9765 = vmatprep.subr.mxu0 0.0
    %9766 = vmatpush1.msra.mxu0 0.0
    %9767 = vmatprep.subr.mxu0 0.0
    %9768 = vmatpush1.msra.mxu0 0.0
    %9769 = vmatprep.subr.mxu0 0.0
    %9770 = vmatpush1.msra.mxu0 0.0
    %9771 = vmatprep.subr.mxu0 0.0
    %9772 = vmatpush1.msra.mxu0 0.0
    %9773 = vmatprep.subr.mxu0 0.0
    %9774 = vmatpush1.msra.mxu0 0.0
    %9775 = vmatprep.subr.mxu0 0.0
    %9776 = vmatpush1.msra.mxu0 0.0
    %9777 = vmatprep.subr.mxu0 0.0
    %9778 = vmatpush1.msra.mxu0 0.0
    %9779 = vmatprep.subr.mxu0 0.0
    %9780 = vmatpush1.msra.mxu0 0.0
    %9781 = vmatprep.subr.mxu0 0.0
    %9782 = vmatpush1.msra.mxu0 0.0
    %9783 = vmatprep.subr.mxu0 0.0
    %9784 = vmatpush1.msra.mxu0 0.0
    %9785 = vmatprep.subr.mxu0 0.0
    %9786 = vmatpush1.msra.mxu0 0.0
    %9787 = vmatprep.subr.mxu0 0.0
    %9788 = vmatpush1.msra.mxu0 0.0
    %9789 = vmatprep.subr.mxu0 0.0
    %9790 = vmatpush1.msra.mxu0 0.0
    %9791 = vmatprep.subr.mxu0 0.0
    %9792 = vmatpush1.msra.mxu0 0.0
    %9793 = vmatprep.mubr.f32.mxu0 0.0
    %9794 = vmatmul.mubr.f32.gmra.mrb[0].mxu0 %v9727
    %v9795 = vpop.f32.mrb[0].mxu0
    %v9796 = vadd.f32 0.0, %v9795
    %v9797 = vpop.f32.mrb[0].mxu0
    %9798 = vdwg.mxu0
    %9799 = vrot.lane.b32.xlu0 %v9012, 96
    %v9800 = vpop.permute.xlu0 %9799
    %v9803 = vsel %vm257, %v9716, 0
    %9805 = vmatprep.subr.mxu0 0.0
    %9806 = vmatpush1.msra.mxu0 %v9800
    %9807 = vmatprep.subr.mxu0 0.0
    %9808 = vmatpush1.msra.mxu0 0.0
    %9809 = vmatprep.subr.mxu0 0.0
    %9810 = vmatpush1.msra.mxu0 0.0
    %9811 = vmatprep.subr.mxu0 0.0
    %9812 = vmatpush1.msra.mxu0 0.0
    %9813 = vmatprep.subr.mxu0 0.0
    %9814 = vmatpush1.msra.mxu0 0.0
    %9815 = vmatprep.subr.mxu0 0.0
    %9816 = vmatpush1.msra.mxu0 0.0
    %9817 = vmatprep.subr.mxu0 0.0
    %9818 = vmatpush1.msra.mxu0 0.0
    %9819 = vmatprep.subr.mxu0 0.0
    %9820 = vmatpush1.msra.mxu0 0.0
    %9821 = vmatprep.subr.mxu0 0.0
    %9822 = vmatpush1.msra.mxu0 0.0
    %9823 = vmatprep.subr.mxu0 0.0
    %9824 = vmatpush1.msra.mxu0 0.0
    %9825 = vmatprep.subr.mxu0 0.0
    %9826 = vmatpush1.msra.mxu0 0.0
    %9827 = vmatprep.subr.mxu0 0.0
    %9828 = vmatpush1.msra.mxu0 0.0
    %9829 = vmatprep.subr.mxu0 0.0
    %9830 = vmatpush1.msra.mxu0 0.0
    %9831 = vmatprep.subr.mxu0 0.0
    %9832 = vmatpush1.msra.mxu0 0.0
    %9833 = vmatprep.subr.mxu0 0.0
    %9834 = vmatpush1.msra.mxu0 0.0
    %9835 = vmatprep.subr.mxu0 0.0
    %9836 = vmatpush1.msra.mxu0 0.0
    %9837 = vmatprep.subr.mxu0 0.0
    %9838 = vmatpush1.msra.mxu0 0.0
    %9839 = vmatprep.subr.mxu0 0.0
    %9840 = vmatpush1.msra.mxu0 0.0
    %9841 = vmatprep.subr.mxu0 0.0
    %9842 = vmatpush1.msra.mxu0 0.0
    %9843 = vmatprep.subr.mxu0 0.0
    %9844 = vmatpush1.msra.mxu0 0.0
    %9845 = vmatprep.subr.mxu0 0.0
    %9846 = vmatpush1.msra.mxu0 0.0
    %9847 = vmatprep.subr.mxu0 0.0
    %9848 = vmatpush1.msra.mxu0 0.0
    %9849 = vmatprep.subr.mxu0 0.0
    %9850 = vmatpush1.msra.mxu0 0.0
    %9851 = vmatprep.subr.mxu0 0.0
    %9852 = vmatpush1.msra.mxu0 0.0
    %9853 = vmatprep.subr.mxu0 0.0
    %9854 = vmatpush1.msra.mxu0 0.0
    %9855 = vmatprep.subr.mxu0 0.0
    %9856 = vmatpush1.msra.mxu0 0.0
    %9857 = vmatprep.subr.mxu0 0.0
    %9858 = vmatpush1.msra.mxu0 0.0
    %9859 = vmatprep.subr.mxu0 0.0
    %9860 = vmatpush1.msra.mxu0 0.0
    %9861 = vmatprep.subr.mxu0 0.0
    %9862 = vmatpush1.msra.mxu0 0.0
    %9863 = vmatprep.subr.mxu0 0.0
    %9864 = vmatpush1.msra.mxu0 0.0
    %9865 = vmatprep.subr.mxu0 0.0
    %9866 = vmatpush1.msra.mxu0 0.0
    %9867 = vmatprep.subr.mxu0 0.0
    %9868 = vmatpush1.msra.mxu0 0.0
    %9869 = vmatprep.mubr.f32.mxu0 0.0
    %9870 = vmatmul.mubr.f32.gmra.mrb[0].mxu0 %v9803
    %v9871 = vpop.f32.mrb[0].mxu0
    %v9872 = vadd.f32 0.0, %v9871
    %v9873 = vpop.f32.mrb[0].mxu0
    %9874 = vdwg.mxu0
    %9875 = vrot.lane.b32.xlu0 %v9032, 96
    %v9876 = vpop.permute.xlu0 %9875
    %v9879 = vsel %vm257, %v9717, 0
    %9881 = vmatprep.subr.mxu0 0.0
    %9882 = vmatpush1.msra.mxu0 %v9876
    %9883 = vmatprep.subr.mxu0 0.0
    %9884 = vmatpush1.msra.mxu0 0.0
    %9885 = vmatprep.subr.mxu0 0.0
    %9886 = vmatpush1.msra.mxu0 0.0
    %9887 = vmatprep.subr.mxu0 0.0
    %9888 = vmatpush1.msra.mxu0 0.0
    %9889 = vmatprep.subr.mxu0 0.0
    %9890 = vmatpush1.msra.mxu0 0.0
    %9891 = vmatprep.subr.mxu0 0.0
    %9892 = vmatpush1.msra.mxu0 0.0
    %9893 = vmatprep.subr.mxu0 0.0
    %9894 = vmatpush1.msra.mxu0 0.0
    %9895 = vmatprep.subr.mxu0 0.0
    %9896 = vmatpush1.msra.mxu0 0.0
    %9897 = vmatprep.subr.mxu0 0.0
    %9898 = vmatpush1.msra.mxu0 0.0
    %9899 = vmatprep.subr.mxu0 0.0
    %9900 = vmatpush1.msra.mxu0 0.0
    %9901 = vmatprep.subr.mxu0 0.0
    %9902 = vmatpush1.msra.mxu0 0.0
    %9903 = vmatprep.subr.mxu0 0.0
    %9904 = vmatpush1.msra.mxu0 0.0
    %9905 = vmatprep.subr.mxu0 0.0
    %9906 = vmatpush1.msra.mxu0 0.0
    %9907 = vmatprep.subr.mxu0 0.0
    %9908 = vmatpush1.msra.mxu0 0.0
    %9909 = vmatprep.subr.mxu0 0.0
    %9910 = vmatpush1.msra.mxu0 0.0
    %9911 = vmatprep.subr.mxu0 0.0
    %9912 = vmatpush1.msra.mxu0 0.0
    %9913 = vmatprep.subr.mxu0 0.0
    %9914 = vmatpush1.msra.mxu0 0.0
    %9915 = vmatprep.subr.mxu0 0.0
    %9916 = vmatpush1.msra.mxu0 0.0
    %9917 = vmatprep.subr.mxu0 0.0
    %9918 = vmatpush1.msra.mxu0 0.0
    %9919 = vmatprep.subr.mxu0 0.0
    %9920 = vmatpush1.msra.mxu0 0.0
    %9921 = vmatprep.subr.mxu0 0.0
    %9922 = vmatpush1.msra.mxu0 0.0
    %9923 = vmatprep.subr.mxu0 0.0
    %9924 = vmatpush1.msra.mxu0 0.0
    %9925 = vmatprep.subr.mxu0 0.0
    %9926 = vmatpush1.msra.mxu0 0.0
    %9927 = vmatprep.subr.mxu0 0.0
    %9928 = vmatpush1.msra.mxu0 0.0
    %9929 = vmatprep.subr.mxu0 0.0
    %9930 = vmatpush1.msra.mxu0 0.0
    %9931 = vmatprep.subr.mxu0 0.0
    %9932 = vmatpush1.msra.mxu0 0.0
    %9933 = vmatprep.subr.mxu0 0.0
    %9934 = vmatpush1.msra.mxu0 0.0
    %9935 = vmatprep.subr.mxu0 0.0
    %9936 = vmatpush1.msra.mxu0 0.0
    %9937 = vmatprep.subr.mxu0 0.0
    %9938 = vmatpush1.msra.mxu0 0.0
    %9939 = vmatprep.subr.mxu0 0.0
    %9940 = vmatpush1.msra.mxu0 0.0
    %9941 = vmatprep.subr.mxu0 0.0
    %9942 = vmatpush1.msra.mxu0 0.0
    %9943 = vmatprep.subr.mxu0 0.0
    %9944 = vmatpush1.msra.mxu0 0.0
    %9945 = vmatprep.mubr.f32.mxu0 0.0
    %9946 = vmatmul.mubr.f32.gmra.mrb[0].mxu0 %v9879
    %v9947 = vpop.f32.mrb[0].mxu0
    %v9948 = vadd.f32 0.0, %v9947
    %v9949 = vpop.f32.mrb[0].mxu0
    %9950 = vdwg.mxu0
    %9951 = vrot.lane.b32.xlu0 %v9034, 96
    %v9952 = vpop.permute.xlu0 %9951
    %v9955 = vsel %vm257, %v9718, 0
    %9957 = vmatprep.subr.mxu0 0.0
    %9958 = vmatpush1.msra.mxu0 %v9952
    %9959 = vmatprep.subr.mxu0 0.0
    %9960 = vmatpush1.msra.mxu0 0.0
    %9961 = vmatprep.subr.mxu0 0.0
    %9962 = vmatpush1.msra.mxu0 0.0
    %9963 = vmatprep.subr.mxu0 0.0
    %9964 = vmatpush1.msra.mxu0 0.0
    %9965 = vmatprep.subr.mxu0 0.0
    %9966 = vmatpush1.msra.mxu0 0.0
    %9967 = vmatprep.subr.mxu0 0.0
    %9968 = vmatpush1.msra.mxu0 0.0
    %9969 = vmatprep.subr.mxu0 0.0
    %9970 = vmatpush1.msra.mxu0 0.0
    %9971 = vmatprep.subr.mxu0 0.0
    %9972 = vmatpush1.msra.mxu0 0.0
    %9973 = vmatprep.subr.mxu0 0.0
    %9974 = vmatpush1.msra.mxu0 0.0
    %9975 = vmatprep.subr.mxu0 0.0
    %9976 = vmatpush1.msra.mxu0 0.0
    %9977 = vmatprep.subr.mxu0 0.0
    %9978 = vmatpush1.msra.mxu0 0.0
    %9979 = vmatprep.subr.mxu0 0.0
    %9980 = vmatpush1.msra.mxu0 0.0
    %9981 = vmatprep.subr.mxu0 0.0
    %9982 = vmatpush1.msra.mxu0 0.0
    %9983 = vmatprep.subr.mxu0 0.0
    %9984 = vmatpush1.msra.mxu0 0.0
    %9985 = vmatprep.subr.mxu0 0.0
    %9986 = vmatpush1.msra.mxu0 0.0
    %9987 = vmatprep.subr.mxu0 0.0
    %9988 = vmatpush1.msra.mxu0 0.0
    %9989 = vmatprep.subr.mxu0 0.0
    %9990 = vmatpush1.msra.mxu0 0.0
    %9991 = vmatprep.subr.mxu0 0.0
    %9992 = vmatpush1.msra.mxu0 0.0
    %9993 = vmatprep.subr.mxu0 0.0
    %9994 = vmatpush1.msra.mxu0 0.0
    %9995 = vmatprep.subr.mxu0 0.0
    %9996 = vmatpush1.msra.mxu0 0.0
    %9997 = vmatprep.subr.mxu0 0.0
    %9998 = vmatpush1.msra.mxu0 0.0
    %9999 = vmatprep.subr.mxu0 0.0
    %10000 = vmatpush1.msra.mxu0 0.0
    %10001 = vmatprep.subr.mxu0 0.0
    %10002 = vmatpush1.msra.mxu0 0.0
    %10003 = vmatprep.subr.mxu0 0.0
    %10004 = vmatpush1.msra.mxu0 0.0
    %10005 = vmatprep.subr.mxu0 0.0
    %10006 = vmatpush1.msra.mxu0 0.0
    %10007 = vmatprep.subr.mxu0 0.0
    %10008 = vmatpush1.msra.mxu0 0.0
    %10009 = vmatprep.subr.mxu0 0.0
    %10010 = vmatpush1.msra.mxu0 0.0
    %10011 = vmatprep.subr.mxu0 0.0
    %10012 = vmatpush1.msra.mxu0 0.0
    %10013 = vmatprep.subr.mxu0 0.0
    %10014 = vmatpush1.msra.mxu0 0.0
    %10015 = vmatprep.subr.mxu0 0.0
    %10016 = vmatpush1.msra.mxu0 0.0
    %10017 = vmatprep.subr.mxu0 0.0
    %10018 = vmatpush1.msra.mxu0 0.0
    %10019 = vmatprep.subr.mxu0 0.0
    %10020 = vmatpush1.msra.mxu0 0.0
    %10021 = vmatprep.mubr.f32.mxu0 0.0
    %10022 = vmatmul.mubr.f32.gmra.mrb[0].mxu0 %v9955
    %v10023 = vpop.f32.mrb[0].mxu0
    %v10024 = vadd.f32 0.0, %v10023
    %v10025 = vpop.f32.mrb[0].mxu0
    %10026 = vdwg.mxu0
    %10027 = vrot.lane.b32.xlu0 %v9036, 96
    %v10028 = vpop.permute.xlu0 %10027
    %v10031 = vsel %vm257, %v9719, 0
    %10033 = vmatprep.subr.mxu0 0.0
    %10034 = vmatpush1.msra.mxu0 %v10028
    %10035 = vmatprep.subr.mxu0 0.0
    %10036 = vmatpush1.msra.mxu0 0.0
    %10037 = vmatprep.subr.mxu0 0.0
    %10038 = vmatpush1.msra.mxu0 0.0
    %10039 = vmatprep.subr.mxu0 0.0
    %10040 = vmatpush1.msra.mxu0 0.0
    %10041 = vmatprep.subr.mxu0 0.0
    %10042 = vmatpush1.msra.mxu0 0.0
    %10043 = vmatprep.subr.mxu0 0.0
    %10044 = vmatpush1.msra.mxu0 0.0
    %10045 = vmatprep.subr.mxu0 0.0
    %10046 = vmatpush1.msra.mxu0 0.0
    %10047 = vmatprep.subr.mxu0 0.0
    %10048 = vmatpush1.msra.mxu0 0.0
    %10049 = vmatprep.subr.mxu0 0.0
    %10050 = vmatpush1.msra.mxu0 0.0
    %10051 = vmatprep.subr.mxu0 0.0
    %10052 = vmatpush1.msra.mxu0 0.0
    %10053 = vmatprep.subr.mxu0 0.0
    %10054 = vmatpush1.msra.mxu0 0.0
    %10055 = vmatprep.subr.mxu0 0.0
    %10056 = vmatpush1.msra.mxu0 0.0
    %10057 = vmatprep.subr.mxu0 0.0
    %10058 = vmatpush1.msra.mxu0 0.0
    %10059 = vmatprep.subr.mxu0 0.0
    %10060 = vmatpush1.msra.mxu0 0.0
    %10061 = vmatprep.subr.mxu0 0.0
    %10062 = vmatpush1.msra.mxu0 0.0
    %10063 = vmatprep.subr.mxu0 0.0
    %10064 = vmatpush1.msra.mxu0 0.0
    %10065 = vmatprep.subr.mxu0 0.0
    %10066 = vmatpush1.msra.mxu0 0.0
    %10067 = vmatprep.subr.mxu0 0.0
    %10068 = vmatpush1.msra.mxu0 0.0
    %10069 = vmatprep.subr.mxu0 0.0
    %10070 = vmatpush1.msra.mxu0 0.0
    %10071 = vmatprep.subr.mxu0 0.0
    %10072 = vmatpush1.msra.mxu0 0.0
    %10073 = vmatprep.subr.mxu0 0.0
    %10074 = vmatpush1.msra.mxu0 0.0
    %10075 = vmatprep.subr.mxu0 0.0
    %10076 = vmatpush1.msra.mxu0 0.0
    %10077 = vmatprep.subr.mxu0 0.0
    %10078 = vmatpush1.msra.mxu0 0.0
    %10079 = vmatprep.subr.mxu0 0.0
    %10080 = vmatpush1.msra.mxu0 0.0
    %10081 = vmatprep.subr.mxu0 0.0
    %10082 = vmatpush1.msra.mxu0 0.0
    %10083 = vmatprep.subr.mxu0 0.0
    %10084 = vmatpush1.msra.mxu0 0.0
    %10085 = vmatprep.subr.mxu0 0.0
    %10086 = vmatpush1.msra.mxu0 0.0
    %10087 = vmatprep.subr.mxu0 0.0
    %10088 = vmatpush1.msra.mxu0 0.0
    %10089 = vmatprep.subr.mxu0 0.0
    %10090 = vmatpush1.msra.mxu0 0.0
    %10091 = vmatprep.subr.mxu0 0.0
    %10092 = vmatpush1.msra.mxu0 0.0
    %10093 = vmatprep.subr.mxu0 0.0
    %10094 = vmatpush1.msra.mxu0 0.0
    %10095 = vmatprep.subr.mxu0 0.0
    %10096 = vmatpush1.msra.mxu0 0.0
    %10097 = vmatprep.mubr.f32.mxu0 0.0
    %10098 = vmatmul.mubr.f32.gmra.mrb[0].mxu0 %v10031
    %v10099 = vpop.f32.mrb[0].mxu0
    %v10100 = vadd.f32 0.0, %v10099
    %v10101 = vpop.f32.mrb[0].mxu0
    %10102 = vdwg.mxu0
    %10103 = vrot.lane.b32.xlu0 %v9038, 96
    %v10104 = vpop.permute.xlu0 %10103
    %v10107 = vsel %vm257, %v9720, 0
    %10109 = vmatprep.subr.mxu0 0.0
    %10110 = vmatpush1.msra.mxu0 %v10104
    %10111 = vmatprep.subr.mxu0 0.0
    %10112 = vmatpush1.msra.mxu0 0.0
    %10113 = vmatprep.subr.mxu0 0.0
    %10114 = vmatpush1.msra.mxu0 0.0
    %10115 = vmatprep.subr.mxu0 0.0
    %10116 = vmatpush1.msra.mxu0 0.0
    %10117 = vmatprep.subr.mxu0 0.0
    %10118 = vmatpush1.msra.mxu0 0.0
    %10119 = vmatprep.subr.mxu0 0.0
    %10120 = vmatpush1.msra.mxu0 0.0
    %10121 = vmatprep.subr.mxu0 0.0
    %10122 = vmatpush1.msra.mxu0 0.0
    %10123 = vmatprep.subr.mxu0 0.0
    %10124 = vmatpush1.msra.mxu0 0.0
    %10125 = vmatprep.subr.mxu0 0.0
    %10126 = vmatpush1.msra.mxu0 0.0
    %10127 = vmatprep.subr.mxu0 0.0
    %10128 = vmatpush1.msra.mxu0 0.0
    %10129 = vmatprep.subr.mxu0 0.0
    %10130 = vmatpush1.msra.mxu0 0.0
    %10131 = vmatprep.subr.mxu0 0.0
    %10132 = vmatpush1.msra.mxu0 0.0
    %10133 = vmatprep.subr.mxu0 0.0
    %10134 = vmatpush1.msra.mxu0 0.0
    %10135 = vmatprep.subr.mxu0 0.0
    %10136 = vmatpush1.msra.mxu0 0.0
    %10137 = vmatprep.subr.mxu0 0.0
    %10138 = vmatpush1.msra.mxu0 0.0
    %10139 = vmatprep.subr.mxu0 0.0
    %10140 = vmatpush1.msra.mxu0 0.0
    %10141 = vmatprep.subr.mxu0 0.0
    %10142 = vmatpush1.msra.mxu0 0.0
    %10143 = vmatprep.subr.mxu0 0.0
    %10144 = vmatpush1.msra.mxu0 0.0
    %10145 = vmatprep.subr.mxu0 0.0
    %10146 = vmatpush1.msra.mxu0 0.0
    %10147 = vmatprep.subr.mxu0 0.0
    %10148 = vmatpush1.msra.mxu0 0.0
    %10149 = vmatprep.subr.mxu0 0.0
    %10150 = vmatpush1.msra.mxu0 0.0
    %10151 = vmatprep.subr.mxu0 0.0
    %10152 = vmatpush1.msra.mxu0 0.0
    %10153 = vmatprep.subr.mxu0 0.0
    %10154 = vmatpush1.msra.mxu0 0.0
    %10155 = vmatprep.subr.mxu0 0.0
    %10156 = vmatpush1.msra.mxu0 0.0
    %10157 = vmatprep.subr.mxu0 0.0
    %10158 = vmatpush1.msra.mxu0 0.0
    %10159 = vmatprep.subr.mxu0 0.0
    %10160 = vmatpush1.msra.mxu0 0.0
    %10161 = vmatprep.subr.mxu0 0.0
    %10162 = vmatpush1.msra.mxu0 0.0
    %10163 = vmatprep.subr.mxu0 0.0
    %10164 = vmatpush1.msra.mxu0 0.0
    %10165 = vmatprep.subr.mxu0 0.0
    %10166 = vmatpush1.msra.mxu0 0.0
    %10167 = vmatprep.subr.mxu0 0.0
    %10168 = vmatpush1.msra.mxu0 0.0
    %10169 = vmatprep.subr.mxu0 0.0
    %10170 = vmatpush1.msra.mxu0 0.0
    %10171 = vmatprep.subr.mxu0 0.0
    %10172 = vmatpush1.msra.mxu0 0.0
    %10173 = vmatprep.mubr.f32.mxu0 0.0
    %10174 = vmatmul.mubr.f32.gmra.mrb[0].mxu0 %v10107
    %v10175 = vpop.f32.mrb[0].mxu0
    %v10176 = vadd.f32 0.0, %v10175
    %v10177 = vpop.f32.mrb[0].mxu0
    %10178 = vdwg.mxu0
    %10179 = vrot.lane.b32.xlu0 %v9040, 96
    %v10180 = vpop.permute.xlu0 %10179
    %v10183 = vsel %vm257, %v9721, 0
    %10185 = vmatprep.subr.mxu0 0.0
    %10186 = vmatpush1.msra.mxu0 %v10180
    %10187 = vmatprep.subr.mxu0 0.0
    %10188 = vmatpush1.msra.mxu0 0.0
    %10189 = vmatprep.subr.mxu0 0.0
    %10190 = vmatpush1.msra.mxu0 0.0
    %10191 = vmatprep.subr.mxu0 0.0
    %10192 = vmatpush1.msra.mxu0 0.0
    %10193 = vmatprep.subr.mxu0 0.0
    %10194 = vmatpush1.msra.mxu0 0.0
    %10195 = vmatprep.subr.mxu0 0.0
    %10196 = vmatpush1.msra.mxu0 0.0
    %10197 = vmatprep.subr.mxu0 0.0
    %10198 = vmatpush1.msra.mxu0 0.0
    %10199 = vmatprep.subr.mxu0 0.0
    %10200 = vmatpush1.msra.mxu0 0.0
    %10201 = vmatprep.subr.mxu0 0.0
    %10202 = vmatpush1.msra.mxu0 0.0
    %10203 = vmatprep.subr.mxu0 0.0
    %10204 = vmatpush1.msra.mxu0 0.0
    %10205 = vmatprep.subr.mxu0 0.0
    %10206 = vmatpush1.msra.mxu0 0.0
    %10207 = vmatprep.subr.mxu0 0.0
    %10208 = vmatpush1.msra.mxu0 0.0
    %10209 = vmatprep.subr.mxu0 0.0
    %10210 = vmatpush1.msra.mxu0 0.0
    %10211 = vmatprep.subr.mxu0 0.0
    %10212 = vmatpush1.msra.mxu0 0.0
    %10213 = vmatprep.subr.mxu0 0.0
    %10214 = vmatpush1.msra.mxu0 0.0
    %10215 = vmatprep.subr.mxu0 0.0
    %10216 = vmatpush1.msra.mxu0 0.0
    %10217 = vmatprep.subr.mxu0 0.0
    %10218 = vmatpush1.msra.mxu0 0.0
    %10219 = vmatprep.subr.mxu0 0.0
    %10220 = vmatpush1.msra.mxu0 0.0
    %10221 = vmatprep.subr.mxu0 0.0
    %10222 = vmatpush1.msra.mxu0 0.0
    %10223 = vmatprep.subr.mxu0 0.0
    %10224 = vmatpush1.msra.mxu0 0.0
    %10225 = vmatprep.subr.mxu0 0.0
    %10226 = vmatpush1.msra.mxu0 0.0
    %10227 = vmatprep.subr.mxu0 0.0
    %10228 = vmatpush1.msra.mxu0 0.0
    %10229 = vmatprep.subr.mxu0 0.0
    %10230 = vmatpush1.msra.mxu0 0.0
    %10231 = vmatprep.subr.mxu0 0.0
    %10232 = vmatpush1.msra.mxu0 0.0
    %10233 = vmatprep.subr.mxu0 0.0
    %10234 = vmatpush1.msra.mxu0 0.0
    %10235 = vmatprep.subr.mxu0 0.0
    %10236 = vmatpush1.msra.mxu0 0.0
    %10237 = vmatprep.subr.mxu0 0.0
    %10238 = vmatpush1.msra.mxu0 0.0
    %10239 = vmatprep.subr.mxu0 0.0
    %10240 = vmatpush1.msra.mxu0 0.0
    %10241 = vmatprep.subr.mxu0 0.0
    %10242 = vmatpush1.msra.mxu0 0.0
    %10243 = vmatprep.subr.mxu0 0.0
    %10244 = vmatpush1.msra.mxu0 0.0
    %10245 = vmatprep.subr.mxu0 0.0
    %10246 = vmatpush1.msra.mxu0 0.0
    %10247 = vmatprep.subr.mxu0 0.0
    %10248 = vmatpush1.msra.mxu0 0.0
    %10249 = vmatprep.mubr.f32.mxu0 0.0
    %10250 = vmatmul.mubr.f32.gmra.mrb[0].mxu0 %v10183
    %v10251 = vpop.f32.mrb[0].mxu0
    %v10252 = vadd.f32 0.0, %v10251
    %v10253 = vpop.f32.mrb[0].mxu0
    %10254 = vdwg.mxu0
    %10255 = vrot.lane.b32.xlu0 %v9042, 96
    %v10256 = vpop.permute.xlu0 %10255
    %v10259 = vsel %vm257, %v9722, 0
    %10261 = vmatprep.subr.mxu0 0.0
    %10262 = vmatpush1.msra.mxu0 %v10256
    %10263 = vmatprep.subr.mxu0 0.0
    %10264 = vmatpush1.msra.mxu0 0.0
    %10265 = vmatprep.subr.mxu0 0.0
    %10266 = vmatpush1.msra.mxu0 0.0
    %10267 = vmatprep.subr.mxu0 0.0
    %10268 = vmatpush1.msra.mxu0 0.0
    %10269 = vmatprep.subr.mxu0 0.0
    %10270 = vmatpush1.msra.mxu0 0.0
    %10271 = vmatprep.subr.mxu0 0.0
    %10272 = vmatpush1.msra.mxu0 0.0
    %10273 = vmatprep.subr.mxu0 0.0
    %10274 = vmatpush1.msra.mxu0 0.0
    %10275 = vmatprep.subr.mxu0 0.0
    %10276 = vmatpush1.msra.mxu0 0.0
    %10277 = vmatprep.subr.mxu0 0.0
    %10278 = vmatpush1.msra.mxu0 0.0
    %10279 = vmatprep.subr.mxu0 0.0
    %10280 = vmatpush1.msra.mxu0 0.0
    %10281 = vmatprep.subr.mxu0 0.0
    %10282 = vmatpush1.msra.mxu0 0.0
    %10283 = vmatprep.subr.mxu0 0.0
    %10284 = vmatpush1.msra.mxu0 0.0
    %10285 = vmatprep.subr.mxu0 0.0
    %10286 = vmatpush1.msra.mxu0 0.0
    %10287 = vmatprep.subr.mxu0 0.0
    %10288 = vmatpush1.msra.mxu0 0.0
    %10289 = vmatprep.subr.mxu0 0.0
    %10290 = vmatpush1.msra.mxu0 0.0
    %10291 = vmatprep.subr.mxu0 0.0
    %10292 = vmatpush1.msra.mxu0 0.0
    %10293 = vmatprep.subr.mxu0 0.0
    %10294 = vmatpush1.msra.mxu0 0.0
    %10295 = vmatprep.subr.mxu0 0.0
    %10296 = vmatpush1.msra.mxu0 0.0
    %10297 = vmatprep.subr.mxu0 0.0
    %10298 = vmatpush1.msra.mxu0 0.0
    %10299 = vmatprep.subr.mxu0 0.0
    %10300 = vmatpush1.msra.mxu0 0.0
    %10301 = vmatprep.subr.mxu0 0.0
    %10302 = vmatpush1.msra.mxu0 0.0
    %10303 = vmatprep.subr.mxu0 0.0
    %10304 = vmatpush1.msra.mxu0 0.0
    %10305 = vmatprep.subr.mxu0 0.0
    %10306 = vmatpush1.msra.mxu0 0.0
    %10307 = vmatprep.subr.mxu0 0.0
    %10308 = vmatpush1.msra.mxu0 0.0
    %10309 = vmatprep.subr.mxu0 0.0
    %10310 = vmatpush1.msra.mxu0 0.0
    %10311 = vmatprep.subr.mxu0 0.0
    %10312 = vmatpush1.msra.mxu0 0.0
    %10313 = vmatprep.subr.mxu0 0.0
    %10314 = vmatpush1.msra.mxu0 0.0
    %10315 = vmatprep.subr.mxu0 0.0
    %10316 = vmatpush1.msra.mxu0 0.0
    %10317 = vmatprep.subr.mxu0 0.0
    %10318 = vmatpush1.msra.mxu0 0.0
    %10319 = vmatprep.subr.mxu0 0.0
    %10320 = vmatpush1.msra.mxu0 0.0
    %10321 = vmatprep.subr.mxu0 0.0
    %10322 = vmatpush1.msra.mxu0 0.0
    %10323 = vmatprep.subr.mxu0 0.0
    %10324 = vmatpush1.msra.mxu0 0.0
    %10325 = vmatprep.mubr.f32.mxu0 0.0
    %10326 = vmatmul.mubr.f32.gmra.mrb[0].mxu0 %v10259
    %v10327 = vpop.f32.mrb[0].mxu0
    %v10328 = vadd.f32 0.0, %v10327
    %v10329 = vpop.f32.mrb[0].mxu0
    %10330 = vdwg.mxu0
    %10333 = vrot.lane.b32.xlu0 %v9948, 8
    %v10334 = vpop.permute.xlu0 %10333
    %10335 = vrot.lane.b32.xlu0 %v10024, 8
    %v10336 = vpop.permute.xlu0 %10335
    %10341 = vrot.lane.b32.xlu0 %v10100, 16
    %v10342 = vpop.permute.xlu0 %10341
    %10343 = vrot.lane.b32.xlu0 %v10176, 16
    %v10344 = vpop.permute.xlu0 %10343
    %10349 = vrot.lane.b32.xlu0 %v10252, 24
    %v10350 = vpop.permute.xlu0 %10349
    %10351 = vrot.lane.b32.xlu0 %v10328, 24
    %v10352 = vpop.permute.xlu0 %10351
    %v10355 = vsel %vm257, %v9796, %v10334
    %v10356 = vsel %vm257, %v9872, %v10336
    %v10357 = vsel %vm1586, %v10355, %v10342
    %v10358 = vsel %vm1586, %v10356, %v10344
    %v10359 = vsel %vm1589, %v10357, %v10350
    %v10360 = vsel %vm1589, %v10358, %v10352
    %v10361 = vld [vmem:[#allocation5 + $0x280] sm:$0xff]
    %v10362 = vld [vmem:[#allocation5 + $0x288] sm:$0xff]
    %v10363 = vld [vmem:[#allocation5 + $0x290] sm:$0xff]
    %v10364 = vld [vmem:[#allocation5 + $0x298] sm:$0xff]
    %v10365 = vld [vmem:[#allocation7 + $0x21] sm:$0x1]
    %v10366 = vlaneseq
    %v10367 = vshrl.u32 %v10366, 7
    %v10368 = vsub.s32 0, %v10367
    %v10369 = vrot.slane %v10365, %v10368
    %v10371 = vsel %vm99, %v10359, 0
    %v10374 = vsel %vm99, %v10360, 0
    %10376 = vmatprep.subr.mxu0 0.0
    %10377 = vmatpush1.msra.mxu0 %v10361
    %10378 = vmatprep.subr.mxu0 0.0
    %10379 = vmatpush1.msra.mxu0 %v10362
    %10380 = vmatprep.subr.mxu0 0.0
    %10381 = vmatpush1.msra.mxu0 %v10363
    %10382 = vmatprep.subr.mxu0 0.0
    %10383 = vmatpush1.msra.mxu0 %v10364
    %10384 = vmatprep.subr.mxu0 0.0
    %10385 = vmatpush1.msra.mxu0 0.0
    %10386 = vmatprep.subr.mxu0 0.0
    %10387 = vmatpush1.msra.mxu0 0.0
    %10388 = vmatprep.subr.mxu0 0.0
    %10389 = vmatpush1.msra.mxu0 0.0
    %10390 = vmatprep.subr.mxu0 0.0
    %10391 = vmatpush1.msra.mxu0 0.0
    %10392 = vmatprep.subr.mxu0 0.0
    %10393 = vmatpush1.msra.mxu0 0.0
    %10394 = vmatprep.subr.mxu0 0.0
    %10395 = vmatpush1.msra.mxu0 0.0
    %10396 = vmatprep.subr.mxu0 0.0
    %10397 = vmatpush1.msra.mxu0 0.0
    %10398 = vmatprep.subr.mxu0 0.0
    %10399 = vmatpush1.msra.mxu0 0.0
    %10400 = vmatprep.subr.mxu0 0.0
    %10401 = vmatpush1.msra.mxu0 0.0
    %10402 = vmatprep.subr.mxu0 0.0
    %10403 = vmatpush1.msra.mxu0 0.0
    %10404 = vmatprep.subr.mxu0 0.0
    %10405 = vmatpush1.msra.mxu0 0.0
    %10406 = vmatprep.subr.mxu0 0.0
    %10407 = vmatpush1.msra.mxu0 0.0
    %10408 = vmatprep.subr.mxu0 0.0
    %10409 = vmatpush1.msra.mxu0 0.0
    %10410 = vmatprep.subr.mxu0 0.0
    %10411 = vmatpush1.msra.mxu0 0.0
    %10412 = vmatprep.subr.mxu0 0.0
    %10413 = vmatpush1.msra.mxu0 0.0
    %10414 = vmatprep.subr.mxu0 0.0
    %10415 = vmatpush1.msra.mxu0 0.0
    %10416 = vmatprep.subr.mxu0 0.0
    %10417 = vmatpush1.msra.mxu0 0.0
    %10418 = vmatprep.subr.mxu0 0.0
    %10419 = vmatpush1.msra.mxu0 0.0
    %10420 = vmatprep.subr.mxu0 0.0
    %10421 = vmatpush1.msra.mxu0 0.0
    %10422 = vmatprep.subr.mxu0 0.0
    %10423 = vmatpush1.msra.mxu0 0.0
    %10424 = vmatprep.subr.mxu0 0.0
    %10425 = vmatpush1.msra.mxu0 0.0
    %10426 = vmatprep.subr.mxu0 0.0
    %10427 = vmatpush1.msra.mxu0 0.0
    %10428 = vmatprep.subr.mxu0 0.0
    %10429 = vmatpush1.msra.mxu0 0.0
    %10430 = vmatprep.subr.mxu0 0.0
    %10431 = vmatpush1.msra.mxu0 0.0
    %10432 = vmatprep.subr.mxu0 0.0
    %10433 = vmatpush1.msra.mxu0 0.0
    %10434 = vmatprep.subr.mxu0 0.0
    %10435 = vmatpush1.msra.mxu0 0.0
    %10436 = vmatprep.subr.mxu0 0.0
    %10437 = vmatpush1.msra.mxu0 0.0
    %10438 = vmatprep.subr.mxu0 0.0
    %10439 = vmatpush1.msra.mxu0 0.0
    %10440 = vmatprep.mubr.f32.mxu0 0.0
    %10441 = vmatmul.mubr.f32.gmra.mrb[0].mxu0 %v10371
    %v10442 = vpop.f32.mrb[0].mxu0
    %v10443 = vadd.f32 %v10369, %v10442
    %v10444 = vpop.f32.mrb[0].mxu0
    %10445 = vmatprep.mubr.f32.mxu0 0.0
    %10446 = vmatmul.mubr.f32.gmra.mrb[0].mxu0 %v10374
    %v10447 = vpop.f32.mrb[0].mxu0
    %v10448 = vadd.f32 %v10369, %v10447
    %v10449 = vpop.f32.mrb[0].mxu0
    %10450 = vdwg.mxu0
    %v10451 = vadd.f32 %v8788, %v10443
    %v10452 = vadd.f32 %v8789, %v10448
    %v10453 = vsel %vm99, %v10451, 0.0
    %10454 = vadd.xlane.f32.xlu0 %v10453
    %v10455 = vpop.xlane.xlu0 %10454
    %v10456 = vsel %vm99, %v10452, 0.0
    %10457 = vadd.xlane.f32.xlu0 %v10456
    %v10458 = vpop.xlane.xlu0 %10457
    %v10459 = vmul.f32 %v10455, %v106
    %v10460 = vmul.f32 %v10458, %v106
    %v10461 = vsub.f32 %v10451, %v10459
    %v10462 = vsub.f32 %v10452, %v10460
    %v10463 = vmul.f32 %v10461, %v10461
    %v10464 = vmul.f32 %v10462, %v10462
    %v10465 = vsel %vm99, %v10463, 0.0
    %10466 = vadd.xlane.f32.xlu0 %v10465
    %v10467 = vpop.xlane.xlu0 %10466
    %v10468 = vsel %vm99, %v10464, 0.0
    %10469 = vadd.xlane.f32.xlu0 %v10468
    %v10470 = vpop.xlane.xlu0 %10469
    %v10471 = vmul.f32 %v10467, %v106
    %v10472 = vmul.f32 %v10470, %v106
    %v10473 = vadd.f32 %v10471, 1e-06
    %v10474 = vadd.f32 %v10472, 1e-06
    %v10475 = vrsqrt.pop %v10473
    %v10476 = vrsqrt.pop %v10474
    %v10477 = vmul.f32 %v10461, %v10475
    %v10478 = vmul.f32 %v10462, %v10476
    %v10479 = vld [vmem:[#allocation7 + $0x26] sm:$0x1]
    %v10480 = vlaneseq
    %v10481 = vshrl.u32 %v10480, 7
    %v10482 = vsub.s32 0, %v10481
    %v10483 = vrot.slane %v10479, %v10482
    %v10484 = vmul.f32 %v10477, %v10483
    %v10485 = vmul.f32 %v10478, %v10483
    %v10486 = vld [vmem:[#allocation7 + $0x27] sm:$0x1]
    %v10487 = vlaneseq
    %v10488 = vshrl.u32 %v10487, 7
    %v10489 = vsub.s32 0, %v10488
    %v10490 = vrot.slane %v10486, %v10489
    %v10491 = vadd.f32 %v10484, %v10490
    %v10492 = vadd.f32 %v10485, %v10490
    %v10493 = vld [vmem:[#allocation5 + $0x2a0] sm:$0xff]
    %v10494 = vld [vmem:[#allocation5 + $0x2a8] sm:$0xff]
    %v10495 = vld [vmem:[#allocation5 + $0x2b0] sm:$0xff]
    %v10496 = vld [vmem:[#allocation5 + $0x2b8] sm:$0xff]
    %v10497 = vld [vmem:[#allocation7 + $0x24] sm:$0x1]
    %v10498 = vlaneseq
    %v10499 = vshrl.u32 %v10498, 7
    %v10500 = vsub.s32 0, %v10499
    %v10501 = vrot.slane %v10497, %v10500
    %v10503 = vsel %vm99, %v10491, 0
    %v10506 = vsel %vm99, %v10492, 0
    %10508 = vmatprep.subr.mxu0 0.0
    %10509 = vmatpush1.msra.mxu0 %v10493
    %10510 = vmatprep.subr.mxu0 0.0
    %10511 = vmatpush1.msra.mxu0 %v10494
    %10512 = vmatprep.subr.mxu0 0.0
    %10513 = vmatpush1.msra.mxu0 %v10495
    %10514 = vmatprep.subr.mxu0 0.0
    %10515 = vmatpush1.msra.mxu0 %v10496
    %10516 = vmatprep.subr.mxu0 0.0
    %10517 = vmatpush1.msra.mxu0 0.0
    %10518 = vmatprep.subr.mxu0 0.0
    %10519 = vmatpush1.msra.mxu0 0.0
    %10520 = vmatprep.subr.mxu0 0.0
    %10521 = vmatpush1.msra.mxu0 0.0
    %10522 = vmatprep.subr.mxu0 0.0
    %10523 = vmatpush1.msra.mxu0 0.0
    %10524 = vmatprep.subr.mxu0 0.0
    %10525 = vmatpush1.msra.mxu0 0.0
    %10526 = vmatprep.subr.mxu0 0.0
    %10527 = vmatpush1.msra.mxu0 0.0
    %10528 = vmatprep.subr.mxu0 0.0
    %10529 = vmatpush1.msra.mxu0 0.0
    %10530 = vmatprep.subr.mxu0 0.0
    %10531 = vmatpush1.msra.mxu0 0.0
    %10532 = vmatprep.subr.mxu0 0.0
    %10533 = vmatpush1.msra.mxu0 0.0
    %10534 = vmatprep.subr.mxu0 0.0
    %10535 = vmatpush1.msra.mxu0 0.0
    %10536 = vmatprep.subr.mxu0 0.0
    %10537 = vmatpush1.msra.mxu0 0.0
    %10538 = vmatprep.subr.mxu0 0.0
    %10539 = vmatpush1.msra.mxu0 0.0
    %10540 = vmatprep.subr.mxu0 0.0
    %10541 = vmatpush1.msra.mxu0 0.0
    %10542 = vmatprep.subr.mxu0 0.0
    %10543 = vmatpush1.msra.mxu0 0.0
    %10544 = vmatprep.subr.mxu0 0.0
    %10545 = vmatpush1.msra.mxu0 0.0
    %10546 = vmatprep.subr.mxu0 0.0
    %10547 = vmatpush1.msra.mxu0 0.0
    %10548 = vmatprep.subr.mxu0 0.0
    %10549 = vmatpush1.msra.mxu0 0.0
    %10550 = vmatprep.subr.mxu0 0.0
    %10551 = vmatpush1.msra.mxu0 0.0
    %10552 = vmatprep.subr.mxu0 0.0
    %10553 = vmatpush1.msra.mxu0 0.0
    %10554 = vmatprep.subr.mxu0 0.0
    %10555 = vmatpush1.msra.mxu0 0.0
    %10556 = vmatprep.subr.mxu0 0.0
    %10557 = vmatpush1.msra.mxu0 0.0
    %10558 = vmatprep.subr.mxu0 0.0
    %10559 = vmatpush1.msra.mxu0 0.0
    %10560 = vmatprep.subr.mxu0 0.0
    %10561 = vmatpush1.msra.mxu0 0.0
    %10562 = vmatprep.subr.mxu0 0.0
    %10563 = vmatpush1.msra.mxu0 0.0
    %10564 = vmatprep.subr.mxu0 0.0
    %10565 = vmatpush1.msra.mxu0 0.0
    %10566 = vmatprep.subr.mxu0 0.0
    %10567 = vmatpush1.msra.mxu0 0.0
    %10568 = vmatprep.subr.mxu0 0.0
    %10569 = vmatpush1.msra.mxu0 0.0
    %10570 = vmatprep.subr.mxu0 0.0
    %10571 = vmatpush1.msra.mxu0 0.0
    %10572 = vmatprep.mubr.f32.mxu0 0.0
    %10573 = vmatmul.mubr.f32.gmra.mrb[0].mxu0 %v10503
    %v10574 = vpop.f32.mrb[0].mxu0
    %v10575 = vadd.f32 %v10501, %v10574
    %v10576 = vpop.f32.mrb[0].mxu0
    %10577 = vmatprep.mubr.f32.mxu0 0.0
    %10578 = vmatmul.mubr.f32.gmra.mrb[0].mxu0 %v10506
    %v10579 = vpop.f32.mrb[0].mxu0
    %v10580 = vadd.f32 %v10501, %v10579
    %v10581 = vpop.f32.mrb[0].mxu0
    %10582 = vdwg.mxu0
    %v10583 = vmax.f32 %v10575, 0.0
    %v10584 = vmax.f32 %v10580, 0.0
    %v10585 = vld [vmem:[#allocation5 + $0x2c0] sm:$0xff]
    %v10586 = vld [vmem:[#allocation5 + $0x2c8] sm:$0xff]
    %v10587 = vld [vmem:[#allocation5 + $0x2d0] sm:$0xff]
    %v10588 = vld [vmem:[#allocation5 + $0x2d8] sm:$0xff]
    %v10589 = vld [vmem:[#allocation5 + $0x2e0] sm:$0xff]
    %v10590 = vld [vmem:[#allocation5 + $0x2e8] sm:$0xff]
    %v10591 = vld [vmem:[#allocation5 + $0x2f0] sm:$0xff]
    %v10592 = vld [vmem:[#allocation5 + $0x2f8] sm:$0xff]
    %v10593 = vld [vmem:[#allocation7 + $0x25] sm:$0x1]
    %v10594 = vlaneseq
    %v10595 = vshrl.u32 %v10594, 7
    %v10596 = vsub.s32 0, %v10595
    %v10597 = vrot.slane %v10593, %v10596
    %v10599 = vsel %vm1829, %v10583, 0
    %v10602 = vsel %vm1829, %v10584, 0
    %10604 = vmatprep.subr.mxu0 0.0
    %10605 = vmatpush1.msra.mxu0 %v10585
    %10606 = vmatprep.subr.mxu0 0.0
    %10607 = vmatpush1.msra.mxu0 %v10586
    %10608 = vmatprep.subr.mxu0 0.0
    %10609 = vmatpush1.msra.mxu0 %v10587
    %10610 = vmatprep.subr.mxu0 0.0
    %10611 = vmatpush1.msra.mxu0 %v10588
    %10612 = vmatprep.subr.mxu0 0.0
    %10613 = vmatpush1.msra.mxu0 %v10589
    %10614 = vmatprep.subr.mxu0 0.0
    %10615 = vmatpush1.msra.mxu0 %v10590
    %10616 = vmatprep.subr.mxu0 0.0
    %10617 = vmatpush1.msra.mxu0 %v10591
    %10618 = vmatprep.subr.mxu0 0.0
    %10619 = vmatpush1.msra.mxu0 %v10592
    %10620 = vmatprep.subr.mxu0 0.0
    %10621 = vmatpush1.msra.mxu0 0.0
    %10622 = vmatprep.subr.mxu0 0.0
    %10623 = vmatpush1.msra.mxu0 0.0
    %10624 = vmatprep.subr.mxu0 0.0
    %10625 = vmatpush1.msra.mxu0 0.0
    %10626 = vmatprep.subr.mxu0 0.0
    %10627 = vmatpush1.msra.mxu0 0.0
    %10628 = vmatprep.subr.mxu0 0.0
    %10629 = vmatpush1.msra.mxu0 0.0
    %10630 = vmatprep.subr.mxu0 0.0
    %10631 = vmatpush1.msra.mxu0 0.0
    %10632 = vmatprep.subr.mxu0 0.0
    %10633 = vmatpush1.msra.mxu0 0.0
    %10634 = vmatprep.subr.mxu0 0.0
    %10635 = vmatpush1.msra.mxu0 0.0
    %10636 = vmatprep.subr.mxu0 0.0
    %10637 = vmatpush1.msra.mxu0 0.0
    %10638 = vmatprep.subr.mxu0 0.0
    %10639 = vmatpush1.msra.mxu0 0.0
    %10640 = vmatprep.subr.mxu0 0.0
    %10641 = vmatpush1.msra.mxu0 0.0
    %10642 = vmatprep.subr.mxu0 0.0
    %10643 = vmatpush1.msra.mxu0 0.0
    %10644 = vmatprep.subr.mxu0 0.0
    %10645 = vmatpush1.msra.mxu0 0.0
    %10646 = vmatprep.subr.mxu0 0.0
    %10647 = vmatpush1.msra.mxu0 0.0
    %10648 = vmatprep.subr.mxu0 0.0
    %10649 = vmatpush1.msra.mxu0 0.0
    %10650 = vmatprep.subr.mxu0 0.0
    %10651 = vmatpush1.msra.mxu0 0.0
    %10652 = vmatprep.subr.mxu0 0.0
    %10653 = vmatpush1.msra.mxu0 0.0
    %10654 = vmatprep.subr.mxu0 0.0
    %10655 = vmatpush1.msra.mxu0 0.0
    %10656 = vmatprep.subr.mxu0 0.0
    %10657 = vmatpush1.msra.mxu0 0.0
    %10658 = vmatprep.subr.mxu0 0.0
    %10659 = vmatpush1.msra.mxu0 0.0
    %10660 = vmatprep.subr.mxu0 0.0
    %10661 = vmatpush1.msra.mxu0 0.0
    %10662 = vmatprep.subr.mxu0 0.0
    %10663 = vmatpush1.msra.mxu0 0.0
    %10664 = vmatprep.subr.mxu0 0.0
    %10665 = vmatpush1.msra.mxu0 0.0
    %10666 = vmatprep.subr.mxu0 0.0
    %10667 = vmatpush1.msra.mxu0 0.0
    %10668 = vmatprep.mubr.f32.mxu0 0.0
    %10669 = vmatmul.mubr.f32.gmra.mrb[0].mxu0 %v10599
    %v10670 = vpop.f32.mrb[0].mxu0
    %v10671 = vadd.f32 %v10597, %v10670
    %v10672 = vpop.f32.mrb[0].mxu0
    %10673 = vmatprep.mubr.f32.mxu0 0.0
    %10674 = vmatmul.mubr.f32.gmra.mrb[0].mxu0 %v10602
    %v10675 = vpop.f32.mrb[0].mxu0
    %v10676 = vadd.f32 %v10597, %v10675
    %v10677 = vpop.f32.mrb[0].mxu0
    %10678 = vdwg.mxu0
    %v10679 = vadd.f32 %v10451, %v10671
    %v10680 = vadd.f32 %v10452, %v10676
    %v10681 = vsel %vm99, %v10679, 0.0
    %10682 = vadd.xlane.f32.xlu0 %v10681
    %v10683 = vpop.xlane.xlu0 %10682
    %v10684 = vsel %vm99, %v10680, 0.0
    %10685 = vadd.xlane.f32.xlu0 %v10684
    %v10686 = vpop.xlane.xlu0 %10685
    %v10687 = vmul.f32 %v10683, %v106
    %v10688 = vmul.f32 %v10686, %v106
    %v10689 = vsub.f32 %v10679, %v10687
    %v10690 = vsub.f32 %v10680, %v10688
    %v10691 = vmul.f32 %v10689, %v10689
    %v10692 = vmul.f32 %v10690, %v10690
    %v10693 = vsel %vm99, %v10691, 0.0
    %10694 = vadd.xlane.f32.xlu0 %v10693
    %v10695 = vpop.xlane.xlu0 %10694
    %v10696 = vsel %vm99, %v10692, 0.0
    %10697 = vadd.xlane.f32.xlu0 %v10696
    %v10698 = vpop.xlane.xlu0 %10697
    %v10699 = vmul.f32 %v10695, %v106
    %v10700 = vmul.f32 %v10698, %v106
    %v10701 = vadd.f32 %v10699, 1e-06
    %v10702 = vadd.f32 %v10700, 1e-06
    %v10703 = vrsqrt.pop %v10701
    %v10704 = vrsqrt.pop %v10702
    %v10705 = vmul.f32 %v10689, %v10703
    %v10706 = vmul.f32 %v10690, %v10704
    %v10707 = vld [vmem:[#allocation7 + $0x2a] sm:$0x1]
    %v10708 = vlaneseq
    %v10709 = vshrl.u32 %v10708, 7
    %v10710 = vsub.s32 0, %v10709
    %v10711 = vrot.slane %v10707, %v10710
    %v10712 = vmul.f32 %v10705, %v10711
    %v10713 = vmul.f32 %v10706, %v10711
    %v10714 = vld [vmem:[#allocation7 + $0x2b] sm:$0x1]
    %v10715 = vlaneseq
    %v10716 = vshrl.u32 %v10715, 7
    %v10717 = vsub.s32 0, %v10716
    %v10718 = vrot.slane %v10714, %v10717
    %v10719 = vadd.f32 %v10712, %v10718
    %v10720 = vadd.f32 %v10713, %v10718
    %10721 = vst.msk [vmem:[#allocation8] sm:$0xff] %vm99, %v10719
    %10722 = vst.msk [vmem:[#allocation8 + $0x8] sm:$0xff] %vm99, %v10720
    // Predicated region
    $region38: #{encoder_decoder_forward.1} parent=1 // pred_check
      _
    $region39: #{encoder_decoder_forward.1} parent=1 // pred_check_branch
      %10724 = sbr.rel (0) target = $region41
    $region40: #{encoder_decoder_forward.1} parent=1 // pred_region
      %s10726 = ssub.s32 256, 256
      %10727 = vsyncadd [#allocation4], %s10726
      %s10728 = sshll.u32 [#allocation8], 4
      %s10729 = int_to_ptr.vmem [resolvable:$true] %s10728
      %10734 = dma.vmem_to_hbm [thread:$0]  %s10729, 256, %s6, [#allocation4], 128, 128, 8
    $region41: #{encoder_decoder_forward.1} parent=1 // pred_fallthru
      _
    // Predicated region
    $region42: #{encoder_decoder_forward.1} parent=1 // pred_check
      _
    $region43: #{encoder_decoder_forward.1} parent=1 // pred_check_branch
      %10736 = sbr.rel (0) target = $region45
    $region44: #{encoder_decoder_forward.1} parent=1 // pred_region
      %10737 = dma.done [#allocation4], 256
    $region45: #{encoder_decoder_forward.1} parent=1 // pred_fallthru
      _
    %10738 = vsyncpa [#allocation3], 1
    %10739 = vsyncpa [#allocation6], 1
    %10740 = vsyncpa [#allocation4], 1

</llo_original>
